<compile_context>
chip_gen: v6e
topology: v6e:2x2x1
jax: 0.10.0
libtpu: 0.0.40
codegen_flags: <defaults>
</compile_context>

<pallas_src>
import jax
import jax.numpy as jnp
from jax import lax
from jax.experimental import pallas as pl
from jax.experimental.pallas import tpu as pltpu

_EPS = 1e-5


def _basic_block_kernel(x_ref, w1_ref, w2_ref, g1_ref, b1_ref, g2_ref, b2_ref,
                        out_ref, pad_ref, col_ref):
    N, H, W, C = x_ref.shape
    NHW = N * H * W
    inv_cnt = 1.0 / NHW

    # Zero the single reused padded scratch once; only the interior is ever
    # overwritten below, so the 1-pixel halo ring stays zero for both convs.
    pad_ref[...] = jnp.zeros(pad_ref.shape, pad_ref.dtype)

    def conv3x3(w_ref):
        # im2col: gather the 9 shifted windows into the reused (NHW, 9*C)
        # scratch, then ONE MXU contraction with K = 9*C.  Operands cast to
        # bf16 once per conv; accumulation in f32.
        for dy in range(3):
            for dx in range(3):
                t = dy * 3 + dx
                col_ref[:, t * C:(t + 1) * C] = (
                    pad_ref[:, dy:dy + H, dx:dx + W, :].reshape(NHW, C))
        patches = col_ref[...].astype(jnp.bfloat16)          # one cast per conv
        return lax.dot_general(
            patches, w_ref[...],
            dimension_numbers=(((1,), (0,)), ((), ())),
            preferred_element_type=jnp.float32)               # (NHW, C) f32

    def bn_affine(y, g_ref, b_ref):
        # Training-mode BN in a single pass over the flat (NHW, C) tensor:
        # batch mean + biased batch variance; affine folded into one
        # per-channel scale/shift FMA.  All stats math in f32.
        mean = jnp.sum(y, axis=0, keepdims=True) * inv_cnt            # (1, C)
        msq = jnp.sum(y * y, axis=0, keepdims=True) * inv_cnt         # (1, C)
        var = jnp.maximum(msq - mean * mean, 0.0)
        scale = g_ref[...] * lax.rsqrt(var + _EPS)                    # (1, C)
        shift = b_ref[...] - mean * scale                             # (1, C)
        return y * scale + shift

    # conv1 -> bn1 -> relu
    pad_ref[:, 1:H + 1, 1:W + 1, :] = x_ref[...]
    mid = jnp.maximum(bn_affine(conv3x3(w1_ref), g1_ref, b1_ref), 0.0)

    # conv2 -> bn2 -> add identity -> relu  (identity re-read from the single x input)
    pad_ref[:, 1:H + 1, 1:W + 1, :] = mid.reshape(N, H, W, C)
    out = bn_affine(conv3x3(w2_ref), g2_ref, b2_ref)
    out = out + x_ref[...].reshape(NHW, C)
    out_ref[...] = jnp.maximum(out, 0.0).reshape(N, H, W, C).astype(out_ref.dtype)


@jax.jit
def basic_block(x_nchw, w1, w2, g1, b1, g2, b2):
    """x_nchw: (N, C, H, W) f32; conv weights HWIO (3, 3, Cin, Cout);
    BN affine params broadcastable to (1, 1, 1, C).  Returns (N, C, H, W)."""
    x = jnp.transpose(x_nchw, (0, 2, 3, 1))                   # NHWC
    N, H, W, Cin = x.shape
    Cout = w1.shape[-1]
    assert Cin == Cout, "identity path requires inplanes == planes (downsample=None)"
    C = Cout
    NHW = N * H * W

    # Flatten HWIO weights to (9*Cin, Cout); row order (dy, dx, cin) matches
    # the im2col column order built inside the kernel.
    w1m = w1.reshape(9 * C, C).astype(jnp.bfloat16)
    w2m = w2.reshape(9 * C, C).astype(jnp.bfloat16)

    vmem = pl.BlockSpec(memory_space=pltpu.MemorySpace.VMEM)

    # VMEM budget sized from the actual working set (with 2x headroom), capped
    # at 64 MiB so it also fits the v7x per-core physical VMEM.
    f32b, bf16b = 4, 2
    io_bytes = 2 * NHW * C * f32b + 2 * 9 * C * C * bf16b + 4 * C * f32b
    scratch_bytes = N * (H + 2) * (W + 2) * C * f32b + NHW * 9 * C * f32b
    vmem_limit = int(min(64 * 2**20, max(32 * 2**20, 2 * (io_bytes + scratch_bytes))))

    cost = pl.CostEstimate(
        flops=2 * (2 * NHW * 9 * C * C),          # two 3x3 convs as matmuls
        transcendentals=2 * C,                    # per-channel rsqrt in each BN
        bytes_accessed=io_bytes)

    out_nhwc = pl.pallas_call(
        _basic_block_kernel,
        out_shape=jax.ShapeDtypeStruct((N, H, W, C), x.dtype),
        in_specs=[vmem] * 7,
        out_specs=vmem,
        scratch_shapes=[pltpu.VMEM((N, H + 2, W + 2, C), jnp.float32),   # reused padded buffer
                        pltpu.VMEM((NHW, 9 * C), jnp.float32)],          # reused im2col buffer
        compiler_params=pltpu.CompilerParams(vmem_limit_bytes=vmem_limit),
        cost_estimate=cost,
    )(x, w1m, w2m,
      g1.reshape(1, C), b1.reshape(1, C),
      g2.reshape(1, C), b2.reshape(1, C))

    return jnp.transpose(out_nhwc, (0, 3, 1, 2))              # back to NCHW


def _reference(x_nchw, w1, w2, g1, b1, g2, b2, matmul_dtype=jnp.float32):
    """Pure-JAX reference of the same forward pass.  matmul_dtype=bfloat16
    mirrors the kernel's MXU input precision (f32 accumulation either way)."""
    x = jnp.transpose(x_nchw, (0, 2, 3, 1))

    def conv(a, w):
        return lax.conv_general_dilated(
            a.astype(matmul_dtype), w.astype(matmul_dtype), (1, 1),
            ((1, 1), (1, 1)), dimension_numbers=("NHWC", "HWIO", "NHWC"),
            preferred_element_type=jnp.float32)

    def bn(a, g, b):
        m = jnp.mean(a, axis=(0, 1, 2), keepdims=True)
        v = jnp.mean(jnp.square(a - m), axis=(0, 1, 2), keepdims=True)
        return (a - m) * lax.rsqrt(v + _EPS) * g + b

    out = jnp.maximum(bn(conv(x, w1), g1, b1), 0.0)
    out = bn(conv(out, w2), g2, b2) + x
    out = jnp.maximum(out, 0.0)
    return jnp.transpose(out, (0, 3, 1, 2))


if __name__ == "__main__":
    inplanes = planes = 4
    N, H, W = 2, 16, 16

    key = jax.random.PRNGKey(0)
    ks = jax.random.split(key, 7)
    # conv weights in HWIO (3, 3, Cin, Cout); bias-free as in conv3x3.
    w1 = 0.1 * jax.random.normal(ks[0], (3, 3, inplanes, planes), jnp.float32)
    w2 = 0.1 * jax.random.normal(ks[1], (3, 3, planes, planes), jnp.float32)
    # BN affine params (gamma, beta), broadcastable over NHWC.
    g1 = 1.0 + 0.1 * jax.random.normal(ks[2], (1, 1, 1, planes), jnp.float32)
    b1 = 0.1 * jax.random.normal(ks[3], (1, 1, 1, planes), jnp.float32)
    g2 = 1.0 + 0.1 * jax.random.normal(ks[4], (1, 1, 1, planes), jnp.float32)
    b2 = 0.1 * jax.random.normal(ks[5], (1, 1, 1, planes), jnp.float32)

    x = jax.random.normal(ks[6], (N, inplanes, H, W), jnp.float32)  # NCHW

    out = jax.block_until_ready(basic_block(x, w1, w2, g1, b1, g2, b2))
    assert out.shape == (N, planes, H, W)

    # Matched-precision reference (bf16 MXU inputs, f32 accumulation).
    ref_match = jax.block_until_ready(
        _reference(x, w1, w2, g1, b1, g2, b2, matmul_dtype=jnp.bfloat16))
    assert jnp.allclose(out, ref_match, atol=1e-2, rtol=1e-2), \
        "mismatch vs matched-precision JAX reference"

    # Full-f32 reference: loose check (bounds the bf16 matmul approximation).
    ref_f32 = jax.block_until_ready(
        _reference(x, w1, w2, g1, b1, g2, b2, matmul_dtype=jnp.float32))
    assert jnp.allclose(out, ref_f32, atol=6e-2, rtol=6e-2), \
        "mismatch vs f32 JAX reference"

    print("KERNEL_OK")
</pallas_src>

<mosaic_0001>
module attributes {stable_mosaic.version = 11 : i64} {
  func.func @_basic_block_kernel(%arg0: memref<2x16x16x4xf32, #tpu.memory_space<vmem>>, %arg1: memref<36x4xbf16, #tpu.memory_space<vmem>>, %arg2: memref<36x4xbf16, #tpu.memory_space<vmem>>, %arg3: memref<1x4xf32, #tpu.memory_space<vmem>>, %arg4: memref<1x4xf32, #tpu.memory_space<vmem>>, %arg5: memref<1x4xf32, #tpu.memory_space<vmem>>, %arg6: memref<1x4xf32, #tpu.memory_space<vmem>>, %arg7: memref<2x16x16x4xf32, #tpu.memory_space<vmem>>, %arg8: memref<2x18x18x4xf32, #tpu.memory_space<vmem>>, %arg9: memref<512x36xf32, #tpu.memory_space<vmem>>) attributes {dimension_semantics = [], scalar_prefetch = 0 : i64, scratch_operands = 2 : i64, tpu.core_type = #tpu.core_type<tc>} {
    %cst = arith.constant 0.000000e+00 : f32
    %0 = vector.broadcast %cst : f32 to vector<2x18x18x4xf32>
    %c0 = arith.constant 0 : index
    %c0_0 = arith.constant 0 : index
    %c0_1 = arith.constant 0 : index
    %c0_2 = arith.constant 0 : index
    %1 = vector.load %arg8[%c0, %c0_0, %c0_1, %c0_2] : memref<2x18x18x4xf32, #tpu.memory_space<vmem>>, vector<2x18x18x4xf32>
    tpu.vector_store %arg8[%c0, %c0_0, %c0_1, %c0_2], %0 {strides = array<i32>} : memref<2x18x18x4xf32, #tpu.memory_space<vmem>>, vector<2x18x18x4xf32>,
    %c0_3 = arith.constant 0 : index
    %c0_4 = arith.constant 0 : index
    %c0_5 = arith.constant 0 : index
    %c0_6 = arith.constant 0 : index
    %2 = vector.load %arg0[%c0_3, %c0_4, %c0_5, %c0_6] : memref<2x16x16x4xf32, #tpu.memory_space<vmem>>, vector<2x16x16x4xf32>
    %c0_7 = arith.constant 0 : index
    %c1 = arith.constant 1 : index
    %c1_8 = arith.constant 1 : index
    %c0_9 = arith.constant 0 : index
    %3 = vector.load %arg8[%c0_7, %c1, %c1_8, %c0_9] : memref<2x18x18x4xf32, #tpu.memory_space<vmem>>, vector<2x16x16x4xf32>
    tpu.vector_store %arg8[%c0_7, %c1, %c1_8, %c0_9], %2 {strides = array<i32>} : memref<2x18x18x4xf32, #tpu.memory_space<vmem>>, vector<2x16x16x4xf32>,
    %c0_10 = arith.constant 0 : index
    %c0_11 = arith.constant 0 : index
    %c0_12 = arith.constant 0 : index
    %c0_13 = arith.constant 0 : index
    %4 = vector.load %arg8[%c0_10, %c0_11, %c0_12, %c0_13] : memref<2x18x18x4xf32, #tpu.memory_space<vmem>>, vector<2x16x16x4xf32>
    %5 = vector.shape_cast %4 : vector<2x16x16x4xf32> to vector<512x4xf32>
    %c0_14 = arith.constant 0 : index
    %c0_15 = arith.constant 0 : index
    %6 = vector.load %arg9[%c0_14, %c0_15] : memref<512x36xf32, #tpu.memory_space<vmem>>, vector<512x4xf32>
    tpu.vector_store %arg9[%c0_14, %c0_15], %5 {strides = array<i32>} : memref<512x36xf32, #tpu.memory_space<vmem>>, vector<512x4xf32>,
    %c0_16 = arith.constant 0 : index
    %c0_17 = arith.constant 0 : index
    %c1_18 = arith.constant 1 : index
    %c0_19 = arith.constant 0 : index
    %7 = vector.load %arg8[%c0_16, %c0_17, %c1_18, %c0_19] : memref<2x18x18x4xf32, #tpu.memory_space<vmem>>, vector<2x16x16x4xf32>
    %8 = vector.shape_cast %7 : vector<2x16x16x4xf32> to vector<512x4xf32>
    %c0_20 = arith.constant 0 : index
    %c4 = arith.constant 4 : index
    %9 = vector.load %arg9[%c0_20, %c4] : memref<512x36xf32, #tpu.memory_space<vmem>>, vector<512x4xf32>
    tpu.vector_store %arg9[%c0_20, %c4], %8 {strides = array<i32>} : memref<512x36xf32, #tpu.memory_space<vmem>>, vector<512x4xf32>,
    %c0_21 = arith.constant 0 : index
    %c0_22 = arith.constant 0 : index
    %c2 = arith.constant 2 : index
    %c0_23 = arith.constant 0 : index
    %10 = vector.load %arg8[%c0_21, %c0_22, %c2, %c0_23] : memref<2x18x18x4xf32, #tpu.memory_space<vmem>>, vector<2x16x16x4xf32>
    %11 = vector.shape_cast %10 : vector<2x16x16x4xf32> to vector<512x4xf32>
    %c0_24 = arith.constant 0 : index
    %c8 = arith.constant 8 : index
    %12 = vector.load %arg9[%c0_24, %c8] : memref<512x36xf32, #tpu.memory_space<vmem>>, vector<512x4xf32>
    tpu.vector_store %arg9[%c0_24, %c8], %11 {strides = array<i32>} : memref<512x36xf32, #tpu.memory_space<vmem>>, vector<512x4xf32>,
    %c0_25 = arith.constant 0 : index
    %c1_26 = arith.constant 1 : index
    %c0_27 = arith.constant 0 : index
    %c0_28 = arith.constant 0 : index
    %13 = vector.load %arg8[%c0_25, %c1_26, %c0_27, %c0_28] : memref<2x18x18x4xf32, #tpu.memory_space<vmem>>, vector<2x16x16x4xf32>
    %14 = vector.shape_cast %13 : vector<2x16x16x4xf32> to vector<512x4xf32>
    %c0_29 = arith.constant 0 : index
    %c12 = arith.constant 12 : index
    %15 = vector.load %arg9[%c0_29, %c12] : memref<512x36xf32, #tpu.memory_space<vmem>>, vector<512x4xf32>
    tpu.vector_store %arg9[%c0_29, %c12], %14 {strides = array<i32>} : memref<512x36xf32, #tpu.memory_space<vmem>>, vector<512x4xf32>,
    %c0_30 = arith.constant 0 : index
    %c1_31 = arith.constant 1 : index
    %c1_32 = arith.constant 1 : index
    %c0_33 = arith.constant 0 : index
    %16 = vector.load %arg8[%c0_30, %c1_31, %c1_32, %c0_33] : memref<2x18x18x4xf32, #tpu.memory_space<vmem>>, vector<2x16x16x4xf32>
    %17 = vector.shape_cast %16 : vector<2x16x16x4xf32> to vector<512x4xf32>
    %c0_34 = arith.constant 0 : index
    %c16 = arith.constant 16 : index
    %18 = vector.load %arg9[%c0_34, %c16] : memref<512x36xf32, #tpu.memory_space<vmem>>, vector<512x4xf32>
    tpu.vector_store %arg9[%c0_34, %c16], %17 {strides = array<i32>} : memref<512x36xf32, #tpu.memory_space<vmem>>, vector<512x4xf32>,
    %c0_35 = arith.constant 0 : index
    %c1_36 = arith.constant 1 : index
    %c2_37 = arith.constant 2 : index
    %c0_38 = arith.constant 0 : index
    %19 = vector.load %arg8[%c0_35, %c1_36, %c2_37, %c0_38] : memref<2x18x18x4xf32, #tpu.memory_space<vmem>>, vector<2x16x16x4xf32>
    %20 = vector.shape_cast %19 : vector<2x16x16x4xf32> to vector<512x4xf32>
    %c0_39 = arith.constant 0 : index
    %c20 = arith.constant 20 : index
    %21 = vector.load %arg9[%c0_39, %c20] : memref<512x36xf32, #tpu.memory_space<vmem>>, vector<512x4xf32>
    tpu.vector_store %arg9[%c0_39, %c20], %20 {strides = array<i32>} : memref<512x36xf32, #tpu.memory_space<vmem>>, vector<512x4xf32>,
    %c0_40 = arith.constant 0 : index
    %c2_41 = arith.constant 2 : index
    %c0_42 = arith.constant 0 : index
    %c0_43 = arith.constant 0 : index
    %22 = vector.load %arg8[%c0_40, %c2_41, %c0_42, %c0_43] : memref<2x18x18x4xf32, #tpu.memory_space<vmem>>, vector<2x16x16x4xf32>
    %23 = vector.shape_cast %22 : vector<2x16x16x4xf32> to vector<512x4xf32>
    %c0_44 = arith.constant 0 : index
    %c24 = arith.constant 24 : index
    %24 = vector.load %arg9[%c0_44, %c24] : memref<512x36xf32, #tpu.memory_space<vmem>>, vector<512x4xf32>
    tpu.vector_store %arg9[%c0_44, %c24], %23 {strides = array<i32>} : memref<512x36xf32, #tpu.memory_space<vmem>>, vector<512x4xf32>,
    %c0_45 = arith.constant 0 : index
    %c2_46 = arith.constant 2 : index
    %c1_47 = arith.constant 1 : index
    %c0_48 = arith.constant 0 : index
    %25 = vector.load %arg8[%c0_45, %c2_46, %c1_47, %c0_48] : memref<2x18x18x4xf32, #tpu.memory_space<vmem>>, vector<2x16x16x4xf32>
    %26 = vector.shape_cast %25 : vector<2x16x16x4xf32> to vector<512x4xf32>
    %c0_49 = arith.constant 0 : index
    %c28 = arith.constant 28 : index
    %27 = vector.load %arg9[%c0_49, %c28] : memref<512x36xf32, #tpu.memory_space<vmem>>, vector<512x4xf32>
    tpu.vector_store %arg9[%c0_49, %c28], %26 {strides = array<i32>} : memref<512x36xf32, #tpu.memory_space<vmem>>, vector<512x4xf32>,
    %c0_50 = arith.constant 0 : index
    %c2_51 = arith.constant 2 : index
    %c2_52 = arith.constant 2 : index
    %c0_53 = arith.constant 0 : index
    %28 = vector.load %arg8[%c0_50, %c2_51, %c2_52, %c0_53] : memref<2x18x18x4xf32, #tpu.memory_space<vmem>>, vector<2x16x16x4xf32>
    %29 = vector.shape_cast %28 : vector<2x16x16x4xf32> to vector<512x4xf32>
    %c0_54 = arith.constant 0 : index
    %c32 = arith.constant 32 : index
    %30 = vector.load %arg9[%c0_54, %c32] : memref<512x36xf32, #tpu.memory_space<vmem>>, vector<512x4xf32>
    tpu.vector_store %arg9[%c0_54, %c32], %29 {strides = array<i32>} : memref<512x36xf32, #tpu.memory_space<vmem>>, vector<512x4xf32>,
    %c0_55 = arith.constant 0 : index
    %c0_56 = arith.constant 0 : index
    %31 = vector.load %arg9[%c0_55, %c0_56] : memref<512x36xf32, #tpu.memory_space<vmem>>, vector<512x36xf32>
    %32 = arith.truncf %31 : vector<512x36xf32> to vector<512x36xbf16>
    %c0_57 = arith.constant 0 : index
    %c0_58 = arith.constant 0 : index
    %33 = vector.load %arg1[%c0_57, %c0_58] : memref<36x4xbf16, #tpu.memory_space<vmem>>, vector<36x4xbf16>
    %cst_59 = arith.constant dense<0.000000e+00> : vector<512x4xf32>
    %34 = tpu.matmul %32, %33, %cst_59 {dimension_numbers = #tpu.dot_dimension_numbers<[1], [0], [0], [1], [0, 0, 1, 1], [], []>} : vector<512x36xbf16>, vector<36x4xbf16>, vector<512x4xf32> -> vector<512x4xf32>
    %cst_60 = arith.constant dense<0.000000e+00> : vector<4xf32>
    %35 = vector.multi_reduction <add>, %34, %cst_60 [0] : vector<512x4xf32> to vector<4xf32>
    %36 = vector.shape_cast %35 : vector<4xf32> to vector<1x4xf32>
    %cst_61 = arith.constant 0.001953125 : f32
    %37 = vector.broadcast %cst_61 : f32 to vector<1x4xf32>
    %38 = arith.mulf %36, %37 : vector<1x4xf32>
    %39 = arith.mulf %34, %34 : vector<512x4xf32>
    %cst_62 = arith.constant dense<0.000000e+00> : vector<4xf32>
    %40 = vector.multi_reduction <add>, %39, %cst_62 [0] : vector<512x4xf32> to vector<4xf32>
    %41 = vector.shape_cast %40 : vector<4xf32> to vector<1x4xf32>
    %cst_63 = arith.constant 0.001953125 : f32
    %42 = vector.broadcast %cst_63 : f32 to vector<1x4xf32>
    %43 = arith.mulf %41, %42 : vector<1x4xf32>
    %44 = arith.mulf %38, %38 : vector<1x4xf32>
    %45 = arith.subf %43, %44 : vector<1x4xf32>
    %cst_64 = arith.constant 0.000000e+00 : f32
    %46 = vector.broadcast %cst_64 : f32 to vector<1x4xf32>
    %47 = arith.maximumf %45, %46 : vector<1x4xf32>
    %c0_65 = arith.constant 0 : index
    %c0_66 = arith.constant 0 : index
    %48 = vector.load %arg3[%c0_65, %c0_66] : memref<1x4xf32, #tpu.memory_space<vmem>>, vector<1x4xf32>
    %cst_67 = arith.constant 9.99999974E-6 : f32
    %49 = vector.broadcast %cst_67 : f32 to vector<1x4xf32>
    %50 = arith.addf %47, %49 : vector<1x4xf32>
    %51 = math.rsqrt %50 : vector<1x4xf32>
    %52 = arith.mulf %48, %51 : vector<1x4xf32>
    %c0_68 = arith.constant 0 : index
    %c0_69 = arith.constant 0 : index
    %53 = vector.load %arg4[%c0_68, %c0_69] : memref<1x4xf32, #tpu.memory_space<vmem>>, vector<1x4xf32>
    %54 = arith.mulf %38, %52 : vector<1x4xf32>
    %55 = arith.subf %53, %54 : vector<1x4xf32>
    %56 = vector.broadcast %52 : vector<1x4xf32> to vector<512x4xf32>
    %57 = arith.mulf %34, %56 : vector<512x4xf32>
    %58 = vector.broadcast %55 : vector<1x4xf32> to vector<512x4xf32>
    %59 = arith.addf %57, %58 : vector<512x4xf32>
    %cst_70 = arith.constant 0.000000e+00 : f32
    %60 = vector.broadcast %cst_70 : f32 to vector<512x4xf32>
    %61 = arith.maximumf %59, %60 : vector<512x4xf32>
    %62 = vector.shape_cast %61 : vector<512x4xf32> to vector<2x16x16x4xf32>
    %c0_71 = arith.constant 0 : index
    %c1_72 = arith.constant 1 : index
    %c1_73 = arith.constant 1 : index
    %c0_74 = arith.constant 0 : index
    %63 = vector.load %arg8[%c0_71, %c1_72, %c1_73, %c0_74] : memref<2x18x18x4xf32, #tpu.memory_space<vmem>>, vector<2x16x16x4xf32>
    tpu.vector_store %arg8[%c0_71, %c1_72, %c1_73, %c0_74], %62 {strides = array<i32>} : memref<2x18x18x4xf32, #tpu.memory_space<vmem>>, vector<2x16x16x4xf32>,
    %c0_75 = arith.constant 0 : index
    %c0_76 = arith.constant 0 : index
    %c0_77 = arith.constant 0 : index
    %c0_78 = arith.constant 0 : index
    %64 = vector.load %arg8[%c0_75, %c0_76, %c0_77, %c0_78] : memref<2x18x18x4xf32, #tpu.memory_space<vmem>>, vector<2x16x16x4xf32>
    %65 = vector.shape_cast %64 : vector<2x16x16x4xf32> to vector<512x4xf32>
    %c0_79 = arith.constant 0 : index
    %c0_80 = arith.constant 0 : index
    %66 = vector.load %arg9[%c0_79, %c0_80] : memref<512x36xf32, #tpu.memory_space<vmem>>, vector<512x4xf32>
    tpu.vector_store %arg9[%c0_79, %c0_80], %65 {strides = array<i32>} : memref<512x36xf32, #tpu.memory_space<vmem>>, vector<512x4xf32>,
    %c0_81 = arith.constant 0 : index
    %c0_82 = arith.constant 0 : index
    %c1_83 = arith.constant 1 : index
    %c0_84 = arith.constant 0 : index
    %67 = vector.load %arg8[%c0_81, %c0_82, %c1_83, %c0_84] : memref<2x18x18x4xf32, #tpu.memory_space<vmem>>, vector<2x16x16x4xf32>
    %68 = vector.shape_cast %67 : vector<2x16x16x4xf32> to vector<512x4xf32>
    %c0_85 = arith.constant 0 : index
    %c4_86 = arith.constant 4 : index
    %69 = vector.load %arg9[%c0_85, %c4_86] : memref<512x36xf32, #tpu.memory_space<vmem>>, vector<512x4xf32>
    tpu.vector_store %arg9[%c0_85, %c4_86], %68 {strides = array<i32>} : memref<512x36xf32, #tpu.memory_space<vmem>>, vector<512x4xf32>,
    %c0_87 = arith.constant 0 : index
    %c0_88 = arith.constant 0 : index
    %c2_89 = arith.constant 2 : index
    %c0_90 = arith.constant 0 : index
    %70 = vector.load %arg8[%c0_87, %c0_88, %c2_89, %c0_90] : memref<2x18x18x4xf32, #tpu.memory_space<vmem>>, vector<2x16x16x4xf32>
    %71 = vector.shape_cast %70 : vector<2x16x16x4xf32> to vector<512x4xf32>
    %c0_91 = arith.constant 0 : index
    %c8_92 = arith.constant 8 : index
    %72 = vector.load %arg9[%c0_91, %c8_92] : memref<512x36xf32, #tpu.memory_space<vmem>>, vector<512x4xf32>
    tpu.vector_store %arg9[%c0_91, %c8_92], %71 {strides = array<i32>} : memref<512x36xf32, #tpu.memory_space<vmem>>, vector<512x4xf32>,
    %c0_93 = arith.constant 0 : index
    %c1_94 = arith.constant 1 : index
    %c0_95 = arith.constant 0 : index
    %c0_96 = arith.constant 0 : index
    %73 = vector.load %arg8[%c0_93, %c1_94, %c0_95, %c0_96] : memref<2x18x18x4xf32, #tpu.memory_space<vmem>>, vector<2x16x16x4xf32>
    %74 = vector.shape_cast %73 : vector<2x16x16x4xf32> to vector<512x4xf32>
    %c0_97 = arith.constant 0 : index
    %c12_98 = arith.constant 12 : index
    %75 = vector.load %arg9[%c0_97, %c12_98] : memref<512x36xf32, #tpu.memory_space<vmem>>, vector<512x4xf32>
    tpu.vector_store %arg9[%c0_97, %c12_98], %74 {strides = array<i32>} : memref<512x36xf32, #tpu.memory_space<vmem>>, vector<512x4xf32>,
    %c0_99 = arith.constant 0 : index
    %c1_100 = arith.constant 1 : index
    %c1_101 = arith.constant 1 : index
    %c0_102 = arith.constant 0 : index
    %76 = vector.load %arg8[%c0_99, %c1_100, %c1_101, %c0_102] : memref<2x18x18x4xf32, #tpu.memory_space<vmem>>, vector<2x16x16x4xf32>
    %77 = vector.shape_cast %76 : vector<2x16x16x4xf32> to vector<512x4xf32>
    %c0_103 = arith.constant 0 : index
    %c16_104 = arith.constant 16 : index
    %78 = vector.load %arg9[%c0_103, %c16_104] : memref<512x36xf32, #tpu.memory_space<vmem>>, vector<512x4xf32>
    tpu.vector_store %arg9[%c0_103, %c16_104], %77 {strides = array<i32>} : memref<512x36xf32, #tpu.memory_space<vmem>>, vector<512x4xf32>,
    %c0_105 = arith.constant 0 : index
    %c1_106 = arith.constant 1 : index
    %c2_107 = arith.constant 2 : index
    %c0_108 = arith.constant 0 : index
    %79 = vector.load %arg8[%c0_105, %c1_106, %c2_107, %c0_108] : memref<2x18x18x4xf32, #tpu.memory_space<vmem>>, vector<2x16x16x4xf32>
    %80 = vector.shape_cast %79 : vector<2x16x16x4xf32> to vector<512x4xf32>
    %c0_109 = arith.constant 0 : index
    %c20_110 = arith.constant 20 : index
    %81 = vector.load %arg9[%c0_109, %c20_110] : memref<512x36xf32, #tpu.memory_space<vmem>>, vector<512x4xf32>
    tpu.vector_store %arg9[%c0_109, %c20_110], %80 {strides = array<i32>} : memref<512x36xf32, #tpu.memory_space<vmem>>, vector<512x4xf32>,
    %c0_111 = arith.constant 0 : index
    %c2_112 = arith.constant 2 : index
    %c0_113 = arith.constant 0 : index
    %c0_114 = arith.constant 0 : index
    %82 = vector.load %arg8[%c0_111, %c2_112, %c0_113, %c0_114] : memref<2x18x18x4xf32, #tpu.memory_space<vmem>>, vector<2x16x16x4xf32>
    %83 = vector.shape_cast %82 : vector<2x16x16x4xf32> to vector<512x4xf32>
    %c0_115 = arith.constant 0 : index
    %c24_116 = arith.constant 24 : index
    %84 = vector.load %arg9[%c0_115, %c24_116] : memref<512x36xf32, #tpu.memory_space<vmem>>, vector<512x4xf32>
    tpu.vector_store %arg9[%c0_115, %c24_116], %83 {strides = array<i32>} : memref<512x36xf32, #tpu.memory_space<vmem>>, vector<512x4xf32>,
    %c0_117 = arith.constant 0 : index
    %c2_118 = arith.constant 2 : index
    %c1_119 = arith.constant 1 : index
    %c0_120 = arith.constant 0 : index
    %85 = vector.load %arg8[%c0_117, %c2_118, %c1_119, %c0_120] : memref<2x18x18x4xf32, #tpu.memory_space<vmem>>, vector<2x16x16x4xf32>
    %86 = vector.shape_cast %85 : vector<2x16x16x4xf32> to vector<512x4xf32>
    %c0_121 = arith.constant 0 : index
    %c28_122 = arith.constant 28 : index
    %87 = vector.load %arg9[%c0_121, %c28_122] : memref<512x36xf32, #tpu.memory_space<vmem>>, vector<512x4xf32>
    tpu.vector_store %arg9[%c0_121, %c28_122], %86 {strides = array<i32>} : memref<512x36xf32, #tpu.memory_space<vmem>>, vector<512x4xf32>,
    %c0_123 = arith.constant 0 : index
    %c2_124 = arith.constant 2 : index
    %c2_125 = arith.constant 2 : index
    %c0_126 = arith.constant 0 : index
    %88 = vector.load %arg8[%c0_123, %c2_124, %c2_125, %c0_126] : memref<2x18x18x4xf32, #tpu.memory_space<vmem>>, vector<2x16x16x4xf32>
    %89 = vector.shape_cast %88 : vector<2x16x16x4xf32> to vector<512x4xf32>
    %c0_127 = arith.constant 0 : index
    %c32_128 = arith.constant 32 : index
    %90 = vector.load %arg9[%c0_127, %c32_128] : memref<512x36xf32, #tpu.memory_space<vmem>>, vector<512x4xf32>
    tpu.vector_store %arg9[%c0_127, %c32_128], %89 {strides = array<i32>} : memref<512x36xf32, #tpu.memory_space<vmem>>, vector<512x4xf32>,
    %c0_129 = arith.constant 0 : index
    %c0_130 = arith.constant 0 : index
    %91 = vector.load %arg9[%c0_129, %c0_130] : memref<512x36xf32, #tpu.memory_space<vmem>>, vector<512x36xf32>
    %92 = arith.truncf %91 : vector<512x36xf32> to vector<512x36xbf16>
    %c0_131 = arith.constant 0 : index
    %c0_132 = arith.constant 0 : index
    %93 = vector.load %arg2[%c0_131, %c0_132] : memref<36x4xbf16, #tpu.memory_space<vmem>>, vector<36x4xbf16>
    %cst_133 = arith.constant dense<0.000000e+00> : vector<512x4xf32>
    %94 = tpu.matmul %92, %93, %cst_133 {dimension_numbers = #tpu.dot_dimension_numbers<[1], [0], [0], [1], [0, 0, 1, 1], [], []>} : vector<512x36xbf16>, vector<36x4xbf16>, vector<512x4xf32> -> vector<512x4xf32>
    %cst_134 = arith.constant dense<0.000000e+00> : vector<4xf32>
    %95 = vector.multi_reduction <add>, %94, %cst_134 [0] : vector<512x4xf32> to vector<4xf32>
    %96 = vector.shape_cast %95 : vector<4xf32> to vector<1x4xf32>
    %cst_135 = arith.constant 0.001953125 : f32
    %97 = vector.broadcast %cst_135 : f32 to vector<1x4xf32>
    %98 = arith.mulf %96, %97 : vector<1x4xf32>
    %99 = arith.mulf %94, %94 : vector<512x4xf32>
    %cst_136 = arith.constant dense<0.000000e+00> : vector<4xf32>
    %100 = vector.multi_reduction <add>, %99, %cst_136 [0] : vector<512x4xf32> to vector<4xf32>
    %101 = vector.shape_cast %100 : vector<4xf32> to vector<1x4xf32>
    %cst_137 = arith.constant 0.001953125 : f32
    %102 = vector.broadcast %cst_137 : f32 to vector<1x4xf32>
    %103 = arith.mulf %101, %102 : vector<1x4xf32>
    %104 = arith.mulf %98, %98 : vector<1x4xf32>
    %105 = arith.subf %103, %104 : vector<1x4xf32>
    %cst_138 = arith.constant 0.000000e+00 : f32
    %106 = vector.broadcast %cst_138 : f32 to vector<1x4xf32>
    %107 = arith.maximumf %105, %106 : vector<1x4xf32>
    %c0_139 = arith.constant 0 : index
    %c0_140 = arith.constant 0 : index
    %108 = vector.load %arg5[%c0_139, %c0_140] : memref<1x4xf32, #tpu.memory_space<vmem>>, vector<1x4xf32>
    %cst_141 = arith.constant 9.99999974E-6 : f32
    %109 = vector.broadcast %cst_141 : f32 to vector<1x4xf32>
    %110 = arith.addf %107, %109 : vector<1x4xf32>
    %111 = math.rsqrt %110 : vector<1x4xf32>
    %112 = arith.mulf %108, %111 : vector<1x4xf32>
    %c0_142 = arith.constant 0 : index
    %c0_143 = arith.constant 0 : index
    %113 = vector.load %arg6[%c0_142, %c0_143] : memref<1x4xf32, #tpu.memory_space<vmem>>, vector<1x4xf32>
    %114 = arith.mulf %98, %112 : vector<1x4xf32>
    %115 = arith.subf %113, %114 : vector<1x4xf32>
    %116 = vector.broadcast %112 : vector<1x4xf32> to vector<512x4xf32>
    %117 = arith.mulf %94, %116 : vector<512x4xf32>
    %118 = vector.broadcast %115 : vector<1x4xf32> to vector<512x4xf32>
    %119 = arith.addf %117, %118 : vector<512x4xf32>
    %c0_144 = arith.constant 0 : index
    %c0_145 = arith.constant 0 : index
    %c0_146 = arith.constant 0 : index
    %c0_147 = arith.constant 0 : index
    %120 = vector.load %arg0[%c0_144, %c0_145, %c0_146, %c0_147] : memref<2x16x16x4xf32, #tpu.memory_space<vmem>>, vector<2x16x16x4xf32>
    %121 = vector.shape_cast %120 : vector<2x16x16x4xf32> to vector<512x4xf32>
    %122 = arith.addf %119, %121 : vector<512x4xf32>
    %cst_148 = arith.constant 0.000000e+00 : f32
    %123 = vector.broadcast %cst_148 : f32 to vector<512x4xf32>
    %124 = arith.maximumf %122, %123 : vector<512x4xf32>
    %125 = vector.shape_cast %124 : vector<512x4xf32> to vector<2x16x16x4xf32>
    %c0_149 = arith.constant 0 : index
    %c0_150 = arith.constant 0 : index
    %c0_151 = arith.constant 0 : index
    %c0_152 = arith.constant 0 : index
    %126 = vector.load %arg7[%c0_149, %c0_150, %c0_151, %c0_152] : memref<2x16x16x4xf32, #tpu.memory_space<vmem>>, vector<2x16x16x4xf32>
    tpu.vector_store %arg7[%c0_149, %c0_150, %c0_151, %c0_152], %125 {strides = array<i32>} : memref<2x16x16x4xf32, #tpu.memory_space<vmem>>, vector<2x16x16x4xf32>,
    return
  }
}

</mosaic_0001>

<llo_original>
// kernel: basic_block.1
$region0: #{basic_block.1}
  #allocation0 [shape = 'u32[]', space=smem, size = 0x4, offset = 0x4, fixed_abs, tag = 'smem constant byte address 0x4 - core index']
  #allocation1 [shape = 'u32[144,128]{1,0:T(1,128)}', space=vmem, size = 0x12000, scoped, tag = 'internal scratch']
  #allocation2 [shape = 'f32[2,18,18,4]{3,2,1,0:T(8,128)}', space=vmem, size = 0x6c000, scoped, tag = 'scratch operand']
  #allocation3 [shape = 'f32[512,36]{1,0:T(8,128)}', space=vmem, size = 0x40000, scoped, tag = 'scratch operand']
  %s0 = inlined_call_operand.vmem [shape: f32[2,16,16,4], index: 0, kind: input, shape index: {}]
  %s1 = inlined_call_operand.vmem [shape: bf16[36,4], index: 1, kind: input, shape index: {}]
  %s2 = inlined_call_operand.vmem [shape: bf16[36,4], index: 2, kind: input, shape index: {}]
  %s3 = inlined_call_operand.vmem [shape: f32[1,4], index: 3, kind: input, shape index: {}]
  %s4 = inlined_call_operand.vmem [shape: f32[1,4], index: 4, kind: input, shape index: {}]
  %s5 = inlined_call_operand.vmem [shape: f32[1,4], index: 5, kind: input, shape index: {}]
  %s6 = inlined_call_operand.vmem [shape: f32[1,4], index: 6, kind: input, shape index: {}]
  %s7 = inlined_call_operand.vmem [shape: f32[2,16,16,4], index: 7, kind: output, shape index: {}]
  %s8 = sld [smem:[#allocation0]]
  $region38: #{basic_block.1} parent=0
    _
  %s10 = ssub.s32 1, %s8
  %s11 = scalar_select 0, %s10, %s8
  // Predicated region
  $region2: #{basic_block.1} parent=0 // pred_check
    _
  $region3: #{basic_block.1} parent=0 // pred_check_branch
    %13 = sbr.rel (0) target = $region5
  $region4: #{basic_block.1} parent=0 // pred_region
    _
  $region5: #{basic_block.1} parent=0 // pred_fallthru
    _
  // Predicated region
  $region6: #{basic_block.1} parent=0 // pred_check
    _
  $region7: #{basic_block.1} parent=0 // pred_check_branch
    %15 = sbr.rel (0) target = $region9
  $region8: #{basic_block.1} parent=0 // pred_region
    _
  $region9: #{basic_block.1} parent=0 // pred_fallthru
    _
  // Predicated region
  $region10: #{basic_block.1} parent=0 // pred_check
    _
  $region11: #{basic_block.1} parent=0 // pred_check_branch
    %17 = sbr.rel (0) target = $region13
  $region12: #{basic_block.1} parent=0 // pred_region
    _
  $region13: #{basic_block.1} parent=0 // pred_fallthru
    _
  // Predicated region
  $region14: #{basic_block.1} parent=0 // pred_check
    _
  $region15: #{basic_block.1} parent=0 // pred_check_branch
    %19 = sbr.rel (0) target = $region17
  $region16: #{basic_block.1} parent=0 // pred_region
    _
  $region17: #{basic_block.1} parent=0 // pred_fallthru
    _
  // Predicated region
  $region18: #{basic_block.1} parent=0 // pred_check
    _
  $region19: #{basic_block.1} parent=0 // pred_check_branch
    %21 = sbr.rel (0) target = $region21
  $region20: #{basic_block.1} parent=0 // pred_region
    _
  $region21: #{basic_block.1} parent=0 // pred_fallthru
    _
  // Predicated region
  $region22: #{basic_block.1} parent=0 // pred_check
    _
  $region23: #{basic_block.1} parent=0 // pred_check_branch
    %23 = sbr.rel (0) target = $region25
  $region24: #{basic_block.1} parent=0 // pred_region
    _
  $region25: #{basic_block.1} parent=0 // pred_fallthru
    _
  // Predicated region
  $region26: #{basic_block.1} parent=0 // pred_check
    _
  $region27: #{basic_block.1} parent=0 // pred_check_branch
    %25 = sbr.rel (0) target = $region29
  $region28: #{basic_block.1} parent=0 // pred_region
    _
  $region29: #{basic_block.1} parent=0 // pred_fallthru
    _
  %vm27 = vcmask 31744
  %28 = vst.msk [vmem:[#allocation2] sm:$0xff] %vm27, 0.0
  %29 = vst.msk [vmem:[#allocation2 + $0x8] sm:$0xff] %vm27, 0.0
  %vm30 = vcmask 25600
  %31 = vst.msk [vmem:[#allocation2 + $0x10] sm:$0x3] %vm30, 0.0
  %32 = vst.msk [vmem:[#allocation2 + $0x18] sm:$0xff] %vm27, 0.0
  %33 = vst.msk [vmem:[#allocation2 + $0x20] sm:$0xff] %vm27, 0.0
  %34 = vst.msk [vmem:[#allocation2 + $0x28] sm:$0x3] %vm30, 0.0
  %35 = vst.msk [vmem:[#allocation2 + $0x30] sm:$0xff] %vm27, 0.0
  %36 = vst.msk [vmem:[#allocation2 + $0x38] sm:$0xff] %vm27, 0.0
  %37 = vst.msk [vmem:[#allocation2 + $0x40] sm:$0x3] %vm30, 0.0
  %38 = vst.msk [vmem:[#allocation2 + $0x48] sm:$0xff] %vm27, 0.0
  %39 = vst.msk [vmem:[#allocation2 + $0x50] sm:$0xff] %vm27, 0.0
  %40 = vst.msk [vmem:[#allocation2 + $0x58] sm:$0x3] %vm30, 0.0
  %41 = vst.msk [vmem:[#allocation2 + $0x60] sm:$0xff] %vm27, 0.0
  %42 = vst.msk [vmem:[#allocation2 + $0x68] sm:$0xff] %vm27, 0.0
  %43 = vst.msk [vmem:[#allocation2 + $0x70] sm:$0x3] %vm30, 0.0
  %44 = vst.msk [vmem:[#allocation2 + $0x78] sm:$0xff] %vm27, 0.0
  %45 = vst.msk [vmem:[#allocation2 + $0x80] sm:$0xff] %vm27, 0.0
  %46 = vst.msk [vmem:[#allocation2 + $0x88] sm:$0x3] %vm30, 0.0
  %47 = vst.msk [vmem:[#allocation2 + $0x90] sm:$0xff] %vm27, 0.0
  %48 = vst.msk [vmem:[#allocation2 + $0x98] sm:$0xff] %vm27, 0.0
  %49 = vst.msk [vmem:[#allocation2 + $0xa0] sm:$0x3] %vm30, 0.0
  %50 = vst.msk [vmem:[#allocation2 + $0xa8] sm:$0xff] %vm27, 0.0
  %51 = vst.msk [vmem:[#allocation2 + $0xb0] sm:$0xff] %vm27, 0.0
  %52 = vst.msk [vmem:[#allocation2 + $0xb8] sm:$0x3] %vm30, 0.0
  %53 = vst.msk [vmem:[#allocation2 + $0xc0] sm:$0xff] %vm27, 0.0
  %54 = vst.msk [vmem:[#allocation2 + $0xc8] sm:$0xff] %vm27, 0.0
  %55 = vst.msk [vmem:[#allocation2 + $0xd0] sm:$0x3] %vm30, 0.0
  %56 = vst.msk [vmem:[#allocation2 + $0xd8] sm:$0xff] %vm27, 0.0
  %57 = vst.msk [vmem:[#allocation2 + $0xe0] sm:$0xff] %vm27, 0.0
  %58 = vst.msk [vmem:[#allocation2 + $0xe8] sm:$0x3] %vm30, 0.0
  %59 = vst.msk [vmem:[#allocation2 + $0xf0] sm:$0xff] %vm27, 0.0
  %60 = vst.msk [vmem:[#allocation2 + $0xf8] sm:$0xff] %vm27, 0.0
  %61 = vst.msk [vmem:[#allocation2 + $0x100] sm:$0x3] %vm30, 0.0
  %62 = vst.msk [vmem:[#allocation2 + $0x108] sm:$0xff] %vm27, 0.0
  %63 = vst.msk [vmem:[#allocation2 + $0x110] sm:$0xff] %vm27, 0.0
  %64 = vst.msk [vmem:[#allocation2 + $0x118] sm:$0x3] %vm30, 0.0
  %65 = vst.msk [vmem:[#allocation2 + $0x120] sm:$0xff] %vm27, 0.0
  %66 = vst.msk [vmem:[#allocation2 + $0x128] sm:$0xff] %vm27, 0.0
  %67 = vst.msk [vmem:[#allocation2 + $0x130] sm:$0x3] %vm30, 0.0
  %68 = vst.msk [vmem:[#allocation2 + $0x138] sm:$0xff] %vm27, 0.0
  %69 = vst.msk [vmem:[#allocation2 + $0x140] sm:$0xff] %vm27, 0.0
  %70 = vst.msk [vmem:[#allocation2 + $0x148] sm:$0x3] %vm30, 0.0
  %71 = vst.msk [vmem:[#allocation2 + $0x150] sm:$0xff] %vm27, 0.0
  %72 = vst.msk [vmem:[#allocation2 + $0x158] sm:$0xff] %vm27, 0.0
  %73 = vst.msk [vmem:[#allocation2 + $0x160] sm:$0x3] %vm30, 0.0
  %74 = vst.msk [vmem:[#allocation2 + $0x168] sm:$0xff] %vm27, 0.0
  %75 = vst.msk [vmem:[#allocation2 + $0x170] sm:$0xff] %vm27, 0.0
  %76 = vst.msk [vmem:[#allocation2 + $0x178] sm:$0x3] %vm30, 0.0
  %77 = vst.msk [vmem:[#allocation2 + $0x180] sm:$0xff] %vm27, 0.0
  %78 = vst.msk [vmem:[#allocation2 + $0x188] sm:$0xff] %vm27, 0.0
  %79 = vst.msk [vmem:[#allocation2 + $0x190] sm:$0x3] %vm30, 0.0
  %80 = vst.msk [vmem:[#allocation2 + $0x198] sm:$0xff] %vm27, 0.0
  %81 = vst.msk [vmem:[#allocation2 + $0x1a0] sm:$0xff] %vm27, 0.0
  %82 = vst.msk [vmem:[#allocation2 + $0x1a8] sm:$0x3] %vm30, 0.0
  %83 = vst.msk [vmem:[#allocation2 + $0x1b0] sm:$0xff] %vm27, 0.0
  %84 = vst.msk [vmem:[#allocation2 + $0x1b8] sm:$0xff] %vm27, 0.0
  %85 = vst.msk [vmem:[#allocation2 + $0x1c0] sm:$0x3] %vm30, 0.0
  %86 = vst.msk [vmem:[#allocation2 + $0x1c8] sm:$0xff] %vm27, 0.0
  %87 = vst.msk [vmem:[#allocation2 + $0x1d0] sm:$0xff] %vm27, 0.0
  %88 = vst.msk [vmem:[#allocation2 + $0x1d8] sm:$0x3] %vm30, 0.0
  %89 = vst.msk [vmem:[#allocation2 + $0x1e0] sm:$0xff] %vm27, 0.0
  %90 = vst.msk [vmem:[#allocation2 + $0x1e8] sm:$0xff] %vm27, 0.0
  %91 = vst.msk [vmem:[#allocation2 + $0x1f0] sm:$0x3] %vm30, 0.0
  %92 = vst.msk [vmem:[#allocation2 + $0x1f8] sm:$0xff] %vm27, 0.0
  %93 = vst.msk [vmem:[#allocation2 + $0x200] sm:$0xff] %vm27, 0.0
  %94 = vst.msk [vmem:[#allocation2 + $0x208] sm:$0x3] %vm30, 0.0
  %95 = vst.msk [vmem:[#allocation2 + $0x210] sm:$0xff] %vm27, 0.0
  %96 = vst.msk [vmem:[#allocation2 + $0x218] sm:$0xff] %vm27, 0.0
  %97 = vst.msk [vmem:[#allocation2 + $0x220] sm:$0x3] %vm30, 0.0
  %98 = vst.msk [vmem:[#allocation2 + $0x228] sm:$0xff] %vm27, 0.0
  %99 = vst.msk [vmem:[#allocation2 + $0x230] sm:$0xff] %vm27, 0.0
  %100 = vst.msk [vmem:[#allocation2 + $0x238] sm:$0x3] %vm30, 0.0
  %101 = vst.msk [vmem:[#allocation2 + $0x240] sm:$0xff] %vm27, 0.0
  %102 = vst.msk [vmem:[#allocation2 + $0x248] sm:$0xff] %vm27, 0.0
  %103 = vst.msk [vmem:[#allocation2 + $0x250] sm:$0x3] %vm30, 0.0
  %104 = vst.msk [vmem:[#allocation2 + $0x258] sm:$0xff] %vm27, 0.0
  %105 = vst.msk [vmem:[#allocation2 + $0x260] sm:$0xff] %vm27, 0.0
  %106 = vst.msk [vmem:[#allocation2 + $0x268] sm:$0x3] %vm30, 0.0
  %107 = vst.msk [vmem:[#allocation2 + $0x270] sm:$0xff] %vm27, 0.0
  %108 = vst.msk [vmem:[#allocation2 + $0x278] sm:$0xff] %vm27, 0.0
  %109 = vst.msk [vmem:[#allocation2 + $0x280] sm:$0x3] %vm30, 0.0
  %110 = vst.msk [vmem:[#allocation2 + $0x288] sm:$0xff] %vm27, 0.0
  %111 = vst.msk [vmem:[#allocation2 + $0x290] sm:$0xff] %vm27, 0.0
  %112 = vst.msk [vmem:[#allocation2 + $0x298] sm:$0x3] %vm30, 0.0
  %113 = vst.msk [vmem:[#allocation2 + $0x2a0] sm:$0xff] %vm27, 0.0
  %114 = vst.msk [vmem:[#allocation2 + $0x2a8] sm:$0xff] %vm27, 0.0
  %115 = vst.msk [vmem:[#allocation2 + $0x2b0] sm:$0x3] %vm30, 0.0
  %116 = vst.msk [vmem:[#allocation2 + $0x2b8] sm:$0xff] %vm27, 0.0
  %117 = vst.msk [vmem:[#allocation2 + $0x2c0] sm:$0xff] %vm27, 0.0
  %118 = vst.msk [vmem:[#allocation2 + $0x2c8] sm:$0x3] %vm30, 0.0
  %119 = vst.msk [vmem:[#allocation2 + $0x2d0] sm:$0xff] %vm27, 0.0
  %120 = vst.msk [vmem:[#allocation2 + $0x2d8] sm:$0xff] %vm27, 0.0
  %121 = vst.msk [vmem:[#allocation2 + $0x2e0] sm:$0x3] %vm30, 0.0
  %122 = vst.msk [vmem:[#allocation2 + $0x2e8] sm:$0xff] %vm27, 0.0
  %123 = vst.msk [vmem:[#allocation2 + $0x2f0] sm:$0xff] %vm27, 0.0
  %124 = vst.msk [vmem:[#allocation2 + $0x2f8] sm:$0x3] %vm30, 0.0
  %125 = vst.msk [vmem:[#allocation2 + $0x300] sm:$0xff] %vm27, 0.0
  %126 = vst.msk [vmem:[#allocation2 + $0x308] sm:$0xff] %vm27, 0.0
  %127 = vst.msk [vmem:[#allocation2 + $0x310] sm:$0x3] %vm30, 0.0
  %128 = vst.msk [vmem:[#allocation2 + $0x318] sm:$0xff] %vm27, 0.0
  %129 = vst.msk [vmem:[#allocation2 + $0x320] sm:$0xff] %vm27, 0.0
  %130 = vst.msk [vmem:[#allocation2 + $0x328] sm:$0x3] %vm30, 0.0
  %131 = vst.msk [vmem:[#allocation2 + $0x330] sm:$0xff] %vm27, 0.0
  %132 = vst.msk [vmem:[#allocation2 + $0x338] sm:$0xff] %vm27, 0.0
  %133 = vst.msk [vmem:[#allocation2 + $0x340] sm:$0x3] %vm30, 0.0
  %134 = vst.msk [vmem:[#allocation2 + $0x348] sm:$0xff] %vm27, 0.0
  %135 = vst.msk [vmem:[#allocation2 + $0x350] sm:$0xff] %vm27, 0.0
  %136 = vst.msk [vmem:[#allocation2 + $0x358] sm:$0x3] %vm30, 0.0
  %v137 = vld [vmem:[%s0] sm:$0xff]
  %v138 = vld [vmem:[%s0 + $0x8] sm:$0xff]
  %v139 = vld [vmem:[%s0 + $0x10] sm:$0xff]
  %v140 = vld [vmem:[%s0 + $0x18] sm:$0xff]
  %v141 = vld [vmem:[%s0 + $0x20] sm:$0xff]
  %v142 = vld [vmem:[%s0 + $0x28] sm:$0xff]
  %v143 = vld [vmem:[%s0 + $0x30] sm:$0xff]
  %v144 = vld [vmem:[%s0 + $0x38] sm:$0xff]
  %v145 = vld [vmem:[%s0 + $0x40] sm:$0xff]
  %v146 = vld [vmem:[%s0 + $0x48] sm:$0xff]
  %v147 = vld [vmem:[%s0 + $0x50] sm:$0xff]
  %v148 = vld [vmem:[%s0 + $0x58] sm:$0xff]
  %v149 = vld [vmem:[%s0 + $0x60] sm:$0xff]
  %v150 = vld [vmem:[%s0 + $0x68] sm:$0xff]
  %v151 = vld [vmem:[%s0 + $0x70] sm:$0xff]
  %v152 = vld [vmem:[%s0 + $0x78] sm:$0xff]
  %v153 = vld [vmem:[%s0 + $0x80] sm:$0xff]
  %v154 = vld [vmem:[%s0 + $0x88] sm:$0xff]
  %v155 = vld [vmem:[%s0 + $0x90] sm:$0xff]
  %v156 = vld [vmem:[%s0 + $0x98] sm:$0xff]
  %v157 = vld [vmem:[%s0 + $0xa0] sm:$0xff]
  %v158 = vld [vmem:[%s0 + $0xa8] sm:$0xff]
  %v159 = vld [vmem:[%s0 + $0xb0] sm:$0xff]
  %v160 = vld [vmem:[%s0 + $0xb8] sm:$0xff]
  %v161 = vld [vmem:[%s0 + $0xc0] sm:$0xff]
  %v162 = vld [vmem:[%s0 + $0xc8] sm:$0xff]
  %v163 = vld [vmem:[%s0 + $0xd0] sm:$0xff]
  %v164 = vld [vmem:[%s0 + $0xd8] sm:$0xff]
  %v165 = vld [vmem:[%s0 + $0xe0] sm:$0xff]
  %v166 = vld [vmem:[%s0 + $0xe8] sm:$0xff]
  %v167 = vld [vmem:[%s0 + $0xf0] sm:$0xff]
  %v168 = vld [vmem:[%s0 + $0xf8] sm:$0xff]
  %v169 = vld [vmem:[%s0 + $0x100] sm:$0xff]
  %v170 = vld [vmem:[%s0 + $0x108] sm:$0xff]
  %v171 = vld [vmem:[%s0 + $0x110] sm:$0xff]
  %v172 = vld [vmem:[%s0 + $0x118] sm:$0xff]
  %v173 = vld [vmem:[%s0 + $0x120] sm:$0xff]
  %v174 = vld [vmem:[%s0 + $0x128] sm:$0xff]
  %v175 = vld [vmem:[%s0 + $0x130] sm:$0xff]
  %v176 = vld [vmem:[%s0 + $0x138] sm:$0xff]
  %v177 = vld [vmem:[%s0 + $0x140] sm:$0xff]
  %v178 = vld [vmem:[%s0 + $0x148] sm:$0xff]
  %v179 = vld [vmem:[%s0 + $0x150] sm:$0xff]
  %v180 = vld [vmem:[%s0 + $0x158] sm:$0xff]
  %v181 = vld [vmem:[%s0 + $0x160] sm:$0xff]
  %v182 = vld [vmem:[%s0 + $0x168] sm:$0xff]
  %v183 = vld [vmem:[%s0 + $0x170] sm:$0xff]
  %v184 = vld [vmem:[%s0 + $0x178] sm:$0xff]
  %v185 = vld [vmem:[%s0 + $0x180] sm:$0xff]
  %v186 = vld [vmem:[%s0 + $0x188] sm:$0xff]
  %v187 = vld [vmem:[%s0 + $0x190] sm:$0xff]
  %v188 = vld [vmem:[%s0 + $0x198] sm:$0xff]
  %v189 = vld [vmem:[%s0 + $0x1a0] sm:$0xff]
  %v190 = vld [vmem:[%s0 + $0x1a8] sm:$0xff]
  %v191 = vld [vmem:[%s0 + $0x1b0] sm:$0xff]
  %v192 = vld [vmem:[%s0 + $0x1b8] sm:$0xff]
  %v193 = vld [vmem:[%s0 + $0x1c0] sm:$0xff]
  %v194 = vld [vmem:[%s0 + $0x1c8] sm:$0xff]
  %v195 = vld [vmem:[%s0 + $0x1d0] sm:$0xff]
  %v196 = vld [vmem:[%s0 + $0x1d8] sm:$0xff]
  %v197 = vld [vmem:[%s0 + $0x1e0] sm:$0xff]
  %v198 = vld [vmem:[%s0 + $0x1e8] sm:$0xff]
  %v199 = vld [vmem:[%s0 + $0x1f0] sm:$0xff]
  %v200 = vld [vmem:[%s0 + $0x1f8] sm:$0xff]
  %s201 = scalar_lea.vmem [#allocation2], 24
  %202 = vst.msk [vmem:[%s201 + $0x1] sm:$0xff] %vm27, %v137
  %203 = vst.msk [vmem:[%s201 + $0x9] sm:$0xff] %vm27, %v138
  %204 = vst.msk [vmem:[%s201 + $0x19] sm:$0xff] %vm27, %v139
  %205 = vst.msk [vmem:[%s201 + $0x21] sm:$0xff] %vm27, %v140
  %206 = vst.msk [vmem:[%s201 + $0x31] sm:$0xff] %vm27, %v141
  %207 = vst.msk [vmem:[%s201 + $0x39] sm:$0xff] %vm27, %v142
  %208 = vst.msk [vmem:[%s201 + $0x49] sm:$0xff] %vm27, %v143
  %209 = vst.msk [vmem:[%s201 + $0x51] sm:$0xff] %vm27, %v144
  %210 = vst.msk [vmem:[%s201 + $0x61] sm:$0xff] %vm27, %v145
  %211 = vst.msk [vmem:[%s201 + $0x69] sm:$0xff] %vm27, %v146
  %212 = vst.msk [vmem:[%s201 + $0x79] sm:$0xff] %vm27, %v147
  %213 = vst.msk [vmem:[%s201 + $0x81] sm:$0xff] %vm27, %v148
  %214 = vst.msk [vmem:[%s201 + $0x91] sm:$0xff] %vm27, %v149
  %215 = vst.msk [vmem:[%s201 + $0x99] sm:$0xff] %vm27, %v150
  %216 = vst.msk [vmem:[%s201 + $0xa9] sm:$0xff] %vm27, %v151
  %217 = vst.msk [vmem:[%s201 + $0xb1] sm:$0xff] %vm27, %v152
  %218 = vst.msk [vmem:[%s201 + $0xc1] sm:$0xff] %vm27, %v153
  %219 = vst.msk [vmem:[%s201 + $0xc9] sm:$0xff] %vm27, %v154
  %220 = vst.msk [vmem:[%s201 + $0xd9] sm:$0xff] %vm27, %v155
  %221 = vst.msk [vmem:[%s201 + $0xe1] sm:$0xff] %vm27, %v156
  %222 = vst.msk [vmem:[%s201 + $0xf1] sm:$0xff] %vm27, %v157
  %223 = vst.msk [vmem:[%s201 + $0xf9] sm:$0xff] %vm27, %v158
  %224 = vst.msk [vmem:[%s201 + $0x109] sm:$0xff] %vm27, %v159
  %225 = vst.msk [vmem:[%s201 + $0x111] sm:$0xff] %vm27, %v160
  %226 = vst.msk [vmem:[%s201 + $0x121] sm:$0xff] %vm27, %v161
  %227 = vst.msk [vmem:[%s201 + $0x129] sm:$0xff] %vm27, %v162
  %228 = vst.msk [vmem:[%s201 + $0x139] sm:$0xff] %vm27, %v163
  %229 = vst.msk [vmem:[%s201 + $0x141] sm:$0xff] %vm27, %v164
  %230 = vst.msk [vmem:[%s201 + $0x151] sm:$0xff] %vm27, %v165
  %231 = vst.msk [vmem:[%s201 + $0x159] sm:$0xff] %vm27, %v166
  %232 = vst.msk [vmem:[%s201 + $0x169] sm:$0xff] %vm27, %v167
  %233 = vst.msk [vmem:[%s201 + $0x171] sm:$0xff] %vm27, %v168
  %234 = vst.msk [vmem:[%s201 + $0x1b1] sm:$0xff] %vm27, %v169
  %235 = vst.msk [vmem:[%s201 + $0x1b9] sm:$0xff] %vm27, %v170
  %236 = vst.msk [vmem:[%s201 + $0x1c9] sm:$0xff] %vm27, %v171
  %237 = vst.msk [vmem:[%s201 + $0x1d1] sm:$0xff] %vm27, %v172
  %238 = vst.msk [vmem:[%s201 + $0x1e1] sm:$0xff] %vm27, %v173
  %239 = vst.msk [vmem:[%s201 + $0x1e9] sm:$0xff] %vm27, %v174
  %240 = vst.msk [vmem:[%s201 + $0x1f9] sm:$0xff] %vm27, %v175
  %241 = vst.msk [vmem:[%s201 + $0x201] sm:$0xff] %vm27, %v176
  %242 = vst.msk [vmem:[%s201 + $0x211] sm:$0xff] %vm27, %v177
  %243 = vst.msk [vmem:[%s201 + $0x219] sm:$0xff] %vm27, %v178
  %244 = vst.msk [vmem:[%s201 + $0x229] sm:$0xff] %vm27, %v179
  %245 = vst.msk [vmem:[%s201 + $0x231] sm:$0xff] %vm27, %v180
  %246 = vst.msk [vmem:[%s201 + $0x241] sm:$0xff] %vm27, %v181
  %247 = vst.msk [vmem:[%s201 + $0x249] sm:$0xff] %vm27, %v182
  %248 = vst.msk [vmem:[%s201 + $0x259] sm:$0xff] %vm27, %v183
  %249 = vst.msk [vmem:[%s201 + $0x261] sm:$0xff] %vm27, %v184
  %250 = vst.msk [vmem:[%s201 + $0x271] sm:$0xff] %vm27, %v185
  %251 = vst.msk [vmem:[%s201 + $0x279] sm:$0xff] %vm27, %v186
  %252 = vst.msk [vmem:[%s201 + $0x289] sm:$0xff] %vm27, %v187
  %253 = vst.msk [vmem:[%s201 + $0x291] sm:$0xff] %vm27, %v188
  %254 = vst.msk [vmem:[%s201 + $0x2a1] sm:$0xff] %vm27, %v189
  %255 = vst.msk [vmem:[%s201 + $0x2a9] sm:$0xff] %vm27, %v190
  %256 = vst.msk [vmem:[%s201 + $0x2b9] sm:$0xff] %vm27, %v191
  %257 = vst.msk [vmem:[%s201 + $0x2c1] sm:$0xff] %vm27, %v192
  %258 = vst.msk [vmem:[%s201 + $0x2d1] sm:$0xff] %vm27, %v193
  %259 = vst.msk [vmem:[%s201 + $0x2d9] sm:$0xff] %vm27, %v194
  %260 = vst.msk [vmem:[%s201 + $0x2e9] sm:$0xff] %vm27, %v195
  %261 = vst.msk [vmem:[%s201 + $0x2f1] sm:$0xff] %vm27, %v196
  %262 = vst.msk [vmem:[%s201 + $0x301] sm:$0xff] %vm27, %v197
  %263 = vst.msk [vmem:[%s201 + $0x309] sm:$0xff] %vm27, %v198
  %264 = vst.msk [vmem:[%s201 + $0x319] sm:$0xff] %vm27, %v199
  %265 = vst.msk [vmem:[%s201 + $0x321] sm:$0xff] %vm27, %v200
  %v266 = vld [vmem:[#allocation2] sm:$0xff]
  %v267 = vld [vmem:[#allocation2 + $0x8] sm:$0xff]
  %v268 = vld [vmem:[#allocation2 + $0x18] sm:$0xff]
  %v269 = vld [vmem:[#allocation2 + $0x20] sm:$0xff]
  %v270 = vld [vmem:[#allocation2 + $0x30] sm:$0xff]
  %v271 = vld [vmem:[#allocation2 + $0x38] sm:$0xff]
  %v272 = vld [vmem:[#allocation2 + $0x48] sm:$0xff]
  %v273 = vld [vmem:[#allocation2 + $0x50] sm:$0xff]
  %v274 = vld [vmem:[#allocation2 + $0x60] sm:$0xff]
  %v275 = vld [vmem:[#allocation2 + $0x68] sm:$0xff]
  %v276 = vld [vmem:[#allocation2 + $0x78] sm:$0xff]
  %v277 = vld [vmem:[#allocation2 + $0x80] sm:$0xff]
  %v278 = vld [vmem:[#allocation2 + $0x90] sm:$0xff]
  %v279 = vld [vmem:[#allocation2 + $0x98] sm:$0xff]
  %v280 = vld [vmem:[#allocation2 + $0xa8] sm:$0xff]
  %v281 = vld [vmem:[#allocation2 + $0xb0] sm:$0xff]
  %v282 = vld [vmem:[#allocation2 + $0xc0] sm:$0xff]
  %v283 = vld [vmem:[#allocation2 + $0xc8] sm:$0xff]
  %v284 = vld [vmem:[#allocation2 + $0xd8] sm:$0xff]
  %v285 = vld [vmem:[#allocation2 + $0xe0] sm:$0xff]
  %v286 = vld [vmem:[#allocation2 + $0xf0] sm:$0xff]
  %v287 = vld [vmem:[#allocation2 + $0xf8] sm:$0xff]
  %v288 = vld [vmem:[#allocation2 + $0x108] sm:$0xff]
  %v289 = vld [vmem:[#allocation2 + $0x110] sm:$0xff]
  %v290 = vld [vmem:[#allocation2 + $0x120] sm:$0xff]
  %v291 = vld [vmem:[#allocation2 + $0x128] sm:$0xff]
  %v292 = vld [vmem:[#allocation2 + $0x138] sm:$0xff]
  %v293 = vld [vmem:[#allocation2 + $0x140] sm:$0xff]
  %v294 = vld [vmem:[#allocation2 + $0x150] sm:$0xff]
  %v295 = vld [vmem:[#allocation2 + $0x158] sm:$0xff]
  %v296 = vld [vmem:[#allocation2 + $0x168] sm:$0xff]
  %v297 = vld [vmem:[#allocation2 + $0x170] sm:$0xff]
  %v298 = vld [vmem:[#allocation2 + $0x1b0] sm:$0xff]
  %v299 = vld [vmem:[#allocation2 + $0x1b8] sm:$0xff]
  %v300 = vld [vmem:[#allocation2 + $0x1c8] sm:$0xff]
  %v301 = vld [vmem:[#allocation2 + $0x1d0] sm:$0xff]
  %v302 = vld [vmem:[#allocation2 + $0x1e0] sm:$0xff]
  %v303 = vld [vmem:[#allocation2 + $0x1e8] sm:$0xff]
  %v304 = vld [vmem:[#allocation2 + $0x1f8] sm:$0xff]
  %v305 = vld [vmem:[#allocation2 + $0x200] sm:$0xff]
  %v306 = vld [vmem:[#allocation2 + $0x210] sm:$0xff]
  %v307 = vld [vmem:[#allocation2 + $0x218] sm:$0xff]
  %v308 = vld [vmem:[#allocation2 + $0x228] sm:$0xff]
  %v309 = vld [vmem:[#allocation2 + $0x230] sm:$0xff]
  %v310 = vld [vmem:[#allocation2 + $0x240] sm:$0xff]
  %v311 = vld [vmem:[#allocation2 + $0x248] sm:$0xff]
  %v312 = vld [vmem:[#allocation2 + $0x258] sm:$0xff]
  %v313 = vld [vmem:[#allocation2 + $0x260] sm:$0xff]
  %v314 = vld [vmem:[#allocation2 + $0x270] sm:$0xff]
  %v315 = vld [vmem:[#allocation2 + $0x278] sm:$0xff]
  %v316 = vld [vmem:[#allocation2 + $0x288] sm:$0xff]
  %v317 = vld [vmem:[#allocation2 + $0x290] sm:$0xff]
  %v318 = vld [vmem:[#allocation2 + $0x2a0] sm:$0xff]
  %v319 = vld [vmem:[#allocation2 + $0x2a8] sm:$0xff]
  %v320 = vld [vmem:[#allocation2 + $0x2b8] sm:$0xff]
  %v321 = vld [vmem:[#allocation2 + $0x2c0] sm:$0xff]
  %v322 = vld [vmem:[#allocation2 + $0x2d0] sm:$0xff]
  %v323 = vld [vmem:[#allocation2 + $0x2d8] sm:$0xff]
  %v324 = vld [vmem:[#allocation2 + $0x2e8] sm:$0xff]
  %v325 = vld [vmem:[#allocation2 + $0x2f0] sm:$0xff]
  %v326 = vld [vmem:[#allocation2 + $0x300] sm:$0xff]
  %v327 = vld [vmem:[#allocation2 + $0x308] sm:$0xff]
  %v328 = vld [vmem:[#allocation2 + $0x318] sm:$0xff]
  %v329 = vld [vmem:[#allocation2 + $0x320] sm:$0xff]
  %330 = vst.msk [vmem:[#allocation3] sm:$0xff] %vm27, %v266
  %331 = vst.msk [vmem:[#allocation3 + $0x8] sm:$0xff] %vm27, %v267
  %332 = vst.msk [vmem:[#allocation3 + $0x10] sm:$0xff] %vm27, %v268
  %333 = vst.msk [vmem:[#allocation3 + $0x18] sm:$0xff] %vm27, %v269
  %334 = vst.msk [vmem:[#allocation3 + $0x20] sm:$0xff] %vm27, %v270
  %335 = vst.msk [vmem:[#allocation3 + $0x28] sm:$0xff] %vm27, %v271
  %336 = vst.msk [vmem:[#allocation3 + $0x30] sm:$0xff] %vm27, %v272
  %337 = vst.msk [vmem:[#allocation3 + $0x38] sm:$0xff] %vm27, %v273
  %338 = vst.msk [vmem:[#allocation3 + $0x40] sm:$0xff] %vm27, %v274
  %339 = vst.msk [vmem:[#allocation3 + $0x48] sm:$0xff] %vm27, %v275
  %340 = vst.msk [vmem:[#allocation3 + $0x50] sm:$0xff] %vm27, %v276
  %341 = vst.msk [vmem:[#allocation3 + $0x58] sm:$0xff] %vm27, %v277
  %342 = vst.msk [vmem:[#allocation3 + $0x60] sm:$0xff] %vm27, %v278
  %343 = vst.msk [vmem:[#allocation3 + $0x68] sm:$0xff] %vm27, %v279
  %344 = vst.msk [vmem:[#allocation3 + $0x70] sm:$0xff] %vm27, %v280
  %345 = vst.msk [vmem:[#allocation3 + $0x78] sm:$0xff] %vm27, %v281
  %346 = vst.msk [vmem:[#allocation3 + $0x80] sm:$0xff] %vm27, %v282
  %347 = vst.msk [vmem:[#allocation3 + $0x88] sm:$0xff] %vm27, %v283
  %348 = vst.msk [vmem:[#allocation3 + $0x90] sm:$0xff] %vm27, %v284
  %349 = vst.msk [vmem:[#allocation3 + $0x98] sm:$0xff] %vm27, %v285
  %350 = vst.msk [vmem:[#allocation3 + $0xa0] sm:$0xff] %vm27, %v286
  %351 = vst.msk [vmem:[#allocation3 + $0xa8] sm:$0xff] %vm27, %v287
  %352 = vst.msk [vmem:[#allocation3 + $0xb0] sm:$0xff] %vm27, %v288
  %353 = vst.msk [vmem:[#allocation3 + $0xb8] sm:$0xff] %vm27, %v289
  %354 = vst.msk [vmem:[#allocation3 + $0xc0] sm:$0xff] %vm27, %v290
  %355 = vst.msk [vmem:[#allocation3 + $0xc8] sm:$0xff] %vm27, %v291
  %356 = vst.msk [vmem:[#allocation3 + $0xd0] sm:$0xff] %vm27, %v292
  %357 = vst.msk [vmem:[#allocation3 + $0xd8] sm:$0xff] %vm27, %v293
  %358 = vst.msk [vmem:[#allocation3 + $0xe0] sm:$0xff] %vm27, %v294
  %359 = vst.msk [vmem:[#allocation3 + $0xe8] sm:$0xff] %vm27, %v295
  %360 = vst.msk [vmem:[#allocation3 + $0xf0] sm:$0xff] %vm27, %v296
  %361 = vst.msk [vmem:[#allocation3 + $0xf8] sm:$0xff] %vm27, %v297
  %362 = vst.msk [vmem:[#allocation3 + $0x100] sm:$0xff] %vm27, %v298
  %363 = vst.msk [vmem:[#allocation3 + $0x108] sm:$0xff] %vm27, %v299
  %364 = vst.msk [vmem:[#allocation3 + $0x110] sm:$0xff] %vm27, %v300
  %365 = vst.msk [vmem:[#allocation3 + $0x118] sm:$0xff] %vm27, %v301
  %366 = vst.msk [vmem:[#allocation3 + $0x120] sm:$0xff] %vm27, %v302
  %367 = vst.msk [vmem:[#allocation3 + $0x128] sm:$0xff] %vm27, %v303
  %368 = vst.msk [vmem:[#allocation3 + $0x130] sm:$0xff] %vm27, %v304
  %369 = vst.msk [vmem:[#allocation3 + $0x138] sm:$0xff] %vm27, %v305
  %370 = vst.msk [vmem:[#allocation3 + $0x140] sm:$0xff] %vm27, %v306
  %371 = vst.msk [vmem:[#allocation3 + $0x148] sm:$0xff] %vm27, %v307
  %372 = vst.msk [vmem:[#allocation3 + $0x150] sm:$0xff] %vm27, %v308
  %373 = vst.msk [vmem:[#allocation3 + $0x158] sm:$0xff] %vm27, %v309
  %374 = vst.msk [vmem:[#allocation3 + $0x160] sm:$0xff] %vm27, %v310
  %375 = vst.msk [vmem:[#allocation3 + $0x168] sm:$0xff] %vm27, %v311
  %376 = vst.msk [vmem:[#allocation3 + $0x170] sm:$0xff] %vm27, %v312
  %377 = vst.msk [vmem:[#allocation3 + $0x178] sm:$0xff] %vm27, %v313
  %378 = vst.msk [vmem:[#allocation3 + $0x180] sm:$0xff] %vm27, %v314
  %379 = vst.msk [vmem:[#allocation3 + $0x188] sm:$0xff] %vm27, %v315
  %380 = vst.msk [vmem:[#allocation3 + $0x190] sm:$0xff] %vm27, %v316
  %381 = vst.msk [vmem:[#allocation3 + $0x198] sm:$0xff] %vm27, %v317
  %382 = vst.msk [vmem:[#allocation3 + $0x1a0] sm:$0xff] %vm27, %v318
  %383 = vst.msk [vmem:[#allocation3 + $0x1a8] sm:$0xff] %vm27, %v319
  %384 = vst.msk [vmem:[#allocation3 + $0x1b0] sm:$0xff] %vm27, %v320
  %385 = vst.msk [vmem:[#allocation3 + $0x1b8] sm:$0xff] %vm27, %v321
  %386 = vst.msk [vmem:[#allocation3 + $0x1c0] sm:$0xff] %vm27, %v322
  %387 = vst.msk [vmem:[#allocation3 + $0x1c8] sm:$0xff] %vm27, %v323
  %388 = vst.msk [vmem:[#allocation3 + $0x1d0] sm:$0xff] %vm27, %v324
  %389 = vst.msk [vmem:[#allocation3 + $0x1d8] sm:$0xff] %vm27, %v325
  %390 = vst.msk [vmem:[#allocation3 + $0x1e0] sm:$0xff] %vm27, %v326
  %391 = vst.msk [vmem:[#allocation3 + $0x1e8] sm:$0xff] %vm27, %v327
  %392 = vst.msk [vmem:[#allocation3 + $0x1f0] sm:$0xff] %vm27, %v328
  %393 = vst.msk [vmem:[#allocation3 + $0x1f8] sm:$0xff] %vm27, %v329
  %v394 = vld [vmem:[#allocation2 + $0x1] sm:$0xff]
  %v395 = vld [vmem:[#allocation2 + $0x9] sm:$0xff]
  %v396 = vld [vmem:[#allocation2 + $0x19] sm:$0xff]
  %v397 = vld [vmem:[#allocation2 + $0x21] sm:$0xff]
  %v398 = vld [vmem:[#allocation2 + $0x31] sm:$0xff]
  %v399 = vld [vmem:[#allocation2 + $0x39] sm:$0xff]
  %v400 = vld [vmem:[#allocation2 + $0x49] sm:$0xff]
  %v401 = vld [vmem:[#allocation2 + $0x51] sm:$0xff]
  %v402 = vld [vmem:[#allocation2 + $0x61] sm:$0xff]
  %v403 = vld [vmem:[#allocation2 + $0x69] sm:$0xff]
  %v404 = vld [vmem:[#allocation2 + $0x79] sm:$0xff]
  %v405 = vld [vmem:[#allocation2 + $0x81] sm:$0xff]
  %v406 = vld [vmem:[#allocation2 + $0x91] sm:$0xff]
  %v407 = vld [vmem:[#allocation2 + $0x99] sm:$0xff]
  %v408 = vld [vmem:[#allocation2 + $0xa9] sm:$0xff]
  %v409 = vld [vmem:[#allocation2 + $0xb1] sm:$0xff]
  %v410 = vld [vmem:[#allocation2 + $0xc1] sm:$0xff]
  %v411 = vld [vmem:[#allocation2 + $0xc9] sm:$0xff]
  %v412 = vld [vmem:[#allocation2 + $0xd9] sm:$0xff]
  %v413 = vld [vmem:[#allocation2 + $0xe1] sm:$0xff]
  %v414 = vld [vmem:[#allocation2 + $0xf1] sm:$0xff]
  %v415 = vld [vmem:[#allocation2 + $0xf9] sm:$0xff]
  %v416 = vld [vmem:[#allocation2 + $0x109] sm:$0xff]
  %v417 = vld [vmem:[#allocation2 + $0x111] sm:$0xff]
  %v418 = vld [vmem:[#allocation2 + $0x121] sm:$0xff]
  %v419 = vld [vmem:[#allocation2 + $0x129] sm:$0xff]
  %v420 = vld [vmem:[#allocation2 + $0x139] sm:$0xff]
  %v421 = vld [vmem:[#allocation2 + $0x141] sm:$0xff]
  %v422 = vld [vmem:[#allocation2 + $0x151] sm:$0xff]
  %v423 = vld [vmem:[#allocation2 + $0x159] sm:$0xff]
  %v424 = vld [vmem:[#allocation2 + $0x169] sm:$0xff]
  %v425 = vld [vmem:[#allocation2 + $0x171] sm:$0xff]
  %v426 = vld [vmem:[#allocation2 + $0x1b1] sm:$0xff]
  %v427 = vld [vmem:[#allocation2 + $0x1b9] sm:$0xff]
  %v428 = vld [vmem:[#allocation2 + $0x1c9] sm:$0xff]
  %v429 = vld [vmem:[#allocation2 + $0x1d1] sm:$0xff]
  %v430 = vld [vmem:[#allocation2 + $0x1e1] sm:$0xff]
  %v431 = vld [vmem:[#allocation2 + $0x1e9] sm:$0xff]
  %v432 = vld [vmem:[#allocation2 + $0x1f9] sm:$0xff]
  %v433 = vld [vmem:[#allocation2 + $0x201] sm:$0xff]
  %v434 = vld [vmem:[#allocation2 + $0x211] sm:$0xff]
  %v435 = vld [vmem:[#allocation2 + $0x219] sm:$0xff]
  %v436 = vld [vmem:[#allocation2 + $0x229] sm:$0xff]
  %v437 = vld [vmem:[#allocation2 + $0x231] sm:$0xff]
  %v438 = vld [vmem:[#allocation2 + $0x241] sm:$0xff]
  %v439 = vld [vmem:[#allocation2 + $0x249] sm:$0xff]
  %v440 = vld [vmem:[#allocation2 + $0x259] sm:$0xff]
  %v441 = vld [vmem:[#allocation2 + $0x261] sm:$0xff]
  %v442 = vld [vmem:[#allocation2 + $0x271] sm:$0xff]
  %v443 = vld [vmem:[#allocation2 + $0x279] sm:$0xff]
  %v444 = vld [vmem:[#allocation2 + $0x289] sm:$0xff]
  %v445 = vld [vmem:[#allocation2 + $0x291] sm:$0xff]
  %v446 = vld [vmem:[#allocation2 + $0x2a1] sm:$0xff]
  %v447 = vld [vmem:[#allocation2 + $0x2a9] sm:$0xff]
  %v448 = vld [vmem:[#allocation2 + $0x2b9] sm:$0xff]
  %v449 = vld [vmem:[#allocation2 + $0x2c1] sm:$0xff]
  %v450 = vld [vmem:[#allocation2 + $0x2d1] sm:$0xff]
  %v451 = vld [vmem:[#allocation2 + $0x2d9] sm:$0xff]
  %v452 = vld [vmem:[#allocation2 + $0x2e9] sm:$0xff]
  %v453 = vld [vmem:[#allocation2 + $0x2f1] sm:$0xff]
  %v454 = vld [vmem:[#allocation2 + $0x301] sm:$0xff]
  %v455 = vld [vmem:[#allocation2 + $0x309] sm:$0xff]
  %v456 = vld [vmem:[#allocation2 + $0x319] sm:$0xff]
  %v457 = vld [vmem:[#allocation2 + $0x321] sm:$0xff]
  %522 = vrot.lane.b32.xlu0 %v394, 4
  %v523 = vpop.permute.xlu0 %522
  %524 = vrot.lane.b32.xlu0 %v395, 4
  %v525 = vpop.permute.xlu0 %524
  %526 = vrot.lane.b32.xlu0 %v396, 4
  %v527 = vpop.permute.xlu0 %526
  %528 = vrot.lane.b32.xlu0 %v397, 4
  %v529 = vpop.permute.xlu0 %528
  %530 = vrot.lane.b32.xlu0 %v398, 4
  %v531 = vpop.permute.xlu0 %530
  %532 = vrot.lane.b32.xlu0 %v399, 4
  %v533 = vpop.permute.xlu0 %532
  %534 = vrot.lane.b32.xlu0 %v400, 4
  %v535 = vpop.permute.xlu0 %534
  %536 = vrot.lane.b32.xlu0 %v401, 4
  %v537 = vpop.permute.xlu0 %536
  %538 = vrot.lane.b32.xlu0 %v402, 4
  %v539 = vpop.permute.xlu0 %538
  %540 = vrot.lane.b32.xlu0 %v403, 4
  %v541 = vpop.permute.xlu0 %540
  %542 = vrot.lane.b32.xlu0 %v404, 4
  %v543 = vpop.permute.xlu0 %542
  %544 = vrot.lane.b32.xlu0 %v405, 4
  %v545 = vpop.permute.xlu0 %544
  %546 = vrot.lane.b32.xlu0 %v406, 4
  %v547 = vpop.permute.xlu0 %546
  %548 = vrot.lane.b32.xlu0 %v407, 4
  %v549 = vpop.permute.xlu0 %548
  %550 = vrot.lane.b32.xlu0 %v408, 4
  %v551 = vpop.permute.xlu0 %550
  %552 = vrot.lane.b32.xlu0 %v409, 4
  %v553 = vpop.permute.xlu0 %552
  %554 = vrot.lane.b32.xlu0 %v410, 4
  %v555 = vpop.permute.xlu0 %554
  %556 = vrot.lane.b32.xlu0 %v411, 4
  %v557 = vpop.permute.xlu0 %556
  %558 = vrot.lane.b32.xlu0 %v412, 4
  %v559 = vpop.permute.xlu0 %558
  %560 = vrot.lane.b32.xlu0 %v413, 4
  %v561 = vpop.permute.xlu0 %560
  %562 = vrot.lane.b32.xlu0 %v414, 4
  %v563 = vpop.permute.xlu0 %562
  %564 = vrot.lane.b32.xlu0 %v415, 4
  %v565 = vpop.permute.xlu0 %564
  %566 = vrot.lane.b32.xlu0 %v416, 4
  %v567 = vpop.permute.xlu0 %566
  %568 = vrot.lane.b32.xlu0 %v417, 4
  %v569 = vpop.permute.xlu0 %568
  %570 = vrot.lane.b32.xlu0 %v418, 4
  %v571 = vpop.permute.xlu0 %570
  %572 = vrot.lane.b32.xlu0 %v419, 4
  %v573 = vpop.permute.xlu0 %572
  %574 = vrot.lane.b32.xlu0 %v420, 4
  %v575 = vpop.permute.xlu0 %574
  %576 = vrot.lane.b32.xlu0 %v421, 4
  %v577 = vpop.permute.xlu0 %576
  %578 = vrot.lane.b32.xlu0 %v422, 4
  %v579 = vpop.permute.xlu0 %578
  %580 = vrot.lane.b32.xlu0 %v423, 4
  %v581 = vpop.permute.xlu0 %580
  %582 = vrot.lane.b32.xlu0 %v424, 4
  %v583 = vpop.permute.xlu0 %582
  %584 = vrot.lane.b32.xlu0 %v425, 4
  %v585 = vpop.permute.xlu0 %584
  %586 = vrot.lane.b32.xlu0 %v426, 4
  %v587 = vpop.permute.xlu0 %586
  %588 = vrot.lane.b32.xlu0 %v427, 4
  %v589 = vpop.permute.xlu0 %588
  %590 = vrot.lane.b32.xlu0 %v428, 4
  %v591 = vpop.permute.xlu0 %590
  %592 = vrot.lane.b32.xlu0 %v429, 4
  %v593 = vpop.permute.xlu0 %592
  %594 = vrot.lane.b32.xlu0 %v430, 4
  %v595 = vpop.permute.xlu0 %594
  %596 = vrot.lane.b32.xlu0 %v431, 4
  %v597 = vpop.permute.xlu0 %596
  %598 = vrot.lane.b32.xlu0 %v432, 4
  %v599 = vpop.permute.xlu0 %598
  %600 = vrot.lane.b32.xlu0 %v433, 4
  %v601 = vpop.permute.xlu0 %600
  %602 = vrot.lane.b32.xlu0 %v434, 4
  %v603 = vpop.permute.xlu0 %602
  %604 = vrot.lane.b32.xlu0 %v435, 4
  %v605 = vpop.permute.xlu0 %604
  %606 = vrot.lane.b32.xlu0 %v436, 4
  %v607 = vpop.permute.xlu0 %606
  %608 = vrot.lane.b32.xlu0 %v437, 4
  %v609 = vpop.permute.xlu0 %608
  %610 = vrot.lane.b32.xlu0 %v438, 4
  %v611 = vpop.permute.xlu0 %610
  %612 = vrot.lane.b32.xlu0 %v439, 4
  %v613 = vpop.permute.xlu0 %612
  %614 = vrot.lane.b32.xlu0 %v440, 4
  %v615 = vpop.permute.xlu0 %614
  %616 = vrot.lane.b32.xlu0 %v441, 4
  %v617 = vpop.permute.xlu0 %616
  %618 = vrot.lane.b32.xlu0 %v442, 4
  %v619 = vpop.permute.xlu0 %618
  %620 = vrot.lane.b32.xlu0 %v443, 4
  %v621 = vpop.permute.xlu0 %620
  %622 = vrot.lane.b32.xlu0 %v444, 4
  %v623 = vpop.permute.xlu0 %622
  %624 = vrot.lane.b32.xlu0 %v445, 4
  %v625 = vpop.permute.xlu0 %624
  %626 = vrot.lane.b32.xlu0 %v446, 4
  %v627 = vpop.permute.xlu0 %626
  %628 = vrot.lane.b32.xlu0 %v447, 4
  %v629 = vpop.permute.xlu0 %628
  %630 = vrot.lane.b32.xlu0 %v448, 4
  %v631 = vpop.permute.xlu0 %630
  %632 = vrot.lane.b32.xlu0 %v449, 4
  %v633 = vpop.permute.xlu0 %632
  %634 = vrot.lane.b32.xlu0 %v450, 4
  %v635 = vpop.permute.xlu0 %634
  %636 = vrot.lane.b32.xlu0 %v451, 4
  %v637 = vpop.permute.xlu0 %636
  %638 = vrot.lane.b32.xlu0 %v452, 4
  %v639 = vpop.permute.xlu0 %638
  %640 = vrot.lane.b32.xlu0 %v453, 4
  %v641 = vpop.permute.xlu0 %640
  %642 = vrot.lane.b32.xlu0 %v454, 4
  %v643 = vpop.permute.xlu0 %642
  %644 = vrot.lane.b32.xlu0 %v455, 4
  %v645 = vpop.permute.xlu0 %644
  %646 = vrot.lane.b32.xlu0 %v456, 4
  %v647 = vpop.permute.xlu0 %646
  %648 = vrot.lane.b32.xlu0 %v457, 4
  %v649 = vpop.permute.xlu0 %648
  %vm714 = vcmask 64544
  %715 = vst.msk [vmem:[#allocation3] sm:$0xff] %vm714, %v523
  %716 = vst.msk [vmem:[#allocation3 + $0x8] sm:$0xff] %vm714, %v525
  %717 = vst.msk [vmem:[#allocation3 + $0x10] sm:$0xff] %vm714, %v527
  %718 = vst.msk [vmem:[#allocation3 + $0x18] sm:$0xff] %vm714, %v529
  %719 = vst.msk [vmem:[#allocation3 + $0x20] sm:$0xff] %vm714, %v531
  %720 = vst.msk [vmem:[#allocation3 + $0x28] sm:$0xff] %vm714, %v533
  %721 = vst.msk [vmem:[#allocation3 + $0x30] sm:$0xff] %vm714, %v535
  %722 = vst.msk [vmem:[#allocation3 + $0x38] sm:$0xff] %vm714, %v537
  %723 = vst.msk [vmem:[#allocation3 + $0x40] sm:$0xff] %vm714, %v539
  %724 = vst.msk [vmem:[#allocation3 + $0x48] sm:$0xff] %vm714, %v541
  %725 = vst.msk [vmem:[#allocation3 + $0x50] sm:$0xff] %vm714, %v543
  %726 = vst.msk [vmem:[#allocation3 + $0x58] sm:$0xff] %vm714, %v545
  %727 = vst.msk [vmem:[#allocation3 + $0x60] sm:$0xff] %vm714, %v547
  %728 = vst.msk [vmem:[#allocation3 + $0x68] sm:$0xff] %vm714, %v549
  %729 = vst.msk [vmem:[#allocation3 + $0x70] sm:$0xff] %vm714, %v551
  %730 = vst.msk [vmem:[#allocation3 + $0x78] sm:$0xff] %vm714, %v553
  %731 = vst.msk [vmem:[#allocation3 + $0x80] sm:$0xff] %vm714, %v555
  %732 = vst.msk [vmem:[#allocation3 + $0x88] sm:$0xff] %vm714, %v557
  %733 = vst.msk [vmem:[#allocation3 + $0x90] sm:$0xff] %vm714, %v559
  %734 = vst.msk [vmem:[#allocation3 + $0x98] sm:$0xff] %vm714, %v561
  %735 = vst.msk [vmem:[#allocation3 + $0xa0] sm:$0xff] %vm714, %v563
  %736 = vst.msk [vmem:[#allocation3 + $0xa8] sm:$0xff] %vm714, %v565
  %737 = vst.msk [vmem:[#allocation3 + $0xb0] sm:$0xff] %vm714, %v567
  %738 = vst.msk [vmem:[#allocation3 + $0xb8] sm:$0xff] %vm714, %v569
  %739 = vst.msk [vmem:[#allocation3 + $0xc0] sm:$0xff] %vm714, %v571
  %740 = vst.msk [vmem:[#allocation3 + $0xc8] sm:$0xff] %vm714, %v573
  %741 = vst.msk [vmem:[#allocation3 + $0xd0] sm:$0xff] %vm714, %v575
  %742 = vst.msk [vmem:[#allocation3 + $0xd8] sm:$0xff] %vm714, %v577
  %743 = vst.msk [vmem:[#allocation3 + $0xe0] sm:$0xff] %vm714, %v579
  %744 = vst.msk [vmem:[#allocation3 + $0xe8] sm:$0xff] %vm714, %v581
  %745 = vst.msk [vmem:[#allocation3 + $0xf0] sm:$0xff] %vm714, %v583
  %746 = vst.msk [vmem:[#allocation3 + $0xf8] sm:$0xff] %vm714, %v585
  %747 = vst.msk [vmem:[#allocation3 + $0x100] sm:$0xff] %vm714, %v587
  %748 = vst.msk [vmem:[#allocation3 + $0x108] sm:$0xff] %vm714, %v589
  %749 = vst.msk [vmem:[#allocation3 + $0x110] sm:$0xff] %vm714, %v591
  %750 = vst.msk [vmem:[#allocation3 + $0x118] sm:$0xff] %vm714, %v593
  %751 = vst.msk [vmem:[#allocation3 + $0x120] sm:$0xff] %vm714, %v595
  %752 = vst.msk [vmem:[#allocation3 + $0x128] sm:$0xff] %vm714, %v597
  %753 = vst.msk [vmem:[#allocation3 + $0x130] sm:$0xff] %vm714, %v599
  %754 = vst.msk [vmem:[#allocation3 + $0x138] sm:$0xff] %vm714, %v601
  %755 = vst.msk [vmem:[#allocation3 + $0x140] sm:$0xff] %vm714, %v603
  %756 = vst.msk [vmem:[#allocation3 + $0x148] sm:$0xff] %vm714, %v605
  %757 = vst.msk [vmem:[#allocation3 + $0x150] sm:$0xff] %vm714, %v607
  %758 = vst.msk [vmem:[#allocation3 + $0x158] sm:$0xff] %vm714, %v609
  %759 = vst.msk [vmem:[#allocation3 + $0x160] sm:$0xff] %vm714, %v611
  %760 = vst.msk [vmem:[#allocation3 + $0x168] sm:$0xff] %vm714, %v613
  %761 = vst.msk [vmem:[#allocation3 + $0x170] sm:$0xff] %vm714, %v615
  %762 = vst.msk [vmem:[#allocation3 + $0x178] sm:$0xff] %vm714, %v617
  %763 = vst.msk [vmem:[#allocation3 + $0x180] sm:$0xff] %vm714, %v619
  %764 = vst.msk [vmem:[#allocation3 + $0x188] sm:$0xff] %vm714, %v621
  %765 = vst.msk [vmem:[#allocation3 + $0x190] sm:$0xff] %vm714, %v623
  %766 = vst.msk [vmem:[#allocation3 + $0x198] sm:$0xff] %vm714, %v625
  %767 = vst.msk [vmem:[#allocation3 + $0x1a0] sm:$0xff] %vm714, %v627
  %768 = vst.msk [vmem:[#allocation3 + $0x1a8] sm:$0xff] %vm714, %v629
  %769 = vst.msk [vmem:[#allocation3 + $0x1b0] sm:$0xff] %vm714, %v631
  %770 = vst.msk [vmem:[#allocation3 + $0x1b8] sm:$0xff] %vm714, %v633
  %771 = vst.msk [vmem:[#allocation3 + $0x1c0] sm:$0xff] %vm714, %v635
  %772 = vst.msk [vmem:[#allocation3 + $0x1c8] sm:$0xff] %vm714, %v637
  %773 = vst.msk [vmem:[#allocation3 + $0x1d0] sm:$0xff] %vm714, %v639
  %774 = vst.msk [vmem:[#allocation3 + $0x1d8] sm:$0xff] %vm714, %v641
  %775 = vst.msk [vmem:[#allocation3 + $0x1e0] sm:$0xff] %vm714, %v643
  %776 = vst.msk [vmem:[#allocation3 + $0x1e8] sm:$0xff] %vm714, %v645
  %777 = vst.msk [vmem:[#allocation3 + $0x1f0] sm:$0xff] %vm714, %v647
  %778 = vst.msk [vmem:[#allocation3 + $0x1f8] sm:$0xff] %vm714, %v649
  %v779 = vld [vmem:[#allocation2 + $0x2] sm:$0xff]
  %v780 = vld [vmem:[#allocation2 + $0xa] sm:$0xff]
  %v781 = vld [vmem:[#allocation2 + $0x1a] sm:$0xff]
  %v782 = vld [vmem:[#allocation2 + $0x22] sm:$0xff]
  %v783 = vld [vmem:[#allocation2 + $0x32] sm:$0xff]
  %v784 = vld [vmem:[#allocation2 + $0x3a] sm:$0xff]
  %v785 = vld [vmem:[#allocation2 + $0x4a] sm:$0xff]
  %v786 = vld [vmem:[#allocation2 + $0x52] sm:$0xff]
  %v787 = vld [vmem:[#allocation2 + $0x62] sm:$0xff]
  %v788 = vld [vmem:[#allocation2 + $0x6a] sm:$0xff]
  %v789 = vld [vmem:[#allocation2 + $0x7a] sm:$0xff]
  %v790 = vld [vmem:[#allocation2 + $0x82] sm:$0xff]
  %v791 = vld [vmem:[#allocation2 + $0x92] sm:$0xff]
  %v792 = vld [vmem:[#allocation2 + $0x9a] sm:$0xff]
  %v793 = vld [vmem:[#allocation2 + $0xaa] sm:$0xff]
  %v794 = vld [vmem:[#allocation2 + $0xb2] sm:$0xff]
  %v795 = vld [vmem:[#allocation2 + $0xc2] sm:$0xff]
  %v796 = vld [vmem:[#allocation2 + $0xca] sm:$0xff]
  %v797 = vld [vmem:[#allocation2 + $0xda] sm:$0xff]
  %v798 = vld [vmem:[#allocation2 + $0xe2] sm:$0xff]
  %v799 = vld [vmem:[#allocation2 + $0xf2] sm:$0xff]
  %v800 = vld [vmem:[#allocation2 + $0xfa] sm:$0xff]
  %v801 = vld [vmem:[#allocation2 + $0x10a] sm:$0xff]
  %v802 = vld [vmem:[#allocation2 + $0x112] sm:$0xff]
  %v803 = vld [vmem:[#allocation2 + $0x122] sm:$0xff]
  %v804 = vld [vmem:[#allocation2 + $0x12a] sm:$0xff]
  %v805 = vld [vmem:[#allocation2 + $0x13a] sm:$0xff]
  %v806 = vld [vmem:[#allocation2 + $0x142] sm:$0xff]
  %v807 = vld [vmem:[#allocation2 + $0x152] sm:$0xff]
  %v808 = vld [vmem:[#allocation2 + $0x15a] sm:$0xff]
  %v809 = vld [vmem:[#allocation2 + $0x16a] sm:$0xff]
  %v810 = vld [vmem:[#allocation2 + $0x172] sm:$0xff]
  %v811 = vld [vmem:[#allocation2 + $0x1b2] sm:$0xff]
  %v812 = vld [vmem:[#allocation2 + $0x1ba] sm:$0xff]
  %v813 = vld [vmem:[#allocation2 + $0x1ca] sm:$0xff]
  %v814 = vld [vmem:[#allocation2 + $0x1d2] sm:$0xff]
  %v815 = vld [vmem:[#allocation2 + $0x1e2] sm:$0xff]
  %v816 = vld [vmem:[#allocation2 + $0x1ea] sm:$0xff]
  %v817 = vld [vmem:[#allocation2 + $0x1fa] sm:$0xff]
  %v818 = vld [vmem:[#allocation2 + $0x202] sm:$0xff]
  %v819 = vld [vmem:[#allocation2 + $0x212] sm:$0xff]
  %v820 = vld [vmem:[#allocation2 + $0x21a] sm:$0xff]
  %v821 = vld [vmem:[#allocation2 + $0x22a] sm:$0xff]
  %v822 = vld [vmem:[#allocation2 + $0x232] sm:$0xff]
  %v823 = vld [vmem:[#allocation2 + $0x242] sm:$0xff]
  %v824 = vld [vmem:[#allocation2 + $0x24a] sm:$0xff]
  %v825 = vld [vmem:[#allocation2 + $0x25a] sm:$0xff]
  %v826 = vld [vmem:[#allocation2 + $0x262] sm:$0xff]
  %v827 = vld [vmem:[#allocation2 + $0x272] sm:$0xff]
  %v828 = vld [vmem:[#allocation2 + $0x27a] sm:$0xff]
  %v829 = vld [vmem:[#allocation2 + $0x28a] sm:$0xff]
  %v830 = vld [vmem:[#allocation2 + $0x292] sm:$0xff]
  %v831 = vld [vmem:[#allocation2 + $0x2a2] sm:$0xff]
  %v832 = vld [vmem:[#allocation2 + $0x2aa] sm:$0xff]
  %v833 = vld [vmem:[#allocation2 + $0x2ba] sm:$0xff]
  %v834 = vld [vmem:[#allocation2 + $0x2c2] sm:$0xff]
  %v835 = vld [vmem:[#allocation2 + $0x2d2] sm:$0xff]
  %v836 = vld [vmem:[#allocation2 + $0x2da] sm:$0xff]
  %v837 = vld [vmem:[#allocation2 + $0x2ea] sm:$0xff]
  %v838 = vld [vmem:[#allocation2 + $0x2f2] sm:$0xff]
  %v839 = vld [vmem:[#allocation2 + $0x302] sm:$0xff]
  %v840 = vld [vmem:[#allocation2 + $0x30a] sm:$0xff]
  %v841 = vld [vmem:[#allocation2 + $0x31a] sm:$0xff]
  %v842 = vld [vmem:[#allocation2 + $0x322] sm:$0xff]
  %907 = vrot.lane.b32.xlu0 %v779, 8
  %v908 = vpop.permute.xlu0 %907
  %909 = vrot.lane.b32.xlu0 %v780, 8
  %v910 = vpop.permute.xlu0 %909
  %911 = vrot.lane.b32.xlu0 %v781, 8
  %v912 = vpop.permute.xlu0 %911
  %913 = vrot.lane.b32.xlu0 %v782, 8
  %v914 = vpop.permute.xlu0 %913
  %915 = vrot.lane.b32.xlu0 %v783, 8
  %v916 = vpop.permute.xlu0 %915
  %917 = vrot.lane.b32.xlu0 %v784, 8
  %v918 = vpop.permute.xlu0 %917
  %919 = vrot.lane.b32.xlu0 %v785, 8
  %v920 = vpop.permute.xlu0 %919
  %921 = vrot.lane.b32.xlu0 %v786, 8
  %v922 = vpop.permute.xlu0 %921
  %923 = vrot.lane.b32.xlu0 %v787, 8
  %v924 = vpop.permute.xlu0 %923
  %925 = vrot.lane.b32.xlu0 %v788, 8
  %v926 = vpop.permute.xlu0 %925
  %927 = vrot.lane.b32.xlu0 %v789, 8
  %v928 = vpop.permute.xlu0 %927
  %929 = vrot.lane.b32.xlu0 %v790, 8
  %v930 = vpop.permute.xlu0 %929
  %931 = vrot.lane.b32.xlu0 %v791, 8
  %v932 = vpop.permute.xlu0 %931
  %933 = vrot.lane.b32.xlu0 %v792, 8
  %v934 = vpop.permute.xlu0 %933
  %935 = vrot.lane.b32.xlu0 %v793, 8
  %v936 = vpop.permute.xlu0 %935
  %937 = vrot.lane.b32.xlu0 %v794, 8
  %v938 = vpop.permute.xlu0 %937
  %939 = vrot.lane.b32.xlu0 %v795, 8
  %v940 = vpop.permute.xlu0 %939
  %941 = vrot.lane.b32.xlu0 %v796, 8
  %v942 = vpop.permute.xlu0 %941
  %943 = vrot.lane.b32.xlu0 %v797, 8
  %v944 = vpop.permute.xlu0 %943
  %945 = vrot.lane.b32.xlu0 %v798, 8
  %v946 = vpop.permute.xlu0 %945
  %947 = vrot.lane.b32.xlu0 %v799, 8
  %v948 = vpop.permute.xlu0 %947
  %949 = vrot.lane.b32.xlu0 %v800, 8
  %v950 = vpop.permute.xlu0 %949
  %951 = vrot.lane.b32.xlu0 %v801, 8
  %v952 = vpop.permute.xlu0 %951
  %953 = vrot.lane.b32.xlu0 %v802, 8
  %v954 = vpop.permute.xlu0 %953
  %955 = vrot.lane.b32.xlu0 %v803, 8
  %v956 = vpop.permute.xlu0 %955
  %957 = vrot.lane.b32.xlu0 %v804, 8
  %v958 = vpop.permute.xlu0 %957
  %959 = vrot.lane.b32.xlu0 %v805, 8
  %v960 = vpop.permute.xlu0 %959
  %961 = vrot.lane.b32.xlu0 %v806, 8
  %v962 = vpop.permute.xlu0 %961
  %963 = vrot.lane.b32.xlu0 %v807, 8
  %v964 = vpop.permute.xlu0 %963
  %965 = vrot.lane.b32.xlu0 %v808, 8
  %v966 = vpop.permute.xlu0 %965
  %967 = vrot.lane.b32.xlu0 %v809, 8
  %v968 = vpop.permute.xlu0 %967
  %969 = vrot.lane.b32.xlu0 %v810, 8
  %v970 = vpop.permute.xlu0 %969
  %971 = vrot.lane.b32.xlu0 %v811, 8
  %v972 = vpop.permute.xlu0 %971
  %973 = vrot.lane.b32.xlu0 %v812, 8
  %v974 = vpop.permute.xlu0 %973
  %975 = vrot.lane.b32.xlu0 %v813, 8
  %v976 = vpop.permute.xlu0 %975
  %977 = vrot.lane.b32.xlu0 %v814, 8
  %v978 = vpop.permute.xlu0 %977
  %979 = vrot.lane.b32.xlu0 %v815, 8
  %v980 = vpop.permute.xlu0 %979
  %981 = vrot.lane.b32.xlu0 %v816, 8
  %v982 = vpop.permute.xlu0 %981
  %983 = vrot.lane.b32.xlu0 %v817, 8
  %v984 = vpop.permute.xlu0 %983
  %985 = vrot.lane.b32.xlu0 %v818, 8
  %v986 = vpop.permute.xlu0 %985
  %987 = vrot.lane.b32.xlu0 %v819, 8
  %v988 = vpop.permute.xlu0 %987
  %989 = vrot.lane.b32.xlu0 %v820, 8
  %v990 = vpop.permute.xlu0 %989
  %991 = vrot.lane.b32.xlu0 %v821, 8
  %v992 = vpop.permute.xlu0 %991
  %993 = vrot.lane.b32.xlu0 %v822, 8
  %v994 = vpop.permute.xlu0 %993
  %995 = vrot.lane.b32.xlu0 %v823, 8
  %v996 = vpop.permute.xlu0 %995
  %997 = vrot.lane.b32.xlu0 %v824, 8
  %v998 = vpop.permute.xlu0 %997
  %999 = vrot.lane.b32.xlu0 %v825, 8
  %v1000 = vpop.permute.xlu0 %999
  %1001 = vrot.lane.b32.xlu0 %v826, 8
  %v1002 = vpop.permute.xlu0 %1001
  %1003 = vrot.lane.b32.xlu0 %v827, 8
  %v1004 = vpop.permute.xlu0 %1003
  %1005 = vrot.lane.b32.xlu0 %v828, 8
  %v1006 = vpop.permute.xlu0 %1005
  %1007 = vrot.lane.b32.xlu0 %v829, 8
  %v1008 = vpop.permute.xlu0 %1007
  %1009 = vrot.lane.b32.xlu0 %v830, 8
  %v1010 = vpop.permute.xlu0 %1009
  %1011 = vrot.lane.b32.xlu0 %v831, 8
  %v1012 = vpop.permute.xlu0 %1011
  %1013 = vrot.lane.b32.xlu0 %v832, 8
  %v1014 = vpop.permute.xlu0 %1013
  %1015 = vrot.lane.b32.xlu0 %v833, 8
  %v1016 = vpop.permute.xlu0 %1015
  %1017 = vrot.lane.b32.xlu0 %v834, 8
  %v1018 = vpop.permute.xlu0 %1017
  %1019 = vrot.lane.b32.xlu0 %v835, 8
  %v1020 = vpop.permute.xlu0 %1019
  %1021 = vrot.lane.b32.xlu0 %v836, 8
  %v1022 = vpop.permute.xlu0 %1021
  %1023 = vrot.lane.b32.xlu0 %v837, 8
  %v1024 = vpop.permute.xlu0 %1023
  %1025 = vrot.lane.b32.xlu0 %v838, 8
  %v1026 = vpop.permute.xlu0 %1025
  %1027 = vrot.lane.b32.xlu0 %v839, 8
  %v1028 = vpop.permute.xlu0 %1027
  %1029 = vrot.lane.b32.xlu0 %v840, 8
  %v1030 = vpop.permute.xlu0 %1029
  %1031 = vrot.lane.b32.xlu0 %v841, 8
  %v1032 = vpop.permute.xlu0 %1031
  %1033 = vrot.lane.b32.xlu0 %v842, 8
  %v1034 = vpop.permute.xlu0 %1033
  %vm1099 = vcmask 97344
  %1100 = vst.msk [vmem:[#allocation3] sm:$0xff] %vm1099, %v908
  %1101 = vst.msk [vmem:[#allocation3 + $0x8] sm:$0xff] %vm1099, %v910
  %1102 = vst.msk [vmem:[#allocation3 + $0x10] sm:$0xff] %vm1099, %v912
  %1103 = vst.msk [vmem:[#allocation3 + $0x18] sm:$0xff] %vm1099, %v914
  %1104 = vst.msk [vmem:[#allocation3 + $0x20] sm:$0xff] %vm1099, %v916
  %1105 = vst.msk [vmem:[#allocation3 + $0x28] sm:$0xff] %vm1099, %v918
  %1106 = vst.msk [vmem:[#allocation3 + $0x30] sm:$0xff] %vm1099, %v920
  %1107 = vst.msk [vmem:[#allocation3 + $0x38] sm:$0xff] %vm1099, %v922
  %1108 = vst.msk [vmem:[#allocation3 + $0x40] sm:$0xff] %vm1099, %v924
  %1109 = vst.msk [vmem:[#allocation3 + $0x48] sm:$0xff] %vm1099, %v926
  %1110 = vst.msk [vmem:[#allocation3 + $0x50] sm:$0xff] %vm1099, %v928
  %1111 = vst.msk [vmem:[#allocation3 + $0x58] sm:$0xff] %vm1099, %v930
  %1112 = vst.msk [vmem:[#allocation3 + $0x60] sm:$0xff] %vm1099, %v932
  %1113 = vst.msk [vmem:[#allocation3 + $0x68] sm:$0xff] %vm1099, %v934
  %1114 = vst.msk [vmem:[#allocation3 + $0x70] sm:$0xff] %vm1099, %v936
  %1115 = vst.msk [vmem:[#allocation3 + $0x78] sm:$0xff] %vm1099, %v938
  %1116 = vst.msk [vmem:[#allocation3 + $0x80] sm:$0xff] %vm1099, %v940
  %1117 = vst.msk [vmem:[#allocation3 + $0x88] sm:$0xff] %vm1099, %v942
  %1118 = vst.msk [vmem:[#allocation3 + $0x90] sm:$0xff] %vm1099, %v944
  %1119 = vst.msk [vmem:[#allocation3 + $0x98] sm:$0xff] %vm1099, %v946
  %1120 = vst.msk [vmem:[#allocation3 + $0xa0] sm:$0xff] %vm1099, %v948
  %1121 = vst.msk [vmem:[#allocation3 + $0xa8] sm:$0xff] %vm1099, %v950
  %1122 = vst.msk [vmem:[#allocation3 + $0xb0] sm:$0xff] %vm1099, %v952
  %1123 = vst.msk [vmem:[#allocation3 + $0xb8] sm:$0xff] %vm1099, %v954
  %1124 = vst.msk [vmem:[#allocation3 + $0xc0] sm:$0xff] %vm1099, %v956
  %1125 = vst.msk [vmem:[#allocation3 + $0xc8] sm:$0xff] %vm1099, %v958
  %1126 = vst.msk [vmem:[#allocation3 + $0xd0] sm:$0xff] %vm1099, %v960
  %1127 = vst.msk [vmem:[#allocation3 + $0xd8] sm:$0xff] %vm1099, %v962
  %1128 = vst.msk [vmem:[#allocation3 + $0xe0] sm:$0xff] %vm1099, %v964
  %1129 = vst.msk [vmem:[#allocation3 + $0xe8] sm:$0xff] %vm1099, %v966
  %1130 = vst.msk [vmem:[#allocation3 + $0xf0] sm:$0xff] %vm1099, %v968
  %1131 = vst.msk [vmem:[#allocation3 + $0xf8] sm:$0xff] %vm1099, %v970
  %1132 = vst.msk [vmem:[#allocation3 + $0x100] sm:$0xff] %vm1099, %v972
  %1133 = vst.msk [vmem:[#allocation3 + $0x108] sm:$0xff] %vm1099, %v974
  %1134 = vst.msk [vmem:[#allocation3 + $0x110] sm:$0xff] %vm1099, %v976
  %1135 = vst.msk [vmem:[#allocation3 + $0x118] sm:$0xff] %vm1099, %v978
  %1136 = vst.msk [vmem:[#allocation3 + $0x120] sm:$0xff] %vm1099, %v980
  %1137 = vst.msk [vmem:[#allocation3 + $0x128] sm:$0xff] %vm1099, %v982
  %1138 = vst.msk [vmem:[#allocation3 + $0x130] sm:$0xff] %vm1099, %v984
  %1139 = vst.msk [vmem:[#allocation3 + $0x138] sm:$0xff] %vm1099, %v986
  %1140 = vst.msk [vmem:[#allocation3 + $0x140] sm:$0xff] %vm1099, %v988
  %1141 = vst.msk [vmem:[#allocation3 + $0x148] sm:$0xff] %vm1099, %v990
  %1142 = vst.msk [vmem:[#allocation3 + $0x150] sm:$0xff] %vm1099, %v992
  %1143 = vst.msk [vmem:[#allocation3 + $0x158] sm:$0xff] %vm1099, %v994
  %1144 = vst.msk [vmem:[#allocation3 + $0x160] sm:$0xff] %vm1099, %v996
  %1145 = vst.msk [vmem:[#allocation3 + $0x168] sm:$0xff] %vm1099, %v998
  %1146 = vst.msk [vmem:[#allocation3 + $0x170] sm:$0xff] %vm1099, %v1000
  %1147 = vst.msk [vmem:[#allocation3 + $0x178] sm:$0xff] %vm1099, %v1002
  %1148 = vst.msk [vmem:[#allocation3 + $0x180] sm:$0xff] %vm1099, %v1004
  %1149 = vst.msk [vmem:[#allocation3 + $0x188] sm:$0xff] %vm1099, %v1006
  %1150 = vst.msk [vmem:[#allocation3 + $0x190] sm:$0xff] %vm1099, %v1008
  %1151 = vst.msk [vmem:[#allocation3 + $0x198] sm:$0xff] %vm1099, %v1010
  %1152 = vst.msk [vmem:[#allocation3 + $0x1a0] sm:$0xff] %vm1099, %v1012
  %1153 = vst.msk [vmem:[#allocation3 + $0x1a8] sm:$0xff] %vm1099, %v1014
  %1154 = vst.msk [vmem:[#allocation3 + $0x1b0] sm:$0xff] %vm1099, %v1016
  %1155 = vst.msk [vmem:[#allocation3 + $0x1b8] sm:$0xff] %vm1099, %v1018
  %1156 = vst.msk [vmem:[#allocation3 + $0x1c0] sm:$0xff] %vm1099, %v1020
  %1157 = vst.msk [vmem:[#allocation3 + $0x1c8] sm:$0xff] %vm1099, %v1022
  %1158 = vst.msk [vmem:[#allocation3 + $0x1d0] sm:$0xff] %vm1099, %v1024
  %1159 = vst.msk [vmem:[#allocation3 + $0x1d8] sm:$0xff] %vm1099, %v1026
  %1160 = vst.msk [vmem:[#allocation3 + $0x1e0] sm:$0xff] %vm1099, %v1028
  %1161 = vst.msk [vmem:[#allocation3 + $0x1e8] sm:$0xff] %vm1099, %v1030
  %1162 = vst.msk [vmem:[#allocation3 + $0x1f0] sm:$0xff] %vm1099, %v1032
  %1163 = vst.msk [vmem:[#allocation3 + $0x1f8] sm:$0xff] %vm1099, %v1034
  %v1164 = vld [vmem:[%s201] sm:$0xff]
  %v1165 = vld [vmem:[%s201 + $0x8] sm:$0xff]
  %v1166 = vld [vmem:[%s201 + $0x18] sm:$0xff]
  %v1167 = vld [vmem:[%s201 + $0x20] sm:$0xff]
  %v1168 = vld [vmem:[%s201 + $0x30] sm:$0xff]
  %v1169 = vld [vmem:[%s201 + $0x38] sm:$0xff]
  %v1170 = vld [vmem:[%s201 + $0x48] sm:$0xff]
  %v1171 = vld [vmem:[%s201 + $0x50] sm:$0xff]
  %v1172 = vld [vmem:[%s201 + $0x60] sm:$0xff]
  %v1173 = vld [vmem:[%s201 + $0x68] sm:$0xff]
  %v1174 = vld [vmem:[%s201 + $0x78] sm:$0xff]
  %v1175 = vld [vmem:[%s201 + $0x80] sm:$0xff]
  %v1176 = vld [vmem:[%s201 + $0x90] sm:$0xff]
  %v1177 = vld [vmem:[%s201 + $0x98] sm:$0xff]
  %v1178 = vld [vmem:[%s201 + $0xa8] sm:$0xff]
  %v1179 = vld [vmem:[%s201 + $0xb0] sm:$0xff]
  %v1180 = vld [vmem:[%s201 + $0xc0] sm:$0xff]
  %v1181 = vld [vmem:[%s201 + $0xc8] sm:$0xff]
  %v1182 = vld [vmem:[%s201 + $0xd8] sm:$0xff]
  %v1183 = vld [vmem:[%s201 + $0xe0] sm:$0xff]
  %v1184 = vld [vmem:[%s201 + $0xf0] sm:$0xff]
  %v1185 = vld [vmem:[%s201 + $0xf8] sm:$0xff]
  %v1186 = vld [vmem:[%s201 + $0x108] sm:$0xff]
  %v1187 = vld [vmem:[%s201 + $0x110] sm:$0xff]
  %v1188 = vld [vmem:[%s201 + $0x120] sm:$0xff]
  %v1189 = vld [vmem:[%s201 + $0x128] sm:$0xff]
  %v1190 = vld [vmem:[%s201 + $0x138] sm:$0xff]
  %v1191 = vld [vmem:[%s201 + $0x140] sm:$0xff]
  %v1192 = vld [vmem:[%s201 + $0x150] sm:$0xff]
  %v1193 = vld [vmem:[%s201 + $0x158] sm:$0xff]
  %v1194 = vld [vmem:[%s201 + $0x168] sm:$0xff]
  %v1195 = vld [vmem:[%s201 + $0x170] sm:$0xff]
  %v1196 = vld [vmem:[%s201 + $0x1b0] sm:$0xff]
  %v1197 = vld [vmem:[%s201 + $0x1b8] sm:$0xff]
  %v1198 = vld [vmem:[%s201 + $0x1c8] sm:$0xff]
  %v1199 = vld [vmem:[%s201 + $0x1d0] sm:$0xff]
  %v1200 = vld [vmem:[%s201 + $0x1e0] sm:$0xff]
  %v1201 = vld [vmem:[%s201 + $0x1e8] sm:$0xff]
  %v1202 = vld [vmem:[%s201 + $0x1f8] sm:$0xff]
  %v1203 = vld [vmem:[%s201 + $0x200] sm:$0xff]
  %v1204 = vld [vmem:[%s201 + $0x210] sm:$0xff]
  %v1205 = vld [vmem:[%s201 + $0x218] sm:$0xff]
  %v1206 = vld [vmem:[%s201 + $0x228] sm:$0xff]
  %v1207 = vld [vmem:[%s201 + $0x230] sm:$0xff]
  %v1208 = vld [vmem:[%s201 + $0x240] sm:$0xff]
  %v1209 = vld [vmem:[%s201 + $0x248] sm:$0xff]
  %v1210 = vld [vmem:[%s201 + $0x258] sm:$0xff]
  %v1211 = vld [vmem:[%s201 + $0x260] sm:$0xff]
  %v1212 = vld [vmem:[%s201 + $0x270] sm:$0xff]
  %v1213 = vld [vmem:[%s201 + $0x278] sm:$0xff]
  %v1214 = vld [vmem:[%s201 + $0x288] sm:$0xff]
  %v1215 = vld [vmem:[%s201 + $0x290] sm:$0xff]
  %v1216 = vld [vmem:[%s201 + $0x2a0] sm:$0xff]
  %v1217 = vld [vmem:[%s201 + $0x2a8] sm:$0xff]
  %v1218 = vld [vmem:[%s201 + $0x2b8] sm:$0xff]
  %v1219 = vld [vmem:[%s201 + $0x2c0] sm:$0xff]
  %v1220 = vld [vmem:[%s201 + $0x2d0] sm:$0xff]
  %v1221 = vld [vmem:[%s201 + $0x2d8] sm:$0xff]
  %v1222 = vld [vmem:[%s201 + $0x2e8] sm:$0xff]
  %v1223 = vld [vmem:[%s201 + $0x2f0] sm:$0xff]
  %v1224 = vld [vmem:[%s201 + $0x300] sm:$0xff]
  %v1225 = vld [vmem:[%s201 + $0x308] sm:$0xff]
  %v1226 = vld [vmem:[%s201 + $0x318] sm:$0xff]
  %v1227 = vld [vmem:[%s201 + $0x320] sm:$0xff]
  %1292 = vrot.lane.b32.xlu0 %v1164, 12
  %v1293 = vpop.permute.xlu0 %1292
  %1294 = vrot.lane.b32.xlu0 %v1165, 12
  %v1295 = vpop.permute.xlu0 %1294
  %1296 = vrot.lane.b32.xlu0 %v1166, 12
  %v1297 = vpop.permute.xlu0 %1296
  %1298 = vrot.lane.b32.xlu0 %v1167, 12
  %v1299 = vpop.permute.xlu0 %1298
  %1300 = vrot.lane.b32.xlu0 %v1168, 12
  %v1301 = vpop.permute.xlu0 %1300
  %1302 = vrot.lane.b32.xlu0 %v1169, 12
  %v1303 = vpop.permute.xlu0 %1302
  %1304 = vrot.lane.b32.xlu0 %v1170, 12
  %v1305 = vpop.permute.xlu0 %1304
  %1306 = vrot.lane.b32.xlu0 %v1171, 12
  %v1307 = vpop.permute.xlu0 %1306
  %1308 = vrot.lane.b32.xlu0 %v1172, 12
  %v1309 = vpop.permute.xlu0 %1308
  %1310 = vrot.lane.b32.xlu0 %v1173, 12
  %v1311 = vpop.permute.xlu0 %1310
  %1312 = vrot.lane.b32.xlu0 %v1174, 12
  %v1313 = vpop.permute.xlu0 %1312
  %1314 = vrot.lane.b32.xlu0 %v1175, 12
  %v1315 = vpop.permute.xlu0 %1314
  %1316 = vrot.lane.b32.xlu0 %v1176, 12
  %v1317 = vpop.permute.xlu0 %1316
  %1318 = vrot.lane.b32.xlu0 %v1177, 12
  %v1319 = vpop.permute.xlu0 %1318
  %1320 = vrot.lane.b32.xlu0 %v1178, 12
  %v1321 = vpop.permute.xlu0 %1320
  %1322 = vrot.lane.b32.xlu0 %v1179, 12
  %v1323 = vpop.permute.xlu0 %1322
  %1324 = vrot.lane.b32.xlu0 %v1180, 12
  %v1325 = vpop.permute.xlu0 %1324
  %1326 = vrot.lane.b32.xlu0 %v1181, 12
  %v1327 = vpop.permute.xlu0 %1326
  %1328 = vrot.lane.b32.xlu0 %v1182, 12
  %v1329 = vpop.permute.xlu0 %1328
  %1330 = vrot.lane.b32.xlu0 %v1183, 12
  %v1331 = vpop.permute.xlu0 %1330
  %1332 = vrot.lane.b32.xlu0 %v1184, 12
  %v1333 = vpop.permute.xlu0 %1332
  %1334 = vrot.lane.b32.xlu0 %v1185, 12
  %v1335 = vpop.permute.xlu0 %1334
  %1336 = vrot.lane.b32.xlu0 %v1186, 12
  %v1337 = vpop.permute.xlu0 %1336
  %1338 = vrot.lane.b32.xlu0 %v1187, 12
  %v1339 = vpop.permute.xlu0 %1338
  %1340 = vrot.lane.b32.xlu0 %v1188, 12
  %v1341 = vpop.permute.xlu0 %1340
  %1342 = vrot.lane.b32.xlu0 %v1189, 12
  %v1343 = vpop.permute.xlu0 %1342
  %1344 = vrot.lane.b32.xlu0 %v1190, 12
  %v1345 = vpop.permute.xlu0 %1344
  %1346 = vrot.lane.b32.xlu0 %v1191, 12
  %v1347 = vpop.permute.xlu0 %1346
  %1348 = vrot.lane.b32.xlu0 %v1192, 12
  %v1349 = vpop.permute.xlu0 %1348
  %1350 = vrot.lane.b32.xlu0 %v1193, 12
  %v1351 = vpop.permute.xlu0 %1350
  %1352 = vrot.lane.b32.xlu0 %v1194, 12
  %v1353 = vpop.permute.xlu0 %1352
  %1354 = vrot.lane.b32.xlu0 %v1195, 12
  %v1355 = vpop.permute.xlu0 %1354
  %1356 = vrot.lane.b32.xlu0 %v1196, 12
  %v1357 = vpop.permute.xlu0 %1356
  %1358 = vrot.lane.b32.xlu0 %v1197, 12
  %v1359 = vpop.permute.xlu0 %1358
  %1360 = vrot.lane.b32.xlu0 %v1198, 12
  %v1361 = vpop.permute.xlu0 %1360
  %1362 = vrot.lane.b32.xlu0 %v1199, 12
  %v1363 = vpop.permute.xlu0 %1362
  %1364 = vrot.lane.b32.xlu0 %v1200, 12
  %v1365 = vpop.permute.xlu0 %1364
  %1366 = vrot.lane.b32.xlu0 %v1201, 12
  %v1367 = vpop.permute.xlu0 %1366
  %1368 = vrot.lane.b32.xlu0 %v1202, 12
  %v1369 = vpop.permute.xlu0 %1368
  %1370 = vrot.lane.b32.xlu0 %v1203, 12
  %v1371 = vpop.permute.xlu0 %1370
  %1372 = vrot.lane.b32.xlu0 %v1204, 12
  %v1373 = vpop.permute.xlu0 %1372
  %1374 = vrot.lane.b32.xlu0 %v1205, 12
  %v1375 = vpop.permute.xlu0 %1374
  %1376 = vrot.lane.b32.xlu0 %v1206, 12
  %v1377 = vpop.permute.xlu0 %1376
  %1378 = vrot.lane.b32.xlu0 %v1207, 12
  %v1379 = vpop.permute.xlu0 %1378
  %1380 = vrot.lane.b32.xlu0 %v1208, 12
  %v1381 = vpop.permute.xlu0 %1380
  %1382 = vrot.lane.b32.xlu0 %v1209, 12
  %v1383 = vpop.permute.xlu0 %1382
  %1384 = vrot.lane.b32.xlu0 %v1210, 12
  %v1385 = vpop.permute.xlu0 %1384
  %1386 = vrot.lane.b32.xlu0 %v1211, 12
  %v1387 = vpop.permute.xlu0 %1386
  %1388 = vrot.lane.b32.xlu0 %v1212, 12
  %v1389 = vpop.permute.xlu0 %1388
  %1390 = vrot.lane.b32.xlu0 %v1213, 12
  %v1391 = vpop.permute.xlu0 %1390
  %1392 = vrot.lane.b32.xlu0 %v1214, 12
  %v1393 = vpop.permute.xlu0 %1392
  %1394 = vrot.lane.b32.xlu0 %v1215, 12
  %v1395 = vpop.permute.xlu0 %1394
  %1396 = vrot.lane.b32.xlu0 %v1216, 12
  %v1397 = vpop.permute.xlu0 %1396
  %1398 = vrot.lane.b32.xlu0 %v1217, 12
  %v1399 = vpop.permute.xlu0 %1398
  %1400 = vrot.lane.b32.xlu0 %v1218, 12
  %v1401 = vpop.permute.xlu0 %1400
  %1402 = vrot.lane.b32.xlu0 %v1219, 12
  %v1403 = vpop.permute.xlu0 %1402
  %1404 = vrot.lane.b32.xlu0 %v1220, 12
  %v1405 = vpop.permute.xlu0 %1404
  %1406 = vrot.lane.b32.xlu0 %v1221, 12
  %v1407 = vpop.permute.xlu0 %1406
  %1408 = vrot.lane.b32.xlu0 %v1222, 12
  %v1409 = vpop.permute.xlu0 %1408
  %1410 = vrot.lane.b32.xlu0 %v1223, 12
  %v1411 = vpop.permute.xlu0 %1410
  %1412 = vrot.lane.b32.xlu0 %v1224, 12
  %v1413 = vpop.permute.xlu0 %1412
  %1414 = vrot.lane.b32.xlu0 %v1225, 12
  %v1415 = vpop.permute.xlu0 %1414
  %1416 = vrot.lane.b32.xlu0 %v1226, 12
  %v1417 = vpop.permute.xlu0 %1416
  %1418 = vrot.lane.b32.xlu0 %v1227, 12
  %v1419 = vpop.permute.xlu0 %1418
  %vm1484 = vcmask 130144
  %1485 = vst.msk [vmem:[#allocation3] sm:$0xff] %vm1484, %v1293
  %1486 = vst.msk [vmem:[#allocation3 + $0x8] sm:$0xff] %vm1484, %v1295
  %1487 = vst.msk [vmem:[#allocation3 + $0x10] sm:$0xff] %vm1484, %v1297
  %1488 = vst.msk [vmem:[#allocation3 + $0x18] sm:$0xff] %vm1484, %v1299
  %1489 = vst.msk [vmem:[#allocation3 + $0x20] sm:$0xff] %vm1484, %v1301
  %1490 = vst.msk [vmem:[#allocation3 + $0x28] sm:$0xff] %vm1484, %v1303
  %1491 = vst.msk [vmem:[#allocation3 + $0x30] sm:$0xff] %vm1484, %v1305
  %1492 = vst.msk [vmem:[#allocation3 + $0x38] sm:$0xff] %vm1484, %v1307
  %1493 = vst.msk [vmem:[#allocation3 + $0x40] sm:$0xff] %vm1484, %v1309
  %1494 = vst.msk [vmem:[#allocation3 + $0x48] sm:$0xff] %vm1484, %v1311
  %1495 = vst.msk [vmem:[#allocation3 + $0x50] sm:$0xff] %vm1484, %v1313
  %1496 = vst.msk [vmem:[#allocation3 + $0x58] sm:$0xff] %vm1484, %v1315
  %1497 = vst.msk [vmem:[#allocation3 + $0x60] sm:$0xff] %vm1484, %v1317
  %1498 = vst.msk [vmem:[#allocation3 + $0x68] sm:$0xff] %vm1484, %v1319
  %1499 = vst.msk [vmem:[#allocation3 + $0x70] sm:$0xff] %vm1484, %v1321
  %1500 = vst.msk [vmem:[#allocation3 + $0x78] sm:$0xff] %vm1484, %v1323
  %1501 = vst.msk [vmem:[#allocation3 + $0x80] sm:$0xff] %vm1484, %v1325
  %1502 = vst.msk [vmem:[#allocation3 + $0x88] sm:$0xff] %vm1484, %v1327
  %1503 = vst.msk [vmem:[#allocation3 + $0x90] sm:$0xff] %vm1484, %v1329
  %1504 = vst.msk [vmem:[#allocation3 + $0x98] sm:$0xff] %vm1484, %v1331
  %1505 = vst.msk [vmem:[#allocation3 + $0xa0] sm:$0xff] %vm1484, %v1333
  %1506 = vst.msk [vmem:[#allocation3 + $0xa8] sm:$0xff] %vm1484, %v1335
  %1507 = vst.msk [vmem:[#allocation3 + $0xb0] sm:$0xff] %vm1484, %v1337
  %1508 = vst.msk [vmem:[#allocation3 + $0xb8] sm:$0xff] %vm1484, %v1339
  %1509 = vst.msk [vmem:[#allocation3 + $0xc0] sm:$0xff] %vm1484, %v1341
  %1510 = vst.msk [vmem:[#allocation3 + $0xc8] sm:$0xff] %vm1484, %v1343
  %1511 = vst.msk [vmem:[#allocation3 + $0xd0] sm:$0xff] %vm1484, %v1345
  %1512 = vst.msk [vmem:[#allocation3 + $0xd8] sm:$0xff] %vm1484, %v1347
  %1513 = vst.msk [vmem:[#allocation3 + $0xe0] sm:$0xff] %vm1484, %v1349
  %1514 = vst.msk [vmem:[#allocation3 + $0xe8] sm:$0xff] %vm1484, %v1351
  %1515 = vst.msk [vmem:[#allocation3 + $0xf0] sm:$0xff] %vm1484, %v1353
  %1516 = vst.msk [vmem:[#allocation3 + $0xf8] sm:$0xff] %vm1484, %v1355
  %1517 = vst.msk [vmem:[#allocation3 + $0x100] sm:$0xff] %vm1484, %v1357
  %1518 = vst.msk [vmem:[#allocation3 + $0x108] sm:$0xff] %vm1484, %v1359
  %1519 = vst.msk [vmem:[#allocation3 + $0x110] sm:$0xff] %vm1484, %v1361
  %1520 = vst.msk [vmem:[#allocation3 + $0x118] sm:$0xff] %vm1484, %v1363
  %1521 = vst.msk [vmem:[#allocation3 + $0x120] sm:$0xff] %vm1484, %v1365
  %1522 = vst.msk [vmem:[#allocation3 + $0x128] sm:$0xff] %vm1484, %v1367
  %1523 = vst.msk [vmem:[#allocation3 + $0x130] sm:$0xff] %vm1484, %v1369
  %1524 = vst.msk [vmem:[#allocation3 + $0x138] sm:$0xff] %vm1484, %v1371
  %1525 = vst.msk [vmem:[#allocation3 + $0x140] sm:$0xff] %vm1484, %v1373
  %1526 = vst.msk [vmem:[#allocation3 + $0x148] sm:$0xff] %vm1484, %v1375
  %1527 = vst.msk [vmem:[#allocation3 + $0x150] sm:$0xff] %vm1484, %v1377
  %1528 = vst.msk [vmem:[#allocation3 + $0x158] sm:$0xff] %vm1484, %v1379
  %1529 = vst.msk [vmem:[#allocation3 + $0x160] sm:$0xff] %vm1484, %v1381
  %1530 = vst.msk [vmem:[#allocation3 + $0x168] sm:$0xff] %vm1484, %v1383
  %1531 = vst.msk [vmem:[#allocation3 + $0x170] sm:$0xff] %vm1484, %v1385
  %1532 = vst.msk [vmem:[#allocation3 + $0x178] sm:$0xff] %vm1484, %v1387
  %1533 = vst.msk [vmem:[#allocation3 + $0x180] sm:$0xff] %vm1484, %v1389
  %1534 = vst.msk [vmem:[#allocation3 + $0x188] sm:$0xff] %vm1484, %v1391
  %1535 = vst.msk [vmem:[#allocation3 + $0x190] sm:$0xff] %vm1484, %v1393
  %1536 = vst.msk [vmem:[#allocation3 + $0x198] sm:$0xff] %vm1484, %v1395
  %1537 = vst.msk [vmem:[#allocation3 + $0x1a0] sm:$0xff] %vm1484, %v1397
  %1538 = vst.msk [vmem:[#allocation3 + $0x1a8] sm:$0xff] %vm1484, %v1399
  %1539 = vst.msk [vmem:[#allocation3 + $0x1b0] sm:$0xff] %vm1484, %v1401
  %1540 = vst.msk [vmem:[#allocation3 + $0x1b8] sm:$0xff] %vm1484, %v1403
  %1541 = vst.msk [vmem:[#allocation3 + $0x1c0] sm:$0xff] %vm1484, %v1405
  %1542 = vst.msk [vmem:[#allocation3 + $0x1c8] sm:$0xff] %vm1484, %v1407
  %1543 = vst.msk [vmem:[#allocation3 + $0x1d0] sm:$0xff] %vm1484, %v1409
  %1544 = vst.msk [vmem:[#allocation3 + $0x1d8] sm:$0xff] %vm1484, %v1411
  %1545 = vst.msk [vmem:[#allocation3 + $0x1e0] sm:$0xff] %vm1484, %v1413
  %1546 = vst.msk [vmem:[#allocation3 + $0x1e8] sm:$0xff] %vm1484, %v1415
  %1547 = vst.msk [vmem:[#allocation3 + $0x1f0] sm:$0xff] %vm1484, %v1417
  %1548 = vst.msk [vmem:[#allocation3 + $0x1f8] sm:$0xff] %vm1484, %v1419
  %v1549 = vld [vmem:[%s201 + $0x1] sm:$0xff]
  %v1550 = vld [vmem:[%s201 + $0x9] sm:$0xff]
  %v1551 = vld [vmem:[%s201 + $0x19] sm:$0xff]
  %v1552 = vld [vmem:[%s201 + $0x21] sm:$0xff]
  %v1553 = vld [vmem:[%s201 + $0x31] sm:$0xff]
  %v1554 = vld [vmem:[%s201 + $0x39] sm:$0xff]
  %v1555 = vld [vmem:[%s201 + $0x49] sm:$0xff]
  %v1556 = vld [vmem:[%s201 + $0x51] sm:$0xff]
  %v1557 = vld [vmem:[%s201 + $0x61] sm:$0xff]
  %v1558 = vld [vmem:[%s201 + $0x69] sm:$0xff]
  %v1559 = vld [vmem:[%s201 + $0x79] sm:$0xff]
  %v1560 = vld [vmem:[%s201 + $0x81] sm:$0xff]
  %v1561 = vld [vmem:[%s201 + $0x91] sm:$0xff]
  %v1562 = vld [vmem:[%s201 + $0x99] sm:$0xff]
  %v1563 = vld [vmem:[%s201 + $0xa9] sm:$0xff]
  %v1564 = vld [vmem:[%s201 + $0xb1] sm:$0xff]
  %v1565 = vld [vmem:[%s201 + $0xc1] sm:$0xff]
  %v1566 = vld [vmem:[%s201 + $0xc9] sm:$0xff]
  %v1567 = vld [vmem:[%s201 + $0xd9] sm:$0xff]
  %v1568 = vld [vmem:[%s201 + $0xe1] sm:$0xff]
  %v1569 = vld [vmem:[%s201 + $0xf1] sm:$0xff]
  %v1570 = vld [vmem:[%s201 + $0xf9] sm:$0xff]
  %v1571 = vld [vmem:[%s201 + $0x109] sm:$0xff]
  %v1572 = vld [vmem:[%s201 + $0x111] sm:$0xff]
  %v1573 = vld [vmem:[%s201 + $0x121] sm:$0xff]
  %v1574 = vld [vmem:[%s201 + $0x129] sm:$0xff]
  %v1575 = vld [vmem:[%s201 + $0x139] sm:$0xff]
  %v1576 = vld [vmem:[%s201 + $0x141] sm:$0xff]
  %v1577 = vld [vmem:[%s201 + $0x151] sm:$0xff]
  %v1578 = vld [vmem:[%s201 + $0x159] sm:$0xff]
  %v1579 = vld [vmem:[%s201 + $0x169] sm:$0xff]
  %v1580 = vld [vmem:[%s201 + $0x171] sm:$0xff]
  %v1581 = vld [vmem:[%s201 + $0x1b1] sm:$0xff]
  %v1582 = vld [vmem:[%s201 + $0x1b9] sm:$0xff]
  %v1583 = vld [vmem:[%s201 + $0x1c9] sm:$0xff]
  %v1584 = vld [vmem:[%s201 + $0x1d1] sm:$0xff]
  %v1585 = vld [vmem:[%s201 + $0x1e1] sm:$0xff]
  %v1586 = vld [vmem:[%s201 + $0x1e9] sm:$0xff]
  %v1587 = vld [vmem:[%s201 + $0x1f9] sm:$0xff]
  %v1588 = vld [vmem:[%s201 + $0x201] sm:$0xff]
  %v1589 = vld [vmem:[%s201 + $0x211] sm:$0xff]
  %v1590 = vld [vmem:[%s201 + $0x219] sm:$0xff]
  %v1591 = vld [vmem:[%s201 + $0x229] sm:$0xff]
  %v1592 = vld [vmem:[%s201 + $0x231] sm:$0xff]
  %v1593 = vld [vmem:[%s201 + $0x241] sm:$0xff]
  %v1594 = vld [vmem:[%s201 + $0x249] sm:$0xff]
  %v1595 = vld [vmem:[%s201 + $0x259] sm:$0xff]
  %v1596 = vld [vmem:[%s201 + $0x261] sm:$0xff]
  %v1597 = vld [vmem:[%s201 + $0x271] sm:$0xff]
  %v1598 = vld [vmem:[%s201 + $0x279] sm:$0xff]
  %v1599 = vld [vmem:[%s201 + $0x289] sm:$0xff]
  %v1600 = vld [vmem:[%s201 + $0x291] sm:$0xff]
  %v1601 = vld [vmem:[%s201 + $0x2a1] sm:$0xff]
  %v1602 = vld [vmem:[%s201 + $0x2a9] sm:$0xff]
  %v1603 = vld [vmem:[%s201 + $0x2b9] sm:$0xff]
  %v1604 = vld [vmem:[%s201 + $0x2c1] sm:$0xff]
  %v1605 = vld [vmem:[%s201 + $0x2d1] sm:$0xff]
  %v1606 = vld [vmem:[%s201 + $0x2d9] sm:$0xff]
  %v1607 = vld [vmem:[%s201 + $0x2e9] sm:$0xff]
  %v1608 = vld [vmem:[%s201 + $0x2f1] sm:$0xff]
  %v1609 = vld [vmem:[%s201 + $0x301] sm:$0xff]
  %v1610 = vld [vmem:[%s201 + $0x309] sm:$0xff]
  %v1611 = vld [vmem:[%s201 + $0x319] sm:$0xff]
  %v1612 = vld [vmem:[%s201 + $0x321] sm:$0xff]
  %1677 = vrot.lane.b32.xlu0 %v1549, 16
  %v1678 = vpop.permute.xlu0 %1677
  %1679 = vrot.lane.b32.xlu0 %v1550, 16
  %v1680 = vpop.permute.xlu0 %1679
  %1681 = vrot.lane.b32.xlu0 %v1551, 16
  %v1682 = vpop.permute.xlu0 %1681
  %1683 = vrot.lane.b32.xlu0 %v1552, 16
  %v1684 = vpop.permute.xlu0 %1683
  %1685 = vrot.lane.b32.xlu0 %v1553, 16
  %v1686 = vpop.permute.xlu0 %1685
  %1687 = vrot.lane.b32.xlu0 %v1554, 16
  %v1688 = vpop.permute.xlu0 %1687
  %1689 = vrot.lane.b32.xlu0 %v1555, 16
  %v1690 = vpop.permute.xlu0 %1689
  %1691 = vrot.lane.b32.xlu0 %v1556, 16
  %v1692 = vpop.permute.xlu0 %1691
  %1693 = vrot.lane.b32.xlu0 %v1557, 16
  %v1694 = vpop.permute.xlu0 %1693
  %1695 = vrot.lane.b32.xlu0 %v1558, 16
  %v1696 = vpop.permute.xlu0 %1695
  %1697 = vrot.lane.b32.xlu0 %v1559, 16
  %v1698 = vpop.permute.xlu0 %1697
  %1699 = vrot.lane.b32.xlu0 %v1560, 16
  %v1700 = vpop.permute.xlu0 %1699
  %1701 = vrot.lane.b32.xlu0 %v1561, 16
  %v1702 = vpop.permute.xlu0 %1701
  %1703 = vrot.lane.b32.xlu0 %v1562, 16
  %v1704 = vpop.permute.xlu0 %1703
  %1705 = vrot.lane.b32.xlu0 %v1563, 16
  %v1706 = vpop.permute.xlu0 %1705
  %1707 = vrot.lane.b32.xlu0 %v1564, 16
  %v1708 = vpop.permute.xlu0 %1707
  %1709 = vrot.lane.b32.xlu0 %v1565, 16
  %v1710 = vpop.permute.xlu0 %1709
  %1711 = vrot.lane.b32.xlu0 %v1566, 16
  %v1712 = vpop.permute.xlu0 %1711
  %1713 = vrot.lane.b32.xlu0 %v1567, 16
  %v1714 = vpop.permute.xlu0 %1713
  %1715 = vrot.lane.b32.xlu0 %v1568, 16
  %v1716 = vpop.permute.xlu0 %1715
  %1717 = vrot.lane.b32.xlu0 %v1569, 16
  %v1718 = vpop.permute.xlu0 %1717
  %1719 = vrot.lane.b32.xlu0 %v1570, 16
  %v1720 = vpop.permute.xlu0 %1719
  %1721 = vrot.lane.b32.xlu0 %v1571, 16
  %v1722 = vpop.permute.xlu0 %1721
  %1723 = vrot.lane.b32.xlu0 %v1572, 16
  %v1724 = vpop.permute.xlu0 %1723
  %1725 = vrot.lane.b32.xlu0 %v1573, 16
  %v1726 = vpop.permute.xlu0 %1725
  %1727 = vrot.lane.b32.xlu0 %v1574, 16
  %v1728 = vpop.permute.xlu0 %1727
  %1729 = vrot.lane.b32.xlu0 %v1575, 16
  %v1730 = vpop.permute.xlu0 %1729
  %1731 = vrot.lane.b32.xlu0 %v1576, 16
  %v1732 = vpop.permute.xlu0 %1731
  %1733 = vrot.lane.b32.xlu0 %v1577, 16
  %v1734 = vpop.permute.xlu0 %1733
  %1735 = vrot.lane.b32.xlu0 %v1578, 16
  %v1736 = vpop.permute.xlu0 %1735
  %1737 = vrot.lane.b32.xlu0 %v1579, 16
  %v1738 = vpop.permute.xlu0 %1737
  %1739 = vrot.lane.b32.xlu0 %v1580, 16
  %v1740 = vpop.permute.xlu0 %1739
  %1741 = vrot.lane.b32.xlu0 %v1581, 16
  %v1742 = vpop.permute.xlu0 %1741
  %1743 = vrot.lane.b32.xlu0 %v1582, 16
  %v1744 = vpop.permute.xlu0 %1743
  %1745 = vrot.lane.b32.xlu0 %v1583, 16
  %v1746 = vpop.permute.xlu0 %1745
  %1747 = vrot.lane.b32.xlu0 %v1584, 16
  %v1748 = vpop.permute.xlu0 %1747
  %1749 = vrot.lane.b32.xlu0 %v1585, 16
  %v1750 = vpop.permute.xlu0 %1749
  %1751 = vrot.lane.b32.xlu0 %v1586, 16
  %v1752 = vpop.permute.xlu0 %1751
  %1753 = vrot.lane.b32.xlu0 %v1587, 16
  %v1754 = vpop.permute.xlu0 %1753
  %1755 = vrot.lane.b32.xlu0 %v1588, 16
  %v1756 = vpop.permute.xlu0 %1755
  %1757 = vrot.lane.b32.xlu0 %v1589, 16
  %v1758 = vpop.permute.xlu0 %1757
  %1759 = vrot.lane.b32.xlu0 %v1590, 16
  %v1760 = vpop.permute.xlu0 %1759
  %1761 = vrot.lane.b32.xlu0 %v1591, 16
  %v1762 = vpop.permute.xlu0 %1761
  %1763 = vrot.lane.b32.xlu0 %v1592, 16
  %v1764 = vpop.permute.xlu0 %1763
  %1765 = vrot.lane.b32.xlu0 %v1593, 16
  %v1766 = vpop.permute.xlu0 %1765
  %1767 = vrot.lane.b32.xlu0 %v1594, 16
  %v1768 = vpop.permute.xlu0 %1767
  %1769 = vrot.lane.b32.xlu0 %v1595, 16
  %v1770 = vpop.permute.xlu0 %1769
  %1771 = vrot.lane.b32.xlu0 %v1596, 16
  %v1772 = vpop.permute.xlu0 %1771
  %1773 = vrot.lane.b32.xlu0 %v1597, 16
  %v1774 = vpop.permute.xlu0 %1773
  %1775 = vrot.lane.b32.xlu0 %v1598, 16
  %v1776 = vpop.permute.xlu0 %1775
  %1777 = vrot.lane.b32.xlu0 %v1599, 16
  %v1778 = vpop.permute.xlu0 %1777
  %1779 = vrot.lane.b32.xlu0 %v1600, 16
  %v1780 = vpop.permute.xlu0 %1779
  %1781 = vrot.lane.b32.xlu0 %v1601, 16
  %v1782 = vpop.permute.xlu0 %1781
  %1783 = vrot.lane.b32.xlu0 %v1602, 16
  %v1784 = vpop.permute.xlu0 %1783
  %1785 = vrot.lane.b32.xlu0 %v1603, 16
  %v1786 = vpop.permute.xlu0 %1785
  %1787 = vrot.lane.b32.xlu0 %v1604, 16
  %v1788 = vpop.permute.xlu0 %1787
  %1789 = vrot.lane.b32.xlu0 %v1605, 16
  %v1790 = vpop.permute.xlu0 %1789
  %1791 = vrot.lane.b32.xlu0 %v1606, 16
  %v1792 = vpop.permute.xlu0 %1791
  %1793 = vrot.lane.b32.xlu0 %v1607, 16
  %v1794 = vpop.permute.xlu0 %1793
  %1795 = vrot.lane.b32.xlu0 %v1608, 16
  %v1796 = vpop.permute.xlu0 %1795
  %1797 = vrot.lane.b32.xlu0 %v1609, 16
  %v1798 = vpop.permute.xlu0 %1797
  %1799 = vrot.lane.b32.xlu0 %v1610, 16
  %v1800 = vpop.permute.xlu0 %1799
  %1801 = vrot.lane.b32.xlu0 %v1611, 16
  %v1802 = vpop.permute.xlu0 %1801
  %1803 = vrot.lane.b32.xlu0 %v1612, 16
  %v1804 = vpop.permute.xlu0 %1803
  %vm1869 = vcmask 162944
  %1870 = vst.msk [vmem:[#allocation3] sm:$0xff] %vm1869, %v1678
  %1871 = vst.msk [vmem:[#allocation3 + $0x8] sm:$0xff] %vm1869, %v1680
  %1872 = vst.msk [vmem:[#allocation3 + $0x10] sm:$0xff] %vm1869, %v1682
  %1873 = vst.msk [vmem:[#allocation3 + $0x18] sm:$0xff] %vm1869, %v1684
  %1874 = vst.msk [vmem:[#allocation3 + $0x20] sm:$0xff] %vm1869, %v1686
  %1875 = vst.msk [vmem:[#allocation3 + $0x28] sm:$0xff] %vm1869, %v1688
  %1876 = vst.msk [vmem:[#allocation3 + $0x30] sm:$0xff] %vm1869, %v1690
  %1877 = vst.msk [vmem:[#allocation3 + $0x38] sm:$0xff] %vm1869, %v1692
  %1878 = vst.msk [vmem:[#allocation3 + $0x40] sm:$0xff] %vm1869, %v1694
  %1879 = vst.msk [vmem:[#allocation3 + $0x48] sm:$0xff] %vm1869, %v1696
  %1880 = vst.msk [vmem:[#allocation3 + $0x50] sm:$0xff] %vm1869, %v1698
  %1881 = vst.msk [vmem:[#allocation3 + $0x58] sm:$0xff] %vm1869, %v1700
  %1882 = vst.msk [vmem:[#allocation3 + $0x60] sm:$0xff] %vm1869, %v1702
  %1883 = vst.msk [vmem:[#allocation3 + $0x68] sm:$0xff] %vm1869, %v1704
  %1884 = vst.msk [vmem:[#allocation3 + $0x70] sm:$0xff] %vm1869, %v1706
  %1885 = vst.msk [vmem:[#allocation3 + $0x78] sm:$0xff] %vm1869, %v1708
  %1886 = vst.msk [vmem:[#allocation3 + $0x80] sm:$0xff] %vm1869, %v1710
  %1887 = vst.msk [vmem:[#allocation3 + $0x88] sm:$0xff] %vm1869, %v1712
  %1888 = vst.msk [vmem:[#allocation3 + $0x90] sm:$0xff] %vm1869, %v1714
  %1889 = vst.msk [vmem:[#allocation3 + $0x98] sm:$0xff] %vm1869, %v1716
  %1890 = vst.msk [vmem:[#allocation3 + $0xa0] sm:$0xff] %vm1869, %v1718
  %1891 = vst.msk [vmem:[#allocation3 + $0xa8] sm:$0xff] %vm1869, %v1720
  %1892 = vst.msk [vmem:[#allocation3 + $0xb0] sm:$0xff] %vm1869, %v1722
  %1893 = vst.msk [vmem:[#allocation3 + $0xb8] sm:$0xff] %vm1869, %v1724
  %1894 = vst.msk [vmem:[#allocation3 + $0xc0] sm:$0xff] %vm1869, %v1726
  %1895 = vst.msk [vmem:[#allocation3 + $0xc8] sm:$0xff] %vm1869, %v1728
  %1896 = vst.msk [vmem:[#allocation3 + $0xd0] sm:$0xff] %vm1869, %v1730
  %1897 = vst.msk [vmem:[#allocation3 + $0xd8] sm:$0xff] %vm1869, %v1732
  %1898 = vst.msk [vmem:[#allocation3 + $0xe0] sm:$0xff] %vm1869, %v1734
  %1899 = vst.msk [vmem:[#allocation3 + $0xe8] sm:$0xff] %vm1869, %v1736
  %1900 = vst.msk [vmem:[#allocation3 + $0xf0] sm:$0xff] %vm1869, %v1738
  %1901 = vst.msk [vmem:[#allocation3 + $0xf8] sm:$0xff] %vm1869, %v1740
  %1902 = vst.msk [vmem:[#allocation3 + $0x100] sm:$0xff] %vm1869, %v1742
  %1903 = vst.msk [vmem:[#allocation3 + $0x108] sm:$0xff] %vm1869, %v1744
  %1904 = vst.msk [vmem:[#allocation3 + $0x110] sm:$0xff] %vm1869, %v1746
  %1905 = vst.msk [vmem:[#allocation3 + $0x118] sm:$0xff] %vm1869, %v1748
  %1906 = vst.msk [vmem:[#allocation3 + $0x120] sm:$0xff] %vm1869, %v1750
  %1907 = vst.msk [vmem:[#allocation3 + $0x128] sm:$0xff] %vm1869, %v1752
  %1908 = vst.msk [vmem:[#allocation3 + $0x130] sm:$0xff] %vm1869, %v1754
  %1909 = vst.msk [vmem:[#allocation3 + $0x138] sm:$0xff] %vm1869, %v1756
  %1910 = vst.msk [vmem:[#allocation3 + $0x140] sm:$0xff] %vm1869, %v1758
  %1911 = vst.msk [vmem:[#allocation3 + $0x148] sm:$0xff] %vm1869, %v1760
  %1912 = vst.msk [vmem:[#allocation3 + $0x150] sm:$0xff] %vm1869, %v1762
  %1913 = vst.msk [vmem:[#allocation3 + $0x158] sm:$0xff] %vm1869, %v1764
  %1914 = vst.msk [vmem:[#allocation3 + $0x160] sm:$0xff] %vm1869, %v1766
  %1915 = vst.msk [vmem:[#allocation3 + $0x168] sm:$0xff] %vm1869, %v1768
  %1916 = vst.msk [vmem:[#allocation3 + $0x170] sm:$0xff] %vm1869, %v1770
  %1917 = vst.msk [vmem:[#allocation3 + $0x178] sm:$0xff] %vm1869, %v1772
  %1918 = vst.msk [vmem:[#allocation3 + $0x180] sm:$0xff] %vm1869, %v1774
  %1919 = vst.msk [vmem:[#allocation3 + $0x188] sm:$0xff] %vm1869, %v1776
  %1920 = vst.msk [vmem:[#allocation3 + $0x190] sm:$0xff] %vm1869, %v1778
  %1921 = vst.msk [vmem:[#allocation3 + $0x198] sm:$0xff] %vm1869, %v1780
  %1922 = vst.msk [vmem:[#allocation3 + $0x1a0] sm:$0xff] %vm1869, %v1782
  %1923 = vst.msk [vmem:[#allocation3 + $0x1a8] sm:$0xff] %vm1869, %v1784
  %1924 = vst.msk [vmem:[#allocation3 + $0x1b0] sm:$0xff] %vm1869, %v1786
  %1925 = vst.msk [vmem:[#allocation3 + $0x1b8] sm:$0xff] %vm1869, %v1788
  %1926 = vst.msk [vmem:[#allocation3 + $0x1c0] sm:$0xff] %vm1869, %v1790
  %1927 = vst.msk [vmem:[#allocation3 + $0x1c8] sm:$0xff] %vm1869, %v1792
  %1928 = vst.msk [vmem:[#allocation3 + $0x1d0] sm:$0xff] %vm1869, %v1794
  %1929 = vst.msk [vmem:[#allocation3 + $0x1d8] sm:$0xff] %vm1869, %v1796
  %1930 = vst.msk [vmem:[#allocation3 + $0x1e0] sm:$0xff] %vm1869, %v1798
  %1931 = vst.msk [vmem:[#allocation3 + $0x1e8] sm:$0xff] %vm1869, %v1800
  %1932 = vst.msk [vmem:[#allocation3 + $0x1f0] sm:$0xff] %vm1869, %v1802
  %1933 = vst.msk [vmem:[#allocation3 + $0x1f8] sm:$0xff] %vm1869, %v1804
  %v1934 = vld [vmem:[%s201 + $0x2] sm:$0xff]
  %v1935 = vld [vmem:[%s201 + $0xa] sm:$0xff]
  %v1936 = vld [vmem:[%s201 + $0x1a] sm:$0xff]
  %v1937 = vld [vmem:[%s201 + $0x22] sm:$0xff]
  %v1938 = vld [vmem:[%s201 + $0x32] sm:$0xff]
  %v1939 = vld [vmem:[%s201 + $0x3a] sm:$0xff]
  %v1940 = vld [vmem:[%s201 + $0x4a] sm:$0xff]
  %v1941 = vld [vmem:[%s201 + $0x52] sm:$0xff]
  %v1942 = vld [vmem:[%s201 + $0x62] sm:$0xff]
  %v1943 = vld [vmem:[%s201 + $0x6a] sm:$0xff]
  %v1944 = vld [vmem:[%s201 + $0x7a] sm:$0xff]
  %v1945 = vld [vmem:[%s201 + $0x82] sm:$0xff]
  %v1946 = vld [vmem:[%s201 + $0x92] sm:$0xff]
  %v1947 = vld [vmem:[%s201 + $0x9a] sm:$0xff]
  %v1948 = vld [vmem:[%s201 + $0xaa] sm:$0xff]
  %v1949 = vld [vmem:[%s201 + $0xb2] sm:$0xff]
  %v1950 = vld [vmem:[%s201 + $0xc2] sm:$0xff]
  %v1951 = vld [vmem:[%s201 + $0xca] sm:$0xff]
  %v1952 = vld [vmem:[%s201 + $0xda] sm:$0xff]
  %v1953 = vld [vmem:[%s201 + $0xe2] sm:$0xff]
  %v1954 = vld [vmem:[%s201 + $0xf2] sm:$0xff]
  %v1955 = vld [vmem:[%s201 + $0xfa] sm:$0xff]
  %v1956 = vld [vmem:[%s201 + $0x10a] sm:$0xff]
  %v1957 = vld [vmem:[%s201 + $0x112] sm:$0xff]
  %v1958 = vld [vmem:[%s201 + $0x122] sm:$0xff]
  %v1959 = vld [vmem:[%s201 + $0x12a] sm:$0xff]
  %v1960 = vld [vmem:[%s201 + $0x13a] sm:$0xff]
  %v1961 = vld [vmem:[%s201 + $0x142] sm:$0xff]
  %v1962 = vld [vmem:[%s201 + $0x152] sm:$0xff]
  %v1963 = vld [vmem:[%s201 + $0x15a] sm:$0xff]
  %v1964 = vld [vmem:[%s201 + $0x16a] sm:$0xff]
  %v1965 = vld [vmem:[%s201 + $0x172] sm:$0xff]
  %v1966 = vld [vmem:[%s201 + $0x1b2] sm:$0xff]
  %v1967 = vld [vmem:[%s201 + $0x1ba] sm:$0xff]
  %v1968 = vld [vmem:[%s201 + $0x1ca] sm:$0xff]
  %v1969 = vld [vmem:[%s201 + $0x1d2] sm:$0xff]
  %v1970 = vld [vmem:[%s201 + $0x1e2] sm:$0xff]
  %v1971 = vld [vmem:[%s201 + $0x1ea] sm:$0xff]
  %v1972 = vld [vmem:[%s201 + $0x1fa] sm:$0xff]
  %v1973 = vld [vmem:[%s201 + $0x202] sm:$0xff]
  %v1974 = vld [vmem:[%s201 + $0x212] sm:$0xff]
  %v1975 = vld [vmem:[%s201 + $0x21a] sm:$0xff]
  %v1976 = vld [vmem:[%s201 + $0x22a] sm:$0xff]
  %v1977 = vld [vmem:[%s201 + $0x232] sm:$0xff]
  %v1978 = vld [vmem:[%s201 + $0x242] sm:$0xff]
  %v1979 = vld [vmem:[%s201 + $0x24a] sm:$0xff]
  %v1980 = vld [vmem:[%s201 + $0x25a] sm:$0xff]
  %v1981 = vld [vmem:[%s201 + $0x262] sm:$0xff]
  %v1982 = vld [vmem:[%s201 + $0x272] sm:$0xff]
  %v1983 = vld [vmem:[%s201 + $0x27a] sm:$0xff]
  %v1984 = vld [vmem:[%s201 + $0x28a] sm:$0xff]
  %v1985 = vld [vmem:[%s201 + $0x292] sm:$0xff]
  %v1986 = vld [vmem:[%s201 + $0x2a2] sm:$0xff]
  %v1987 = vld [vmem:[%s201 + $0x2aa] sm:$0xff]
  %v1988 = vld [vmem:[%s201 + $0x2ba] sm:$0xff]
  %v1989 = vld [vmem:[%s201 + $0x2c2] sm:$0xff]
  %v1990 = vld [vmem:[%s201 + $0x2d2] sm:$0xff]
  %v1991 = vld [vmem:[%s201 + $0x2da] sm:$0xff]
  %v1992 = vld [vmem:[%s201 + $0x2ea] sm:$0xff]
  %v1993 = vld [vmem:[%s201 + $0x2f2] sm:$0xff]
  %v1994 = vld [vmem:[%s201 + $0x302] sm:$0xff]
  %v1995 = vld [vmem:[%s201 + $0x30a] sm:$0xff]
  %v1996 = vld [vmem:[%s201 + $0x31a] sm:$0xff]
  %v1997 = vld [vmem:[%s201 + $0x322] sm:$0xff]
  %2062 = vrot.lane.b32.xlu0 %v1934, 20
  %v2063 = vpop.permute.xlu0 %2062
  %2064 = vrot.lane.b32.xlu0 %v1935, 20
  %v2065 = vpop.permute.xlu0 %2064
  %2066 = vrot.lane.b32.xlu0 %v1936, 20
  %v2067 = vpop.permute.xlu0 %2066
  %2068 = vrot.lane.b32.xlu0 %v1937, 20
  %v2069 = vpop.permute.xlu0 %2068
  %2070 = vrot.lane.b32.xlu0 %v1938, 20
  %v2071 = vpop.permute.xlu0 %2070
  %2072 = vrot.lane.b32.xlu0 %v1939, 20
  %v2073 = vpop.permute.xlu0 %2072
  %2074 = vrot.lane.b32.xlu0 %v1940, 20
  %v2075 = vpop.permute.xlu0 %2074
  %2076 = vrot.lane.b32.xlu0 %v1941, 20
  %v2077 = vpop.permute.xlu0 %2076
  %2078 = vrot.lane.b32.xlu0 %v1942, 20
  %v2079 = vpop.permute.xlu0 %2078
  %2080 = vrot.lane.b32.xlu0 %v1943, 20
  %v2081 = vpop.permute.xlu0 %2080
  %2082 = vrot.lane.b32.xlu0 %v1944, 20
  %v2083 = vpop.permute.xlu0 %2082
  %2084 = vrot.lane.b32.xlu0 %v1945, 20
  %v2085 = vpop.permute.xlu0 %2084
  %2086 = vrot.lane.b32.xlu0 %v1946, 20
  %v2087 = vpop.permute.xlu0 %2086
  %2088 = vrot.lane.b32.xlu0 %v1947, 20
  %v2089 = vpop.permute.xlu0 %2088
  %2090 = vrot.lane.b32.xlu0 %v1948, 20
  %v2091 = vpop.permute.xlu0 %2090
  %2092 = vrot.lane.b32.xlu0 %v1949, 20
  %v2093 = vpop.permute.xlu0 %2092
  %2094 = vrot.lane.b32.xlu0 %v1950, 20
  %v2095 = vpop.permute.xlu0 %2094
  %2096 = vrot.lane.b32.xlu0 %v1951, 20
  %v2097 = vpop.permute.xlu0 %2096
  %2098 = vrot.lane.b32.xlu0 %v1952, 20
  %v2099 = vpop.permute.xlu0 %2098
  %2100 = vrot.lane.b32.xlu0 %v1953, 20
  %v2101 = vpop.permute.xlu0 %2100
  %2102 = vrot.lane.b32.xlu0 %v1954, 20
  %v2103 = vpop.permute.xlu0 %2102
  %2104 = vrot.lane.b32.xlu0 %v1955, 20
  %v2105 = vpop.permute.xlu0 %2104
  %2106 = vrot.lane.b32.xlu0 %v1956, 20
  %v2107 = vpop.permute.xlu0 %2106
  %2108 = vrot.lane.b32.xlu0 %v1957, 20
  %v2109 = vpop.permute.xlu0 %2108
  %2110 = vrot.lane.b32.xlu0 %v1958, 20
  %v2111 = vpop.permute.xlu0 %2110
  %2112 = vrot.lane.b32.xlu0 %v1959, 20
  %v2113 = vpop.permute.xlu0 %2112
  %2114 = vrot.lane.b32.xlu0 %v1960, 20
  %v2115 = vpop.permute.xlu0 %2114
  %2116 = vrot.lane.b32.xlu0 %v1961, 20
  %v2117 = vpop.permute.xlu0 %2116
  %2118 = vrot.lane.b32.xlu0 %v1962, 20
  %v2119 = vpop.permute.xlu0 %2118
  %2120 = vrot.lane.b32.xlu0 %v1963, 20
  %v2121 = vpop.permute.xlu0 %2120
  %2122 = vrot.lane.b32.xlu0 %v1964, 20
  %v2123 = vpop.permute.xlu0 %2122
  %2124 = vrot.lane.b32.xlu0 %v1965, 20
  %v2125 = vpop.permute.xlu0 %2124
  %2126 = vrot.lane.b32.xlu0 %v1966, 20
  %v2127 = vpop.permute.xlu0 %2126
  %2128 = vrot.lane.b32.xlu0 %v1967, 20
  %v2129 = vpop.permute.xlu0 %2128
  %2130 = vrot.lane.b32.xlu0 %v1968, 20
  %v2131 = vpop.permute.xlu0 %2130
  %2132 = vrot.lane.b32.xlu0 %v1969, 20
  %v2133 = vpop.permute.xlu0 %2132
  %2134 = vrot.lane.b32.xlu0 %v1970, 20
  %v2135 = vpop.permute.xlu0 %2134
  %2136 = vrot.lane.b32.xlu0 %v1971, 20
  %v2137 = vpop.permute.xlu0 %2136
  %2138 = vrot.lane.b32.xlu0 %v1972, 20
  %v2139 = vpop.permute.xlu0 %2138
  %2140 = vrot.lane.b32.xlu0 %v1973, 20
  %v2141 = vpop.permute.xlu0 %2140
  %2142 = vrot.lane.b32.xlu0 %v1974, 20
  %v2143 = vpop.permute.xlu0 %2142
  %2144 = vrot.lane.b32.xlu0 %v1975, 20
  %v2145 = vpop.permute.xlu0 %2144
  %2146 = vrot.lane.b32.xlu0 %v1976, 20
  %v2147 = vpop.permute.xlu0 %2146
  %2148 = vrot.lane.b32.xlu0 %v1977, 20
  %v2149 = vpop.permute.xlu0 %2148
  %2150 = vrot.lane.b32.xlu0 %v1978, 20
  %v2151 = vpop.permute.xlu0 %2150
  %2152 = vrot.lane.b32.xlu0 %v1979, 20
  %v2153 = vpop.permute.xlu0 %2152
  %2154 = vrot.lane.b32.xlu0 %v1980, 20
  %v2155 = vpop.permute.xlu0 %2154
  %2156 = vrot.lane.b32.xlu0 %v1981, 20
  %v2157 = vpop.permute.xlu0 %2156
  %2158 = vrot.lane.b32.xlu0 %v1982, 20
  %v2159 = vpop.permute.xlu0 %2158
  %2160 = vrot.lane.b32.xlu0 %v1983, 20
  %v2161 = vpop.permute.xlu0 %2160
  %2162 = vrot.lane.b32.xlu0 %v1984, 20
  %v2163 = vpop.permute.xlu0 %2162
  %2164 = vrot.lane.b32.xlu0 %v1985, 20
  %v2165 = vpop.permute.xlu0 %2164
  %2166 = vrot.lane.b32.xlu0 %v1986, 20
  %v2167 = vpop.permute.xlu0 %2166
  %2168 = vrot.lane.b32.xlu0 %v1987, 20
  %v2169 = vpop.permute.xlu0 %2168
  %2170 = vrot.lane.b32.xlu0 %v1988, 20
  %v2171 = vpop.permute.xlu0 %2170
  %2172 = vrot.lane.b32.xlu0 %v1989, 20
  %v2173 = vpop.permute.xlu0 %2172
  %2174 = vrot.lane.b32.xlu0 %v1990, 20
  %v2175 = vpop.permute.xlu0 %2174
  %2176 = vrot.lane.b32.xlu0 %v1991, 20
  %v2177 = vpop.permute.xlu0 %2176
  %2178 = vrot.lane.b32.xlu0 %v1992, 20
  %v2179 = vpop.permute.xlu0 %2178
  %2180 = vrot.lane.b32.xlu0 %v1993, 20
  %v2181 = vpop.permute.xlu0 %2180
  %2182 = vrot.lane.b32.xlu0 %v1994, 20
  %v2183 = vpop.permute.xlu0 %2182
  %2184 = vrot.lane.b32.xlu0 %v1995, 20
  %v2185 = vpop.permute.xlu0 %2184
  %2186 = vrot.lane.b32.xlu0 %v1996, 20
  %v2187 = vpop.permute.xlu0 %2186
  %2188 = vrot.lane.b32.xlu0 %v1997, 20
  %v2189 = vpop.permute.xlu0 %2188
  %vm2254 = vcmask 195744
  %2255 = vst.msk [vmem:[#allocation3] sm:$0xff] %vm2254, %v2063
  %2256 = vst.msk [vmem:[#allocation3 + $0x8] sm:$0xff] %vm2254, %v2065
  %2257 = vst.msk [vmem:[#allocation3 + $0x10] sm:$0xff] %vm2254, %v2067
  %2258 = vst.msk [vmem:[#allocation3 + $0x18] sm:$0xff] %vm2254, %v2069
  %2259 = vst.msk [vmem:[#allocation3 + $0x20] sm:$0xff] %vm2254, %v2071
  %2260 = vst.msk [vmem:[#allocation3 + $0x28] sm:$0xff] %vm2254, %v2073
  %2261 = vst.msk [vmem:[#allocation3 + $0x30] sm:$0xff] %vm2254, %v2075
  %2262 = vst.msk [vmem:[#allocation3 + $0x38] sm:$0xff] %vm2254, %v2077
  %2263 = vst.msk [vmem:[#allocation3 + $0x40] sm:$0xff] %vm2254, %v2079
  %2264 = vst.msk [vmem:[#allocation3 + $0x48] sm:$0xff] %vm2254, %v2081
  %2265 = vst.msk [vmem:[#allocation3 + $0x50] sm:$0xff] %vm2254, %v2083
  %2266 = vst.msk [vmem:[#allocation3 + $0x58] sm:$0xff] %vm2254, %v2085
  %2267 = vst.msk [vmem:[#allocation3 + $0x60] sm:$0xff] %vm2254, %v2087
  %2268 = vst.msk [vmem:[#allocation3 + $0x68] sm:$0xff] %vm2254, %v2089
  %2269 = vst.msk [vmem:[#allocation3 + $0x70] sm:$0xff] %vm2254, %v2091
  %2270 = vst.msk [vmem:[#allocation3 + $0x78] sm:$0xff] %vm2254, %v2093
  %2271 = vst.msk [vmem:[#allocation3 + $0x80] sm:$0xff] %vm2254, %v2095
  %2272 = vst.msk [vmem:[#allocation3 + $0x88] sm:$0xff] %vm2254, %v2097
  %2273 = vst.msk [vmem:[#allocation3 + $0x90] sm:$0xff] %vm2254, %v2099
  %2274 = vst.msk [vmem:[#allocation3 + $0x98] sm:$0xff] %vm2254, %v2101
  %2275 = vst.msk [vmem:[#allocation3 + $0xa0] sm:$0xff] %vm2254, %v2103
  %2276 = vst.msk [vmem:[#allocation3 + $0xa8] sm:$0xff] %vm2254, %v2105
  %2277 = vst.msk [vmem:[#allocation3 + $0xb0] sm:$0xff] %vm2254, %v2107
  %2278 = vst.msk [vmem:[#allocation3 + $0xb8] sm:$0xff] %vm2254, %v2109
  %2279 = vst.msk [vmem:[#allocation3 + $0xc0] sm:$0xff] %vm2254, %v2111
  %2280 = vst.msk [vmem:[#allocation3 + $0xc8] sm:$0xff] %vm2254, %v2113
  %2281 = vst.msk [vmem:[#allocation3 + $0xd0] sm:$0xff] %vm2254, %v2115
  %2282 = vst.msk [vmem:[#allocation3 + $0xd8] sm:$0xff] %vm2254, %v2117
  %2283 = vst.msk [vmem:[#allocation3 + $0xe0] sm:$0xff] %vm2254, %v2119
  %2284 = vst.msk [vmem:[#allocation3 + $0xe8] sm:$0xff] %vm2254, %v2121
  %2285 = vst.msk [vmem:[#allocation3 + $0xf0] sm:$0xff] %vm2254, %v2123
  %2286 = vst.msk [vmem:[#allocation3 + $0xf8] sm:$0xff] %vm2254, %v2125
  %2287 = vst.msk [vmem:[#allocation3 + $0x100] sm:$0xff] %vm2254, %v2127
  %2288 = vst.msk [vmem:[#allocation3 + $0x108] sm:$0xff] %vm2254, %v2129
  %2289 = vst.msk [vmem:[#allocation3 + $0x110] sm:$0xff] %vm2254, %v2131
  %2290 = vst.msk [vmem:[#allocation3 + $0x118] sm:$0xff] %vm2254, %v2133
  %2291 = vst.msk [vmem:[#allocation3 + $0x120] sm:$0xff] %vm2254, %v2135
  %2292 = vst.msk [vmem:[#allocation3 + $0x128] sm:$0xff] %vm2254, %v2137
  %2293 = vst.msk [vmem:[#allocation3 + $0x130] sm:$0xff] %vm2254, %v2139
  %2294 = vst.msk [vmem:[#allocation3 + $0x138] sm:$0xff] %vm2254, %v2141
  %2295 = vst.msk [vmem:[#allocation3 + $0x140] sm:$0xff] %vm2254, %v2143
  %2296 = vst.msk [vmem:[#allocation3 + $0x148] sm:$0xff] %vm2254, %v2145
  %2297 = vst.msk [vmem:[#allocation3 + $0x150] sm:$0xff] %vm2254, %v2147
  %2298 = vst.msk [vmem:[#allocation3 + $0x158] sm:$0xff] %vm2254, %v2149
  %2299 = vst.msk [vmem:[#allocation3 + $0x160] sm:$0xff] %vm2254, %v2151
  %2300 = vst.msk [vmem:[#allocation3 + $0x168] sm:$0xff] %vm2254, %v2153
  %2301 = vst.msk [vmem:[#allocation3 + $0x170] sm:$0xff] %vm2254, %v2155
  %2302 = vst.msk [vmem:[#allocation3 + $0x178] sm:$0xff] %vm2254, %v2157
  %2303 = vst.msk [vmem:[#allocation3 + $0x180] sm:$0xff] %vm2254, %v2159
  %2304 = vst.msk [vmem:[#allocation3 + $0x188] sm:$0xff] %vm2254, %v2161
  %2305 = vst.msk [vmem:[#allocation3 + $0x190] sm:$0xff] %vm2254, %v2163
  %2306 = vst.msk [vmem:[#allocation3 + $0x198] sm:$0xff] %vm2254, %v2165
  %2307 = vst.msk [vmem:[#allocation3 + $0x1a0] sm:$0xff] %vm2254, %v2167
  %2308 = vst.msk [vmem:[#allocation3 + $0x1a8] sm:$0xff] %vm2254, %v2169
  %2309 = vst.msk [vmem:[#allocation3 + $0x1b0] sm:$0xff] %vm2254, %v2171
  %2310 = vst.msk [vmem:[#allocation3 + $0x1b8] sm:$0xff] %vm2254, %v2173
  %2311 = vst.msk [vmem:[#allocation3 + $0x1c0] sm:$0xff] %vm2254, %v2175
  %2312 = vst.msk [vmem:[#allocation3 + $0x1c8] sm:$0xff] %vm2254, %v2177
  %2313 = vst.msk [vmem:[#allocation3 + $0x1d0] sm:$0xff] %vm2254, %v2179
  %2314 = vst.msk [vmem:[#allocation3 + $0x1d8] sm:$0xff] %vm2254, %v2181
  %2315 = vst.msk [vmem:[#allocation3 + $0x1e0] sm:$0xff] %vm2254, %v2183
  %2316 = vst.msk [vmem:[#allocation3 + $0x1e8] sm:$0xff] %vm2254, %v2185
  %2317 = vst.msk [vmem:[#allocation3 + $0x1f0] sm:$0xff] %vm2254, %v2187
  %2318 = vst.msk [vmem:[#allocation3 + $0x1f8] sm:$0xff] %vm2254, %v2189
  %s2319 = scalar_lea.vmem [#allocation2], 48
  %v2320 = vld [vmem:[%s2319] sm:$0xff]
  %v2321 = vld [vmem:[%s2319 + $0x8] sm:$0xff]
  %v2322 = vld [vmem:[%s2319 + $0x18] sm:$0xff]
  %v2323 = vld [vmem:[%s2319 + $0x20] sm:$0xff]
  %v2324 = vld [vmem:[%s2319 + $0x30] sm:$0xff]
  %v2325 = vld [vmem:[%s2319 + $0x38] sm:$0xff]
  %v2326 = vld [vmem:[%s2319 + $0x48] sm:$0xff]
  %v2327 = vld [vmem:[%s2319 + $0x50] sm:$0xff]
  %v2328 = vld [vmem:[%s2319 + $0x60] sm:$0xff]
  %v2329 = vld [vmem:[%s2319 + $0x68] sm:$0xff]
  %v2330 = vld [vmem:[%s2319 + $0x78] sm:$0xff]
  %v2331 = vld [vmem:[%s2319 + $0x80] sm:$0xff]
  %v2332 = vld [vmem:[%s2319 + $0x90] sm:$0xff]
  %v2333 = vld [vmem:[%s2319 + $0x98] sm:$0xff]
  %v2334 = vld [vmem:[%s2319 + $0xa8] sm:$0xff]
  %v2335 = vld [vmem:[%s2319 + $0xb0] sm:$0xff]
  %v2336 = vld [vmem:[%s2319 + $0xc0] sm:$0xff]
  %v2337 = vld [vmem:[%s2319 + $0xc8] sm:$0xff]
  %v2338 = vld [vmem:[%s2319 + $0xd8] sm:$0xff]
  %v2339 = vld [vmem:[%s2319 + $0xe0] sm:$0xff]
  %v2340 = vld [vmem:[%s2319 + $0xf0] sm:$0xff]
  %v2341 = vld [vmem:[%s2319 + $0xf8] sm:$0xff]
  %v2342 = vld [vmem:[%s2319 + $0x108] sm:$0xff]
  %v2343 = vld [vmem:[%s2319 + $0x110] sm:$0xff]
  %v2344 = vld [vmem:[%s2319 + $0x120] sm:$0xff]
  %v2345 = vld [vmem:[%s2319 + $0x128] sm:$0xff]
  %v2346 = vld [vmem:[%s2319 + $0x138] sm:$0xff]
  %v2347 = vld [vmem:[%s2319 + $0x140] sm:$0xff]
  %v2348 = vld [vmem:[%s2319 + $0x150] sm:$0xff]
  %v2349 = vld [vmem:[%s2319 + $0x158] sm:$0xff]
  %v2350 = vld [vmem:[%s2319 + $0x168] sm:$0xff]
  %v2351 = vld [vmem:[%s2319 + $0x170] sm:$0xff]
  %v2352 = vld [vmem:[%s2319 + $0x1b0] sm:$0xff]
  %v2353 = vld [vmem:[%s2319 + $0x1b8] sm:$0xff]
  %v2354 = vld [vmem:[%s2319 + $0x1c8] sm:$0xff]
  %v2355 = vld [vmem:[%s2319 + $0x1d0] sm:$0xff]
  %v2356 = vld [vmem:[%s2319 + $0x1e0] sm:$0xff]
  %v2357 = vld [vmem:[%s2319 + $0x1e8] sm:$0xff]
  %v2358 = vld [vmem:[%s2319 + $0x1f8] sm:$0xff]
  %v2359 = vld [vmem:[%s2319 + $0x200] sm:$0xff]
  %v2360 = vld [vmem:[%s2319 + $0x210] sm:$0xff]
  %v2361 = vld [vmem:[%s2319 + $0x218] sm:$0xff]
  %v2362 = vld [vmem:[%s2319 + $0x228] sm:$0xff]
  %v2363 = vld [vmem:[%s2319 + $0x230] sm:$0xff]
  %v2364 = vld [vmem:[%s2319 + $0x240] sm:$0xff]
  %v2365 = vld [vmem:[%s2319 + $0x248] sm:$0xff]
  %v2366 = vld [vmem:[%s2319 + $0x258] sm:$0xff]
  %v2367 = vld [vmem:[%s2319 + $0x260] sm:$0xff]
  %v2368 = vld [vmem:[%s2319 + $0x270] sm:$0xff]
  %v2369 = vld [vmem:[%s2319 + $0x278] sm:$0xff]
  %v2370 = vld [vmem:[%s2319 + $0x288] sm:$0xff]
  %v2371 = vld [vmem:[%s2319 + $0x290] sm:$0xff]
  %v2372 = vld [vmem:[%s2319 + $0x2a0] sm:$0xff]
  %v2373 = vld [vmem:[%s2319 + $0x2a8] sm:$0xff]
  %v2374 = vld [vmem:[%s2319 + $0x2b8] sm:$0xff]
  %v2375 = vld [vmem:[%s2319 + $0x2c0] sm:$0xff]
  %v2376 = vld [vmem:[%s2319 + $0x2d0] sm:$0xff]
  %v2377 = vld [vmem:[%s2319 + $0x2d8] sm:$0xff]
  %v2378 = vld [vmem:[%s2319 + $0x2e8] sm:$0xff]
  %v2379 = vld [vmem:[%s2319 + $0x2f0] sm:$0xff]
  %v2380 = vld [vmem:[%s2319 + $0x300] sm:$0xff]
  %v2381 = vld [vmem:[%s2319 + $0x308] sm:$0xff]
  %v2382 = vld [vmem:[%s2319 + $0x318] sm:$0xff]
  %v2383 = vld [vmem:[%s2319 + $0x320] sm:$0xff]
  %2448 = vrot.lane.b32.xlu0 %v2320, 24
  %v2449 = vpop.permute.xlu0 %2448
  %2450 = vrot.lane.b32.xlu0 %v2321, 24
  %v2451 = vpop.permute.xlu0 %2450
  %2452 = vrot.lane.b32.xlu0 %v2322, 24
  %v2453 = vpop.permute.xlu0 %2452
  %2454 = vrot.lane.b32.xlu0 %v2323, 24
  %v2455 = vpop.permute.xlu0 %2454
  %2456 = vrot.lane.b32.xlu0 %v2324, 24
  %v2457 = vpop.permute.xlu0 %2456
  %2458 = vrot.lane.b32.xlu0 %v2325, 24
  %v2459 = vpop.permute.xlu0 %2458
  %2460 = vrot.lane.b32.xlu0 %v2326, 24
  %v2461 = vpop.permute.xlu0 %2460
  %2462 = vrot.lane.b32.xlu0 %v2327, 24
  %v2463 = vpop.permute.xlu0 %2462
  %2464 = vrot.lane.b32.xlu0 %v2328, 24
  %v2465 = vpop.permute.xlu0 %2464
  %2466 = vrot.lane.b32.xlu0 %v2329, 24
  %v2467 = vpop.permute.xlu0 %2466
  %2468 = vrot.lane.b32.xlu0 %v2330, 24
  %v2469 = vpop.permute.xlu0 %2468
  %2470 = vrot.lane.b32.xlu0 %v2331, 24
  %v2471 = vpop.permute.xlu0 %2470
  %2472 = vrot.lane.b32.xlu0 %v2332, 24
  %v2473 = vpop.permute.xlu0 %2472
  %2474 = vrot.lane.b32.xlu0 %v2333, 24
  %v2475 = vpop.permute.xlu0 %2474
  %2476 = vrot.lane.b32.xlu0 %v2334, 24
  %v2477 = vpop.permute.xlu0 %2476
  %2478 = vrot.lane.b32.xlu0 %v2335, 24
  %v2479 = vpop.permute.xlu0 %2478
  %2480 = vrot.lane.b32.xlu0 %v2336, 24
  %v2481 = vpop.permute.xlu0 %2480
  %2482 = vrot.lane.b32.xlu0 %v2337, 24
  %v2483 = vpop.permute.xlu0 %2482
  %2484 = vrot.lane.b32.xlu0 %v2338, 24
  %v2485 = vpop.permute.xlu0 %2484
  %2486 = vrot.lane.b32.xlu0 %v2339, 24
  %v2487 = vpop.permute.xlu0 %2486
  %2488 = vrot.lane.b32.xlu0 %v2340, 24
  %v2489 = vpop.permute.xlu0 %2488
  %2490 = vrot.lane.b32.xlu0 %v2341, 24
  %v2491 = vpop.permute.xlu0 %2490
  %2492 = vrot.lane.b32.xlu0 %v2342, 24
  %v2493 = vpop.permute.xlu0 %2492
  %2494 = vrot.lane.b32.xlu0 %v2343, 24
  %v2495 = vpop.permute.xlu0 %2494
  %2496 = vrot.lane.b32.xlu0 %v2344, 24
  %v2497 = vpop.permute.xlu0 %2496
  %2498 = vrot.lane.b32.xlu0 %v2345, 24
  %v2499 = vpop.permute.xlu0 %2498
  %2500 = vrot.lane.b32.xlu0 %v2346, 24
  %v2501 = vpop.permute.xlu0 %2500
  %2502 = vrot.lane.b32.xlu0 %v2347, 24
  %v2503 = vpop.permute.xlu0 %2502
  %2504 = vrot.lane.b32.xlu0 %v2348, 24
  %v2505 = vpop.permute.xlu0 %2504
  %2506 = vrot.lane.b32.xlu0 %v2349, 24
  %v2507 = vpop.permute.xlu0 %2506
  %2508 = vrot.lane.b32.xlu0 %v2350, 24
  %v2509 = vpop.permute.xlu0 %2508
  %2510 = vrot.lane.b32.xlu0 %v2351, 24
  %v2511 = vpop.permute.xlu0 %2510
  %2512 = vrot.lane.b32.xlu0 %v2352, 24
  %v2513 = vpop.permute.xlu0 %2512
  %2514 = vrot.lane.b32.xlu0 %v2353, 24
  %v2515 = vpop.permute.xlu0 %2514
  %2516 = vrot.lane.b32.xlu0 %v2354, 24
  %v2517 = vpop.permute.xlu0 %2516
  %2518 = vrot.lane.b32.xlu0 %v2355, 24
  %v2519 = vpop.permute.xlu0 %2518
  %2520 = vrot.lane.b32.xlu0 %v2356, 24
  %v2521 = vpop.permute.xlu0 %2520
  %2522 = vrot.lane.b32.xlu0 %v2357, 24
  %v2523 = vpop.permute.xlu0 %2522
  %2524 = vrot.lane.b32.xlu0 %v2358, 24
  %v2525 = vpop.permute.xlu0 %2524
  %2526 = vrot.lane.b32.xlu0 %v2359, 24
  %v2527 = vpop.permute.xlu0 %2526
  %2528 = vrot.lane.b32.xlu0 %v2360, 24
  %v2529 = vpop.permute.xlu0 %2528
  %2530 = vrot.lane.b32.xlu0 %v2361, 24
  %v2531 = vpop.permute.xlu0 %2530
  %2532 = vrot.lane.b32.xlu0 %v2362, 24
  %v2533 = vpop.permute.xlu0 %2532
  %2534 = vrot.lane.b32.xlu0 %v2363, 24
  %v2535 = vpop.permute.xlu0 %2534
  %2536 = vrot.lane.b32.xlu0 %v2364, 24
  %v2537 = vpop.permute.xlu0 %2536
  %2538 = vrot.lane.b32.xlu0 %v2365, 24
  %v2539 = vpop.permute.xlu0 %2538
  %2540 = vrot.lane.b32.xlu0 %v2366, 24
  %v2541 = vpop.permute.xlu0 %2540
  %2542 = vrot.lane.b32.xlu0 %v2367, 24
  %v2543 = vpop.permute.xlu0 %2542
  %2544 = vrot.lane.b32.xlu0 %v2368, 24
  %v2545 = vpop.permute.xlu0 %2544
  %2546 = vrot.lane.b32.xlu0 %v2369, 24
  %v2547 = vpop.permute.xlu0 %2546
  %2548 = vrot.lane.b32.xlu0 %v2370, 24
  %v2549 = vpop.permute.xlu0 %2548
  %2550 = vrot.lane.b32.xlu0 %v2371, 24
  %v2551 = vpop.permute.xlu0 %2550
  %2552 = vrot.lane.b32.xlu0 %v2372, 24
  %v2553 = vpop.permute.xlu0 %2552
  %2554 = vrot.lane.b32.xlu0 %v2373, 24
  %v2555 = vpop.permute.xlu0 %2554
  %2556 = vrot.lane.b32.xlu0 %v2374, 24
  %v2557 = vpop.permute.xlu0 %2556
  %2558 = vrot.lane.b32.xlu0 %v2375, 24
  %v2559 = vpop.permute.xlu0 %2558
  %2560 = vrot.lane.b32.xlu0 %v2376, 24
  %v2561 = vpop.permute.xlu0 %2560
  %2562 = vrot.lane.b32.xlu0 %v2377, 24
  %v2563 = vpop.permute.xlu0 %2562
  %2564 = vrot.lane.b32.xlu0 %v2378, 24
  %v2565 = vpop.permute.xlu0 %2564
  %2566 = vrot.lane.b32.xlu0 %v2379, 24
  %v2567 = vpop.permute.xlu0 %2566
  %2568 = vrot.lane.b32.xlu0 %v2380, 24
  %v2569 = vpop.permute.xlu0 %2568
  %2570 = vrot.lane.b32.xlu0 %v2381, 24
  %v2571 = vpop.permute.xlu0 %2570
  %2572 = vrot.lane.b32.xlu0 %v2382, 24
  %v2573 = vpop.permute.xlu0 %2572
  %2574 = vrot.lane.b32.xlu0 %v2383, 24
  %v2575 = vpop.permute.xlu0 %2574
  %vm2640 = vcmask 228544
  %2641 = vst.msk [vmem:[#allocation3] sm:$0xff] %vm2640, %v2449
  %2642 = vst.msk [vmem:[#allocation3 + $0x8] sm:$0xff] %vm2640, %v2451
  %2643 = vst.msk [vmem:[#allocation3 + $0x10] sm:$0xff] %vm2640, %v2453
  %2644 = vst.msk [vmem:[#allocation3 + $0x18] sm:$0xff] %vm2640, %v2455
  %2645 = vst.msk [vmem:[#allocation3 + $0x20] sm:$0xff] %vm2640, %v2457
  %2646 = vst.msk [vmem:[#allocation3 + $0x28] sm:$0xff] %vm2640, %v2459
  %2647 = vst.msk [vmem:[#allocation3 + $0x30] sm:$0xff] %vm2640, %v2461
  %2648 = vst.msk [vmem:[#allocation3 + $0x38] sm:$0xff] %vm2640, %v2463
  %2649 = vst.msk [vmem:[#allocation3 + $0x40] sm:$0xff] %vm2640, %v2465
  %2650 = vst.msk [vmem:[#allocation3 + $0x48] sm:$0xff] %vm2640, %v2467
  %2651 = vst.msk [vmem:[#allocation3 + $0x50] sm:$0xff] %vm2640, %v2469
  %2652 = vst.msk [vmem:[#allocation3 + $0x58] sm:$0xff] %vm2640, %v2471
  %2653 = vst.msk [vmem:[#allocation3 + $0x60] sm:$0xff] %vm2640, %v2473
  %2654 = vst.msk [vmem:[#allocation3 + $0x68] sm:$0xff] %vm2640, %v2475
  %2655 = vst.msk [vmem:[#allocation3 + $0x70] sm:$0xff] %vm2640, %v2477
  %2656 = vst.msk [vmem:[#allocation3 + $0x78] sm:$0xff] %vm2640, %v2479
  %2657 = vst.msk [vmem:[#allocation3 + $0x80] sm:$0xff] %vm2640, %v2481
  %2658 = vst.msk [vmem:[#allocation3 + $0x88] sm:$0xff] %vm2640, %v2483
  %2659 = vst.msk [vmem:[#allocation3 + $0x90] sm:$0xff] %vm2640, %v2485
  %2660 = vst.msk [vmem:[#allocation3 + $0x98] sm:$0xff] %vm2640, %v2487
  %2661 = vst.msk [vmem:[#allocation3 + $0xa0] sm:$0xff] %vm2640, %v2489
  %2662 = vst.msk [vmem:[#allocation3 + $0xa8] sm:$0xff] %vm2640, %v2491
  %2663 = vst.msk [vmem:[#allocation3 + $0xb0] sm:$0xff] %vm2640, %v2493
  %2664 = vst.msk [vmem:[#allocation3 + $0xb8] sm:$0xff] %vm2640, %v2495
  %2665 = vst.msk [vmem:[#allocation3 + $0xc0] sm:$0xff] %vm2640, %v2497
  %2666 = vst.msk [vmem:[#allocation3 + $0xc8] sm:$0xff] %vm2640, %v2499
  %2667 = vst.msk [vmem:[#allocation3 + $0xd0] sm:$0xff] %vm2640, %v2501
  %2668 = vst.msk [vmem:[#allocation3 + $0xd8] sm:$0xff] %vm2640, %v2503
  %2669 = vst.msk [vmem:[#allocation3 + $0xe0] sm:$0xff] %vm2640, %v2505
  %2670 = vst.msk [vmem:[#allocation3 + $0xe8] sm:$0xff] %vm2640, %v2507
  %2671 = vst.msk [vmem:[#allocation3 + $0xf0] sm:$0xff] %vm2640, %v2509
  %2672 = vst.msk [vmem:[#allocation3 + $0xf8] sm:$0xff] %vm2640, %v2511
  %2673 = vst.msk [vmem:[#allocation3 + $0x100] sm:$0xff] %vm2640, %v2513
  %2674 = vst.msk [vmem:[#allocation3 + $0x108] sm:$0xff] %vm2640, %v2515
  %2675 = vst.msk [vmem:[#allocation3 + $0x110] sm:$0xff] %vm2640, %v2517
  %2676 = vst.msk [vmem:[#allocation3 + $0x118] sm:$0xff] %vm2640, %v2519
  %2677 = vst.msk [vmem:[#allocation3 + $0x120] sm:$0xff] %vm2640, %v2521
  %2678 = vst.msk [vmem:[#allocation3 + $0x128] sm:$0xff] %vm2640, %v2523
  %2679 = vst.msk [vmem:[#allocation3 + $0x130] sm:$0xff] %vm2640, %v2525
  %2680 = vst.msk [vmem:[#allocation3 + $0x138] sm:$0xff] %vm2640, %v2527
  %2681 = vst.msk [vmem:[#allocation3 + $0x140] sm:$0xff] %vm2640, %v2529
  %2682 = vst.msk [vmem:[#allocation3 + $0x148] sm:$0xff] %vm2640, %v2531
  %2683 = vst.msk [vmem:[#allocation3 + $0x150] sm:$0xff] %vm2640, %v2533
  %2684 = vst.msk [vmem:[#allocation3 + $0x158] sm:$0xff] %vm2640, %v2535
  %2685 = vst.msk [vmem:[#allocation3 + $0x160] sm:$0xff] %vm2640, %v2537
  %2686 = vst.msk [vmem:[#allocation3 + $0x168] sm:$0xff] %vm2640, %v2539
  %2687 = vst.msk [vmem:[#allocation3 + $0x170] sm:$0xff] %vm2640, %v2541
  %2688 = vst.msk [vmem:[#allocation3 + $0x178] sm:$0xff] %vm2640, %v2543
  %2689 = vst.msk [vmem:[#allocation3 + $0x180] sm:$0xff] %vm2640, %v2545
  %2690 = vst.msk [vmem:[#allocation3 + $0x188] sm:$0xff] %vm2640, %v2547
  %2691 = vst.msk [vmem:[#allocation3 + $0x190] sm:$0xff] %vm2640, %v2549
  %2692 = vst.msk [vmem:[#allocation3 + $0x198] sm:$0xff] %vm2640, %v2551
  %2693 = vst.msk [vmem:[#allocation3 + $0x1a0] sm:$0xff] %vm2640, %v2553
  %2694 = vst.msk [vmem:[#allocation3 + $0x1a8] sm:$0xff] %vm2640, %v2555
  %2695 = vst.msk [vmem:[#allocation3 + $0x1b0] sm:$0xff] %vm2640, %v2557
  %2696 = vst.msk [vmem:[#allocation3 + $0x1b8] sm:$0xff] %vm2640, %v2559
  %2697 = vst.msk [vmem:[#allocation3 + $0x1c0] sm:$0xff] %vm2640, %v2561
  %2698 = vst.msk [vmem:[#allocation3 + $0x1c8] sm:$0xff] %vm2640, %v2563
  %2699 = vst.msk [vmem:[#allocation3 + $0x1d0] sm:$0xff] %vm2640, %v2565
  %2700 = vst.msk [vmem:[#allocation3 + $0x1d8] sm:$0xff] %vm2640, %v2567
  %2701 = vst.msk [vmem:[#allocation3 + $0x1e0] sm:$0xff] %vm2640, %v2569
  %2702 = vst.msk [vmem:[#allocation3 + $0x1e8] sm:$0xff] %vm2640, %v2571
  %2703 = vst.msk [vmem:[#allocation3 + $0x1f0] sm:$0xff] %vm2640, %v2573
  %2704 = vst.msk [vmem:[#allocation3 + $0x1f8] sm:$0xff] %vm2640, %v2575
  %v2705 = vld [vmem:[%s2319 + $0x1] sm:$0xff]
  %v2706 = vld [vmem:[%s2319 + $0x9] sm:$0xff]
  %v2707 = vld [vmem:[%s2319 + $0x19] sm:$0xff]
  %v2708 = vld [vmem:[%s2319 + $0x21] sm:$0xff]
  %v2709 = vld [vmem:[%s2319 + $0x31] sm:$0xff]
  %v2710 = vld [vmem:[%s2319 + $0x39] sm:$0xff]
  %v2711 = vld [vmem:[%s2319 + $0x49] sm:$0xff]
  %v2712 = vld [vmem:[%s2319 + $0x51] sm:$0xff]
  %v2713 = vld [vmem:[%s2319 + $0x61] sm:$0xff]
  %v2714 = vld [vmem:[%s2319 + $0x69] sm:$0xff]
  %v2715 = vld [vmem:[%s2319 + $0x79] sm:$0xff]
  %v2716 = vld [vmem:[%s2319 + $0x81] sm:$0xff]
  %v2717 = vld [vmem:[%s2319 + $0x91] sm:$0xff]
  %v2718 = vld [vmem:[%s2319 + $0x99] sm:$0xff]
  %v2719 = vld [vmem:[%s2319 + $0xa9] sm:$0xff]
  %v2720 = vld [vmem:[%s2319 + $0xb1] sm:$0xff]
  %v2721 = vld [vmem:[%s2319 + $0xc1] sm:$0xff]
  %v2722 = vld [vmem:[%s2319 + $0xc9] sm:$0xff]
  %v2723 = vld [vmem:[%s2319 + $0xd9] sm:$0xff]
  %v2724 = vld [vmem:[%s2319 + $0xe1] sm:$0xff]
  %v2725 = vld [vmem:[%s2319 + $0xf1] sm:$0xff]
  %v2726 = vld [vmem:[%s2319 + $0xf9] sm:$0xff]
  %v2727 = vld [vmem:[%s2319 + $0x109] sm:$0xff]
  %v2728 = vld [vmem:[%s2319 + $0x111] sm:$0xff]
  %v2729 = vld [vmem:[%s2319 + $0x121] sm:$0xff]
  %v2730 = vld [vmem:[%s2319 + $0x129] sm:$0xff]
  %v2731 = vld [vmem:[%s2319 + $0x139] sm:$0xff]
  %v2732 = vld [vmem:[%s2319 + $0x141] sm:$0xff]
  %v2733 = vld [vmem:[%s2319 + $0x151] sm:$0xff]
  %v2734 = vld [vmem:[%s2319 + $0x159] sm:$0xff]
  %v2735 = vld [vmem:[%s2319 + $0x169] sm:$0xff]
  %v2736 = vld [vmem:[%s2319 + $0x171] sm:$0xff]
  %v2737 = vld [vmem:[%s2319 + $0x1b1] sm:$0xff]
  %v2738 = vld [vmem:[%s2319 + $0x1b9] sm:$0xff]
  %v2739 = vld [vmem:[%s2319 + $0x1c9] sm:$0xff]
  %v2740 = vld [vmem:[%s2319 + $0x1d1] sm:$0xff]
  %v2741 = vld [vmem:[%s2319 + $0x1e1] sm:$0xff]
  %v2742 = vld [vmem:[%s2319 + $0x1e9] sm:$0xff]
  %v2743 = vld [vmem:[%s2319 + $0x1f9] sm:$0xff]
  %v2744 = vld [vmem:[%s2319 + $0x201] sm:$0xff]
  %v2745 = vld [vmem:[%s2319 + $0x211] sm:$0xff]
  %v2746 = vld [vmem:[%s2319 + $0x219] sm:$0xff]
  %v2747 = vld [vmem:[%s2319 + $0x229] sm:$0xff]
  %v2748 = vld [vmem:[%s2319 + $0x231] sm:$0xff]
  %v2749 = vld [vmem:[%s2319 + $0x241] sm:$0xff]
  %v2750 = vld [vmem:[%s2319 + $0x249] sm:$0xff]
  %v2751 = vld [vmem:[%s2319 + $0x259] sm:$0xff]
  %v2752 = vld [vmem:[%s2319 + $0x261] sm:$0xff]
  %v2753 = vld [vmem:[%s2319 + $0x271] sm:$0xff]
  %v2754 = vld [vmem:[%s2319 + $0x279] sm:$0xff]
  %v2755 = vld [vmem:[%s2319 + $0x289] sm:$0xff]
  %v2756 = vld [vmem:[%s2319 + $0x291] sm:$0xff]
  %v2757 = vld [vmem:[%s2319 + $0x2a1] sm:$0xff]
  %v2758 = vld [vmem:[%s2319 + $0x2a9] sm:$0xff]
  %v2759 = vld [vmem:[%s2319 + $0x2b9] sm:$0xff]
  %v2760 = vld [vmem:[%s2319 + $0x2c1] sm:$0xff]
  %v2761 = vld [vmem:[%s2319 + $0x2d1] sm:$0xff]
  %v2762 = vld [vmem:[%s2319 + $0x2d9] sm:$0xff]
  %v2763 = vld [vmem:[%s2319 + $0x2e9] sm:$0xff]
  %v2764 = vld [vmem:[%s2319 + $0x2f1] sm:$0xff]
  %v2765 = vld [vmem:[%s2319 + $0x301] sm:$0xff]
  %v2766 = vld [vmem:[%s2319 + $0x309] sm:$0xff]
  %v2767 = vld [vmem:[%s2319 + $0x319] sm:$0xff]
  %v2768 = vld [vmem:[%s2319 + $0x321] sm:$0xff]
  %2833 = vrot.lane.b32.xlu0 %v2705, 28
  %v2834 = vpop.permute.xlu0 %2833
  %2835 = vrot.lane.b32.xlu0 %v2706, 28
  %v2836 = vpop.permute.xlu0 %2835
  %2837 = vrot.lane.b32.xlu0 %v2707, 28
  %v2838 = vpop.permute.xlu0 %2837
  %2839 = vrot.lane.b32.xlu0 %v2708, 28
  %v2840 = vpop.permute.xlu0 %2839
  %2841 = vrot.lane.b32.xlu0 %v2709, 28
  %v2842 = vpop.permute.xlu0 %2841
  %2843 = vrot.lane.b32.xlu0 %v2710, 28
  %v2844 = vpop.permute.xlu0 %2843
  %2845 = vrot.lane.b32.xlu0 %v2711, 28
  %v2846 = vpop.permute.xlu0 %2845
  %2847 = vrot.lane.b32.xlu0 %v2712, 28
  %v2848 = vpop.permute.xlu0 %2847
  %2849 = vrot.lane.b32.xlu0 %v2713, 28
  %v2850 = vpop.permute.xlu0 %2849
  %2851 = vrot.lane.b32.xlu0 %v2714, 28
  %v2852 = vpop.permute.xlu0 %2851
  %2853 = vrot.lane.b32.xlu0 %v2715, 28
  %v2854 = vpop.permute.xlu0 %2853
  %2855 = vrot.lane.b32.xlu0 %v2716, 28
  %v2856 = vpop.permute.xlu0 %2855
  %2857 = vrot.lane.b32.xlu0 %v2717, 28
  %v2858 = vpop.permute.xlu0 %2857
  %2859 = vrot.lane.b32.xlu0 %v2718, 28
  %v2860 = vpop.permute.xlu0 %2859
  %2861 = vrot.lane.b32.xlu0 %v2719, 28
  %v2862 = vpop.permute.xlu0 %2861
  %2863 = vrot.lane.b32.xlu0 %v2720, 28
  %v2864 = vpop.permute.xlu0 %2863
  %2865 = vrot.lane.b32.xlu0 %v2721, 28
  %v2866 = vpop.permute.xlu0 %2865
  %2867 = vrot.lane.b32.xlu0 %v2722, 28
  %v2868 = vpop.permute.xlu0 %2867
  %2869 = vrot.lane.b32.xlu0 %v2723, 28
  %v2870 = vpop.permute.xlu0 %2869
  %2871 = vrot.lane.b32.xlu0 %v2724, 28
  %v2872 = vpop.permute.xlu0 %2871
  %2873 = vrot.lane.b32.xlu0 %v2725, 28
  %v2874 = vpop.permute.xlu0 %2873
  %2875 = vrot.lane.b32.xlu0 %v2726, 28
  %v2876 = vpop.permute.xlu0 %2875
  %2877 = vrot.lane.b32.xlu0 %v2727, 28
  %v2878 = vpop.permute.xlu0 %2877
  %2879 = vrot.lane.b32.xlu0 %v2728, 28
  %v2880 = vpop.permute.xlu0 %2879
  %2881 = vrot.lane.b32.xlu0 %v2729, 28
  %v2882 = vpop.permute.xlu0 %2881
  %2883 = vrot.lane.b32.xlu0 %v2730, 28
  %v2884 = vpop.permute.xlu0 %2883
  %2885 = vrot.lane.b32.xlu0 %v2731, 28
  %v2886 = vpop.permute.xlu0 %2885
  %2887 = vrot.lane.b32.xlu0 %v2732, 28
  %v2888 = vpop.permute.xlu0 %2887
  %2889 = vrot.lane.b32.xlu0 %v2733, 28
  %v2890 = vpop.permute.xlu0 %2889
  %2891 = vrot.lane.b32.xlu0 %v2734, 28
  %v2892 = vpop.permute.xlu0 %2891
  %2893 = vrot.lane.b32.xlu0 %v2735, 28
  %v2894 = vpop.permute.xlu0 %2893
  %2895 = vrot.lane.b32.xlu0 %v2736, 28
  %v2896 = vpop.permute.xlu0 %2895
  %2897 = vrot.lane.b32.xlu0 %v2737, 28
  %v2898 = vpop.permute.xlu0 %2897
  %2899 = vrot.lane.b32.xlu0 %v2738, 28
  %v2900 = vpop.permute.xlu0 %2899
  %2901 = vrot.lane.b32.xlu0 %v2739, 28
  %v2902 = vpop.permute.xlu0 %2901
  %2903 = vrot.lane.b32.xlu0 %v2740, 28
  %v2904 = vpop.permute.xlu0 %2903
  %2905 = vrot.lane.b32.xlu0 %v2741, 28
  %v2906 = vpop.permute.xlu0 %2905
  %2907 = vrot.lane.b32.xlu0 %v2742, 28
  %v2908 = vpop.permute.xlu0 %2907
  %2909 = vrot.lane.b32.xlu0 %v2743, 28
  %v2910 = vpop.permute.xlu0 %2909
  %2911 = vrot.lane.b32.xlu0 %v2744, 28
  %v2912 = vpop.permute.xlu0 %2911
  %2913 = vrot.lane.b32.xlu0 %v2745, 28
  %v2914 = vpop.permute.xlu0 %2913
  %2915 = vrot.lane.b32.xlu0 %v2746, 28
  %v2916 = vpop.permute.xlu0 %2915
  %2917 = vrot.lane.b32.xlu0 %v2747, 28
  %v2918 = vpop.permute.xlu0 %2917
  %2919 = vrot.lane.b32.xlu0 %v2748, 28
  %v2920 = vpop.permute.xlu0 %2919
  %2921 = vrot.lane.b32.xlu0 %v2749, 28
  %v2922 = vpop.permute.xlu0 %2921
  %2923 = vrot.lane.b32.xlu0 %v2750, 28
  %v2924 = vpop.permute.xlu0 %2923
  %2925 = vrot.lane.b32.xlu0 %v2751, 28
  %v2926 = vpop.permute.xlu0 %2925
  %2927 = vrot.lane.b32.xlu0 %v2752, 28
  %v2928 = vpop.permute.xlu0 %2927
  %2929 = vrot.lane.b32.xlu0 %v2753, 28
  %v2930 = vpop.permute.xlu0 %2929
  %2931 = vrot.lane.b32.xlu0 %v2754, 28
  %v2932 = vpop.permute.xlu0 %2931
  %2933 = vrot.lane.b32.xlu0 %v2755, 28
  %v2934 = vpop.permute.xlu0 %2933
  %2935 = vrot.lane.b32.xlu0 %v2756, 28
  %v2936 = vpop.permute.xlu0 %2935
  %2937 = vrot.lane.b32.xlu0 %v2757, 28
  %v2938 = vpop.permute.xlu0 %2937
  %2939 = vrot.lane.b32.xlu0 %v2758, 28
  %v2940 = vpop.permute.xlu0 %2939
  %2941 = vrot.lane.b32.xlu0 %v2759, 28
  %v2942 = vpop.permute.xlu0 %2941
  %2943 = vrot.lane.b32.xlu0 %v2760, 28
  %v2944 = vpop.permute.xlu0 %2943
  %2945 = vrot.lane.b32.xlu0 %v2761, 28
  %v2946 = vpop.permute.xlu0 %2945
  %2947 = vrot.lane.b32.xlu0 %v2762, 28
  %v2948 = vpop.permute.xlu0 %2947
  %2949 = vrot.lane.b32.xlu0 %v2763, 28
  %v2950 = vpop.permute.xlu0 %2949
  %2951 = vrot.lane.b32.xlu0 %v2764, 28
  %v2952 = vpop.permute.xlu0 %2951
  %2953 = vrot.lane.b32.xlu0 %v2765, 28
  %v2954 = vpop.permute.xlu0 %2953
  %2955 = vrot.lane.b32.xlu0 %v2766, 28
  %v2956 = vpop.permute.xlu0 %2955
  %2957 = vrot.lane.b32.xlu0 %v2767, 28
  %v2958 = vpop.permute.xlu0 %2957
  %2959 = vrot.lane.b32.xlu0 %v2768, 28
  %v2960 = vpop.permute.xlu0 %2959
  %vm3025 = vcmask 261344
  %3026 = vst.msk [vmem:[#allocation3] sm:$0xff] %vm3025, %v2834
  %3027 = vst.msk [vmem:[#allocation3 + $0x8] sm:$0xff] %vm3025, %v2836
  %3028 = vst.msk [vmem:[#allocation3 + $0x10] sm:$0xff] %vm3025, %v2838
  %3029 = vst.msk [vmem:[#allocation3 + $0x18] sm:$0xff] %vm3025, %v2840
  %3030 = vst.msk [vmem:[#allocation3 + $0x20] sm:$0xff] %vm3025, %v2842
  %3031 = vst.msk [vmem:[#allocation3 + $0x28] sm:$0xff] %vm3025, %v2844
  %3032 = vst.msk [vmem:[#allocation3 + $0x30] sm:$0xff] %vm3025, %v2846
  %3033 = vst.msk [vmem:[#allocation3 + $0x38] sm:$0xff] %vm3025, %v2848
  %3034 = vst.msk [vmem:[#allocation3 + $0x40] sm:$0xff] %vm3025, %v2850
  %3035 = vst.msk [vmem:[#allocation3 + $0x48] sm:$0xff] %vm3025, %v2852
  %3036 = vst.msk [vmem:[#allocation3 + $0x50] sm:$0xff] %vm3025, %v2854
  %3037 = vst.msk [vmem:[#allocation3 + $0x58] sm:$0xff] %vm3025, %v2856
  %3038 = vst.msk [vmem:[#allocation3 + $0x60] sm:$0xff] %vm3025, %v2858
  %3039 = vst.msk [vmem:[#allocation3 + $0x68] sm:$0xff] %vm3025, %v2860
  %3040 = vst.msk [vmem:[#allocation3 + $0x70] sm:$0xff] %vm3025, %v2862
  %3041 = vst.msk [vmem:[#allocation3 + $0x78] sm:$0xff] %vm3025, %v2864
  %3042 = vst.msk [vmem:[#allocation3 + $0x80] sm:$0xff] %vm3025, %v2866
  %3043 = vst.msk [vmem:[#allocation3 + $0x88] sm:$0xff] %vm3025, %v2868
  %3044 = vst.msk [vmem:[#allocation3 + $0x90] sm:$0xff] %vm3025, %v2870
  %3045 = vst.msk [vmem:[#allocation3 + $0x98] sm:$0xff] %vm3025, %v2872
  %3046 = vst.msk [vmem:[#allocation3 + $0xa0] sm:$0xff] %vm3025, %v2874
  %3047 = vst.msk [vmem:[#allocation3 + $0xa8] sm:$0xff] %vm3025, %v2876
  %3048 = vst.msk [vmem:[#allocation3 + $0xb0] sm:$0xff] %vm3025, %v2878
  %3049 = vst.msk [vmem:[#allocation3 + $0xb8] sm:$0xff] %vm3025, %v2880
  %3050 = vst.msk [vmem:[#allocation3 + $0xc0] sm:$0xff] %vm3025, %v2882
  %3051 = vst.msk [vmem:[#allocation3 + $0xc8] sm:$0xff] %vm3025, %v2884
  %3052 = vst.msk [vmem:[#allocation3 + $0xd0] sm:$0xff] %vm3025, %v2886
  %3053 = vst.msk [vmem:[#allocation3 + $0xd8] sm:$0xff] %vm3025, %v2888
  %3054 = vst.msk [vmem:[#allocation3 + $0xe0] sm:$0xff] %vm3025, %v2890
  %3055 = vst.msk [vmem:[#allocation3 + $0xe8] sm:$0xff] %vm3025, %v2892
  %3056 = vst.msk [vmem:[#allocation3 + $0xf0] sm:$0xff] %vm3025, %v2894
  %3057 = vst.msk [vmem:[#allocation3 + $0xf8] sm:$0xff] %vm3025, %v2896
  %3058 = vst.msk [vmem:[#allocation3 + $0x100] sm:$0xff] %vm3025, %v2898
  %3059 = vst.msk [vmem:[#allocation3 + $0x108] sm:$0xff] %vm3025, %v2900
  %3060 = vst.msk [vmem:[#allocation3 + $0x110] sm:$0xff] %vm3025, %v2902
  %3061 = vst.msk [vmem:[#allocation3 + $0x118] sm:$0xff] %vm3025, %v2904
  %3062 = vst.msk [vmem:[#allocation3 + $0x120] sm:$0xff] %vm3025, %v2906
  %3063 = vst.msk [vmem:[#allocation3 + $0x128] sm:$0xff] %vm3025, %v2908
  %3064 = vst.msk [vmem:[#allocation3 + $0x130] sm:$0xff] %vm3025, %v2910
  %3065 = vst.msk [vmem:[#allocation3 + $0x138] sm:$0xff] %vm3025, %v2912
  %3066 = vst.msk [vmem:[#allocation3 + $0x140] sm:$0xff] %vm3025, %v2914
  %3067 = vst.msk [vmem:[#allocation3 + $0x148] sm:$0xff] %vm3025, %v2916
  %3068 = vst.msk [vmem:[#allocation3 + $0x150] sm:$0xff] %vm3025, %v2918
  %3069 = vst.msk [vmem:[#allocation3 + $0x158] sm:$0xff] %vm3025, %v2920
  %3070 = vst.msk [vmem:[#allocation3 + $0x160] sm:$0xff] %vm3025, %v2922
  %3071 = vst.msk [vmem:[#allocation3 + $0x168] sm:$0xff] %vm3025, %v2924
  %3072 = vst.msk [vmem:[#allocation3 + $0x170] sm:$0xff] %vm3025, %v2926
  %3073 = vst.msk [vmem:[#allocation3 + $0x178] sm:$0xff] %vm3025, %v2928
  %3074 = vst.msk [vmem:[#allocation3 + $0x180] sm:$0xff] %vm3025, %v2930
  %3075 = vst.msk [vmem:[#allocation3 + $0x188] sm:$0xff] %vm3025, %v2932
  %3076 = vst.msk [vmem:[#allocation3 + $0x190] sm:$0xff] %vm3025, %v2934
  %3077 = vst.msk [vmem:[#allocation3 + $0x198] sm:$0xff] %vm3025, %v2936
  %3078 = vst.msk [vmem:[#allocation3 + $0x1a0] sm:$0xff] %vm3025, %v2938
  %3079 = vst.msk [vmem:[#allocation3 + $0x1a8] sm:$0xff] %vm3025, %v2940
  %3080 = vst.msk [vmem:[#allocation3 + $0x1b0] sm:$0xff] %vm3025, %v2942
  %3081 = vst.msk [vmem:[#allocation3 + $0x1b8] sm:$0xff] %vm3025, %v2944
  %3082 = vst.msk [vmem:[#allocation3 + $0x1c0] sm:$0xff] %vm3025, %v2946
  %3083 = vst.msk [vmem:[#allocation3 + $0x1c8] sm:$0xff] %vm3025, %v2948
  %3084 = vst.msk [vmem:[#allocation3 + $0x1d0] sm:$0xff] %vm3025, %v2950
  %3085 = vst.msk [vmem:[#allocation3 + $0x1d8] sm:$0xff] %vm3025, %v2952
  %3086 = vst.msk [vmem:[#allocation3 + $0x1e0] sm:$0xff] %vm3025, %v2954
  %3087 = vst.msk [vmem:[#allocation3 + $0x1e8] sm:$0xff] %vm3025, %v2956
  %3088 = vst.msk [vmem:[#allocation3 + $0x1f0] sm:$0xff] %vm3025, %v2958
  %3089 = vst.msk [vmem:[#allocation3 + $0x1f8] sm:$0xff] %vm3025, %v2960
  %v3090 = vld [vmem:[%s2319 + $0x2] sm:$0xff]
  %v3091 = vld [vmem:[%s2319 + $0xa] sm:$0xff]
  %v3092 = vld [vmem:[%s2319 + $0x1a] sm:$0xff]
  %v3093 = vld [vmem:[%s2319 + $0x22] sm:$0xff]
  %v3094 = vld [vmem:[%s2319 + $0x32] sm:$0xff]
  %v3095 = vld [vmem:[%s2319 + $0x3a] sm:$0xff]
  %v3096 = vld [vmem:[%s2319 + $0x4a] sm:$0xff]
  %v3097 = vld [vmem:[%s2319 + $0x52] sm:$0xff]
  %v3098 = vld [vmem:[%s2319 + $0x62] sm:$0xff]
  %v3099 = vld [vmem:[%s2319 + $0x6a] sm:$0xff]
  %v3100 = vld [vmem:[%s2319 + $0x7a] sm:$0xff]
  %v3101 = vld [vmem:[%s2319 + $0x82] sm:$0xff]
  %v3102 = vld [vmem:[%s2319 + $0x92] sm:$0xff]
  %v3103 = vld [vmem:[%s2319 + $0x9a] sm:$0xff]
  %v3104 = vld [vmem:[%s2319 + $0xaa] sm:$0xff]
  %v3105 = vld [vmem:[%s2319 + $0xb2] sm:$0xff]
  %v3106 = vld [vmem:[%s2319 + $0xc2] sm:$0xff]
  %v3107 = vld [vmem:[%s2319 + $0xca] sm:$0xff]
  %v3108 = vld [vmem:[%s2319 + $0xda] sm:$0xff]
  %v3109 = vld [vmem:[%s2319 + $0xe2] sm:$0xff]
  %v3110 = vld [vmem:[%s2319 + $0xf2] sm:$0xff]
  %v3111 = vld [vmem:[%s2319 + $0xfa] sm:$0xff]
  %v3112 = vld [vmem:[%s2319 + $0x10a] sm:$0xff]
  %v3113 = vld [vmem:[%s2319 + $0x112] sm:$0xff]
  %v3114 = vld [vmem:[%s2319 + $0x122] sm:$0xff]
  %v3115 = vld [vmem:[%s2319 + $0x12a] sm:$0xff]
  %v3116 = vld [vmem:[%s2319 + $0x13a] sm:$0xff]
  %v3117 = vld [vmem:[%s2319 + $0x142] sm:$0xff]
  %v3118 = vld [vmem:[%s2319 + $0x152] sm:$0xff]
  %v3119 = vld [vmem:[%s2319 + $0x15a] sm:$0xff]
  %v3120 = vld [vmem:[%s2319 + $0x16a] sm:$0xff]
  %v3121 = vld [vmem:[%s2319 + $0x172] sm:$0xff]
  %v3122 = vld [vmem:[%s2319 + $0x1b2] sm:$0xff]
  %v3123 = vld [vmem:[%s2319 + $0x1ba] sm:$0xff]
  %v3124 = vld [vmem:[%s2319 + $0x1ca] sm:$0xff]
  %v3125 = vld [vmem:[%s2319 + $0x1d2] sm:$0xff]
  %v3126 = vld [vmem:[%s2319 + $0x1e2] sm:$0xff]
  %v3127 = vld [vmem:[%s2319 + $0x1ea] sm:$0xff]
  %v3128 = vld [vmem:[%s2319 + $0x1fa] sm:$0xff]
  %v3129 = vld [vmem:[%s2319 + $0x202] sm:$0xff]
  %v3130 = vld [vmem:[%s2319 + $0x212] sm:$0xff]
  %v3131 = vld [vmem:[%s2319 + $0x21a] sm:$0xff]
  %v3132 = vld [vmem:[%s2319 + $0x22a] sm:$0xff]
  %v3133 = vld [vmem:[%s2319 + $0x232] sm:$0xff]
  %v3134 = vld [vmem:[%s2319 + $0x242] sm:$0xff]
  %v3135 = vld [vmem:[%s2319 + $0x24a] sm:$0xff]
  %v3136 = vld [vmem:[%s2319 + $0x25a] sm:$0xff]
  %v3137 = vld [vmem:[%s2319 + $0x262] sm:$0xff]
  %v3138 = vld [vmem:[%s2319 + $0x272] sm:$0xff]
  %v3139 = vld [vmem:[%s2319 + $0x27a] sm:$0xff]
  %v3140 = vld [vmem:[%s2319 + $0x28a] sm:$0xff]
  %v3141 = vld [vmem:[%s2319 + $0x292] sm:$0xff]
  %v3142 = vld [vmem:[%s2319 + $0x2a2] sm:$0xff]
  %v3143 = vld [vmem:[%s2319 + $0x2aa] sm:$0xff]
  %v3144 = vld [vmem:[%s2319 + $0x2ba] sm:$0xff]
  %v3145 = vld [vmem:[%s2319 + $0x2c2] sm:$0xff]
  %v3146 = vld [vmem:[%s2319 + $0x2d2] sm:$0xff]
  %v3147 = vld [vmem:[%s2319 + $0x2da] sm:$0xff]
  %v3148 = vld [vmem:[%s2319 + $0x2ea] sm:$0xff]
  %v3149 = vld [vmem:[%s2319 + $0x2f2] sm:$0xff]
  %v3150 = vld [vmem:[%s2319 + $0x302] sm:$0xff]
  %v3151 = vld [vmem:[%s2319 + $0x30a] sm:$0xff]
  %v3152 = vld [vmem:[%s2319 + $0x31a] sm:$0xff]
  %v3153 = vld [vmem:[%s2319 + $0x322] sm:$0xff]
  %3218 = vrot.lane.b32.xlu0 %v3090, 32
  %v3219 = vpop.permute.xlu0 %3218
  %3220 = vrot.lane.b32.xlu0 %v3091, 32
  %v3221 = vpop.permute.xlu0 %3220
  %3222 = vrot.lane.b32.xlu0 %v3092, 32
  %v3223 = vpop.permute.xlu0 %3222
  %3224 = vrot.lane.b32.xlu0 %v3093, 32
  %v3225 = vpop.permute.xlu0 %3224
  %3226 = vrot.lane.b32.xlu0 %v3094, 32
  %v3227 = vpop.permute.xlu0 %3226
  %3228 = vrot.lane.b32.xlu0 %v3095, 32
  %v3229 = vpop.permute.xlu0 %3228
  %3230 = vrot.lane.b32.xlu0 %v3096, 32
  %v3231 = vpop.permute.xlu0 %3230
  %3232 = vrot.lane.b32.xlu0 %v3097, 32
  %v3233 = vpop.permute.xlu0 %3232
  %3234 = vrot.lane.b32.xlu0 %v3098, 32
  %v3235 = vpop.permute.xlu0 %3234
  %3236 = vrot.lane.b32.xlu0 %v3099, 32
  %v3237 = vpop.permute.xlu0 %3236
  %3238 = vrot.lane.b32.xlu0 %v3100, 32
  %v3239 = vpop.permute.xlu0 %3238
  %3240 = vrot.lane.b32.xlu0 %v3101, 32
  %v3241 = vpop.permute.xlu0 %3240
  %3242 = vrot.lane.b32.xlu0 %v3102, 32
  %v3243 = vpop.permute.xlu0 %3242
  %3244 = vrot.lane.b32.xlu0 %v3103, 32
  %v3245 = vpop.permute.xlu0 %3244
  %3246 = vrot.lane.b32.xlu0 %v3104, 32
  %v3247 = vpop.permute.xlu0 %3246
  %3248 = vrot.lane.b32.xlu0 %v3105, 32
  %v3249 = vpop.permute.xlu0 %3248
  %3250 = vrot.lane.b32.xlu0 %v3106, 32
  %v3251 = vpop.permute.xlu0 %3250
  %3252 = vrot.lane.b32.xlu0 %v3107, 32
  %v3253 = vpop.permute.xlu0 %3252
  %3254 = vrot.lane.b32.xlu0 %v3108, 32
  %v3255 = vpop.permute.xlu0 %3254
  %3256 = vrot.lane.b32.xlu0 %v3109, 32
  %v3257 = vpop.permute.xlu0 %3256
  %3258 = vrot.lane.b32.xlu0 %v3110, 32
  %v3259 = vpop.permute.xlu0 %3258
  %3260 = vrot.lane.b32.xlu0 %v3111, 32
  %v3261 = vpop.permute.xlu0 %3260
  %3262 = vrot.lane.b32.xlu0 %v3112, 32
  %v3263 = vpop.permute.xlu0 %3262
  %3264 = vrot.lane.b32.xlu0 %v3113, 32
  %v3265 = vpop.permute.xlu0 %3264
  %3266 = vrot.lane.b32.xlu0 %v3114, 32
  %v3267 = vpop.permute.xlu0 %3266
  %3268 = vrot.lane.b32.xlu0 %v3115, 32
  %v3269 = vpop.permute.xlu0 %3268
  %3270 = vrot.lane.b32.xlu0 %v3116, 32
  %v3271 = vpop.permute.xlu0 %3270
  %3272 = vrot.lane.b32.xlu0 %v3117, 32
  %v3273 = vpop.permute.xlu0 %3272
  %3274 = vrot.lane.b32.xlu0 %v3118, 32
  %v3275 = vpop.permute.xlu0 %3274
  %3276 = vrot.lane.b32.xlu0 %v3119, 32
  %v3277 = vpop.permute.xlu0 %3276
  %3278 = vrot.lane.b32.xlu0 %v3120, 32
  %v3279 = vpop.permute.xlu0 %3278
  %3280 = vrot.lane.b32.xlu0 %v3121, 32
  %v3281 = vpop.permute.xlu0 %3280
  %3282 = vrot.lane.b32.xlu0 %v3122, 32
  %v3283 = vpop.permute.xlu0 %3282
  %3284 = vrot.lane.b32.xlu0 %v3123, 32
  %v3285 = vpop.permute.xlu0 %3284
  %3286 = vrot.lane.b32.xlu0 %v3124, 32
  %v3287 = vpop.permute.xlu0 %3286
  %3288 = vrot.lane.b32.xlu0 %v3125, 32
  %v3289 = vpop.permute.xlu0 %3288
  %3290 = vrot.lane.b32.xlu0 %v3126, 32
  %v3291 = vpop.permute.xlu0 %3290
  %3292 = vrot.lane.b32.xlu0 %v3127, 32
  %v3293 = vpop.permute.xlu0 %3292
  %3294 = vrot.lane.b32.xlu0 %v3128, 32
  %v3295 = vpop.permute.xlu0 %3294
  %3296 = vrot.lane.b32.xlu0 %v3129, 32
  %v3297 = vpop.permute.xlu0 %3296
  %3298 = vrot.lane.b32.xlu0 %v3130, 32
  %v3299 = vpop.permute.xlu0 %3298
  %3300 = vrot.lane.b32.xlu0 %v3131, 32
  %v3301 = vpop.permute.xlu0 %3300
  %3302 = vrot.lane.b32.xlu0 %v3132, 32
  %v3303 = vpop.permute.xlu0 %3302
  %3304 = vrot.lane.b32.xlu0 %v3133, 32
  %v3305 = vpop.permute.xlu0 %3304
  %3306 = vrot.lane.b32.xlu0 %v3134, 32
  %v3307 = vpop.permute.xlu0 %3306
  %3308 = vrot.lane.b32.xlu0 %v3135, 32
  %v3309 = vpop.permute.xlu0 %3308
  %3310 = vrot.lane.b32.xlu0 %v3136, 32
  %v3311 = vpop.permute.xlu0 %3310
  %3312 = vrot.lane.b32.xlu0 %v3137, 32
  %v3313 = vpop.permute.xlu0 %3312
  %3314 = vrot.lane.b32.xlu0 %v3138, 32
  %v3315 = vpop.permute.xlu0 %3314
  %3316 = vrot.lane.b32.xlu0 %v3139, 32
  %v3317 = vpop.permute.xlu0 %3316
  %3318 = vrot.lane.b32.xlu0 %v3140, 32
  %v3319 = vpop.permute.xlu0 %3318
  %3320 = vrot.lane.b32.xlu0 %v3141, 32
  %v3321 = vpop.permute.xlu0 %3320
  %3322 = vrot.lane.b32.xlu0 %v3142, 32
  %v3323 = vpop.permute.xlu0 %3322
  %3324 = vrot.lane.b32.xlu0 %v3143, 32
  %v3325 = vpop.permute.xlu0 %3324
  %3326 = vrot.lane.b32.xlu0 %v3144, 32
  %v3327 = vpop.permute.xlu0 %3326
  %3328 = vrot.lane.b32.xlu0 %v3145, 32
  %v3329 = vpop.permute.xlu0 %3328
  %3330 = vrot.lane.b32.xlu0 %v3146, 32
  %v3331 = vpop.permute.xlu0 %3330
  %3332 = vrot.lane.b32.xlu0 %v3147, 32
  %v3333 = vpop.permute.xlu0 %3332
  %3334 = vrot.lane.b32.xlu0 %v3148, 32
  %v3335 = vpop.permute.xlu0 %3334
  %3336 = vrot.lane.b32.xlu0 %v3149, 32
  %v3337 = vpop.permute.xlu0 %3336
  %3338 = vrot.lane.b32.xlu0 %v3150, 32
  %v3339 = vpop.permute.xlu0 %3338
  %3340 = vrot.lane.b32.xlu0 %v3151, 32
  %v3341 = vpop.permute.xlu0 %3340
  %3342 = vrot.lane.b32.xlu0 %v3152, 32
  %v3343 = vpop.permute.xlu0 %3342
  %3344 = vrot.lane.b32.xlu0 %v3153, 32
  %v3345 = vpop.permute.xlu0 %3344
  %vm3410 = vcmask 294144
  %3411 = vst.msk [vmem:[#allocation3] sm:$0xff] %vm3410, %v3219
  %3412 = vst.msk [vmem:[#allocation3 + $0x8] sm:$0xff] %vm3410, %v3221
  %3413 = vst.msk [vmem:[#allocation3 + $0x10] sm:$0xff] %vm3410, %v3223
  %3414 = vst.msk [vmem:[#allocation3 + $0x18] sm:$0xff] %vm3410, %v3225
  %3415 = vst.msk [vmem:[#allocation3 + $0x20] sm:$0xff] %vm3410, %v3227
  %3416 = vst.msk [vmem:[#allocation3 + $0x28] sm:$0xff] %vm3410, %v3229
  %3417 = vst.msk [vmem:[#allocation3 + $0x30] sm:$0xff] %vm3410, %v3231
  %3418 = vst.msk [vmem:[#allocation3 + $0x38] sm:$0xff] %vm3410, %v3233
  %3419 = vst.msk [vmem:[#allocation3 + $0x40] sm:$0xff] %vm3410, %v3235
  %3420 = vst.msk [vmem:[#allocation3 + $0x48] sm:$0xff] %vm3410, %v3237
  %3421 = vst.msk [vmem:[#allocation3 + $0x50] sm:$0xff] %vm3410, %v3239
  %3422 = vst.msk [vmem:[#allocation3 + $0x58] sm:$0xff] %vm3410, %v3241
  %3423 = vst.msk [vmem:[#allocation3 + $0x60] sm:$0xff] %vm3410, %v3243
  %3424 = vst.msk [vmem:[#allocation3 + $0x68] sm:$0xff] %vm3410, %v3245
  %3425 = vst.msk [vmem:[#allocation3 + $0x70] sm:$0xff] %vm3410, %v3247
  %3426 = vst.msk [vmem:[#allocation3 + $0x78] sm:$0xff] %vm3410, %v3249
  %3427 = vst.msk [vmem:[#allocation3 + $0x80] sm:$0xff] %vm3410, %v3251
  %3428 = vst.msk [vmem:[#allocation3 + $0x88] sm:$0xff] %vm3410, %v3253
  %3429 = vst.msk [vmem:[#allocation3 + $0x90] sm:$0xff] %vm3410, %v3255
  %3430 = vst.msk [vmem:[#allocation3 + $0x98] sm:$0xff] %vm3410, %v3257
  %3431 = vst.msk [vmem:[#allocation3 + $0xa0] sm:$0xff] %vm3410, %v3259
  %3432 = vst.msk [vmem:[#allocation3 + $0xa8] sm:$0xff] %vm3410, %v3261
  %3433 = vst.msk [vmem:[#allocation3 + $0xb0] sm:$0xff] %vm3410, %v3263
  %3434 = vst.msk [vmem:[#allocation3 + $0xb8] sm:$0xff] %vm3410, %v3265
  %3435 = vst.msk [vmem:[#allocation3 + $0xc0] sm:$0xff] %vm3410, %v3267
  %3436 = vst.msk [vmem:[#allocation3 + $0xc8] sm:$0xff] %vm3410, %v3269
  %3437 = vst.msk [vmem:[#allocation3 + $0xd0] sm:$0xff] %vm3410, %v3271
  %3438 = vst.msk [vmem:[#allocation3 + $0xd8] sm:$0xff] %vm3410, %v3273
  %3439 = vst.msk [vmem:[#allocation3 + $0xe0] sm:$0xff] %vm3410, %v3275
  %3440 = vst.msk [vmem:[#allocation3 + $0xe8] sm:$0xff] %vm3410, %v3277
  %3441 = vst.msk [vmem:[#allocation3 + $0xf0] sm:$0xff] %vm3410, %v3279
  %3442 = vst.msk [vmem:[#allocation3 + $0xf8] sm:$0xff] %vm3410, %v3281
  %3443 = vst.msk [vmem:[#allocation3 + $0x100] sm:$0xff] %vm3410, %v3283
  %3444 = vst.msk [vmem:[#allocation3 + $0x108] sm:$0xff] %vm3410, %v3285
  %3445 = vst.msk [vmem:[#allocation3 + $0x110] sm:$0xff] %vm3410, %v3287
  %3446 = vst.msk [vmem:[#allocation3 + $0x118] sm:$0xff] %vm3410, %v3289
  %3447 = vst.msk [vmem:[#allocation3 + $0x120] sm:$0xff] %vm3410, %v3291
  %3448 = vst.msk [vmem:[#allocation3 + $0x128] sm:$0xff] %vm3410, %v3293
  %3449 = vst.msk [vmem:[#allocation3 + $0x130] sm:$0xff] %vm3410, %v3295
  %3450 = vst.msk [vmem:[#allocation3 + $0x138] sm:$0xff] %vm3410, %v3297
  %3451 = vst.msk [vmem:[#allocation3 + $0x140] sm:$0xff] %vm3410, %v3299
  %3452 = vst.msk [vmem:[#allocation3 + $0x148] sm:$0xff] %vm3410, %v3301
  %3453 = vst.msk [vmem:[#allocation3 + $0x150] sm:$0xff] %vm3410, %v3303
  %3454 = vst.msk [vmem:[#allocation3 + $0x158] sm:$0xff] %vm3410, %v3305
  %3455 = vst.msk [vmem:[#allocation3 + $0x160] sm:$0xff] %vm3410, %v3307
  %3456 = vst.msk [vmem:[#allocation3 + $0x168] sm:$0xff] %vm3410, %v3309
  %3457 = vst.msk [vmem:[#allocation3 + $0x170] sm:$0xff] %vm3410, %v3311
  %3458 = vst.msk [vmem:[#allocation3 + $0x178] sm:$0xff] %vm3410, %v3313
  %3459 = vst.msk [vmem:[#allocation3 + $0x180] sm:$0xff] %vm3410, %v3315
  %3460 = vst.msk [vmem:[#allocation3 + $0x188] sm:$0xff] %vm3410, %v3317
  %3461 = vst.msk [vmem:[#allocation3 + $0x190] sm:$0xff] %vm3410, %v3319
  %3462 = vst.msk [vmem:[#allocation3 + $0x198] sm:$0xff] %vm3410, %v3321
  %3463 = vst.msk [vmem:[#allocation3 + $0x1a0] sm:$0xff] %vm3410, %v3323
  %3464 = vst.msk [vmem:[#allocation3 + $0x1a8] sm:$0xff] %vm3410, %v3325
  %3465 = vst.msk [vmem:[#allocation3 + $0x1b0] sm:$0xff] %vm3410, %v3327
  %3466 = vst.msk [vmem:[#allocation3 + $0x1b8] sm:$0xff] %vm3410, %v3329
  %3467 = vst.msk [vmem:[#allocation3 + $0x1c0] sm:$0xff] %vm3410, %v3331
  %3468 = vst.msk [vmem:[#allocation3 + $0x1c8] sm:$0xff] %vm3410, %v3333
  %3469 = vst.msk [vmem:[#allocation3 + $0x1d0] sm:$0xff] %vm3410, %v3335
  %3470 = vst.msk [vmem:[#allocation3 + $0x1d8] sm:$0xff] %vm3410, %v3337
  %3471 = vst.msk [vmem:[#allocation3 + $0x1e0] sm:$0xff] %vm3410, %v3339
  %3472 = vst.msk [vmem:[#allocation3 + $0x1e8] sm:$0xff] %vm3410, %v3341
  %3473 = vst.msk [vmem:[#allocation3 + $0x1f0] sm:$0xff] %vm3410, %v3343
  %3474 = vst.msk [vmem:[#allocation3 + $0x1f8] sm:$0xff] %vm3410, %v3345
  %v3475 = vld [vmem:[#allocation3] sm:$0xff]
  %v3476 = vld [vmem:[#allocation3 + $0x8] sm:$0xff]
  %v3477 = vld [vmem:[#allocation3 + $0x10] sm:$0xff]
  %v3478 = vld [vmem:[#allocation3 + $0x18] sm:$0xff]
  %v3479 = vld [vmem:[#allocation3 + $0x20] sm:$0xff]
  %v3480 = vld [vmem:[#allocation3 + $0x28] sm:$0xff]
  %v3481 = vld [vmem:[#allocation3 + $0x30] sm:$0xff]
  %v3482 = vld [vmem:[#allocation3 + $0x38] sm:$0xff]
  %v3483 = vld [vmem:[#allocation3 + $0x40] sm:$0xff]
  %v3484 = vld [vmem:[#allocation3 + $0x48] sm:$0xff]
  %v3485 = vld [vmem:[#allocation3 + $0x50] sm:$0xff]
  %v3486 = vld [vmem:[#allocation3 + $0x58] sm:$0xff]
  %v3487 = vld [vmem:[#allocation3 + $0x60] sm:$0xff]
  %v3488 = vld [vmem:[#allocation3 + $0x68] sm:$0xff]
  %v3489 = vld [vmem:[#allocation3 + $0x70] sm:$0xff]
  %v3490 = vld [vmem:[#allocation3 + $0x78] sm:$0xff]
  %v3491 = vld [vmem:[#allocation3 + $0x80] sm:$0xff]
  %v3492 = vld [vmem:[#allocation3 + $0x88] sm:$0xff]
  %v3493 = vld [vmem:[#allocation3 + $0x90] sm:$0xff]
  %v3494 = vld [vmem:[#allocation3 + $0x98] sm:$0xff]
  %v3495 = vld [vmem:[#allocation3 + $0xa0] sm:$0xff]
  %v3496 = vld [vmem:[#allocation3 + $0xa8] sm:$0xff]
  %v3497 = vld [vmem:[#allocation3 + $0xb0] sm:$0xff]
  %v3498 = vld [vmem:[#allocation3 + $0xb8] sm:$0xff]
  %v3499 = vld [vmem:[#allocation3 + $0xc0] sm:$0xff]
  %v3500 = vld [vmem:[#allocation3 + $0xc8] sm:$0xff]
  %v3501 = vld [vmem:[#allocation3 + $0xd0] sm:$0xff]
  %v3502 = vld [vmem:[#allocation3 + $0xd8] sm:$0xff]
  %v3503 = vld [vmem:[#allocation3 + $0xe0] sm:$0xff]
  %v3504 = vld [vmem:[#allocation3 + $0xe8] sm:$0xff]
  %v3505 = vld [vmem:[#allocation3 + $0xf0] sm:$0xff]
  %v3506 = vld [vmem:[#allocation3 + $0xf8] sm:$0xff]
  %v3507 = vld [vmem:[#allocation3 + $0x100] sm:$0xff]
  %v3508 = vld [vmem:[#allocation3 + $0x108] sm:$0xff]
  %v3509 = vld [vmem:[#allocation3 + $0x110] sm:$0xff]
  %v3510 = vld [vmem:[#allocation3 + $0x118] sm:$0xff]
  %v3511 = vld [vmem:[#allocation3 + $0x120] sm:$0xff]
  %v3512 = vld [vmem:[#allocation3 + $0x128] sm:$0xff]
  %v3513 = vld [vmem:[#allocation3 + $0x130] sm:$0xff]
  %v3514 = vld [vmem:[#allocation3 + $0x138] sm:$0xff]
  %v3515 = vld [vmem:[#allocation3 + $0x140] sm:$0xff]
  %v3516 = vld [vmem:[#allocation3 + $0x148] sm:$0xff]
  %v3517 = vld [vmem:[#allocation3 + $0x150] sm:$0xff]
  %v3518 = vld [vmem:[#allocation3 + $0x158] sm:$0xff]
  %v3519 = vld [vmem:[#allocation3 + $0x160] sm:$0xff]
  %v3520 = vld [vmem:[#allocation3 + $0x168] sm:$0xff]
  %v3521 = vld [vmem:[#allocation3 + $0x170] sm:$0xff]
  %v3522 = vld [vmem:[#allocation3 + $0x178] sm:$0xff]
  %v3523 = vld [vmem:[#allocation3 + $0x180] sm:$0xff]
  %v3524 = vld [vmem:[#allocation3 + $0x188] sm:$0xff]
  %v3525 = vld [vmem:[#allocation3 + $0x190] sm:$0xff]
  %v3526 = vld [vmem:[#allocation3 + $0x198] sm:$0xff]
  %v3527 = vld [vmem:[#allocation3 + $0x1a0] sm:$0xff]
  %v3528 = vld [vmem:[#allocation3 + $0x1a8] sm:$0xff]
  %v3529 = vld [vmem:[#allocation3 + $0x1b0] sm:$0xff]
  %v3530 = vld [vmem:[#allocation3 + $0x1b8] sm:$0xff]
  %v3531 = vld [vmem:[#allocation3 + $0x1c0] sm:$0xff]
  %v3532 = vld [vmem:[#allocation3 + $0x1c8] sm:$0xff]
  %v3533 = vld [vmem:[#allocation3 + $0x1d0] sm:$0xff]
  %v3534 = vld [vmem:[#allocation3 + $0x1d8] sm:$0xff]
  %v3535 = vld [vmem:[#allocation3 + $0x1e0] sm:$0xff]
  %v3536 = vld [vmem:[#allocation3 + $0x1e8] sm:$0xff]
  %v3537 = vld [vmem:[#allocation3 + $0x1f0] sm:$0xff]
  %v3538 = vld [vmem:[#allocation3 + $0x1f8] sm:$0xff]
  %v3539 = vpack.c.bf16 %v3476, %v3475
  %v3540 = vpack.c.bf16 %v3478, %v3477
  %v3541 = vpack.c.bf16 %v3480, %v3479
  %v3542 = vpack.c.bf16 %v3482, %v3481
  %v3543 = vpack.c.bf16 %v3484, %v3483
  %v3544 = vpack.c.bf16 %v3486, %v3485
  %v3545 = vpack.c.bf16 %v3488, %v3487
  %v3546 = vpack.c.bf16 %v3490, %v3489
  %v3547 = vpack.c.bf16 %v3492, %v3491
  %v3548 = vpack.c.bf16 %v3494, %v3493
  %v3549 = vpack.c.bf16 %v3496, %v3495
  %v3550 = vpack.c.bf16 %v3498, %v3497
  %v3551 = vpack.c.bf16 %v3500, %v3499
  %v3552 = vpack.c.bf16 %v3502, %v3501
  %v3553 = vpack.c.bf16 %v3504, %v3503
  %v3554 = vpack.c.bf16 %v3506, %v3505
  %v3555 = vpack.c.bf16 %v3508, %v3507
  %v3556 = vpack.c.bf16 %v3510, %v3509
  %v3557 = vpack.c.bf16 %v3512, %v3511
  %v3558 = vpack.c.bf16 %v3514, %v3513
  %v3559 = vpack.c.bf16 %v3516, %v3515
  %v3560 = vpack.c.bf16 %v3518, %v3517
  %v3561 = vpack.c.bf16 %v3520, %v3519
  %v3562 = vpack.c.bf16 %v3522, %v3521
  %v3563 = vpack.c.bf16 %v3524, %v3523
  %v3564 = vpack.c.bf16 %v3526, %v3525
  %v3565 = vpack.c.bf16 %v3528, %v3527
  %v3566 = vpack.c.bf16 %v3530, %v3529
  %v3567 = vpack.c.bf16 %v3532, %v3531
  %v3568 = vpack.c.bf16 %v3534, %v3533
  %v3569 = vpack.c.bf16 %v3536, %v3535
  %v3570 = vpack.c.bf16 %v3538, %v3537
  %v3571 = vld [vmem:[%s1] sm:$0xf]
  %v3572 = vld [vmem:[%s1 + $0x4] sm:$0xf]
  %v3573 = vld [vmem:[%s1 + $0x8] sm:$0xf]
  %v3574 = vld [vmem:[%s1 + $0xc] sm:$0xf]
  %v3575 = vld [vmem:[%s1 + $0x10] sm:$0x3]
  %v3581 = vunpack.c.l.b16 %v3571
  %v3582 = vunpack.c.l.b16 %v3572
  %v3583 = vunpack.c.l.b16 %v3573
  %v3584 = vunpack.c.l.b16 %v3574
  %v3585 = vunpack.c.l.b16 %v3575
  %v3586 = vpack.c.b16 %v3582, %v3581
  %v3587 = vpack.c.b16 %v3584, %v3583
  %v3588 = vpack.c.b16 %v3585, %v3585
  %vm3591 = vcmask 293888
  %v3593 = vsel %vm3591, %v3539, 0
  %v3596 = vsel %vm3591, %v3540, 0
  %v3599 = vsel %vm3591, %v3541, 0
  %v3602 = vsel %vm3591, %v3542, 0
  %v3605 = vsel %vm3591, %v3543, 0
  %v3608 = vsel %vm3591, %v3544, 0
  %v3611 = vsel %vm3591, %v3545, 0
  %v3614 = vsel %vm3591, %v3546, 0
  %v3617 = vsel %vm3591, %v3547, 0
  %v3620 = vsel %vm3591, %v3548, 0
  %v3623 = vsel %vm3591, %v3549, 0
  %v3626 = vsel %vm3591, %v3550, 0
  %v3629 = vsel %vm3591, %v3551, 0
  %v3632 = vsel %vm3591, %v3552, 0
  %v3635 = vsel %vm3591, %v3553, 0
  %v3638 = vsel %vm3591, %v3554, 0
  %v3641 = vsel %vm3591, %v3555, 0
  %v3644 = vsel %vm3591, %v3556, 0
  %v3647 = vsel %vm3591, %v3557, 0
  %v3650 = vsel %vm3591, %v3558, 0
  %v3653 = vsel %vm3591, %v3559, 0
  %v3656 = vsel %vm3591, %v3560, 0
  %v3659 = vsel %vm3591, %v3561, 0
  %v3662 = vsel %vm3591, %v3562, 0
  %v3665 = vsel %vm3591, %v3563, 0
  %v3668 = vsel %vm3591, %v3564, 0
  %v3671 = vsel %vm3591, %v3565, 0
  %v3674 = vsel %vm3591, %v3566, 0
  %v3677 = vsel %vm3591, %v3567, 0
  %v3680 = vsel %vm3591, %v3568, 0
  %v3683 = vsel %vm3591, %v3569, 0
  %v3686 = vsel %vm3591, %v3570, 0
  %vm3688 = vcmask 1041408
  %v3690 = vsel %vm3688, %v3588, 0
  %3692 = vmatprep.subr.bf16.mxu0 0
  %3693 = vmatpush1.bf16.msra.mxu0 0
  %3694 = vmatprep.subr.bf16.mxu0 0
  %3695 = vmatpush1.bf16.msra.mxu0 0
  %3696 = vmatprep.subr.bf16.mxu0 0
  %3697 = vmatpush1.bf16.msra.mxu0 0
  %3698 = vmatprep.subr.bf16.mxu0 0
  %3699 = vmatpush1.bf16.msra.mxu0 0
  %3700 = vmatprep.subr.bf16.mxu0 0
  %3701 = vmatpush1.bf16.msra.mxu0 0
  %3702 = vmatprep.subr.bf16.mxu0 0
  %3703 = vmatpush1.bf16.msra.mxu0 %v3690
  %3704 = vmatprep.subr.bf16.mxu0 0
  %3705 = vmatpush1.bf16.msra.mxu0 %v3587
  %3706 = vmatprep.subr.bf16.mxu0 0
  %3707 = vmatpush1.bf16.msra.mxu0 %v3586
  %3708 = vmatprep.subr.bf16.mxu0 0
  %3709 = vmatpush2.bf16.msra.mxu0 0
  %3710 = vmatprep.subr.bf16.mxu0 0
  %3711 = vmatpush2.bf16.msra.mxu0 0
  %3712 = vmatprep.subr.bf16.mxu0 0
  %3713 = vmatpush2.bf16.msra.mxu0 0
  %3714 = vmatprep.subr.bf16.mxu0 0
  %3715 = vmatpush2.bf16.msra.mxu0 0
  %3716 = vmatprep.subr.bf16.mxu0 0
  %3717 = vmatpush2.bf16.msra.mxu0 0
  %3718 = vmatprep.subr.bf16.mxu0 0
  %3719 = vmatpush2.bf16.msra.mxu0 0
  %3720 = vmatprep.subr.bf16.mxu0 0
  %3721 = vmatpush2.bf16.msra.mxu0 0
  %3722 = vmatprep.subr.bf16.mxu0 0
  %3723 = vmatpush2.bf16.msra.mxu0 0
  %3724 = vmatprep.mubr.bf16.mxu0 0
  %3725 = vmatmul.mubr.bf16.gmra.mxu0 %v3593
  %v3726 = vpop.f32.mrf.mxu0
  %v3727 = vadd.f32 0.0, %v3726
  %v3728 = vpop.f32.mrf.mxu0
  %v3729 = vpop.f32.mrf.mxu0
  %v3730 = vadd.f32 0.0, %v3729
  %v3731 = vpop.f32.mrf.mxu0
  %3732 = vmatprep.mubr.bf16.mxu0 0
  %3733 = vmatmul.mubr.bf16.gmra.mxu0 %v3596
  %v3734 = vpop.f32.mrf.mxu0
  %v3735 = vadd.f32 0.0, %v3734
  %v3736 = vpop.f32.mrf.mxu0
  %v3737 = vpop.f32.mrf.mxu0
  %v3738 = vadd.f32 0.0, %v3737
  %v3739 = vpop.f32.mrf.mxu0
  %3740 = vmatprep.mubr.bf16.mxu0 0
  %3741 = vmatmul.mubr.bf16.gmra.mxu0 %v3599
  %v3742 = vpop.f32.mrf.mxu0
  %v3743 = vadd.f32 0.0, %v3742
  %v3744 = vpop.f32.mrf.mxu0
  %v3745 = vpop.f32.mrf.mxu0
  %v3746 = vadd.f32 0.0, %v3745
  %v3747 = vpop.f32.mrf.mxu0
  %3748 = vmatprep.mubr.bf16.mxu0 0
  %3749 = vmatmul.mubr.bf16.gmra.mxu0 %v3602
  %v3750 = vpop.f32.mrf.mxu0
  %v3751 = vadd.f32 0.0, %v3750
  %v3752 = vpop.f32.mrf.mxu0
  %v3753 = vpop.f32.mrf.mxu0
  %v3754 = vadd.f32 0.0, %v3753
  %v3755 = vpop.f32.mrf.mxu0
  %3756 = vmatprep.mubr.bf16.mxu0 0
  %3757 = vmatmul.mubr.bf16.gmra.mxu0 %v3605
  %v3758 = vpop.f32.mrf.mxu0
  %v3759 = vadd.f32 0.0, %v3758
  %v3760 = vpop.f32.mrf.mxu0
  %v3761 = vpop.f32.mrf.mxu0
  %v3762 = vadd.f32 0.0, %v3761
  %v3763 = vpop.f32.mrf.mxu0
  %3764 = vmatprep.mubr.bf16.mxu0 0
  %3765 = vmatmul.mubr.bf16.gmra.mxu0 %v3608
  %v3766 = vpop.f32.mrf.mxu0
  %v3767 = vadd.f32 0.0, %v3766
  %v3768 = vpop.f32.mrf.mxu0
  %v3769 = vpop.f32.mrf.mxu0
  %v3770 = vadd.f32 0.0, %v3769
  %v3771 = vpop.f32.mrf.mxu0
  %3772 = vmatprep.mubr.bf16.mxu0 0
  %3773 = vmatmul.mubr.bf16.gmra.mxu0 %v3611
  %v3774 = vpop.f32.mrf.mxu0
  %v3775 = vadd.f32 0.0, %v3774
  %v3776 = vpop.f32.mrf.mxu0
  %v3777 = vpop.f32.mrf.mxu0
  %v3778 = vadd.f32 0.0, %v3777
  %v3779 = vpop.f32.mrf.mxu0
  %3780 = vmatprep.mubr.bf16.mxu0 0
  %3781 = vmatmul.mubr.bf16.gmra.mxu0 %v3614
  %v3782 = vpop.f32.mrf.mxu0
  %v3783 = vadd.f32 0.0, %v3782
  %v3784 = vpop.f32.mrf.mxu0
  %v3785 = vpop.f32.mrf.mxu0
  %v3786 = vadd.f32 0.0, %v3785
  %v3787 = vpop.f32.mrf.mxu0
  %3788 = vmatprep.mubr.bf16.mxu0 0
  %3789 = vmatmul.mubr.bf16.gmra.mxu0 %v3617
  %v3790 = vpop.f32.mrf.mxu0
  %v3791 = vadd.f32 0.0, %v3790
  %v3792 = vpop.f32.mrf.mxu0
  %v3793 = vpop.f32.mrf.mxu0
  %v3794 = vadd.f32 0.0, %v3793
  %v3795 = vpop.f32.mrf.mxu0
  %3796 = vmatprep.mubr.bf16.mxu0 0
  %3797 = vmatmul.mubr.bf16.gmra.mxu0 %v3620
  %v3798 = vpop.f32.mrf.mxu0
  %v3799 = vadd.f32 0.0, %v3798
  %v3800 = vpop.f32.mrf.mxu0
  %v3801 = vpop.f32.mrf.mxu0
  %v3802 = vadd.f32 0.0, %v3801
  %v3803 = vpop.f32.mrf.mxu0
  %3804 = vmatprep.mubr.bf16.mxu0 0
  %3805 = vmatmul.mubr.bf16.gmra.mxu0 %v3623
  %v3806 = vpop.f32.mrf.mxu0
  %v3807 = vadd.f32 0.0, %v3806
  %v3808 = vpop.f32.mrf.mxu0
  %v3809 = vpop.f32.mrf.mxu0
  %v3810 = vadd.f32 0.0, %v3809
  %v3811 = vpop.f32.mrf.mxu0
  %3812 = vmatprep.mubr.bf16.mxu0 0
  %3813 = vmatmul.mubr.bf16.gmra.mxu0 %v3626
  %v3814 = vpop.f32.mrf.mxu0
  %v3815 = vadd.f32 0.0, %v3814
  %v3816 = vpop.f32.mrf.mxu0
  %v3817 = vpop.f32.mrf.mxu0
  %v3818 = vadd.f32 0.0, %v3817
  %v3819 = vpop.f32.mrf.mxu0
  %3820 = vmatprep.mubr.bf16.mxu0 0
  %3821 = vmatmul.mubr.bf16.gmra.mxu0 %v3629
  %v3822 = vpop.f32.mrf.mxu0
  %v3823 = vadd.f32 0.0, %v3822
  %v3824 = vpop.f32.mrf.mxu0
  %v3825 = vpop.f32.mrf.mxu0
  %v3826 = vadd.f32 0.0, %v3825
  %v3827 = vpop.f32.mrf.mxu0
  %3828 = vmatprep.mubr.bf16.mxu0 0
  %3829 = vmatmul.mubr.bf16.gmra.mxu0 %v3632
  %v3830 = vpop.f32.mrf.mxu0
  %v3831 = vadd.f32 0.0, %v3830
  %v3832 = vpop.f32.mrf.mxu0
  %v3833 = vpop.f32.mrf.mxu0
  %v3834 = vadd.f32 0.0, %v3833
  %v3835 = vpop.f32.mrf.mxu0
  %3836 = vmatprep.mubr.bf16.mxu0 0
  %3837 = vmatmul.mubr.bf16.gmra.mxu0 %v3635
  %v3838 = vpop.f32.mrf.mxu0
  %v3839 = vadd.f32 0.0, %v3838
  %v3840 = vpop.f32.mrf.mxu0
  %v3841 = vpop.f32.mrf.mxu0
  %v3842 = vadd.f32 0.0, %v3841
  %v3843 = vpop.f32.mrf.mxu0
  %3844 = vmatprep.mubr.bf16.mxu0 0
  %3845 = vmatmul.mubr.bf16.gmra.mxu0 %v3638
  %v3846 = vpop.f32.mrf.mxu0
  %v3847 = vadd.f32 0.0, %v3846
  %v3848 = vpop.f32.mrf.mxu0
  %v3849 = vpop.f32.mrf.mxu0
  %v3850 = vadd.f32 0.0, %v3849
  %v3851 = vpop.f32.mrf.mxu0
  %3852 = vmatprep.mubr.bf16.mxu0 0
  %3853 = vmatmul.mubr.bf16.gmra.mxu0 %v3641
  %v3854 = vpop.f32.mrf.mxu0
  %v3855 = vadd.f32 0.0, %v3854
  %v3856 = vpop.f32.mrf.mxu0
  %v3857 = vpop.f32.mrf.mxu0
  %v3858 = vadd.f32 0.0, %v3857
  %v3859 = vpop.f32.mrf.mxu0
  %3860 = vmatprep.mubr.bf16.mxu0 0
  %3861 = vmatmul.mubr.bf16.gmra.mxu0 %v3644
  %v3862 = vpop.f32.mrf.mxu0
  %v3863 = vadd.f32 0.0, %v3862
  %v3864 = vpop.f32.mrf.mxu0
  %v3865 = vpop.f32.mrf.mxu0
  %v3866 = vadd.f32 0.0, %v3865
  %v3867 = vpop.f32.mrf.mxu0
  %3868 = vmatprep.mubr.bf16.mxu0 0
  %3869 = vmatmul.mubr.bf16.gmra.mxu0 %v3647
  %v3870 = vpop.f32.mrf.mxu0
  %v3871 = vadd.f32 0.0, %v3870
  %v3872 = vpop.f32.mrf.mxu0
  %v3873 = vpop.f32.mrf.mxu0
  %v3874 = vadd.f32 0.0, %v3873
  %v3875 = vpop.f32.mrf.mxu0
  %3876 = vmatprep.mubr.bf16.mxu0 0
  %3877 = vmatmul.mubr.bf16.gmra.mxu0 %v3650
  %v3878 = vpop.f32.mrf.mxu0
  %v3879 = vadd.f32 0.0, %v3878
  %v3880 = vpop.f32.mrf.mxu0
  %v3881 = vpop.f32.mrf.mxu0
  %v3882 = vadd.f32 0.0, %v3881
  %v3883 = vpop.f32.mrf.mxu0
  %3884 = vmatprep.mubr.bf16.mxu0 0
  %3885 = vmatmul.mubr.bf16.gmra.mxu0 %v3653
  %v3886 = vpop.f32.mrf.mxu0
  %v3887 = vadd.f32 0.0, %v3886
  %v3888 = vpop.f32.mrf.mxu0
  %v3889 = vpop.f32.mrf.mxu0
  %v3890 = vadd.f32 0.0, %v3889
  %v3891 = vpop.f32.mrf.mxu0
  %3892 = vmatprep.mubr.bf16.mxu0 0
  %3893 = vmatmul.mubr.bf16.gmra.mxu0 %v3656
  %v3894 = vpop.f32.mrf.mxu0
  %v3895 = vadd.f32 0.0, %v3894
  %v3896 = vpop.f32.mrf.mxu0
  %v3897 = vpop.f32.mrf.mxu0
  %v3898 = vadd.f32 0.0, %v3897
  %v3899 = vpop.f32.mrf.mxu0
  %3900 = vmatprep.mubr.bf16.mxu0 0
  %3901 = vmatmul.mubr.bf16.gmra.mxu0 %v3659
  %v3902 = vpop.f32.mrf.mxu0
  %v3903 = vadd.f32 0.0, %v3902
  %v3904 = vpop.f32.mrf.mxu0
  %v3905 = vpop.f32.mrf.mxu0
  %v3906 = vadd.f32 0.0, %v3905
  %v3907 = vpop.f32.mrf.mxu0
  %3908 = vmatprep.mubr.bf16.mxu0 0
  %3909 = vmatmul.mubr.bf16.gmra.mxu0 %v3662
  %v3910 = vpop.f32.mrf.mxu0
  %v3911 = vadd.f32 0.0, %v3910
  %v3912 = vpop.f32.mrf.mxu0
  %v3913 = vpop.f32.mrf.mxu0
  %v3914 = vadd.f32 0.0, %v3913
  %v3915 = vpop.f32.mrf.mxu0
  %3916 = vmatprep.mubr.bf16.mxu0 0
  %3917 = vmatmul.mubr.bf16.gmra.mxu0 %v3665
  %v3918 = vpop.f32.mrf.mxu0
  %v3919 = vadd.f32 0.0, %v3918
  %v3920 = vpop.f32.mrf.mxu0
  %v3921 = vpop.f32.mrf.mxu0
  %v3922 = vadd.f32 0.0, %v3921
  %v3923 = vpop.f32.mrf.mxu0
  %3924 = vmatprep.mubr.bf16.mxu0 0
  %3925 = vmatmul.mubr.bf16.gmra.mxu0 %v3668
  %v3926 = vpop.f32.mrf.mxu0
  %v3927 = vadd.f32 0.0, %v3926
  %v3928 = vpop.f32.mrf.mxu0
  %v3929 = vpop.f32.mrf.mxu0
  %v3930 = vadd.f32 0.0, %v3929
  %v3931 = vpop.f32.mrf.mxu0
  %3932 = vmatprep.mubr.bf16.mxu0 0
  %3933 = vmatmul.mubr.bf16.gmra.mxu0 %v3671
  %v3934 = vpop.f32.mrf.mxu0
  %v3935 = vadd.f32 0.0, %v3934
  %v3936 = vpop.f32.mrf.mxu0
  %v3937 = vpop.f32.mrf.mxu0
  %v3938 = vadd.f32 0.0, %v3937
  %v3939 = vpop.f32.mrf.mxu0
  %3940 = vmatprep.mubr.bf16.mxu0 0
  %3941 = vmatmul.mubr.bf16.gmra.mxu0 %v3674
  %v3942 = vpop.f32.mrf.mxu0
  %v3943 = vadd.f32 0.0, %v3942
  %v3944 = vpop.f32.mrf.mxu0
  %v3945 = vpop.f32.mrf.mxu0
  %v3946 = vadd.f32 0.0, %v3945
  %v3947 = vpop.f32.mrf.mxu0
  %3948 = vmatprep.mubr.bf16.mxu0 0
  %3949 = vmatmul.mubr.bf16.gmra.mxu0 %v3677
  %v3950 = vpop.f32.mrf.mxu0
  %v3951 = vadd.f32 0.0, %v3950
  %v3952 = vpop.f32.mrf.mxu0
  %v3953 = vpop.f32.mrf.mxu0
  %v3954 = vadd.f32 0.0, %v3953
  %v3955 = vpop.f32.mrf.mxu0
  %3956 = vmatprep.mubr.bf16.mxu0 0
  %3957 = vmatmul.mubr.bf16.gmra.mxu0 %v3680
  %v3958 = vpop.f32.mrf.mxu0
  %v3959 = vadd.f32 0.0, %v3958
  %v3960 = vpop.f32.mrf.mxu0
  %v3961 = vpop.f32.mrf.mxu0
  %v3962 = vadd.f32 0.0, %v3961
  %v3963 = vpop.f32.mrf.mxu0
  %3964 = vmatprep.mubr.bf16.mxu0 0
  %3965 = vmatmul.mubr.bf16.gmra.mxu0 %v3683
  %v3966 = vpop.f32.mrf.mxu0
  %v3967 = vadd.f32 0.0, %v3966
  %v3968 = vpop.f32.mrf.mxu0
  %v3969 = vpop.f32.mrf.mxu0
  %v3970 = vadd.f32 0.0, %v3969
  %v3971 = vpop.f32.mrf.mxu0
  %3972 = vmatprep.mubr.bf16.mxu0 0
  %3973 = vmatmul.mubr.bf16.gmra.mxu0 %v3686
  %v3974 = vpop.f32.mrf.mxu0
  %v3975 = vadd.f32 0.0, %v3974
  %v3976 = vpop.f32.mrf.mxu0
  %v3977 = vpop.f32.mrf.mxu0
  %v3978 = vadd.f32 0.0, %v3977
  %v3979 = vpop.f32.mrf.mxu0
  %3980 = vdwg.mxu0
  %v3981 = vsel %vm27, %v3727, 0.0
  %v3982 = vsel %vm27, %v3730, 0.0
  %v3983 = vadd.f32 %v3981, %v3982
  %v3984 = vsel %vm27, %v3735, 0.0
  %v3985 = vadd.f32 %v3983, %v3984
  %v3986 = vsel %vm27, %v3738, 0.0
  %v3987 = vadd.f32 %v3985, %v3986
  %v3988 = vsel %vm27, %v3743, 0.0
  %v3989 = vadd.f32 %v3987, %v3988
  %v3990 = vsel %vm27, %v3746, 0.0
  %v3991 = vadd.f32 %v3989, %v3990
  %v3992 = vsel %vm27, %v3751, 0.0
  %v3993 = vadd.f32 %v3991, %v3992
  %v3994 = vsel %vm27, %v3754, 0.0
  %v3995 = vadd.f32 %v3993, %v3994
  %v3996 = vsel %vm27, %v3759, 0.0
  %v3997 = vadd.f32 %v3995, %v3996
  %v3998 = vsel %vm27, %v3762, 0.0
  %v3999 = vadd.f32 %v3997, %v3998
  %v4000 = vsel %vm27, %v3767, 0.0
  %v4001 = vadd.f32 %v3999, %v4000
  %v4002 = vsel %vm27, %v3770, 0.0
  %v4003 = vadd.f32 %v4001, %v4002
  %v4004 = vsel %vm27, %v3775, 0.0
  %v4005 = vadd.f32 %v4003, %v4004
  %v4006 = vsel %vm27, %v3778, 0.0
  %v4007 = vadd.f32 %v4005, %v4006
  %v4008 = vsel %vm27, %v3783, 0.0
  %v4009 = vadd.f32 %v4007, %v4008
  %v4010 = vsel %vm27, %v3786, 0.0
  %v4011 = vadd.f32 %v4009, %v4010
  %v4012 = vsel %vm27, %v3791, 0.0
  %v4013 = vadd.f32 %v4011, %v4012
  %v4014 = vsel %vm27, %v3794, 0.0
  %v4015 = vadd.f32 %v4013, %v4014
  %v4016 = vsel %vm27, %v3799, 0.0
  %v4017 = vadd.f32 %v4015, %v4016
  %v4018 = vsel %vm27, %v3802, 0.0
  %v4019 = vadd.f32 %v4017, %v4018
  %v4020 = vsel %vm27, %v3807, 0.0
  %v4021 = vadd.f32 %v4019, %v4020
  %v4022 = vsel %vm27, %v3810, 0.0
  %v4023 = vadd.f32 %v4021, %v4022
  %v4024 = vsel %vm27, %v3815, 0.0
  %v4025 = vadd.f32 %v4023, %v4024
  %v4026 = vsel %vm27, %v3818, 0.0
  %v4027 = vadd.f32 %v4025, %v4026
  %v4028 = vsel %vm27, %v3823, 0.0
  %v4029 = vadd.f32 %v4027, %v4028
  %v4030 = vsel %vm27, %v3826, 0.0
  %v4031 = vadd.f32 %v4029, %v4030
  %v4032 = vsel %vm27, %v3831, 0.0
  %v4033 = vadd.f32 %v4031, %v4032
  %v4034 = vsel %vm27, %v3834, 0.0
  %v4035 = vadd.f32 %v4033, %v4034
  %v4036 = vsel %vm27, %v3839, 0.0
  %v4037 = vadd.f32 %v4035, %v4036
  %v4038 = vsel %vm27, %v3842, 0.0
  %v4039 = vadd.f32 %v4037, %v4038
  %v4040 = vsel %vm27, %v3847, 0.0
  %v4041 = vadd.f32 %v4039, %v4040
  %v4042 = vsel %vm27, %v3850, 0.0
  %v4043 = vadd.f32 %v4041, %v4042
  %v4044 = vsel %vm27, %v3855, 0.0
  %v4045 = vadd.f32 %v4043, %v4044
  %v4046 = vsel %vm27, %v3858, 0.0
  %v4047 = vadd.f32 %v4045, %v4046
  %v4048 = vsel %vm27, %v3863, 0.0
  %v4049 = vadd.f32 %v4047, %v4048
  %v4050 = vsel %vm27, %v3866, 0.0
  %v4051 = vadd.f32 %v4049, %v4050
  %v4052 = vsel %vm27, %v3871, 0.0
  %v4053 = vadd.f32 %v4051, %v4052
  %v4054 = vsel %vm27, %v3874, 0.0
  %v4055 = vadd.f32 %v4053, %v4054
  %v4056 = vsel %vm27, %v3879, 0.0
  %v4057 = vadd.f32 %v4055, %v4056
  %v4058 = vsel %vm27, %v3882, 0.0
  %v4059 = vadd.f32 %v4057, %v4058
  %v4060 = vsel %vm27, %v3887, 0.0
  %v4061 = vadd.f32 %v4059, %v4060
  %v4062 = vsel %vm27, %v3890, 0.0
  %v4063 = vadd.f32 %v4061, %v4062
  %v4064 = vsel %vm27, %v3895, 0.0
  %v4065 = vadd.f32 %v4063, %v4064
  %v4066 = vsel %vm27, %v3898, 0.0
  %v4067 = vadd.f32 %v4065, %v4066
  %v4068 = vsel %vm27, %v3903, 0.0
  %v4069 = vadd.f32 %v4067, %v4068
  %v4070 = vsel %vm27, %v3906, 0.0
  %v4071 = vadd.f32 %v4069, %v4070
  %v4072 = vsel %vm27, %v3911, 0.0
  %v4073 = vadd.f32 %v4071, %v4072
  %v4074 = vsel %vm27, %v3914, 0.0
  %v4075 = vadd.f32 %v4073, %v4074
  %v4076 = vsel %vm27, %v3919, 0.0
  %v4077 = vadd.f32 %v4075, %v4076
  %v4078 = vsel %vm27, %v3922, 0.0
  %v4079 = vadd.f32 %v4077, %v4078
  %v4080 = vsel %vm27, %v3927, 0.0
  %v4081 = vadd.f32 %v4079, %v4080
  %v4082 = vsel %vm27, %v3930, 0.0
  %v4083 = vadd.f32 %v4081, %v4082
  %v4084 = vsel %vm27, %v3935, 0.0
  %v4085 = vadd.f32 %v4083, %v4084
  %v4086 = vsel %vm27, %v3938, 0.0
  %v4087 = vadd.f32 %v4085, %v4086
  %v4088 = vsel %vm27, %v3943, 0.0
  %v4089 = vadd.f32 %v4087, %v4088
  %v4090 = vsel %vm27, %v3946, 0.0
  %v4091 = vadd.f32 %v4089, %v4090
  %v4092 = vsel %vm27, %v3951, 0.0
  %v4093 = vadd.f32 %v4091, %v4092
  %v4094 = vsel %vm27, %v3954, 0.0
  %v4095 = vadd.f32 %v4093, %v4094
  %v4096 = vsel %vm27, %v3959, 0.0
  %v4097 = vadd.f32 %v4095, %v4096
  %v4098 = vsel %vm27, %v3962, 0.0
  %v4099 = vadd.f32 %v4097, %v4098
  %v4100 = vsel %vm27, %v3967, 0.0
  %v4101 = vadd.f32 %v4099, %v4100
  %v4102 = vsel %vm27, %v3970, 0.0
  %v4103 = vadd.f32 %v4101, %v4102
  %v4104 = vsel %vm27, %v3975, 0.0
  %v4105 = vadd.f32 %v4103, %v4104
  %v4106 = vsel %vm27, %v3978, 0.0
  %v4107 = vadd.f32 %v4105, %v4106
  %v4108 = vrot.slane %v4107, 4
  %v4109 = vadd.f32 %v4107, %v4108
  %v4110 = vrot.slane %v4109, 2
  %v4111 = vadd.f32 %v4109, %v4110
  %v4112 = vrot.slane %v4111, 1
  %v4113 = vadd.f32 %v4111, %v4112
  %v4114 = vmul.f32 %v4113, 0.001953125
  %v4115 = vmul.f32 %v3727, %v3727
  %v4116 = vmul.f32 %v3730, %v3730
  %v4117 = vmul.f32 %v3735, %v3735
  %v4118 = vmul.f32 %v3738, %v3738
  %v4119 = vmul.f32 %v3743, %v3743
  %v4120 = vmul.f32 %v3746, %v3746
  %v4121 = vmul.f32 %v3751, %v3751
  %v4122 = vmul.f32 %v3754, %v3754
  %v4123 = vmul.f32 %v3759, %v3759
  %v4124 = vmul.f32 %v3762, %v3762
  %v4125 = vmul.f32 %v3767, %v3767
  %v4126 = vmul.f32 %v3770, %v3770
  %v4127 = vmul.f32 %v3775, %v3775
  %v4128 = vmul.f32 %v3778, %v3778
  %v4129 = vmul.f32 %v3783, %v3783
  %v4130 = vmul.f32 %v3786, %v3786
  %v4131 = vmul.f32 %v3791, %v3791
  %v4132 = vmul.f32 %v3794, %v3794
  %v4133 = vmul.f32 %v3799, %v3799
  %v4134 = vmul.f32 %v3802, %v3802
  %v4135 = vmul.f32 %v3807, %v3807
  %v4136 = vmul.f32 %v3810, %v3810
  %v4137 = vmul.f32 %v3815, %v3815
  %v4138 = vmul.f32 %v3818, %v3818
  %v4139 = vmul.f32 %v3823, %v3823
  %v4140 = vmul.f32 %v3826, %v3826
  %v4141 = vmul.f32 %v3831, %v3831
  %v4142 = vmul.f32 %v3834, %v3834
  %v4143 = vmul.f32 %v3839, %v3839
  %v4144 = vmul.f32 %v3842, %v3842
  %v4145 = vmul.f32 %v3847, %v3847
  %v4146 = vmul.f32 %v3850, %v3850
  %v4147 = vmul.f32 %v3855, %v3855
  %v4148 = vmul.f32 %v3858, %v3858
  %v4149 = vmul.f32 %v3863, %v3863
  %v4150 = vmul.f32 %v3866, %v3866
  %v4151 = vmul.f32 %v3871, %v3871
  %v4152 = vmul.f32 %v3874, %v3874
  %v4153 = vmul.f32 %v3879, %v3879
  %v4154 = vmul.f32 %v3882, %v3882
  %v4155 = vmul.f32 %v3887, %v3887
  %v4156 = vmul.f32 %v3890, %v3890
  %v4157 = vmul.f32 %v3895, %v3895
  %v4158 = vmul.f32 %v3898, %v3898
  %v4159 = vmul.f32 %v3903, %v3903
  %v4160 = vmul.f32 %v3906, %v3906
  %v4161 = vmul.f32 %v3911, %v3911
  %v4162 = vmul.f32 %v3914, %v3914
  %v4163 = vmul.f32 %v3919, %v3919
  %v4164 = vmul.f32 %v3922, %v3922
  %v4165 = vmul.f32 %v3927, %v3927
  %v4166 = vmul.f32 %v3930, %v3930
  %v4167 = vmul.f32 %v3935, %v3935
  %v4168 = vmul.f32 %v3938, %v3938
  %v4169 = vmul.f32 %v3943, %v3943
  %v4170 = vmul.f32 %v3946, %v3946
  %v4171 = vmul.f32 %v3951, %v3951
  %v4172 = vmul.f32 %v3954, %v3954
  %v4173 = vmul.f32 %v3959, %v3959
  %v4174 = vmul.f32 %v3962, %v3962
  %v4175 = vmul.f32 %v3967, %v3967
  %v4176 = vmul.f32 %v3970, %v3970
  %v4177 = vmul.f32 %v3975, %v3975
  %v4178 = vmul.f32 %v3978, %v3978
  %v4179 = vsel %vm27, %v4115, 0.0
  %v4180 = vsel %vm27, %v4116, 0.0
  %v4181 = vadd.f32 %v4179, %v4180
  %v4182 = vsel %vm27, %v4117, 0.0
  %v4183 = vadd.f32 %v4181, %v4182
  %v4184 = vsel %vm27, %v4118, 0.0
  %v4185 = vadd.f32 %v4183, %v4184
  %v4186 = vsel %vm27, %v4119, 0.0
  %v4187 = vadd.f32 %v4185, %v4186
  %v4188 = vsel %vm27, %v4120, 0.0
  %v4189 = vadd.f32 %v4187, %v4188
  %v4190 = vsel %vm27, %v4121, 0.0
  %v4191 = vadd.f32 %v4189, %v4190
  %v4192 = vsel %vm27, %v4122, 0.0
  %v4193 = vadd.f32 %v4191, %v4192
  %v4194 = vsel %vm27, %v4123, 0.0
  %v4195 = vadd.f32 %v4193, %v4194
  %v4196 = vsel %vm27, %v4124, 0.0
  %v4197 = vadd.f32 %v4195, %v4196
  %v4198 = vsel %vm27, %v4125, 0.0
  %v4199 = vadd.f32 %v4197, %v4198
  %v4200 = vsel %vm27, %v4126, 0.0
  %v4201 = vadd.f32 %v4199, %v4200
  %v4202 = vsel %vm27, %v4127, 0.0
  %v4203 = vadd.f32 %v4201, %v4202
  %v4204 = vsel %vm27, %v4128, 0.0
  %v4205 = vadd.f32 %v4203, %v4204
  %v4206 = vsel %vm27, %v4129, 0.0
  %v4207 = vadd.f32 %v4205, %v4206
  %v4208 = vsel %vm27, %v4130, 0.0
  %v4209 = vadd.f32 %v4207, %v4208
  %v4210 = vsel %vm27, %v4131, 0.0
  %v4211 = vadd.f32 %v4209, %v4210
  %v4212 = vsel %vm27, %v4132, 0.0
  %v4213 = vadd.f32 %v4211, %v4212
  %v4214 = vsel %vm27, %v4133, 0.0
  %v4215 = vadd.f32 %v4213, %v4214
  %v4216 = vsel %vm27, %v4134, 0.0
  %v4217 = vadd.f32 %v4215, %v4216
  %v4218 = vsel %vm27, %v4135, 0.0
  %v4219 = vadd.f32 %v4217, %v4218
  %v4220 = vsel %vm27, %v4136, 0.0
  %v4221 = vadd.f32 %v4219, %v4220
  %v4222 = vsel %vm27, %v4137, 0.0
  %v4223 = vadd.f32 %v4221, %v4222
  %v4224 = vsel %vm27, %v4138, 0.0
  %v4225 = vadd.f32 %v4223, %v4224
  %v4226 = vsel %vm27, %v4139, 0.0
  %v4227 = vadd.f32 %v4225, %v4226
  %v4228 = vsel %vm27, %v4140, 0.0
  %v4229 = vadd.f32 %v4227, %v4228
  %v4230 = vsel %vm27, %v4141, 0.0
  %v4231 = vadd.f32 %v4229, %v4230
  %v4232 = vsel %vm27, %v4142, 0.0
  %v4233 = vadd.f32 %v4231, %v4232
  %v4234 = vsel %vm27, %v4143, 0.0
  %v4235 = vadd.f32 %v4233, %v4234
  %v4236 = vsel %vm27, %v4144, 0.0
  %v4237 = vadd.f32 %v4235, %v4236
  %v4238 = vsel %vm27, %v4145, 0.0
  %v4239 = vadd.f32 %v4237, %v4238
  %v4240 = vsel %vm27, %v4146, 0.0
  %v4241 = vadd.f32 %v4239, %v4240
  %v4242 = vsel %vm27, %v4147, 0.0
  %v4243 = vadd.f32 %v4241, %v4242
  %v4244 = vsel %vm27, %v4148, 0.0
  %v4245 = vadd.f32 %v4243, %v4244
  %v4246 = vsel %vm27, %v4149, 0.0
  %v4247 = vadd.f32 %v4245, %v4246
  %v4248 = vsel %vm27, %v4150, 0.0
  %v4249 = vadd.f32 %v4247, %v4248
  %v4250 = vsel %vm27, %v4151, 0.0
  %v4251 = vadd.f32 %v4249, %v4250
  %v4252 = vsel %vm27, %v4152, 0.0
  %v4253 = vadd.f32 %v4251, %v4252
  %v4254 = vsel %vm27, %v4153, 0.0
  %v4255 = vadd.f32 %v4253, %v4254
  %v4256 = vsel %vm27, %v4154, 0.0
  %v4257 = vadd.f32 %v4255, %v4256
  %v4258 = vsel %vm27, %v4155, 0.0
  %v4259 = vadd.f32 %v4257, %v4258
  %v4260 = vsel %vm27, %v4156, 0.0
  %v4261 = vadd.f32 %v4259, %v4260
  %v4262 = vsel %vm27, %v4157, 0.0
  %v4263 = vadd.f32 %v4261, %v4262
  %v4264 = vsel %vm27, %v4158, 0.0
  %v4265 = vadd.f32 %v4263, %v4264
  %v4266 = vsel %vm27, %v4159, 0.0
  %v4267 = vadd.f32 %v4265, %v4266
  %v4268 = vsel %vm27, %v4160, 0.0
  %v4269 = vadd.f32 %v4267, %v4268
  %v4270 = vsel %vm27, %v4161, 0.0
  %v4271 = vadd.f32 %v4269, %v4270
  %v4272 = vsel %vm27, %v4162, 0.0
  %v4273 = vadd.f32 %v4271, %v4272
  %v4274 = vsel %vm27, %v4163, 0.0
  %v4275 = vadd.f32 %v4273, %v4274
  %v4276 = vsel %vm27, %v4164, 0.0
  %v4277 = vadd.f32 %v4275, %v4276
  %v4278 = vsel %vm27, %v4165, 0.0
  %v4279 = vadd.f32 %v4277, %v4278
  %v4280 = vsel %vm27, %v4166, 0.0
  %v4281 = vadd.f32 %v4279, %v4280
  %v4282 = vsel %vm27, %v4167, 0.0
  %v4283 = vadd.f32 %v4281, %v4282
  %v4284 = vsel %vm27, %v4168, 0.0
  %v4285 = vadd.f32 %v4283, %v4284
  %v4286 = vsel %vm27, %v4169, 0.0
  %v4287 = vadd.f32 %v4285, %v4286
  %v4288 = vsel %vm27, %v4170, 0.0
  %v4289 = vadd.f32 %v4287, %v4288
  %v4290 = vsel %vm27, %v4171, 0.0
  %v4291 = vadd.f32 %v4289, %v4290
  %v4292 = vsel %vm27, %v4172, 0.0
  %v4293 = vadd.f32 %v4291, %v4292
  %v4294 = vsel %vm27, %v4173, 0.0
  %v4295 = vadd.f32 %v4293, %v4294
  %v4296 = vsel %vm27, %v4174, 0.0
  %v4297 = vadd.f32 %v4295, %v4296
  %v4298 = vsel %vm27, %v4175, 0.0
  %v4299 = vadd.f32 %v4297, %v4298
  %v4300 = vsel %vm27, %v4176, 0.0
  %v4301 = vadd.f32 %v4299, %v4300
  %v4302 = vsel %vm27, %v4177, 0.0
  %v4303 = vadd.f32 %v4301, %v4302
  %v4304 = vsel %vm27, %v4178, 0.0
  %v4305 = vadd.f32 %v4303, %v4304
  %v4306 = vrot.slane %v4305, 4
  %v4307 = vadd.f32 %v4305, %v4306
  %v4308 = vrot.slane %v4307, 2
  %v4309 = vadd.f32 %v4307, %v4308
  %v4310 = vrot.slane %v4309, 1
  %v4311 = vadd.f32 %v4309, %v4310
  %v4312 = vmul.f32 %v4311, 0.001953125
  %v4313 = vmul.f32 %v4114, %v4114
  %v4314 = vsub.f32 %v4312, %v4313
  %v4315 = vmax.f32 %v4314, 0.0
  %v4316 = vld [vmem:[%s3] sm:$0x1]
  %v4317 = vadd.f32 %v4315, 1e-05
  %v4318 = vrsqrt.pop %v4317
  %v4319 = vmul.f32 %v4316, %v4318
  %v4320 = vld [vmem:[%s4] sm:$0x1]
  %v4321 = vmul.f32 %v4114, %v4319
  %v4322 = vsub.f32 %v4320, %v4321
  %v4324 = vlaneseq
  %v4325 = vshrl.u32 %v4324, 7
  %v4326 = vsub.s32 0, %v4325
  %v4327 = vrot.slane %v4319, %v4326
  %v4329 = vmul.f32 %v3727, %v4327
  %v4330 = vmul.f32 %v3730, %v4327
  %v4331 = vmul.f32 %v3735, %v4327
  %v4332 = vmul.f32 %v3738, %v4327
  %v4333 = vmul.f32 %v3743, %v4327
  %v4334 = vmul.f32 %v3746, %v4327
  %v4335 = vmul.f32 %v3751, %v4327
  %v4336 = vmul.f32 %v3754, %v4327
  %v4337 = vmul.f32 %v3759, %v4327
  %v4338 = vmul.f32 %v3762, %v4327
  %v4339 = vmul.f32 %v3767, %v4327
  %v4340 = vmul.f32 %v3770, %v4327
  %v4341 = vmul.f32 %v3775, %v4327
  %v4342 = vmul.f32 %v3778, %v4327
  %v4343 = vmul.f32 %v3783, %v4327
  %v4344 = vmul.f32 %v3786, %v4327
  %v4345 = vmul.f32 %v3791, %v4327
  %v4346 = vmul.f32 %v3794, %v4327
  %v4347 = vmul.f32 %v3799, %v4327
  %v4348 = vmul.f32 %v3802, %v4327
  %v4349 = vmul.f32 %v3807, %v4327
  %v4350 = vmul.f32 %v3810, %v4327
  %v4351 = vmul.f32 %v3815, %v4327
  %v4352 = vmul.f32 %v3818, %v4327
  %v4353 = vmul.f32 %v3823, %v4327
  %v4354 = vmul.f32 %v3826, %v4327
  %v4355 = vmul.f32 %v3831, %v4327
  %v4356 = vmul.f32 %v3834, %v4327
  %v4357 = vmul.f32 %v3839, %v4327
  %v4358 = vmul.f32 %v3842, %v4327
  %v4359 = vmul.f32 %v3847, %v4327
  %v4360 = vmul.f32 %v3850, %v4327
  %v4361 = vmul.f32 %v3855, %v4327
  %v4362 = vmul.f32 %v3858, %v4327
  %v4363 = vmul.f32 %v3863, %v4327
  %v4364 = vmul.f32 %v3866, %v4327
  %v4365 = vmul.f32 %v3871, %v4327
  %v4366 = vmul.f32 %v3874, %v4327
  %v4367 = vmul.f32 %v3879, %v4327
  %v4368 = vmul.f32 %v3882, %v4327
  %v4369 = vmul.f32 %v3887, %v4327
  %v4370 = vmul.f32 %v3890, %v4327
  %v4371 = vmul.f32 %v3895, %v4327
  %v4372 = vmul.f32 %v3898, %v4327
  %v4373 = vmul.f32 %v3903, %v4327
  %v4374 = vmul.f32 %v3906, %v4327
  %v4375 = vmul.f32 %v3911, %v4327
  %v4376 = vmul.f32 %v3914, %v4327
  %v4377 = vmul.f32 %v3919, %v4327
  %v4378 = vmul.f32 %v3922, %v4327
  %v4379 = vmul.f32 %v3927, %v4327
  %v4380 = vmul.f32 %v3930, %v4327
  %v4381 = vmul.f32 %v3935, %v4327
  %v4382 = vmul.f32 %v3938, %v4327
  %v4383 = vmul.f32 %v3943, %v4327
  %v4384 = vmul.f32 %v3946, %v4327
  %v4385 = vmul.f32 %v3951, %v4327
  %v4386 = vmul.f32 %v3954, %v4327
  %v4387 = vmul.f32 %v3959, %v4327
  %v4388 = vmul.f32 %v3962, %v4327
  %v4389 = vmul.f32 %v3967, %v4327
  %v4390 = vmul.f32 %v3970, %v4327
  %v4391 = vmul.f32 %v3975, %v4327
  %v4392 = vmul.f32 %v3978, %v4327
  %v4394 = vlaneseq
  %v4395 = vshrl.u32 %v4394, 7
  %v4396 = vsub.s32 0, %v4395
  %v4397 = vrot.slane %v4322, %v4396
  %v4399 = vadd.f32 %v4329, %v4397
  %v4400 = vadd.f32 %v4330, %v4397
  %v4401 = vadd.f32 %v4331, %v4397
  %v4402 = vadd.f32 %v4332, %v4397
  %v4403 = vadd.f32 %v4333, %v4397
  %v4404 = vadd.f32 %v4334, %v4397
  %v4405 = vadd.f32 %v4335, %v4397
  %v4406 = vadd.f32 %v4336, %v4397
  %v4407 = vadd.f32 %v4337, %v4397
  %v4408 = vadd.f32 %v4338, %v4397
  %v4409 = vadd.f32 %v4339, %v4397
  %v4410 = vadd.f32 %v4340, %v4397
  %v4411 = vadd.f32 %v4341, %v4397
  %v4412 = vadd.f32 %v4342, %v4397
  %v4413 = vadd.f32 %v4343, %v4397
  %v4414 = vadd.f32 %v4344, %v4397
  %v4415 = vadd.f32 %v4345, %v4397
  %v4416 = vadd.f32 %v4346, %v4397
  %v4417 = vadd.f32 %v4347, %v4397
  %v4418 = vadd.f32 %v4348, %v4397
  %v4419 = vadd.f32 %v4349, %v4397
  %v4420 = vadd.f32 %v4350, %v4397
  %v4421 = vadd.f32 %v4351, %v4397
  %v4422 = vadd.f32 %v4352, %v4397
  %v4423 = vadd.f32 %v4353, %v4397
  %v4424 = vadd.f32 %v4354, %v4397
  %v4425 = vadd.f32 %v4355, %v4397
  %v4426 = vadd.f32 %v4356, %v4397
  %v4427 = vadd.f32 %v4357, %v4397
  %v4428 = vadd.f32 %v4358, %v4397
  %v4429 = vadd.f32 %v4359, %v4397
  %v4430 = vadd.f32 %v4360, %v4397
  %v4431 = vadd.f32 %v4361, %v4397
  %v4432 = vadd.f32 %v4362, %v4397
  %v4433 = vadd.f32 %v4363, %v4397
  %v4434 = vadd.f32 %v4364, %v4397
  %v4435 = vadd.f32 %v4365, %v4397
  %v4436 = vadd.f32 %v4366, %v4397
  %v4437 = vadd.f32 %v4367, %v4397
  %v4438 = vadd.f32 %v4368, %v4397
  %v4439 = vadd.f32 %v4369, %v4397
  %v4440 = vadd.f32 %v4370, %v4397
  %v4441 = vadd.f32 %v4371, %v4397
  %v4442 = vadd.f32 %v4372, %v4397
  %v4443 = vadd.f32 %v4373, %v4397
  %v4444 = vadd.f32 %v4374, %v4397
  %v4445 = vadd.f32 %v4375, %v4397
  %v4446 = vadd.f32 %v4376, %v4397
  %v4447 = vadd.f32 %v4377, %v4397
  %v4448 = vadd.f32 %v4378, %v4397
  %v4449 = vadd.f32 %v4379, %v4397
  %v4450 = vadd.f32 %v4380, %v4397
  %v4451 = vadd.f32 %v4381, %v4397
  %v4452 = vadd.f32 %v4382, %v4397
  %v4453 = vadd.f32 %v4383, %v4397
  %v4454 = vadd.f32 %v4384, %v4397
  %v4455 = vadd.f32 %v4385, %v4397
  %v4456 = vadd.f32 %v4386, %v4397
  %v4457 = vadd.f32 %v4387, %v4397
  %v4458 = vadd.f32 %v4388, %v4397
  %v4459 = vadd.f32 %v4389, %v4397
  %v4460 = vadd.f32 %v4390, %v4397
  %v4461 = vadd.f32 %v4391, %v4397
  %v4462 = vadd.f32 %v4392, %v4397
  %v4463 = vmax.f32 %v4399, 0.0
  %v4464 = vmax.f32 %v4400, 0.0
  %v4465 = vmax.f32 %v4401, 0.0
  %v4466 = vmax.f32 %v4402, 0.0
  %v4467 = vmax.f32 %v4403, 0.0
  %v4468 = vmax.f32 %v4404, 0.0
  %v4469 = vmax.f32 %v4405, 0.0
  %v4470 = vmax.f32 %v4406, 0.0
  %v4471 = vmax.f32 %v4407, 0.0
  %v4472 = vmax.f32 %v4408, 0.0
  %v4473 = vmax.f32 %v4409, 0.0
  %v4474 = vmax.f32 %v4410, 0.0
  %v4475 = vmax.f32 %v4411, 0.0
  %v4476 = vmax.f32 %v4412, 0.0
  %v4477 = vmax.f32 %v4413, 0.0
  %v4478 = vmax.f32 %v4414, 0.0
  %v4479 = vmax.f32 %v4415, 0.0
  %v4480 = vmax.f32 %v4416, 0.0
  %v4481 = vmax.f32 %v4417, 0.0
  %v4482 = vmax.f32 %v4418, 0.0
  %v4483 = vmax.f32 %v4419, 0.0
  %v4484 = vmax.f32 %v4420, 0.0
  %v4485 = vmax.f32 %v4421, 0.0
  %v4486 = vmax.f32 %v4422, 0.0
  %v4487 = vmax.f32 %v4423, 0.0
  %v4488 = vmax.f32 %v4424, 0.0
  %v4489 = vmax.f32 %v4425, 0.0
  %v4490 = vmax.f32 %v4426, 0.0
  %v4491 = vmax.f32 %v4427, 0.0
  %v4492 = vmax.f32 %v4428, 0.0
  %v4493 = vmax.f32 %v4429, 0.0
  %v4494 = vmax.f32 %v4430, 0.0
  %v4495 = vmax.f32 %v4431, 0.0
  %v4496 = vmax.f32 %v4432, 0.0
  %v4497 = vmax.f32 %v4433, 0.0
  %v4498 = vmax.f32 %v4434, 0.0
  %v4499 = vmax.f32 %v4435, 0.0
  %v4500 = vmax.f32 %v4436, 0.0
  %v4501 = vmax.f32 %v4437, 0.0
  %v4502 = vmax.f32 %v4438, 0.0
  %v4503 = vmax.f32 %v4439, 0.0
  %v4504 = vmax.f32 %v4440, 0.0
  %v4505 = vmax.f32 %v4441, 0.0
  %v4506 = vmax.f32 %v4442, 0.0
  %v4507 = vmax.f32 %v4443, 0.0
  %v4508 = vmax.f32 %v4444, 0.0
  %v4509 = vmax.f32 %v4445, 0.0
  %v4510 = vmax.f32 %v4446, 0.0
  %v4511 = vmax.f32 %v4447, 0.0
  %v4512 = vmax.f32 %v4448, 0.0
  %v4513 = vmax.f32 %v4449, 0.0
  %v4514 = vmax.f32 %v4450, 0.0
  %v4515 = vmax.f32 %v4451, 0.0
  %v4516 = vmax.f32 %v4452, 0.0
  %v4517 = vmax.f32 %v4453, 0.0
  %v4518 = vmax.f32 %v4454, 0.0
  %v4519 = vmax.f32 %v4455, 0.0
  %v4520 = vmax.f32 %v4456, 0.0
  %v4521 = vmax.f32 %v4457, 0.0
  %v4522 = vmax.f32 %v4458, 0.0
  %v4523 = vmax.f32 %v4459, 0.0
  %v4524 = vmax.f32 %v4460, 0.0
  %v4525 = vmax.f32 %v4461, 0.0
  %v4526 = vmax.f32 %v4462, 0.0
  %4527 = vst.msk [vmem:[%s201 + $0x1] sm:$0xff] %vm27, %v4463
  %4528 = vst.msk [vmem:[%s201 + $0x9] sm:$0xff] %vm27, %v4464
  %4529 = vst.msk [vmem:[%s201 + $0x19] sm:$0xff] %vm27, %v4465
  %4530 = vst.msk [vmem:[%s201 + $0x21] sm:$0xff] %vm27, %v4466
  %4531 = vst.msk [vmem:[%s201 + $0x31] sm:$0xff] %vm27, %v4467
  %4532 = vst.msk [vmem:[%s201 + $0x39] sm:$0xff] %vm27, %v4468
  %4533 = vst.msk [vmem:[%s201 + $0x49] sm:$0xff] %vm27, %v4469
  %4534 = vst.msk [vmem:[%s201 + $0x51] sm:$0xff] %vm27, %v4470
  %4535 = vst.msk [vmem:[%s201 + $0x61] sm:$0xff] %vm27, %v4471
  %4536 = vst.msk [vmem:[%s201 + $0x69] sm:$0xff] %vm27, %v4472
  %4537 = vst.msk [vmem:[%s201 + $0x79] sm:$0xff] %vm27, %v4473
  %4538 = vst.msk [vmem:[%s201 + $0x81] sm:$0xff] %vm27, %v4474
  %4539 = vst.msk [vmem:[%s201 + $0x91] sm:$0xff] %vm27, %v4475
  %4540 = vst.msk [vmem:[%s201 + $0x99] sm:$0xff] %vm27, %v4476
  %4541 = vst.msk [vmem:[%s201 + $0xa9] sm:$0xff] %vm27, %v4477
  %4542 = vst.msk [vmem:[%s201 + $0xb1] sm:$0xff] %vm27, %v4478
  %4543 = vst.msk [vmem:[%s201 + $0xc1] sm:$0xff] %vm27, %v4479
  %4544 = vst.msk [vmem:[%s201 + $0xc9] sm:$0xff] %vm27, %v4480
  %4545 = vst.msk [vmem:[%s201 + $0xd9] sm:$0xff] %vm27, %v4481
  %4546 = vst.msk [vmem:[%s201 + $0xe1] sm:$0xff] %vm27, %v4482
  %4547 = vst.msk [vmem:[%s201 + $0xf1] sm:$0xff] %vm27, %v4483
  %4548 = vst.msk [vmem:[%s201 + $0xf9] sm:$0xff] %vm27, %v4484
  %4549 = vst.msk [vmem:[%s201 + $0x109] sm:$0xff] %vm27, %v4485
  %4550 = vst.msk [vmem:[%s201 + $0x111] sm:$0xff] %vm27, %v4486
  %4551 = vst.msk [vmem:[%s201 + $0x121] sm:$0xff] %vm27, %v4487
  %4552 = vst.msk [vmem:[%s201 + $0x129] sm:$0xff] %vm27, %v4488
  %4553 = vst.msk [vmem:[%s201 + $0x139] sm:$0xff] %vm27, %v4489
  %4554 = vst.msk [vmem:[%s201 + $0x141] sm:$0xff] %vm27, %v4490
  %4555 = vst.msk [vmem:[%s201 + $0x151] sm:$0xff] %vm27, %v4491
  %4556 = vst.msk [vmem:[%s201 + $0x159] sm:$0xff] %vm27, %v4492
  %4557 = vst.msk [vmem:[%s201 + $0x169] sm:$0xff] %vm27, %v4493
  %4558 = vst.msk [vmem:[%s201 + $0x171] sm:$0xff] %vm27, %v4494
  %4559 = vst.msk [vmem:[%s201 + $0x1b1] sm:$0xff] %vm27, %v4495
  %4560 = vst.msk [vmem:[%s201 + $0x1b9] sm:$0xff] %vm27, %v4496
  %4561 = vst.msk [vmem:[%s201 + $0x1c9] sm:$0xff] %vm27, %v4497
  %4562 = vst.msk [vmem:[%s201 + $0x1d1] sm:$0xff] %vm27, %v4498
  %4563 = vst.msk [vmem:[%s201 + $0x1e1] sm:$0xff] %vm27, %v4499
  %4564 = vst.msk [vmem:[%s201 + $0x1e9] sm:$0xff] %vm27, %v4500
  %4565 = vst.msk [vmem:[%s201 + $0x1f9] sm:$0xff] %vm27, %v4501
  %4566 = vst.msk [vmem:[%s201 + $0x201] sm:$0xff] %vm27, %v4502
  %4567 = vst.msk [vmem:[%s201 + $0x211] sm:$0xff] %vm27, %v4503
  %4568 = vst.msk [vmem:[%s201 + $0x219] sm:$0xff] %vm27, %v4504
  %4569 = vst.msk [vmem:[%s201 + $0x229] sm:$0xff] %vm27, %v4505
  %4570 = vst.msk [vmem:[%s201 + $0x231] sm:$0xff] %vm27, %v4506
  %4571 = vst.msk [vmem:[%s201 + $0x241] sm:$0xff] %vm27, %v4507
  %4572 = vst.msk [vmem:[%s201 + $0x249] sm:$0xff] %vm27, %v4508
  %4573 = vst.msk [vmem:[%s201 + $0x259] sm:$0xff] %vm27, %v4509
  %4574 = vst.msk [vmem:[%s201 + $0x261] sm:$0xff] %vm27, %v4510
  %4575 = vst.msk [vmem:[%s201 + $0x271] sm:$0xff] %vm27, %v4511
  %4576 = vst.msk [vmem:[%s201 + $0x279] sm:$0xff] %vm27, %v4512
  %4577 = vst.msk [vmem:[%s201 + $0x289] sm:$0xff] %vm27, %v4513
  %4578 = vst.msk [vmem:[%s201 + $0x291] sm:$0xff] %vm27, %v4514
  %4579 = vst.msk [vmem:[%s201 + $0x2a1] sm:$0xff] %vm27, %v4515
  %4580 = vst.msk [vmem:[%s201 + $0x2a9] sm:$0xff] %vm27, %v4516
  %4581 = vst.msk [vmem:[%s201 + $0x2b9] sm:$0xff] %vm27, %v4517
  %4582 = vst.msk [vmem:[%s201 + $0x2c1] sm:$0xff] %vm27, %v4518
  %4583 = vst.msk [vmem:[%s201 + $0x2d1] sm:$0xff] %vm27, %v4519
  %4584 = vst.msk [vmem:[%s201 + $0x2d9] sm:$0xff] %vm27, %v4520
  %4585 = vst.msk [vmem:[%s201 + $0x2e9] sm:$0xff] %vm27, %v4521
  %4586 = vst.msk [vmem:[%s201 + $0x2f1] sm:$0xff] %vm27, %v4522
  %4587 = vst.msk [vmem:[%s201 + $0x301] sm:$0xff] %vm27, %v4523
  %4588 = vst.msk [vmem:[%s201 + $0x309] sm:$0xff] %vm27, %v4524
  %4589 = vst.msk [vmem:[%s201 + $0x319] sm:$0xff] %vm27, %v4525
  %4590 = vst.msk [vmem:[%s201 + $0x321] sm:$0xff] %vm27, %v4526
  %v4591 = vld [vmem:[#allocation2] sm:$0xff]
  %v4592 = vld [vmem:[#allocation2 + $0x8] sm:$0xff]
  %v4593 = vld [vmem:[#allocation2 + $0x18] sm:$0xff]
  %v4594 = vld [vmem:[#allocation2 + $0x20] sm:$0xff]
  %v4595 = vld [vmem:[#allocation2 + $0x30] sm:$0xff]
  %v4596 = vld [vmem:[#allocation2 + $0x38] sm:$0xff]
  %v4597 = vld [vmem:[#allocation2 + $0x48] sm:$0xff]
  %v4598 = vld [vmem:[#allocation2 + $0x50] sm:$0xff]
  %v4599 = vld [vmem:[#allocation2 + $0x60] sm:$0xff]
  %v4600 = vld [vmem:[#allocation2 + $0x68] sm:$0xff]
  %v4601 = vld [vmem:[#allocation2 + $0x78] sm:$0xff]
  %v4602 = vld [vmem:[#allocation2 + $0x80] sm:$0xff]
  %v4603 = vld [vmem:[#allocation2 + $0x90] sm:$0xff]
  %v4604 = vld [vmem:[#allocation2 + $0x98] sm:$0xff]
  %v4605 = vld [vmem:[#allocation2 + $0xa8] sm:$0xff]
  %v4606 = vld [vmem:[#allocation2 + $0xb0] sm:$0xff]
  %v4607 = vld [vmem:[#allocation2 + $0xc0] sm:$0xff]
  %v4608 = vld [vmem:[#allocation2 + $0xc8] sm:$0xff]
  %v4609 = vld [vmem:[#allocation2 + $0xd8] sm:$0xff]
  %v4610 = vld [vmem:[#allocation2 + $0xe0] sm:$0xff]
  %v4611 = vld [vmem:[#allocation2 + $0xf0] sm:$0xff]
  %v4612 = vld [vmem:[#allocation2 + $0xf8] sm:$0xff]
  %v4613 = vld [vmem:[#allocation2 + $0x108] sm:$0xff]
  %v4614 = vld [vmem:[#allocation2 + $0x110] sm:$0xff]
  %v4615 = vld [vmem:[#allocation2 + $0x120] sm:$0xff]
  %v4616 = vld [vmem:[#allocation2 + $0x128] sm:$0xff]
  %v4617 = vld [vmem:[#allocation2 + $0x138] sm:$0xff]
  %v4618 = vld [vmem:[#allocation2 + $0x140] sm:$0xff]
  %v4619 = vld [vmem:[#allocation2 + $0x150] sm:$0xff]
  %v4620 = vld [vmem:[#allocation2 + $0x158] sm:$0xff]
  %v4621 = vld [vmem:[#allocation2 + $0x168] sm:$0xff]
  %v4622 = vld [vmem:[#allocation2 + $0x170] sm:$0xff]
  %v4623 = vld [vmem:[#allocation2 + $0x1b0] sm:$0xff]
  %v4624 = vld [vmem:[#allocation2 + $0x1b8] sm:$0xff]
  %v4625 = vld [vmem:[#allocation2 + $0x1c8] sm:$0xff]
  %v4626 = vld [vmem:[#allocation2 + $0x1d0] sm:$0xff]
  %v4627 = vld [vmem:[#allocation2 + $0x1e0] sm:$0xff]
  %v4628 = vld [vmem:[#allocation2 + $0x1e8] sm:$0xff]
  %v4629 = vld [vmem:[#allocation2 + $0x1f8] sm:$0xff]
  %v4630 = vld [vmem:[#allocation2 + $0x200] sm:$0xff]
  %v4631 = vld [vmem:[#allocation2 + $0x210] sm:$0xff]
  %v4632 = vld [vmem:[#allocation2 + $0x218] sm:$0xff]
  %v4633 = vld [vmem:[#allocation2 + $0x228] sm:$0xff]
  %v4634 = vld [vmem:[#allocation2 + $0x230] sm:$0xff]
  %v4635 = vld [vmem:[#allocation2 + $0x240] sm:$0xff]
  %v4636 = vld [vmem:[#allocation2 + $0x248] sm:$0xff]
  %v4637 = vld [vmem:[#allocation2 + $0x258] sm:$0xff]
  %v4638 = vld [vmem:[#allocation2 + $0x260] sm:$0xff]
  %v4639 = vld [vmem:[#allocation2 + $0x270] sm:$0xff]
  %v4640 = vld [vmem:[#allocation2 + $0x278] sm:$0xff]
  %v4641 = vld [vmem:[#allocation2 + $0x288] sm:$0xff]
  %v4642 = vld [vmem:[#allocation2 + $0x290] sm:$0xff]
  %v4643 = vld [vmem:[#allocation2 + $0x2a0] sm:$0xff]
  %v4644 = vld [vmem:[#allocation2 + $0x2a8] sm:$0xff]
  %v4645 = vld [vmem:[#allocation2 + $0x2b8] sm:$0xff]
  %v4646 = vld [vmem:[#allocation2 + $0x2c0] sm:$0xff]
  %v4647 = vld [vmem:[#allocation2 + $0x2d0] sm:$0xff]
  %v4648 = vld [vmem:[#allocation2 + $0x2d8] sm:$0xff]
  %v4649 = vld [vmem:[#allocation2 + $0x2e8] sm:$0xff]
  %v4650 = vld [vmem:[#allocation2 + $0x2f0] sm:$0xff]
  %v4651 = vld [vmem:[#allocation2 + $0x300] sm:$0xff]
  %v4652 = vld [vmem:[#allocation2 + $0x308] sm:$0xff]
  %v4653 = vld [vmem:[#allocation2 + $0x318] sm:$0xff]
  %v4654 = vld [vmem:[#allocation2 + $0x320] sm:$0xff]
  %4655 = vst.msk [vmem:[#allocation3] sm:$0xff] %vm27, %v4591
  %4656 = vst.msk [vmem:[#allocation3 + $0x8] sm:$0xff] %vm27, %v4592
  %4657 = vst.msk [vmem:[#allocation3 + $0x10] sm:$0xff] %vm27, %v4593
  %4658 = vst.msk [vmem:[#allocation3 + $0x18] sm:$0xff] %vm27, %v4594
  %4659 = vst.msk [vmem:[#allocation3 + $0x20] sm:$0xff] %vm27, %v4595
  %4660 = vst.msk [vmem:[#allocation3 + $0x28] sm:$0xff] %vm27, %v4596
  %4661 = vst.msk [vmem:[#allocation3 + $0x30] sm:$0xff] %vm27, %v4597
  %4662 = vst.msk [vmem:[#allocation3 + $0x38] sm:$0xff] %vm27, %v4598
  %4663 = vst.msk [vmem:[#allocation3 + $0x40] sm:$0xff] %vm27, %v4599
  %4664 = vst.msk [vmem:[#allocation3 + $0x48] sm:$0xff] %vm27, %v4600
  %4665 = vst.msk [vmem:[#allocation3 + $0x50] sm:$0xff] %vm27, %v4601
  %4666 = vst.msk [vmem:[#allocation3 + $0x58] sm:$0xff] %vm27, %v4602
  %4667 = vst.msk [vmem:[#allocation3 + $0x60] sm:$0xff] %vm27, %v4603
  %4668 = vst.msk [vmem:[#allocation3 + $0x68] sm:$0xff] %vm27, %v4604
  %4669 = vst.msk [vmem:[#allocation3 + $0x70] sm:$0xff] %vm27, %v4605
  %4670 = vst.msk [vmem:[#allocation3 + $0x78] sm:$0xff] %vm27, %v4606
  %4671 = vst.msk [vmem:[#allocation3 + $0x80] sm:$0xff] %vm27, %v4607
  %4672 = vst.msk [vmem:[#allocation3 + $0x88] sm:$0xff] %vm27, %v4608
  %4673 = vst.msk [vmem:[#allocation3 + $0x90] sm:$0xff] %vm27, %v4609
  %4674 = vst.msk [vmem:[#allocation3 + $0x98] sm:$0xff] %vm27, %v4610
  %4675 = vst.msk [vmem:[#allocation3 + $0xa0] sm:$0xff] %vm27, %v4611
  %4676 = vst.msk [vmem:[#allocation3 + $0xa8] sm:$0xff] %vm27, %v4612
  %4677 = vst.msk [vmem:[#allocation3 + $0xb0] sm:$0xff] %vm27, %v4613
  %4678 = vst.msk [vmem:[#allocation3 + $0xb8] sm:$0xff] %vm27, %v4614
  %4679 = vst.msk [vmem:[#allocation3 + $0xc0] sm:$0xff] %vm27, %v4615
  %4680 = vst.msk [vmem:[#allocation3 + $0xc8] sm:$0xff] %vm27, %v4616
  %4681 = vst.msk [vmem:[#allocation3 + $0xd0] sm:$0xff] %vm27, %v4617
  %4682 = vst.msk [vmem:[#allocation3 + $0xd8] sm:$0xff] %vm27, %v4618
  %4683 = vst.msk [vmem:[#allocation3 + $0xe0] sm:$0xff] %vm27, %v4619
  %4684 = vst.msk [vmem:[#allocation3 + $0xe8] sm:$0xff] %vm27, %v4620
  %4685 = vst.msk [vmem:[#allocation3 + $0xf0] sm:$0xff] %vm27, %v4621
  %4686 = vst.msk [vmem:[#allocation3 + $0xf8] sm:$0xff] %vm27, %v4622
  %4687 = vst.msk [vmem:[#allocation3 + $0x100] sm:$0xff] %vm27, %v4623
  %4688 = vst.msk [vmem:[#allocation3 + $0x108] sm:$0xff] %vm27, %v4624
  %4689 = vst.msk [vmem:[#allocation3 + $0x110] sm:$0xff] %vm27, %v4625
  %4690 = vst.msk [vmem:[#allocation3 + $0x118] sm:$0xff] %vm27, %v4626
  %4691 = vst.msk [vmem:[#allocation3 + $0x120] sm:$0xff] %vm27, %v4627
  %4692 = vst.msk [vmem:[#allocation3 + $0x128] sm:$0xff] %vm27, %v4628
  %4693 = vst.msk [vmem:[#allocation3 + $0x130] sm:$0xff] %vm27, %v4629
  %4694 = vst.msk [vmem:[#allocation3 + $0x138] sm:$0xff] %vm27, %v4630
  %4695 = vst.msk [vmem:[#allocation3 + $0x140] sm:$0xff] %vm27, %v4631
  %4696 = vst.msk [vmem:[#allocation3 + $0x148] sm:$0xff] %vm27, %v4632
  %4697 = vst.msk [vmem:[#allocation3 + $0x150] sm:$0xff] %vm27, %v4633
  %4698 = vst.msk [vmem:[#allocation3 + $0x158] sm:$0xff] %vm27, %v4634
  %4699 = vst.msk [vmem:[#allocation3 + $0x160] sm:$0xff] %vm27, %v4635
  %4700 = vst.msk [vmem:[#allocation3 + $0x168] sm:$0xff] %vm27, %v4636
  %4701 = vst.msk [vmem:[#allocation3 + $0x170] sm:$0xff] %vm27, %v4637
  %4702 = vst.msk [vmem:[#allocation3 + $0x178] sm:$0xff] %vm27, %v4638
  %4703 = vst.msk [vmem:[#allocation3 + $0x180] sm:$0xff] %vm27, %v4639
  %4704 = vst.msk [vmem:[#allocation3 + $0x188] sm:$0xff] %vm27, %v4640
  %4705 = vst.msk [vmem:[#allocation3 + $0x190] sm:$0xff] %vm27, %v4641
  %4706 = vst.msk [vmem:[#allocation3 + $0x198] sm:$0xff] %vm27, %v4642
  %4707 = vst.msk [vmem:[#allocation3 + $0x1a0] sm:$0xff] %vm27, %v4643
  %4708 = vst.msk [vmem:[#allocation3 + $0x1a8] sm:$0xff] %vm27, %v4644
  %4709 = vst.msk [vmem:[#allocation3 + $0x1b0] sm:$0xff] %vm27, %v4645
  %4710 = vst.msk [vmem:[#allocation3 + $0x1b8] sm:$0xff] %vm27, %v4646
  %4711 = vst.msk [vmem:[#allocation3 + $0x1c0] sm:$0xff] %vm27, %v4647
  %4712 = vst.msk [vmem:[#allocation3 + $0x1c8] sm:$0xff] %vm27, %v4648
  %4713 = vst.msk [vmem:[#allocation3 + $0x1d0] sm:$0xff] %vm27, %v4649
  %4714 = vst.msk [vmem:[#allocation3 + $0x1d8] sm:$0xff] %vm27, %v4650
  %4715 = vst.msk [vmem:[#allocation3 + $0x1e0] sm:$0xff] %vm27, %v4651
  %4716 = vst.msk [vmem:[#allocation3 + $0x1e8] sm:$0xff] %vm27, %v4652
  %4717 = vst.msk [vmem:[#allocation3 + $0x1f0] sm:$0xff] %vm27, %v4653
  %4718 = vst.msk [vmem:[#allocation3 + $0x1f8] sm:$0xff] %vm27, %v4654
  %v4719 = vld [vmem:[#allocation2 + $0x1] sm:$0xff]
  %v4720 = vld [vmem:[#allocation2 + $0x9] sm:$0xff]
  %v4721 = vld [vmem:[#allocation2 + $0x19] sm:$0xff]
  %v4722 = vld [vmem:[#allocation2 + $0x21] sm:$0xff]
  %v4723 = vld [vmem:[#allocation2 + $0x31] sm:$0xff]
  %v4724 = vld [vmem:[#allocation2 + $0x39] sm:$0xff]
  %v4725 = vld [vmem:[#allocation2 + $0x49] sm:$0xff]
  %v4726 = vld [vmem:[#allocation2 + $0x51] sm:$0xff]
  %v4727 = vld [vmem:[#allocation2 + $0x61] sm:$0xff]
  %v4728 = vld [vmem:[#allocation2 + $0x69] sm:$0xff]
  %v4729 = vld [vmem:[#allocation2 + $0x79] sm:$0xff]
  %v4730 = vld [vmem:[#allocation2 + $0x81] sm:$0xff]
  %v4731 = vld [vmem:[#allocation2 + $0x91] sm:$0xff]
  %v4732 = vld [vmem:[#allocation2 + $0x99] sm:$0xff]
  %v4733 = vld [vmem:[#allocation2 + $0xa9] sm:$0xff]
  %v4734 = vld [vmem:[#allocation2 + $0xb1] sm:$0xff]
  %v4735 = vld [vmem:[#allocation2 + $0xc1] sm:$0xff]
  %v4736 = vld [vmem:[#allocation2 + $0xc9] sm:$0xff]
  %v4737 = vld [vmem:[#allocation2 + $0xd9] sm:$0xff]
  %v4738 = vld [vmem:[#allocation2 + $0xe1] sm:$0xff]
  %v4739 = vld [vmem:[#allocation2 + $0xf1] sm:$0xff]
  %v4740 = vld [vmem:[#allocation2 + $0xf9] sm:$0xff]
  %v4741 = vld [vmem:[#allocation2 + $0x109] sm:$0xff]
  %v4742 = vld [vmem:[#allocation2 + $0x111] sm:$0xff]
  %v4743 = vld [vmem:[#allocation2 + $0x121] sm:$0xff]
  %v4744 = vld [vmem:[#allocation2 + $0x129] sm:$0xff]
  %v4745 = vld [vmem:[#allocation2 + $0x139] sm:$0xff]
  %v4746 = vld [vmem:[#allocation2 + $0x141] sm:$0xff]
  %v4747 = vld [vmem:[#allocation2 + $0x151] sm:$0xff]
  %v4748 = vld [vmem:[#allocation2 + $0x159] sm:$0xff]
  %v4749 = vld [vmem:[#allocation2 + $0x169] sm:$0xff]
  %v4750 = vld [vmem:[#allocation2 + $0x171] sm:$0xff]
  %v4751 = vld [vmem:[#allocation2 + $0x1b1] sm:$0xff]
  %v4752 = vld [vmem:[#allocation2 + $0x1b9] sm:$0xff]
  %v4753 = vld [vmem:[#allocation2 + $0x1c9] sm:$0xff]
  %v4754 = vld [vmem:[#allocation2 + $0x1d1] sm:$0xff]
  %v4755 = vld [vmem:[#allocation2 + $0x1e1] sm:$0xff]
  %v4756 = vld [vmem:[#allocation2 + $0x1e9] sm:$0xff]
  %v4757 = vld [vmem:[#allocation2 + $0x1f9] sm:$0xff]
  %v4758 = vld [vmem:[#allocation2 + $0x201] sm:$0xff]
  %v4759 = vld [vmem:[#allocation2 + $0x211] sm:$0xff]
  %v4760 = vld [vmem:[#allocation2 + $0x219] sm:$0xff]
  %v4761 = vld [vmem:[#allocation2 + $0x229] sm:$0xff]
  %v4762 = vld [vmem:[#allocation2 + $0x231] sm:$0xff]
  %v4763 = vld [vmem:[#allocation2 + $0x241] sm:$0xff]
  %v4764 = vld [vmem:[#allocation2 + $0x249] sm:$0xff]
  %v4765 = vld [vmem:[#allocation2 + $0x259] sm:$0xff]
  %v4766 = vld [vmem:[#allocation2 + $0x261] sm:$0xff]
  %v4767 = vld [vmem:[#allocation2 + $0x271] sm:$0xff]
  %v4768 = vld [vmem:[#allocation2 + $0x279] sm:$0xff]
  %v4769 = vld [vmem:[#allocation2 + $0x289] sm:$0xff]
  %v4770 = vld [vmem:[#allocation2 + $0x291] sm:$0xff]
  %v4771 = vld [vmem:[#allocation2 + $0x2a1] sm:$0xff]
  %v4772 = vld [vmem:[#allocation2 + $0x2a9] sm:$0xff]
  %v4773 = vld [vmem:[#allocation2 + $0x2b9] sm:$0xff]
  %v4774 = vld [vmem:[#allocation2 + $0x2c1] sm:$0xff]
  %v4775 = vld [vmem:[#allocation2 + $0x2d1] sm:$0xff]
  %v4776 = vld [vmem:[#allocation2 + $0x2d9] sm:$0xff]
  %v4777 = vld [vmem:[#allocation2 + $0x2e9] sm:$0xff]
  %v4778 = vld [vmem:[#allocation2 + $0x2f1] sm:$0xff]
  %v4779 = vld [vmem:[#allocation2 + $0x301] sm:$0xff]
  %v4780 = vld [vmem:[#allocation2 + $0x309] sm:$0xff]
  %v4781 = vld [vmem:[#allocation2 + $0x319] sm:$0xff]
  %v4782 = vld [vmem:[#allocation2 + $0x321] sm:$0xff]
  %4847 = vrot.lane.b32.xlu0 %v4719, 4
  %v4848 = vpop.permute.xlu0 %4847
  %4849 = vrot.lane.b32.xlu0 %v4720, 4
  %v4850 = vpop.permute.xlu0 %4849
  %4851 = vrot.lane.b32.xlu0 %v4721, 4
  %v4852 = vpop.permute.xlu0 %4851
  %4853 = vrot.lane.b32.xlu0 %v4722, 4
  %v4854 = vpop.permute.xlu0 %4853
  %4855 = vrot.lane.b32.xlu0 %v4723, 4
  %v4856 = vpop.permute.xlu0 %4855
  %4857 = vrot.lane.b32.xlu0 %v4724, 4
  %v4858 = vpop.permute.xlu0 %4857
  %4859 = vrot.lane.b32.xlu0 %v4725, 4
  %v4860 = vpop.permute.xlu0 %4859
  %4861 = vrot.lane.b32.xlu0 %v4726, 4
  %v4862 = vpop.permute.xlu0 %4861
  %4863 = vrot.lane.b32.xlu0 %v4727, 4
  %v4864 = vpop.permute.xlu0 %4863
  %4865 = vrot.lane.b32.xlu0 %v4728, 4
  %v4866 = vpop.permute.xlu0 %4865
  %4867 = vrot.lane.b32.xlu0 %v4729, 4
  %v4868 = vpop.permute.xlu0 %4867
  %4869 = vrot.lane.b32.xlu0 %v4730, 4
  %v4870 = vpop.permute.xlu0 %4869
  %4871 = vrot.lane.b32.xlu0 %v4731, 4
  %v4872 = vpop.permute.xlu0 %4871
  %4873 = vrot.lane.b32.xlu0 %v4732, 4
  %v4874 = vpop.permute.xlu0 %4873
  %4875 = vrot.lane.b32.xlu0 %v4733, 4
  %v4876 = vpop.permute.xlu0 %4875
  %4877 = vrot.lane.b32.xlu0 %v4734, 4
  %v4878 = vpop.permute.xlu0 %4877
  %4879 = vrot.lane.b32.xlu0 %v4735, 4
  %v4880 = vpop.permute.xlu0 %4879
  %4881 = vrot.lane.b32.xlu0 %v4736, 4
  %v4882 = vpop.permute.xlu0 %4881
  %4883 = vrot.lane.b32.xlu0 %v4737, 4
  %v4884 = vpop.permute.xlu0 %4883
  %4885 = vrot.lane.b32.xlu0 %v4738, 4
  %v4886 = vpop.permute.xlu0 %4885
  %4887 = vrot.lane.b32.xlu0 %v4739, 4
  %v4888 = vpop.permute.xlu0 %4887
  %4889 = vrot.lane.b32.xlu0 %v4740, 4
  %v4890 = vpop.permute.xlu0 %4889
  %4891 = vrot.lane.b32.xlu0 %v4741, 4
  %v4892 = vpop.permute.xlu0 %4891
  %4893 = vrot.lane.b32.xlu0 %v4742, 4
  %v4894 = vpop.permute.xlu0 %4893
  %4895 = vrot.lane.b32.xlu0 %v4743, 4
  %v4896 = vpop.permute.xlu0 %4895
  %4897 = vrot.lane.b32.xlu0 %v4744, 4
  %v4898 = vpop.permute.xlu0 %4897
  %4899 = vrot.lane.b32.xlu0 %v4745, 4
  %v4900 = vpop.permute.xlu0 %4899
  %4901 = vrot.lane.b32.xlu0 %v4746, 4
  %v4902 = vpop.permute.xlu0 %4901
  %4903 = vrot.lane.b32.xlu0 %v4747, 4
  %v4904 = vpop.permute.xlu0 %4903
  %4905 = vrot.lane.b32.xlu0 %v4748, 4
  %v4906 = vpop.permute.xlu0 %4905
  %4907 = vrot.lane.b32.xlu0 %v4749, 4
  %v4908 = vpop.permute.xlu0 %4907
  %4909 = vrot.lane.b32.xlu0 %v4750, 4
  %v4910 = vpop.permute.xlu0 %4909
  %4911 = vrot.lane.b32.xlu0 %v4751, 4
  %v4912 = vpop.permute.xlu0 %4911
  %4913 = vrot.lane.b32.xlu0 %v4752, 4
  %v4914 = vpop.permute.xlu0 %4913
  %4915 = vrot.lane.b32.xlu0 %v4753, 4
  %v4916 = vpop.permute.xlu0 %4915
  %4917 = vrot.lane.b32.xlu0 %v4754, 4
  %v4918 = vpop.permute.xlu0 %4917
  %4919 = vrot.lane.b32.xlu0 %v4755, 4
  %v4920 = vpop.permute.xlu0 %4919
  %4921 = vrot.lane.b32.xlu0 %v4756, 4
  %v4922 = vpop.permute.xlu0 %4921
  %4923 = vrot.lane.b32.xlu0 %v4757, 4
  %v4924 = vpop.permute.xlu0 %4923
  %4925 = vrot.lane.b32.xlu0 %v4758, 4
  %v4926 = vpop.permute.xlu0 %4925
  %4927 = vrot.lane.b32.xlu0 %v4759, 4
  %v4928 = vpop.permute.xlu0 %4927
  %4929 = vrot.lane.b32.xlu0 %v4760, 4
  %v4930 = vpop.permute.xlu0 %4929
  %4931 = vrot.lane.b32.xlu0 %v4761, 4
  %v4932 = vpop.permute.xlu0 %4931
  %4933 = vrot.lane.b32.xlu0 %v4762, 4
  %v4934 = vpop.permute.xlu0 %4933
  %4935 = vrot.lane.b32.xlu0 %v4763, 4
  %v4936 = vpop.permute.xlu0 %4935
  %4937 = vrot.lane.b32.xlu0 %v4764, 4
  %v4938 = vpop.permute.xlu0 %4937
  %4939 = vrot.lane.b32.xlu0 %v4765, 4
  %v4940 = vpop.permute.xlu0 %4939
  %4941 = vrot.lane.b32.xlu0 %v4766, 4
  %v4942 = vpop.permute.xlu0 %4941
  %4943 = vrot.lane.b32.xlu0 %v4767, 4
  %v4944 = vpop.permute.xlu0 %4943
  %4945 = vrot.lane.b32.xlu0 %v4768, 4
  %v4946 = vpop.permute.xlu0 %4945
  %4947 = vrot.lane.b32.xlu0 %v4769, 4
  %v4948 = vpop.permute.xlu0 %4947
  %4949 = vrot.lane.b32.xlu0 %v4770, 4
  %v4950 = vpop.permute.xlu0 %4949
  %4951 = vrot.lane.b32.xlu0 %v4771, 4
  %v4952 = vpop.permute.xlu0 %4951
  %4953 = vrot.lane.b32.xlu0 %v4772, 4
  %v4954 = vpop.permute.xlu0 %4953
  %4955 = vrot.lane.b32.xlu0 %v4773, 4
  %v4956 = vpop.permute.xlu0 %4955
  %4957 = vrot.lane.b32.xlu0 %v4774, 4
  %v4958 = vpop.permute.xlu0 %4957
  %4959 = vrot.lane.b32.xlu0 %v4775, 4
  %v4960 = vpop.permute.xlu0 %4959
  %4961 = vrot.lane.b32.xlu0 %v4776, 4
  %v4962 = vpop.permute.xlu0 %4961
  %4963 = vrot.lane.b32.xlu0 %v4777, 4
  %v4964 = vpop.permute.xlu0 %4963
  %4965 = vrot.lane.b32.xlu0 %v4778, 4
  %v4966 = vpop.permute.xlu0 %4965
  %4967 = vrot.lane.b32.xlu0 %v4779, 4
  %v4968 = vpop.permute.xlu0 %4967
  %4969 = vrot.lane.b32.xlu0 %v4780, 4
  %v4970 = vpop.permute.xlu0 %4969
  %4971 = vrot.lane.b32.xlu0 %v4781, 4
  %v4972 = vpop.permute.xlu0 %4971
  %4973 = vrot.lane.b32.xlu0 %v4782, 4
  %v4974 = vpop.permute.xlu0 %4973
  %5039 = vst.msk [vmem:[#allocation3] sm:$0xff] %vm714, %v4848
  %5040 = vst.msk [vmem:[#allocation3 + $0x8] sm:$0xff] %vm714, %v4850
  %5041 = vst.msk [vmem:[#allocation3 + $0x10] sm:$0xff] %vm714, %v4852
  %5042 = vst.msk [vmem:[#allocation3 + $0x18] sm:$0xff] %vm714, %v4854
  %5043 = vst.msk [vmem:[#allocation3 + $0x20] sm:$0xff] %vm714, %v4856
  %5044 = vst.msk [vmem:[#allocation3 + $0x28] sm:$0xff] %vm714, %v4858
  %5045 = vst.msk [vmem:[#allocation3 + $0x30] sm:$0xff] %vm714, %v4860
  %5046 = vst.msk [vmem:[#allocation3 + $0x38] sm:$0xff] %vm714, %v4862
  %5047 = vst.msk [vmem:[#allocation3 + $0x40] sm:$0xff] %vm714, %v4864
  %5048 = vst.msk [vmem:[#allocation3 + $0x48] sm:$0xff] %vm714, %v4866
  %5049 = vst.msk [vmem:[#allocation3 + $0x50] sm:$0xff] %vm714, %v4868
  %5050 = vst.msk [vmem:[#allocation3 + $0x58] sm:$0xff] %vm714, %v4870
  %5051 = vst.msk [vmem:[#allocation3 + $0x60] sm:$0xff] %vm714, %v4872
  %5052 = vst.msk [vmem:[#allocation3 + $0x68] sm:$0xff] %vm714, %v4874
  %5053 = vst.msk [vmem:[#allocation3 + $0x70] sm:$0xff] %vm714, %v4876
  %5054 = vst.msk [vmem:[#allocation3 + $0x78] sm:$0xff] %vm714, %v4878
  %5055 = vst.msk [vmem:[#allocation3 + $0x80] sm:$0xff] %vm714, %v4880
  %5056 = vst.msk [vmem:[#allocation3 + $0x88] sm:$0xff] %vm714, %v4882
  %5057 = vst.msk [vmem:[#allocation3 + $0x90] sm:$0xff] %vm714, %v4884
  %5058 = vst.msk [vmem:[#allocation3 + $0x98] sm:$0xff] %vm714, %v4886
  %5059 = vst.msk [vmem:[#allocation3 + $0xa0] sm:$0xff] %vm714, %v4888
  %5060 = vst.msk [vmem:[#allocation3 + $0xa8] sm:$0xff] %vm714, %v4890
  %5061 = vst.msk [vmem:[#allocation3 + $0xb0] sm:$0xff] %vm714, %v4892
  %5062 = vst.msk [vmem:[#allocation3 + $0xb8] sm:$0xff] %vm714, %v4894
  %5063 = vst.msk [vmem:[#allocation3 + $0xc0] sm:$0xff] %vm714, %v4896
  %5064 = vst.msk [vmem:[#allocation3 + $0xc8] sm:$0xff] %vm714, %v4898
  %5065 = vst.msk [vmem:[#allocation3 + $0xd0] sm:$0xff] %vm714, %v4900
  %5066 = vst.msk [vmem:[#allocation3 + $0xd8] sm:$0xff] %vm714, %v4902
  %5067 = vst.msk [vmem:[#allocation3 + $0xe0] sm:$0xff] %vm714, %v4904
  %5068 = vst.msk [vmem:[#allocation3 + $0xe8] sm:$0xff] %vm714, %v4906
  %5069 = vst.msk [vmem:[#allocation3 + $0xf0] sm:$0xff] %vm714, %v4908
  %5070 = vst.msk [vmem:[#allocation3 + $0xf8] sm:$0xff] %vm714, %v4910
  %5071 = vst.msk [vmem:[#allocation3 + $0x100] sm:$0xff] %vm714, %v4912
  %5072 = vst.msk [vmem:[#allocation3 + $0x108] sm:$0xff] %vm714, %v4914
  %5073 = vst.msk [vmem:[#allocation3 + $0x110] sm:$0xff] %vm714, %v4916
  %5074 = vst.msk [vmem:[#allocation3 + $0x118] sm:$0xff] %vm714, %v4918
  %5075 = vst.msk [vmem:[#allocation3 + $0x120] sm:$0xff] %vm714, %v4920
  %5076 = vst.msk [vmem:[#allocation3 + $0x128] sm:$0xff] %vm714, %v4922
  %5077 = vst.msk [vmem:[#allocation3 + $0x130] sm:$0xff] %vm714, %v4924
  %5078 = vst.msk [vmem:[#allocation3 + $0x138] sm:$0xff] %vm714, %v4926
  %5079 = vst.msk [vmem:[#allocation3 + $0x140] sm:$0xff] %vm714, %v4928
  %5080 = vst.msk [vmem:[#allocation3 + $0x148] sm:$0xff] %vm714, %v4930
  %5081 = vst.msk [vmem:[#allocation3 + $0x150] sm:$0xff] %vm714, %v4932
  %5082 = vst.msk [vmem:[#allocation3 + $0x158] sm:$0xff] %vm714, %v4934
  %5083 = vst.msk [vmem:[#allocation3 + $0x160] sm:$0xff] %vm714, %v4936
  %5084 = vst.msk [vmem:[#allocation3 + $0x168] sm:$0xff] %vm714, %v4938
  %5085 = vst.msk [vmem:[#allocation3 + $0x170] sm:$0xff] %vm714, %v4940
  %5086 = vst.msk [vmem:[#allocation3 + $0x178] sm:$0xff] %vm714, %v4942
  %5087 = vst.msk [vmem:[#allocation3 + $0x180] sm:$0xff] %vm714, %v4944
  %5088 = vst.msk [vmem:[#allocation3 + $0x188] sm:$0xff] %vm714, %v4946
  %5089 = vst.msk [vmem:[#allocation3 + $0x190] sm:$0xff] %vm714, %v4948
  %5090 = vst.msk [vmem:[#allocation3 + $0x198] sm:$0xff] %vm714, %v4950
  %5091 = vst.msk [vmem:[#allocation3 + $0x1a0] sm:$0xff] %vm714, %v4952
  %5092 = vst.msk [vmem:[#allocation3 + $0x1a8] sm:$0xff] %vm714, %v4954
  %5093 = vst.msk [vmem:[#allocation3 + $0x1b0] sm:$0xff] %vm714, %v4956
  %5094 = vst.msk [vmem:[#allocation3 + $0x1b8] sm:$0xff] %vm714, %v4958
  %5095 = vst.msk [vmem:[#allocation3 + $0x1c0] sm:$0xff] %vm714, %v4960
  %5096 = vst.msk [vmem:[#allocation3 + $0x1c8] sm:$0xff] %vm714, %v4962
  %5097 = vst.msk [vmem:[#allocation3 + $0x1d0] sm:$0xff] %vm714, %v4964
  %5098 = vst.msk [vmem:[#allocation3 + $0x1d8] sm:$0xff] %vm714, %v4966
  %5099 = vst.msk [vmem:[#allocation3 + $0x1e0] sm:$0xff] %vm714, %v4968
  %5100 = vst.msk [vmem:[#allocation3 + $0x1e8] sm:$0xff] %vm714, %v4970
  %5101 = vst.msk [vmem:[#allocation3 + $0x1f0] sm:$0xff] %vm714, %v4972
  %5102 = vst.msk [vmem:[#allocation3 + $0x1f8] sm:$0xff] %vm714, %v4974
  %v5103 = vld [vmem:[#allocation2 + $0x2] sm:$0xff]
  %v5104 = vld [vmem:[#allocation2 + $0xa] sm:$0xff]
  %v5105 = vld [vmem:[#allocation2 + $0x1a] sm:$0xff]
  %v5106 = vld [vmem:[#allocation2 + $0x22] sm:$0xff]
  %v5107 = vld [vmem:[#allocation2 + $0x32] sm:$0xff]
  %v5108 = vld [vmem:[#allocation2 + $0x3a] sm:$0xff]
  %v5109 = vld [vmem:[#allocation2 + $0x4a] sm:$0xff]
  %v5110 = vld [vmem:[#allocation2 + $0x52] sm:$0xff]
  %v5111 = vld [vmem:[#allocation2 + $0x62] sm:$0xff]
  %v5112 = vld [vmem:[#allocation2 + $0x6a] sm:$0xff]
  %v5113 = vld [vmem:[#allocation2 + $0x7a] sm:$0xff]
  %v5114 = vld [vmem:[#allocation2 + $0x82] sm:$0xff]
  %v5115 = vld [vmem:[#allocation2 + $0x92] sm:$0xff]
  %v5116 = vld [vmem:[#allocation2 + $0x9a] sm:$0xff]
  %v5117 = vld [vmem:[#allocation2 + $0xaa] sm:$0xff]
  %v5118 = vld [vmem:[#allocation2 + $0xb2] sm:$0xff]
  %v5119 = vld [vmem:[#allocation2 + $0xc2] sm:$0xff]
  %v5120 = vld [vmem:[#allocation2 + $0xca] sm:$0xff]
  %v5121 = vld [vmem:[#allocation2 + $0xda] sm:$0xff]
  %v5122 = vld [vmem:[#allocation2 + $0xe2] sm:$0xff]
  %v5123 = vld [vmem:[#allocation2 + $0xf2] sm:$0xff]
  %v5124 = vld [vmem:[#allocation2 + $0xfa] sm:$0xff]
  %v5125 = vld [vmem:[#allocation2 + $0x10a] sm:$0xff]
  %v5126 = vld [vmem:[#allocation2 + $0x112] sm:$0xff]
  %v5127 = vld [vmem:[#allocation2 + $0x122] sm:$0xff]
  %v5128 = vld [vmem:[#allocation2 + $0x12a] sm:$0xff]
  %v5129 = vld [vmem:[#allocation2 + $0x13a] sm:$0xff]
  %v5130 = vld [vmem:[#allocation2 + $0x142] sm:$0xff]
  %v5131 = vld [vmem:[#allocation2 + $0x152] sm:$0xff]
  %v5132 = vld [vmem:[#allocation2 + $0x15a] sm:$0xff]
  %v5133 = vld [vmem:[#allocation2 + $0x16a] sm:$0xff]
  %v5134 = vld [vmem:[#allocation2 + $0x172] sm:$0xff]
  %v5135 = vld [vmem:[#allocation2 + $0x1b2] sm:$0xff]
  %v5136 = vld [vmem:[#allocation2 + $0x1ba] sm:$0xff]
  %v5137 = vld [vmem:[#allocation2 + $0x1ca] sm:$0xff]
  %v5138 = vld [vmem:[#allocation2 + $0x1d2] sm:$0xff]
  %v5139 = vld [vmem:[#allocation2 + $0x1e2] sm:$0xff]
  %v5140 = vld [vmem:[#allocation2 + $0x1ea] sm:$0xff]
  %v5141 = vld [vmem:[#allocation2 + $0x1fa] sm:$0xff]
  %v5142 = vld [vmem:[#allocation2 + $0x202] sm:$0xff]
  %v5143 = vld [vmem:[#allocation2 + $0x212] sm:$0xff]
  %v5144 = vld [vmem:[#allocation2 + $0x21a] sm:$0xff]
  %v5145 = vld [vmem:[#allocation2 + $0x22a] sm:$0xff]
  %v5146 = vld [vmem:[#allocation2 + $0x232] sm:$0xff]
  %v5147 = vld [vmem:[#allocation2 + $0x242] sm:$0xff]
  %v5148 = vld [vmem:[#allocation2 + $0x24a] sm:$0xff]
  %v5149 = vld [vmem:[#allocation2 + $0x25a] sm:$0xff]
  %v5150 = vld [vmem:[#allocation2 + $0x262] sm:$0xff]
  %v5151 = vld [vmem:[#allocation2 + $0x272] sm:$0xff]
  %v5152 = vld [vmem:[#allocation2 + $0x27a] sm:$0xff]
  %v5153 = vld [vmem:[#allocation2 + $0x28a] sm:$0xff]
  %v5154 = vld [vmem:[#allocation2 + $0x292] sm:$0xff]
  %v5155 = vld [vmem:[#allocation2 + $0x2a2] sm:$0xff]
  %v5156 = vld [vmem:[#allocation2 + $0x2aa] sm:$0xff]
  %v5157 = vld [vmem:[#allocation2 + $0x2ba] sm:$0xff]
  %v5158 = vld [vmem:[#allocation2 + $0x2c2] sm:$0xff]
  %v5159 = vld [vmem:[#allocation2 + $0x2d2] sm:$0xff]
  %v5160 = vld [vmem:[#allocation2 + $0x2da] sm:$0xff]
  %v5161 = vld [vmem:[#allocation2 + $0x2ea] sm:$0xff]
  %v5162 = vld [vmem:[#allocation2 + $0x2f2] sm:$0xff]
  %v5163 = vld [vmem:[#allocation2 + $0x302] sm:$0xff]
  %v5164 = vld [vmem:[#allocation2 + $0x30a] sm:$0xff]
  %v5165 = vld [vmem:[#allocation2 + $0x31a] sm:$0xff]
  %v5166 = vld [vmem:[#allocation2 + $0x322] sm:$0xff]
  %5231 = vrot.lane.b32.xlu0 %v5103, 8
  %v5232 = vpop.permute.xlu0 %5231
  %5233 = vrot.lane.b32.xlu0 %v5104, 8
  %v5234 = vpop.permute.xlu0 %5233
  %5235 = vrot.lane.b32.xlu0 %v5105, 8
  %v5236 = vpop.permute.xlu0 %5235
  %5237 = vrot.lane.b32.xlu0 %v5106, 8
  %v5238 = vpop.permute.xlu0 %5237
  %5239 = vrot.lane.b32.xlu0 %v5107, 8
  %v5240 = vpop.permute.xlu0 %5239
  %5241 = vrot.lane.b32.xlu0 %v5108, 8
  %v5242 = vpop.permute.xlu0 %5241
  %5243 = vrot.lane.b32.xlu0 %v5109, 8
  %v5244 = vpop.permute.xlu0 %5243
  %5245 = vrot.lane.b32.xlu0 %v5110, 8
  %v5246 = vpop.permute.xlu0 %5245
  %5247 = vrot.lane.b32.xlu0 %v5111, 8
  %v5248 = vpop.permute.xlu0 %5247
  %5249 = vrot.lane.b32.xlu0 %v5112, 8
  %v5250 = vpop.permute.xlu0 %5249
  %5251 = vrot.lane.b32.xlu0 %v5113, 8
  %v5252 = vpop.permute.xlu0 %5251
  %5253 = vrot.lane.b32.xlu0 %v5114, 8
  %v5254 = vpop.permute.xlu0 %5253
  %5255 = vrot.lane.b32.xlu0 %v5115, 8
  %v5256 = vpop.permute.xlu0 %5255
  %5257 = vrot.lane.b32.xlu0 %v5116, 8
  %v5258 = vpop.permute.xlu0 %5257
  %5259 = vrot.lane.b32.xlu0 %v5117, 8
  %v5260 = vpop.permute.xlu0 %5259
  %5261 = vrot.lane.b32.xlu0 %v5118, 8
  %v5262 = vpop.permute.xlu0 %5261
  %5263 = vrot.lane.b32.xlu0 %v5119, 8
  %v5264 = vpop.permute.xlu0 %5263
  %5265 = vrot.lane.b32.xlu0 %v5120, 8
  %v5266 = vpop.permute.xlu0 %5265
  %5267 = vrot.lane.b32.xlu0 %v5121, 8
  %v5268 = vpop.permute.xlu0 %5267
  %5269 = vrot.lane.b32.xlu0 %v5122, 8
  %v5270 = vpop.permute.xlu0 %5269
  %5271 = vrot.lane.b32.xlu0 %v5123, 8
  %v5272 = vpop.permute.xlu0 %5271
  %5273 = vrot.lane.b32.xlu0 %v5124, 8
  %v5274 = vpop.permute.xlu0 %5273
  %5275 = vrot.lane.b32.xlu0 %v5125, 8
  %v5276 = vpop.permute.xlu0 %5275
  %5277 = vrot.lane.b32.xlu0 %v5126, 8
  %v5278 = vpop.permute.xlu0 %5277
  %5279 = vrot.lane.b32.xlu0 %v5127, 8
  %v5280 = vpop.permute.xlu0 %5279
  %5281 = vrot.lane.b32.xlu0 %v5128, 8
  %v5282 = vpop.permute.xlu0 %5281
  %5283 = vrot.lane.b32.xlu0 %v5129, 8
  %v5284 = vpop.permute.xlu0 %5283
  %5285 = vrot.lane.b32.xlu0 %v5130, 8
  %v5286 = vpop.permute.xlu0 %5285
  %5287 = vrot.lane.b32.xlu0 %v5131, 8
  %v5288 = vpop.permute.xlu0 %5287
  %5289 = vrot.lane.b32.xlu0 %v5132, 8
  %v5290 = vpop.permute.xlu0 %5289
  %5291 = vrot.lane.b32.xlu0 %v5133, 8
  %v5292 = vpop.permute.xlu0 %5291
  %5293 = vrot.lane.b32.xlu0 %v5134, 8
  %v5294 = vpop.permute.xlu0 %5293
  %5295 = vrot.lane.b32.xlu0 %v5135, 8
  %v5296 = vpop.permute.xlu0 %5295
  %5297 = vrot.lane.b32.xlu0 %v5136, 8
  %v5298 = vpop.permute.xlu0 %5297
  %5299 = vrot.lane.b32.xlu0 %v5137, 8
  %v5300 = vpop.permute.xlu0 %5299
  %5301 = vrot.lane.b32.xlu0 %v5138, 8
  %v5302 = vpop.permute.xlu0 %5301
  %5303 = vrot.lane.b32.xlu0 %v5139, 8
  %v5304 = vpop.permute.xlu0 %5303
  %5305 = vrot.lane.b32.xlu0 %v5140, 8
  %v5306 = vpop.permute.xlu0 %5305
  %5307 = vrot.lane.b32.xlu0 %v5141, 8
  %v5308 = vpop.permute.xlu0 %5307
  %5309 = vrot.lane.b32.xlu0 %v5142, 8
  %v5310 = vpop.permute.xlu0 %5309
  %5311 = vrot.lane.b32.xlu0 %v5143, 8
  %v5312 = vpop.permute.xlu0 %5311
  %5313 = vrot.lane.b32.xlu0 %v5144, 8
  %v5314 = vpop.permute.xlu0 %5313
  %5315 = vrot.lane.b32.xlu0 %v5145, 8
  %v5316 = vpop.permute.xlu0 %5315
  %5317 = vrot.lane.b32.xlu0 %v5146, 8
  %v5318 = vpop.permute.xlu0 %5317
  %5319 = vrot.lane.b32.xlu0 %v5147, 8
  %v5320 = vpop.permute.xlu0 %5319
  %5321 = vrot.lane.b32.xlu0 %v5148, 8
  %v5322 = vpop.permute.xlu0 %5321
  %5323 = vrot.lane.b32.xlu0 %v5149, 8
  %v5324 = vpop.permute.xlu0 %5323
  %5325 = vrot.lane.b32.xlu0 %v5150, 8
  %v5326 = vpop.permute.xlu0 %5325
  %5327 = vrot.lane.b32.xlu0 %v5151, 8
  %v5328 = vpop.permute.xlu0 %5327
  %5329 = vrot.lane.b32.xlu0 %v5152, 8
  %v5330 = vpop.permute.xlu0 %5329
  %5331 = vrot.lane.b32.xlu0 %v5153, 8
  %v5332 = vpop.permute.xlu0 %5331
  %5333 = vrot.lane.b32.xlu0 %v5154, 8
  %v5334 = vpop.permute.xlu0 %5333
  %5335 = vrot.lane.b32.xlu0 %v5155, 8
  %v5336 = vpop.permute.xlu0 %5335
  %5337 = vrot.lane.b32.xlu0 %v5156, 8
  %v5338 = vpop.permute.xlu0 %5337
  %5339 = vrot.lane.b32.xlu0 %v5157, 8
  %v5340 = vpop.permute.xlu0 %5339
  %5341 = vrot.lane.b32.xlu0 %v5158, 8
  %v5342 = vpop.permute.xlu0 %5341
  %5343 = vrot.lane.b32.xlu0 %v5159, 8
  %v5344 = vpop.permute.xlu0 %5343
  %5345 = vrot.lane.b32.xlu0 %v5160, 8
  %v5346 = vpop.permute.xlu0 %5345
  %5347 = vrot.lane.b32.xlu0 %v5161, 8
  %v5348 = vpop.permute.xlu0 %5347
  %5349 = vrot.lane.b32.xlu0 %v5162, 8
  %v5350 = vpop.permute.xlu0 %5349
  %5351 = vrot.lane.b32.xlu0 %v5163, 8
  %v5352 = vpop.permute.xlu0 %5351
  %5353 = vrot.lane.b32.xlu0 %v5164, 8
  %v5354 = vpop.permute.xlu0 %5353
  %5355 = vrot.lane.b32.xlu0 %v5165, 8
  %v5356 = vpop.permute.xlu0 %5355
  %5357 = vrot.lane.b32.xlu0 %v5166, 8
  %v5358 = vpop.permute.xlu0 %5357
  %5423 = vst.msk [vmem:[#allocation3] sm:$0xff] %vm1099, %v5232
  %5424 = vst.msk [vmem:[#allocation3 + $0x8] sm:$0xff] %vm1099, %v5234
  %5425 = vst.msk [vmem:[#allocation3 + $0x10] sm:$0xff] %vm1099, %v5236
  %5426 = vst.msk [vmem:[#allocation3 + $0x18] sm:$0xff] %vm1099, %v5238
  %5427 = vst.msk [vmem:[#allocation3 + $0x20] sm:$0xff] %vm1099, %v5240
  %5428 = vst.msk [vmem:[#allocation3 + $0x28] sm:$0xff] %vm1099, %v5242
  %5429 = vst.msk [vmem:[#allocation3 + $0x30] sm:$0xff] %vm1099, %v5244
  %5430 = vst.msk [vmem:[#allocation3 + $0x38] sm:$0xff] %vm1099, %v5246
  %5431 = vst.msk [vmem:[#allocation3 + $0x40] sm:$0xff] %vm1099, %v5248
  %5432 = vst.msk [vmem:[#allocation3 + $0x48] sm:$0xff] %vm1099, %v5250
  %5433 = vst.msk [vmem:[#allocation3 + $0x50] sm:$0xff] %vm1099, %v5252
  %5434 = vst.msk [vmem:[#allocation3 + $0x58] sm:$0xff] %vm1099, %v5254
  %5435 = vst.msk [vmem:[#allocation3 + $0x60] sm:$0xff] %vm1099, %v5256
  %5436 = vst.msk [vmem:[#allocation3 + $0x68] sm:$0xff] %vm1099, %v5258
  %5437 = vst.msk [vmem:[#allocation3 + $0x70] sm:$0xff] %vm1099, %v5260
  %5438 = vst.msk [vmem:[#allocation3 + $0x78] sm:$0xff] %vm1099, %v5262
  %5439 = vst.msk [vmem:[#allocation3 + $0x80] sm:$0xff] %vm1099, %v5264
  %5440 = vst.msk [vmem:[#allocation3 + $0x88] sm:$0xff] %vm1099, %v5266
  %5441 = vst.msk [vmem:[#allocation3 + $0x90] sm:$0xff] %vm1099, %v5268
  %5442 = vst.msk [vmem:[#allocation3 + $0x98] sm:$0xff] %vm1099, %v5270
  %5443 = vst.msk [vmem:[#allocation3 + $0xa0] sm:$0xff] %vm1099, %v5272
  %5444 = vst.msk [vmem:[#allocation3 + $0xa8] sm:$0xff] %vm1099, %v5274
  %5445 = vst.msk [vmem:[#allocation3 + $0xb0] sm:$0xff] %vm1099, %v5276
  %5446 = vst.msk [vmem:[#allocation3 + $0xb8] sm:$0xff] %vm1099, %v5278
  %5447 = vst.msk [vmem:[#allocation3 + $0xc0] sm:$0xff] %vm1099, %v5280
  %5448 = vst.msk [vmem:[#allocation3 + $0xc8] sm:$0xff] %vm1099, %v5282
  %5449 = vst.msk [vmem:[#allocation3 + $0xd0] sm:$0xff] %vm1099, %v5284
  %5450 = vst.msk [vmem:[#allocation3 + $0xd8] sm:$0xff] %vm1099, %v5286
  %5451 = vst.msk [vmem:[#allocation3 + $0xe0] sm:$0xff] %vm1099, %v5288
  %5452 = vst.msk [vmem:[#allocation3 + $0xe8] sm:$0xff] %vm1099, %v5290
  %5453 = vst.msk [vmem:[#allocation3 + $0xf0] sm:$0xff] %vm1099, %v5292
  %5454 = vst.msk [vmem:[#allocation3 + $0xf8] sm:$0xff] %vm1099, %v5294
  %5455 = vst.msk [vmem:[#allocation3 + $0x100] sm:$0xff] %vm1099, %v5296
  %5456 = vst.msk [vmem:[#allocation3 + $0x108] sm:$0xff] %vm1099, %v5298
  %5457 = vst.msk [vmem:[#allocation3 + $0x110] sm:$0xff] %vm1099, %v5300
  %5458 = vst.msk [vmem:[#allocation3 + $0x118] sm:$0xff] %vm1099, %v5302
  %5459 = vst.msk [vmem:[#allocation3 + $0x120] sm:$0xff] %vm1099, %v5304
  %5460 = vst.msk [vmem:[#allocation3 + $0x128] sm:$0xff] %vm1099, %v5306
  %5461 = vst.msk [vmem:[#allocation3 + $0x130] sm:$0xff] %vm1099, %v5308
  %5462 = vst.msk [vmem:[#allocation3 + $0x138] sm:$0xff] %vm1099, %v5310
  %5463 = vst.msk [vmem:[#allocation3 + $0x140] sm:$0xff] %vm1099, %v5312
  %5464 = vst.msk [vmem:[#allocation3 + $0x148] sm:$0xff] %vm1099, %v5314
  %5465 = vst.msk [vmem:[#allocation3 + $0x150] sm:$0xff] %vm1099, %v5316
  %5466 = vst.msk [vmem:[#allocation3 + $0x158] sm:$0xff] %vm1099, %v5318
  %5467 = vst.msk [vmem:[#allocation3 + $0x160] sm:$0xff] %vm1099, %v5320
  %5468 = vst.msk [vmem:[#allocation3 + $0x168] sm:$0xff] %vm1099, %v5322
  %5469 = vst.msk [vmem:[#allocation3 + $0x170] sm:$0xff] %vm1099, %v5324
  %5470 = vst.msk [vmem:[#allocation3 + $0x178] sm:$0xff] %vm1099, %v5326
  %5471 = vst.msk [vmem:[#allocation3 + $0x180] sm:$0xff] %vm1099, %v5328
  %5472 = vst.msk [vmem:[#allocation3 + $0x188] sm:$0xff] %vm1099, %v5330
  %5473 = vst.msk [vmem:[#allocation3 + $0x190] sm:$0xff] %vm1099, %v5332
  %5474 = vst.msk [vmem:[#allocation3 + $0x198] sm:$0xff] %vm1099, %v5334
  %5475 = vst.msk [vmem:[#allocation3 + $0x1a0] sm:$0xff] %vm1099, %v5336
  %5476 = vst.msk [vmem:[#allocation3 + $0x1a8] sm:$0xff] %vm1099, %v5338
  %5477 = vst.msk [vmem:[#allocation3 + $0x1b0] sm:$0xff] %vm1099, %v5340
  %5478 = vst.msk [vmem:[#allocation3 + $0x1b8] sm:$0xff] %vm1099, %v5342
  %5479 = vst.msk [vmem:[#allocation3 + $0x1c0] sm:$0xff] %vm1099, %v5344
  %5480 = vst.msk [vmem:[#allocation3 + $0x1c8] sm:$0xff] %vm1099, %v5346
  %5481 = vst.msk [vmem:[#allocation3 + $0x1d0] sm:$0xff] %vm1099, %v5348
  %5482 = vst.msk [vmem:[#allocation3 + $0x1d8] sm:$0xff] %vm1099, %v5350
  %5483 = vst.msk [vmem:[#allocation3 + $0x1e0] sm:$0xff] %vm1099, %v5352
  %5484 = vst.msk [vmem:[#allocation3 + $0x1e8] sm:$0xff] %vm1099, %v5354
  %5485 = vst.msk [vmem:[#allocation3 + $0x1f0] sm:$0xff] %vm1099, %v5356
  %5486 = vst.msk [vmem:[#allocation3 + $0x1f8] sm:$0xff] %vm1099, %v5358
  %v5487 = vld [vmem:[%s201] sm:$0xff]
  %v5488 = vld [vmem:[%s201 + $0x8] sm:$0xff]
  %v5489 = vld [vmem:[%s201 + $0x18] sm:$0xff]
  %v5490 = vld [vmem:[%s201 + $0x20] sm:$0xff]
  %v5491 = vld [vmem:[%s201 + $0x30] sm:$0xff]
  %v5492 = vld [vmem:[%s201 + $0x38] sm:$0xff]
  %v5493 = vld [vmem:[%s201 + $0x48] sm:$0xff]
  %v5494 = vld [vmem:[%s201 + $0x50] sm:$0xff]
  %v5495 = vld [vmem:[%s201 + $0x60] sm:$0xff]
  %v5496 = vld [vmem:[%s201 + $0x68] sm:$0xff]
  %v5497 = vld [vmem:[%s201 + $0x78] sm:$0xff]
  %v5498 = vld [vmem:[%s201 + $0x80] sm:$0xff]
  %v5499 = vld [vmem:[%s201 + $0x90] sm:$0xff]
  %v5500 = vld [vmem:[%s201 + $0x98] sm:$0xff]
  %v5501 = vld [vmem:[%s201 + $0xa8] sm:$0xff]
  %v5502 = vld [vmem:[%s201 + $0xb0] sm:$0xff]
  %v5503 = vld [vmem:[%s201 + $0xc0] sm:$0xff]
  %v5504 = vld [vmem:[%s201 + $0xc8] sm:$0xff]
  %v5505 = vld [vmem:[%s201 + $0xd8] sm:$0xff]
  %v5506 = vld [vmem:[%s201 + $0xe0] sm:$0xff]
  %v5507 = vld [vmem:[%s201 + $0xf0] sm:$0xff]
  %v5508 = vld [vmem:[%s201 + $0xf8] sm:$0xff]
  %v5509 = vld [vmem:[%s201 + $0x108] sm:$0xff]
  %v5510 = vld [vmem:[%s201 + $0x110] sm:$0xff]
  %v5511 = vld [vmem:[%s201 + $0x120] sm:$0xff]
  %v5512 = vld [vmem:[%s201 + $0x128] sm:$0xff]
  %v5513 = vld [vmem:[%s201 + $0x138] sm:$0xff]
  %v5514 = vld [vmem:[%s201 + $0x140] sm:$0xff]
  %v5515 = vld [vmem:[%s201 + $0x150] sm:$0xff]
  %v5516 = vld [vmem:[%s201 + $0x158] sm:$0xff]
  %v5517 = vld [vmem:[%s201 + $0x168] sm:$0xff]
  %v5518 = vld [vmem:[%s201 + $0x170] sm:$0xff]
  %v5519 = vld [vmem:[%s201 + $0x1b0] sm:$0xff]
  %v5520 = vld [vmem:[%s201 + $0x1b8] sm:$0xff]
  %v5521 = vld [vmem:[%s201 + $0x1c8] sm:$0xff]
  %v5522 = vld [vmem:[%s201 + $0x1d0] sm:$0xff]
  %v5523 = vld [vmem:[%s201 + $0x1e0] sm:$0xff]
  %v5524 = vld [vmem:[%s201 + $0x1e8] sm:$0xff]
  %v5525 = vld [vmem:[%s201 + $0x1f8] sm:$0xff]
  %v5526 = vld [vmem:[%s201 + $0x200] sm:$0xff]
  %v5527 = vld [vmem:[%s201 + $0x210] sm:$0xff]
  %v5528 = vld [vmem:[%s201 + $0x218] sm:$0xff]
  %v5529 = vld [vmem:[%s201 + $0x228] sm:$0xff]
  %v5530 = vld [vmem:[%s201 + $0x230] sm:$0xff]
  %v5531 = vld [vmem:[%s201 + $0x240] sm:$0xff]
  %v5532 = vld [vmem:[%s201 + $0x248] sm:$0xff]
  %v5533 = vld [vmem:[%s201 + $0x258] sm:$0xff]
  %v5534 = vld [vmem:[%s201 + $0x260] sm:$0xff]
  %v5535 = vld [vmem:[%s201 + $0x270] sm:$0xff]
  %v5536 = vld [vmem:[%s201 + $0x278] sm:$0xff]
  %v5537 = vld [vmem:[%s201 + $0x288] sm:$0xff]
  %v5538 = vld [vmem:[%s201 + $0x290] sm:$0xff]
  %v5539 = vld [vmem:[%s201 + $0x2a0] sm:$0xff]
  %v5540 = vld [vmem:[%s201 + $0x2a8] sm:$0xff]
  %v5541 = vld [vmem:[%s201 + $0x2b8] sm:$0xff]
  %v5542 = vld [vmem:[%s201 + $0x2c0] sm:$0xff]
  %v5543 = vld [vmem:[%s201 + $0x2d0] sm:$0xff]
  %v5544 = vld [vmem:[%s201 + $0x2d8] sm:$0xff]
  %v5545 = vld [vmem:[%s201 + $0x2e8] sm:$0xff]
  %v5546 = vld [vmem:[%s201 + $0x2f0] sm:$0xff]
  %v5547 = vld [vmem:[%s201 + $0x300] sm:$0xff]
  %v5548 = vld [vmem:[%s201 + $0x308] sm:$0xff]
  %v5549 = vld [vmem:[%s201 + $0x318] sm:$0xff]
  %v5550 = vld [vmem:[%s201 + $0x320] sm:$0xff]
  %5615 = vrot.lane.b32.xlu0 %v5487, 12
  %v5616 = vpop.permute.xlu0 %5615
  %5617 = vrot.lane.b32.xlu0 %v5488, 12
  %v5618 = vpop.permute.xlu0 %5617
  %5619 = vrot.lane.b32.xlu0 %v5489, 12
  %v5620 = vpop.permute.xlu0 %5619
  %5621 = vrot.lane.b32.xlu0 %v5490, 12
  %v5622 = vpop.permute.xlu0 %5621
  %5623 = vrot.lane.b32.xlu0 %v5491, 12
  %v5624 = vpop.permute.xlu0 %5623
  %5625 = vrot.lane.b32.xlu0 %v5492, 12
  %v5626 = vpop.permute.xlu0 %5625
  %5627 = vrot.lane.b32.xlu0 %v5493, 12
  %v5628 = vpop.permute.xlu0 %5627
  %5629 = vrot.lane.b32.xlu0 %v5494, 12
  %v5630 = vpop.permute.xlu0 %5629
  %5631 = vrot.lane.b32.xlu0 %v5495, 12
  %v5632 = vpop.permute.xlu0 %5631
  %5633 = vrot.lane.b32.xlu0 %v5496, 12
  %v5634 = vpop.permute.xlu0 %5633
  %5635 = vrot.lane.b32.xlu0 %v5497, 12
  %v5636 = vpop.permute.xlu0 %5635
  %5637 = vrot.lane.b32.xlu0 %v5498, 12
  %v5638 = vpop.permute.xlu0 %5637
  %5639 = vrot.lane.b32.xlu0 %v5499, 12
  %v5640 = vpop.permute.xlu0 %5639
  %5641 = vrot.lane.b32.xlu0 %v5500, 12
  %v5642 = vpop.permute.xlu0 %5641
  %5643 = vrot.lane.b32.xlu0 %v5501, 12
  %v5644 = vpop.permute.xlu0 %5643
  %5645 = vrot.lane.b32.xlu0 %v5502, 12
  %v5646 = vpop.permute.xlu0 %5645
  %5647 = vrot.lane.b32.xlu0 %v5503, 12
  %v5648 = vpop.permute.xlu0 %5647
  %5649 = vrot.lane.b32.xlu0 %v5504, 12
  %v5650 = vpop.permute.xlu0 %5649
  %5651 = vrot.lane.b32.xlu0 %v5505, 12
  %v5652 = vpop.permute.xlu0 %5651
  %5653 = vrot.lane.b32.xlu0 %v5506, 12
  %v5654 = vpop.permute.xlu0 %5653
  %5655 = vrot.lane.b32.xlu0 %v5507, 12
  %v5656 = vpop.permute.xlu0 %5655
  %5657 = vrot.lane.b32.xlu0 %v5508, 12
  %v5658 = vpop.permute.xlu0 %5657
  %5659 = vrot.lane.b32.xlu0 %v5509, 12
  %v5660 = vpop.permute.xlu0 %5659
  %5661 = vrot.lane.b32.xlu0 %v5510, 12
  %v5662 = vpop.permute.xlu0 %5661
  %5663 = vrot.lane.b32.xlu0 %v5511, 12
  %v5664 = vpop.permute.xlu0 %5663
  %5665 = vrot.lane.b32.xlu0 %v5512, 12
  %v5666 = vpop.permute.xlu0 %5665
  %5667 = vrot.lane.b32.xlu0 %v5513, 12
  %v5668 = vpop.permute.xlu0 %5667
  %5669 = vrot.lane.b32.xlu0 %v5514, 12
  %v5670 = vpop.permute.xlu0 %5669
  %5671 = vrot.lane.b32.xlu0 %v5515, 12
  %v5672 = vpop.permute.xlu0 %5671
  %5673 = vrot.lane.b32.xlu0 %v5516, 12
  %v5674 = vpop.permute.xlu0 %5673
  %5675 = vrot.lane.b32.xlu0 %v5517, 12
  %v5676 = vpop.permute.xlu0 %5675
  %5677 = vrot.lane.b32.xlu0 %v5518, 12
  %v5678 = vpop.permute.xlu0 %5677
  %5679 = vrot.lane.b32.xlu0 %v5519, 12
  %v5680 = vpop.permute.xlu0 %5679
  %5681 = vrot.lane.b32.xlu0 %v5520, 12
  %v5682 = vpop.permute.xlu0 %5681
  %5683 = vrot.lane.b32.xlu0 %v5521, 12
  %v5684 = vpop.permute.xlu0 %5683
  %5685 = vrot.lane.b32.xlu0 %v5522, 12
  %v5686 = vpop.permute.xlu0 %5685
  %5687 = vrot.lane.b32.xlu0 %v5523, 12
  %v5688 = vpop.permute.xlu0 %5687
  %5689 = vrot.lane.b32.xlu0 %v5524, 12
  %v5690 = vpop.permute.xlu0 %5689
  %5691 = vrot.lane.b32.xlu0 %v5525, 12
  %v5692 = vpop.permute.xlu0 %5691
  %5693 = vrot.lane.b32.xlu0 %v5526, 12
  %v5694 = vpop.permute.xlu0 %5693
  %5695 = vrot.lane.b32.xlu0 %v5527, 12
  %v5696 = vpop.permute.xlu0 %5695
  %5697 = vrot.lane.b32.xlu0 %v5528, 12
  %v5698 = vpop.permute.xlu0 %5697
  %5699 = vrot.lane.b32.xlu0 %v5529, 12
  %v5700 = vpop.permute.xlu0 %5699
  %5701 = vrot.lane.b32.xlu0 %v5530, 12
  %v5702 = vpop.permute.xlu0 %5701
  %5703 = vrot.lane.b32.xlu0 %v5531, 12
  %v5704 = vpop.permute.xlu0 %5703
  %5705 = vrot.lane.b32.xlu0 %v5532, 12
  %v5706 = vpop.permute.xlu0 %5705
  %5707 = vrot.lane.b32.xlu0 %v5533, 12
  %v5708 = vpop.permute.xlu0 %5707
  %5709 = vrot.lane.b32.xlu0 %v5534, 12
  %v5710 = vpop.permute.xlu0 %5709
  %5711 = vrot.lane.b32.xlu0 %v5535, 12
  %v5712 = vpop.permute.xlu0 %5711
  %5713 = vrot.lane.b32.xlu0 %v5536, 12
  %v5714 = vpop.permute.xlu0 %5713
  %5715 = vrot.lane.b32.xlu0 %v5537, 12
  %v5716 = vpop.permute.xlu0 %5715
  %5717 = vrot.lane.b32.xlu0 %v5538, 12
  %v5718 = vpop.permute.xlu0 %5717
  %5719 = vrot.lane.b32.xlu0 %v5539, 12
  %v5720 = vpop.permute.xlu0 %5719
  %5721 = vrot.lane.b32.xlu0 %v5540, 12
  %v5722 = vpop.permute.xlu0 %5721
  %5723 = vrot.lane.b32.xlu0 %v5541, 12
  %v5724 = vpop.permute.xlu0 %5723
  %5725 = vrot.lane.b32.xlu0 %v5542, 12
  %v5726 = vpop.permute.xlu0 %5725
  %5727 = vrot.lane.b32.xlu0 %v5543, 12
  %v5728 = vpop.permute.xlu0 %5727
  %5729 = vrot.lane.b32.xlu0 %v5544, 12
  %v5730 = vpop.permute.xlu0 %5729
  %5731 = vrot.lane.b32.xlu0 %v5545, 12
  %v5732 = vpop.permute.xlu0 %5731
  %5733 = vrot.lane.b32.xlu0 %v5546, 12
  %v5734 = vpop.permute.xlu0 %5733
  %5735 = vrot.lane.b32.xlu0 %v5547, 12
  %v5736 = vpop.permute.xlu0 %5735
  %5737 = vrot.lane.b32.xlu0 %v5548, 12
  %v5738 = vpop.permute.xlu0 %5737
  %5739 = vrot.lane.b32.xlu0 %v5549, 12
  %v5740 = vpop.permute.xlu0 %5739
  %5741 = vrot.lane.b32.xlu0 %v5550, 12
  %v5742 = vpop.permute.xlu0 %5741
  %5807 = vst.msk [vmem:[#allocation3] sm:$0xff] %vm1484, %v5616
  %5808 = vst.msk [vmem:[#allocation3 + $0x8] sm:$0xff] %vm1484, %v5618
  %5809 = vst.msk [vmem:[#allocation3 + $0x10] sm:$0xff] %vm1484, %v5620
  %5810 = vst.msk [vmem:[#allocation3 + $0x18] sm:$0xff] %vm1484, %v5622
  %5811 = vst.msk [vmem:[#allocation3 + $0x20] sm:$0xff] %vm1484, %v5624
  %5812 = vst.msk [vmem:[#allocation3 + $0x28] sm:$0xff] %vm1484, %v5626
  %5813 = vst.msk [vmem:[#allocation3 + $0x30] sm:$0xff] %vm1484, %v5628
  %5814 = vst.msk [vmem:[#allocation3 + $0x38] sm:$0xff] %vm1484, %v5630
  %5815 = vst.msk [vmem:[#allocation3 + $0x40] sm:$0xff] %vm1484, %v5632
  %5816 = vst.msk [vmem:[#allocation3 + $0x48] sm:$0xff] %vm1484, %v5634
  %5817 = vst.msk [vmem:[#allocation3 + $0x50] sm:$0xff] %vm1484, %v5636
  %5818 = vst.msk [vmem:[#allocation3 + $0x58] sm:$0xff] %vm1484, %v5638
  %5819 = vst.msk [vmem:[#allocation3 + $0x60] sm:$0xff] %vm1484, %v5640
  %5820 = vst.msk [vmem:[#allocation3 + $0x68] sm:$0xff] %vm1484, %v5642
  %5821 = vst.msk [vmem:[#allocation3 + $0x70] sm:$0xff] %vm1484, %v5644
  %5822 = vst.msk [vmem:[#allocation3 + $0x78] sm:$0xff] %vm1484, %v5646
  %5823 = vst.msk [vmem:[#allocation3 + $0x80] sm:$0xff] %vm1484, %v5648
  %5824 = vst.msk [vmem:[#allocation3 + $0x88] sm:$0xff] %vm1484, %v5650
  %5825 = vst.msk [vmem:[#allocation3 + $0x90] sm:$0xff] %vm1484, %v5652
  %5826 = vst.msk [vmem:[#allocation3 + $0x98] sm:$0xff] %vm1484, %v5654
  %5827 = vst.msk [vmem:[#allocation3 + $0xa0] sm:$0xff] %vm1484, %v5656
  %5828 = vst.msk [vmem:[#allocation3 + $0xa8] sm:$0xff] %vm1484, %v5658
  %5829 = vst.msk [vmem:[#allocation3 + $0xb0] sm:$0xff] %vm1484, %v5660
  %5830 = vst.msk [vmem:[#allocation3 + $0xb8] sm:$0xff] %vm1484, %v5662
  %5831 = vst.msk [vmem:[#allocation3 + $0xc0] sm:$0xff] %vm1484, %v5664
  %5832 = vst.msk [vmem:[#allocation3 + $0xc8] sm:$0xff] %vm1484, %v5666
  %5833 = vst.msk [vmem:[#allocation3 + $0xd0] sm:$0xff] %vm1484, %v5668
  %5834 = vst.msk [vmem:[#allocation3 + $0xd8] sm:$0xff] %vm1484, %v5670
  %5835 = vst.msk [vmem:[#allocation3 + $0xe0] sm:$0xff] %vm1484, %v5672
  %5836 = vst.msk [vmem:[#allocation3 + $0xe8] sm:$0xff] %vm1484, %v5674
  %5837 = vst.msk [vmem:[#allocation3 + $0xf0] sm:$0xff] %vm1484, %v5676
  %5838 = vst.msk [vmem:[#allocation3 + $0xf8] sm:$0xff] %vm1484, %v5678
  %5839 = vst.msk [vmem:[#allocation3 + $0x100] sm:$0xff] %vm1484, %v5680
  %5840 = vst.msk [vmem:[#allocation3 + $0x108] sm:$0xff] %vm1484, %v5682
  %5841 = vst.msk [vmem:[#allocation3 + $0x110] sm:$0xff] %vm1484, %v5684
  %5842 = vst.msk [vmem:[#allocation3 + $0x118] sm:$0xff] %vm1484, %v5686
  %5843 = vst.msk [vmem:[#allocation3 + $0x120] sm:$0xff] %vm1484, %v5688
  %5844 = vst.msk [vmem:[#allocation3 + $0x128] sm:$0xff] %vm1484, %v5690
  %5845 = vst.msk [vmem:[#allocation3 + $0x130] sm:$0xff] %vm1484, %v5692
  %5846 = vst.msk [vmem:[#allocation3 + $0x138] sm:$0xff] %vm1484, %v5694
  %5847 = vst.msk [vmem:[#allocation3 + $0x140] sm:$0xff] %vm1484, %v5696
  %5848 = vst.msk [vmem:[#allocation3 + $0x148] sm:$0xff] %vm1484, %v5698
  %5849 = vst.msk [vmem:[#allocation3 + $0x150] sm:$0xff] %vm1484, %v5700
  %5850 = vst.msk [vmem:[#allocation3 + $0x158] sm:$0xff] %vm1484, %v5702
  %5851 = vst.msk [vmem:[#allocation3 + $0x160] sm:$0xff] %vm1484, %v5704
  %5852 = vst.msk [vmem:[#allocation3 + $0x168] sm:$0xff] %vm1484, %v5706
  %5853 = vst.msk [vmem:[#allocation3 + $0x170] sm:$0xff] %vm1484, %v5708
  %5854 = vst.msk [vmem:[#allocation3 + $0x178] sm:$0xff] %vm1484, %v5710
  %5855 = vst.msk [vmem:[#allocation3 + $0x180] sm:$0xff] %vm1484, %v5712
  %5856 = vst.msk [vmem:[#allocation3 + $0x188] sm:$0xff] %vm1484, %v5714
  %5857 = vst.msk [vmem:[#allocation3 + $0x190] sm:$0xff] %vm1484, %v5716
  %5858 = vst.msk [vmem:[#allocation3 + $0x198] sm:$0xff] %vm1484, %v5718
  %5859 = vst.msk [vmem:[#allocation3 + $0x1a0] sm:$0xff] %vm1484, %v5720
  %5860 = vst.msk [vmem:[#allocation3 + $0x1a8] sm:$0xff] %vm1484, %v5722
  %5861 = vst.msk [vmem:[#allocation3 + $0x1b0] sm:$0xff] %vm1484, %v5724
  %5862 = vst.msk [vmem:[#allocation3 + $0x1b8] sm:$0xff] %vm1484, %v5726
  %5863 = vst.msk [vmem:[#allocation3 + $0x1c0] sm:$0xff] %vm1484, %v5728
  %5864 = vst.msk [vmem:[#allocation3 + $0x1c8] sm:$0xff] %vm1484, %v5730
  %5865 = vst.msk [vmem:[#allocation3 + $0x1d0] sm:$0xff] %vm1484, %v5732
  %5866 = vst.msk [vmem:[#allocation3 + $0x1d8] sm:$0xff] %vm1484, %v5734
  %5867 = vst.msk [vmem:[#allocation3 + $0x1e0] sm:$0xff] %vm1484, %v5736
  %5868 = vst.msk [vmem:[#allocation3 + $0x1e8] sm:$0xff] %vm1484, %v5738
  %5869 = vst.msk [vmem:[#allocation3 + $0x1f0] sm:$0xff] %vm1484, %v5740
  %5870 = vst.msk [vmem:[#allocation3 + $0x1f8] sm:$0xff] %vm1484, %v5742
  %v5871 = vld [vmem:[%s201 + $0x1] sm:$0xff]
  %v5872 = vld [vmem:[%s201 + $0x9] sm:$0xff]
  %v5873 = vld [vmem:[%s201 + $0x19] sm:$0xff]
  %v5874 = vld [vmem:[%s201 + $0x21] sm:$0xff]
  %v5875 = vld [vmem:[%s201 + $0x31] sm:$0xff]
  %v5876 = vld [vmem:[%s201 + $0x39] sm:$0xff]
  %v5877 = vld [vmem:[%s201 + $0x49] sm:$0xff]
  %v5878 = vld [vmem:[%s201 + $0x51] sm:$0xff]
  %v5879 = vld [vmem:[%s201 + $0x61] sm:$0xff]
  %v5880 = vld [vmem:[%s201 + $0x69] sm:$0xff]
  %v5881 = vld [vmem:[%s201 + $0x79] sm:$0xff]
  %v5882 = vld [vmem:[%s201 + $0x81] sm:$0xff]
  %v5883 = vld [vmem:[%s201 + $0x91] sm:$0xff]
  %v5884 = vld [vmem:[%s201 + $0x99] sm:$0xff]
  %v5885 = vld [vmem:[%s201 + $0xa9] sm:$0xff]
  %v5886 = vld [vmem:[%s201 + $0xb1] sm:$0xff]
  %v5887 = vld [vmem:[%s201 + $0xc1] sm:$0xff]
  %v5888 = vld [vmem:[%s201 + $0xc9] sm:$0xff]
  %v5889 = vld [vmem:[%s201 + $0xd9] sm:$0xff]
  %v5890 = vld [vmem:[%s201 + $0xe1] sm:$0xff]
  %v5891 = vld [vmem:[%s201 + $0xf1] sm:$0xff]
  %v5892 = vld [vmem:[%s201 + $0xf9] sm:$0xff]
  %v5893 = vld [vmem:[%s201 + $0x109] sm:$0xff]
  %v5894 = vld [vmem:[%s201 + $0x111] sm:$0xff]
  %v5895 = vld [vmem:[%s201 + $0x121] sm:$0xff]
  %v5896 = vld [vmem:[%s201 + $0x129] sm:$0xff]
  %v5897 = vld [vmem:[%s201 + $0x139] sm:$0xff]
  %v5898 = vld [vmem:[%s201 + $0x141] sm:$0xff]
  %v5899 = vld [vmem:[%s201 + $0x151] sm:$0xff]
  %v5900 = vld [vmem:[%s201 + $0x159] sm:$0xff]
  %v5901 = vld [vmem:[%s201 + $0x169] sm:$0xff]
  %v5902 = vld [vmem:[%s201 + $0x171] sm:$0xff]
  %v5903 = vld [vmem:[%s201 + $0x1b1] sm:$0xff]
  %v5904 = vld [vmem:[%s201 + $0x1b9] sm:$0xff]
  %v5905 = vld [vmem:[%s201 + $0x1c9] sm:$0xff]
  %v5906 = vld [vmem:[%s201 + $0x1d1] sm:$0xff]
  %v5907 = vld [vmem:[%s201 + $0x1e1] sm:$0xff]
  %v5908 = vld [vmem:[%s201 + $0x1e9] sm:$0xff]
  %v5909 = vld [vmem:[%s201 + $0x1f9] sm:$0xff]
  %v5910 = vld [vmem:[%s201 + $0x201] sm:$0xff]
  %v5911 = vld [vmem:[%s201 + $0x211] sm:$0xff]
  %v5912 = vld [vmem:[%s201 + $0x219] sm:$0xff]
  %v5913 = vld [vmem:[%s201 + $0x229] sm:$0xff]
  %v5914 = vld [vmem:[%s201 + $0x231] sm:$0xff]
  %v5915 = vld [vmem:[%s201 + $0x241] sm:$0xff]
  %v5916 = vld [vmem:[%s201 + $0x249] sm:$0xff]
  %v5917 = vld [vmem:[%s201 + $0x259] sm:$0xff]
  %v5918 = vld [vmem:[%s201 + $0x261] sm:$0xff]
  %v5919 = vld [vmem:[%s201 + $0x271] sm:$0xff]
  %v5920 = vld [vmem:[%s201 + $0x279] sm:$0xff]
  %v5921 = vld [vmem:[%s201 + $0x289] sm:$0xff]
  %v5922 = vld [vmem:[%s201 + $0x291] sm:$0xff]
  %v5923 = vld [vmem:[%s201 + $0x2a1] sm:$0xff]
  %v5924 = vld [vmem:[%s201 + $0x2a9] sm:$0xff]
  %v5925 = vld [vmem:[%s201 + $0x2b9] sm:$0xff]
  %v5926 = vld [vmem:[%s201 + $0x2c1] sm:$0xff]
  %v5927 = vld [vmem:[%s201 + $0x2d1] sm:$0xff]
  %v5928 = vld [vmem:[%s201 + $0x2d9] sm:$0xff]
  %v5929 = vld [vmem:[%s201 + $0x2e9] sm:$0xff]
  %v5930 = vld [vmem:[%s201 + $0x2f1] sm:$0xff]
  %v5931 = vld [vmem:[%s201 + $0x301] sm:$0xff]
  %v5932 = vld [vmem:[%s201 + $0x309] sm:$0xff]
  %v5933 = vld [vmem:[%s201 + $0x319] sm:$0xff]
  %v5934 = vld [vmem:[%s201 + $0x321] sm:$0xff]
  %5999 = vrot.lane.b32.xlu0 %v5871, 16
  %v6000 = vpop.permute.xlu0 %5999
  %6001 = vrot.lane.b32.xlu0 %v5872, 16
  %v6002 = vpop.permute.xlu0 %6001
  %6003 = vrot.lane.b32.xlu0 %v5873, 16
  %v6004 = vpop.permute.xlu0 %6003
  %6005 = vrot.lane.b32.xlu0 %v5874, 16
  %v6006 = vpop.permute.xlu0 %6005
  %6007 = vrot.lane.b32.xlu0 %v5875, 16
  %v6008 = vpop.permute.xlu0 %6007
  %6009 = vrot.lane.b32.xlu0 %v5876, 16
  %v6010 = vpop.permute.xlu0 %6009
  %6011 = vrot.lane.b32.xlu0 %v5877, 16
  %v6012 = vpop.permute.xlu0 %6011
  %6013 = vrot.lane.b32.xlu0 %v5878, 16
  %v6014 = vpop.permute.xlu0 %6013
  %6015 = vrot.lane.b32.xlu0 %v5879, 16
  %v6016 = vpop.permute.xlu0 %6015
  %6017 = vrot.lane.b32.xlu0 %v5880, 16
  %v6018 = vpop.permute.xlu0 %6017
  %6019 = vrot.lane.b32.xlu0 %v5881, 16
  %v6020 = vpop.permute.xlu0 %6019
  %6021 = vrot.lane.b32.xlu0 %v5882, 16
  %v6022 = vpop.permute.xlu0 %6021
  %6023 = vrot.lane.b32.xlu0 %v5883, 16
  %v6024 = vpop.permute.xlu0 %6023
  %6025 = vrot.lane.b32.xlu0 %v5884, 16
  %v6026 = vpop.permute.xlu0 %6025
  %6027 = vrot.lane.b32.xlu0 %v5885, 16
  %v6028 = vpop.permute.xlu0 %6027
  %6029 = vrot.lane.b32.xlu0 %v5886, 16
  %v6030 = vpop.permute.xlu0 %6029
  %6031 = vrot.lane.b32.xlu0 %v5887, 16
  %v6032 = vpop.permute.xlu0 %6031
  %6033 = vrot.lane.b32.xlu0 %v5888, 16
  %v6034 = vpop.permute.xlu0 %6033
  %6035 = vrot.lane.b32.xlu0 %v5889, 16
  %v6036 = vpop.permute.xlu0 %6035
  %6037 = vrot.lane.b32.xlu0 %v5890, 16
  %v6038 = vpop.permute.xlu0 %6037
  %6039 = vrot.lane.b32.xlu0 %v5891, 16
  %v6040 = vpop.permute.xlu0 %6039
  %6041 = vrot.lane.b32.xlu0 %v5892, 16
  %v6042 = vpop.permute.xlu0 %6041
  %6043 = vrot.lane.b32.xlu0 %v5893, 16
  %v6044 = vpop.permute.xlu0 %6043
  %6045 = vrot.lane.b32.xlu0 %v5894, 16
  %v6046 = vpop.permute.xlu0 %6045
  %6047 = vrot.lane.b32.xlu0 %v5895, 16
  %v6048 = vpop.permute.xlu0 %6047
  %6049 = vrot.lane.b32.xlu0 %v5896, 16
  %v6050 = vpop.permute.xlu0 %6049
  %6051 = vrot.lane.b32.xlu0 %v5897, 16
  %v6052 = vpop.permute.xlu0 %6051
  %6053 = vrot.lane.b32.xlu0 %v5898, 16
  %v6054 = vpop.permute.xlu0 %6053
  %6055 = vrot.lane.b32.xlu0 %v5899, 16
  %v6056 = vpop.permute.xlu0 %6055
  %6057 = vrot.lane.b32.xlu0 %v5900, 16
  %v6058 = vpop.permute.xlu0 %6057
  %6059 = vrot.lane.b32.xlu0 %v5901, 16
  %v6060 = vpop.permute.xlu0 %6059
  %6061 = vrot.lane.b32.xlu0 %v5902, 16
  %v6062 = vpop.permute.xlu0 %6061
  %6063 = vrot.lane.b32.xlu0 %v5903, 16
  %v6064 = vpop.permute.xlu0 %6063
  %6065 = vrot.lane.b32.xlu0 %v5904, 16
  %v6066 = vpop.permute.xlu0 %6065
  %6067 = vrot.lane.b32.xlu0 %v5905, 16
  %v6068 = vpop.permute.xlu0 %6067
  %6069 = vrot.lane.b32.xlu0 %v5906, 16
  %v6070 = vpop.permute.xlu0 %6069
  %6071 = vrot.lane.b32.xlu0 %v5907, 16
  %v6072 = vpop.permute.xlu0 %6071
  %6073 = vrot.lane.b32.xlu0 %v5908, 16
  %v6074 = vpop.permute.xlu0 %6073
  %6075 = vrot.lane.b32.xlu0 %v5909, 16
  %v6076 = vpop.permute.xlu0 %6075
  %6077 = vrot.lane.b32.xlu0 %v5910, 16
  %v6078 = vpop.permute.xlu0 %6077
  %6079 = vrot.lane.b32.xlu0 %v5911, 16
  %v6080 = vpop.permute.xlu0 %6079
  %6081 = vrot.lane.b32.xlu0 %v5912, 16
  %v6082 = vpop.permute.xlu0 %6081
  %6083 = vrot.lane.b32.xlu0 %v5913, 16
  %v6084 = vpop.permute.xlu0 %6083
  %6085 = vrot.lane.b32.xlu0 %v5914, 16
  %v6086 = vpop.permute.xlu0 %6085
  %6087 = vrot.lane.b32.xlu0 %v5915, 16
  %v6088 = vpop.permute.xlu0 %6087
  %6089 = vrot.lane.b32.xlu0 %v5916, 16
  %v6090 = vpop.permute.xlu0 %6089
  %6091 = vrot.lane.b32.xlu0 %v5917, 16
  %v6092 = vpop.permute.xlu0 %6091
  %6093 = vrot.lane.b32.xlu0 %v5918, 16
  %v6094 = vpop.permute.xlu0 %6093
  %6095 = vrot.lane.b32.xlu0 %v5919, 16
  %v6096 = vpop.permute.xlu0 %6095
  %6097 = vrot.lane.b32.xlu0 %v5920, 16
  %v6098 = vpop.permute.xlu0 %6097
  %6099 = vrot.lane.b32.xlu0 %v5921, 16
  %v6100 = vpop.permute.xlu0 %6099
  %6101 = vrot.lane.b32.xlu0 %v5922, 16
  %v6102 = vpop.permute.xlu0 %6101
  %6103 = vrot.lane.b32.xlu0 %v5923, 16
  %v6104 = vpop.permute.xlu0 %6103
  %6105 = vrot.lane.b32.xlu0 %v5924, 16
  %v6106 = vpop.permute.xlu0 %6105
  %6107 = vrot.lane.b32.xlu0 %v5925, 16
  %v6108 = vpop.permute.xlu0 %6107
  %6109 = vrot.lane.b32.xlu0 %v5926, 16
  %v6110 = vpop.permute.xlu0 %6109
  %6111 = vrot.lane.b32.xlu0 %v5927, 16
  %v6112 = vpop.permute.xlu0 %6111
  %6113 = vrot.lane.b32.xlu0 %v5928, 16
  %v6114 = vpop.permute.xlu0 %6113
  %6115 = vrot.lane.b32.xlu0 %v5929, 16
  %v6116 = vpop.permute.xlu0 %6115
  %6117 = vrot.lane.b32.xlu0 %v5930, 16
  %v6118 = vpop.permute.xlu0 %6117
  %6119 = vrot.lane.b32.xlu0 %v5931, 16
  %v6120 = vpop.permute.xlu0 %6119
  %6121 = vrot.lane.b32.xlu0 %v5932, 16
  %v6122 = vpop.permute.xlu0 %6121
  %6123 = vrot.lane.b32.xlu0 %v5933, 16
  %v6124 = vpop.permute.xlu0 %6123
  %6125 = vrot.lane.b32.xlu0 %v5934, 16
  %v6126 = vpop.permute.xlu0 %6125
  %6191 = vst.msk [vmem:[#allocation3] sm:$0xff] %vm1869, %v6000
  %6192 = vst.msk [vmem:[#allocation3 + $0x8] sm:$0xff] %vm1869, %v6002
  %6193 = vst.msk [vmem:[#allocation3 + $0x10] sm:$0xff] %vm1869, %v6004
  %6194 = vst.msk [vmem:[#allocation3 + $0x18] sm:$0xff] %vm1869, %v6006
  %6195 = vst.msk [vmem:[#allocation3 + $0x20] sm:$0xff] %vm1869, %v6008
  %6196 = vst.msk [vmem:[#allocation3 + $0x28] sm:$0xff] %vm1869, %v6010
  %6197 = vst.msk [vmem:[#allocation3 + $0x30] sm:$0xff] %vm1869, %v6012
  %6198 = vst.msk [vmem:[#allocation3 + $0x38] sm:$0xff] %vm1869, %v6014
  %6199 = vst.msk [vmem:[#allocation3 + $0x40] sm:$0xff] %vm1869, %v6016
  %6200 = vst.msk [vmem:[#allocation3 + $0x48] sm:$0xff] %vm1869, %v6018
  %6201 = vst.msk [vmem:[#allocation3 + $0x50] sm:$0xff] %vm1869, %v6020
  %6202 = vst.msk [vmem:[#allocation3 + $0x58] sm:$0xff] %vm1869, %v6022
  %6203 = vst.msk [vmem:[#allocation3 + $0x60] sm:$0xff] %vm1869, %v6024
  %6204 = vst.msk [vmem:[#allocation3 + $0x68] sm:$0xff] %vm1869, %v6026
  %6205 = vst.msk [vmem:[#allocation3 + $0x70] sm:$0xff] %vm1869, %v6028
  %6206 = vst.msk [vmem:[#allocation3 + $0x78] sm:$0xff] %vm1869, %v6030
  %6207 = vst.msk [vmem:[#allocation3 + $0x80] sm:$0xff] %vm1869, %v6032
  %6208 = vst.msk [vmem:[#allocation3 + $0x88] sm:$0xff] %vm1869, %v6034
  %6209 = vst.msk [vmem:[#allocation3 + $0x90] sm:$0xff] %vm1869, %v6036
  %6210 = vst.msk [vmem:[#allocation3 + $0x98] sm:$0xff] %vm1869, %v6038
  %6211 = vst.msk [vmem:[#allocation3 + $0xa0] sm:$0xff] %vm1869, %v6040
  %6212 = vst.msk [vmem:[#allocation3 + $0xa8] sm:$0xff] %vm1869, %v6042
  %6213 = vst.msk [vmem:[#allocation3 + $0xb0] sm:$0xff] %vm1869, %v6044
  %6214 = vst.msk [vmem:[#allocation3 + $0xb8] sm:$0xff] %vm1869, %v6046
  %6215 = vst.msk [vmem:[#allocation3 + $0xc0] sm:$0xff] %vm1869, %v6048
  %6216 = vst.msk [vmem:[#allocation3 + $0xc8] sm:$0xff] %vm1869, %v6050
  %6217 = vst.msk [vmem:[#allocation3 + $0xd0] sm:$0xff] %vm1869, %v6052
  %6218 = vst.msk [vmem:[#allocation3 + $0xd8] sm:$0xff] %vm1869, %v6054
  %6219 = vst.msk [vmem:[#allocation3 + $0xe0] sm:$0xff] %vm1869, %v6056
  %6220 = vst.msk [vmem:[#allocation3 + $0xe8] sm:$0xff] %vm1869, %v6058
  %6221 = vst.msk [vmem:[#allocation3 + $0xf0] sm:$0xff] %vm1869, %v6060
  %6222 = vst.msk [vmem:[#allocation3 + $0xf8] sm:$0xff] %vm1869, %v6062
  %6223 = vst.msk [vmem:[#allocation3 + $0x100] sm:$0xff] %vm1869, %v6064
  %6224 = vst.msk [vmem:[#allocation3 + $0x108] sm:$0xff] %vm1869, %v6066
  %6225 = vst.msk [vmem:[#allocation3 + $0x110] sm:$0xff] %vm1869, %v6068
  %6226 = vst.msk [vmem:[#allocation3 + $0x118] sm:$0xff] %vm1869, %v6070
  %6227 = vst.msk [vmem:[#allocation3 + $0x120] sm:$0xff] %vm1869, %v6072
  %6228 = vst.msk [vmem:[#allocation3 + $0x128] sm:$0xff] %vm1869, %v6074
  %6229 = vst.msk [vmem:[#allocation3 + $0x130] sm:$0xff] %vm1869, %v6076
  %6230 = vst.msk [vmem:[#allocation3 + $0x138] sm:$0xff] %vm1869, %v6078
  %6231 = vst.msk [vmem:[#allocation3 + $0x140] sm:$0xff] %vm1869, %v6080
  %6232 = vst.msk [vmem:[#allocation3 + $0x148] sm:$0xff] %vm1869, %v6082
  %6233 = vst.msk [vmem:[#allocation3 + $0x150] sm:$0xff] %vm1869, %v6084
  %6234 = vst.msk [vmem:[#allocation3 + $0x158] sm:$0xff] %vm1869, %v6086
  %6235 = vst.msk [vmem:[#allocation3 + $0x160] sm:$0xff] %vm1869, %v6088
  %6236 = vst.msk [vmem:[#allocation3 + $0x168] sm:$0xff] %vm1869, %v6090
  %6237 = vst.msk [vmem:[#allocation3 + $0x170] sm:$0xff] %vm1869, %v6092
  %6238 = vst.msk [vmem:[#allocation3 + $0x178] sm:$0xff] %vm1869, %v6094
  %6239 = vst.msk [vmem:[#allocation3 + $0x180] sm:$0xff] %vm1869, %v6096
  %6240 = vst.msk [vmem:[#allocation3 + $0x188] sm:$0xff] %vm1869, %v6098
  %6241 = vst.msk [vmem:[#allocation3 + $0x190] sm:$0xff] %vm1869, %v6100
  %6242 = vst.msk [vmem:[#allocation3 + $0x198] sm:$0xff] %vm1869, %v6102
  %6243 = vst.msk [vmem:[#allocation3 + $0x1a0] sm:$0xff] %vm1869, %v6104
  %6244 = vst.msk [vmem:[#allocation3 + $0x1a8] sm:$0xff] %vm1869, %v6106
  %6245 = vst.msk [vmem:[#allocation3 + $0x1b0] sm:$0xff] %vm1869, %v6108
  %6246 = vst.msk [vmem:[#allocation3 + $0x1b8] sm:$0xff] %vm1869, %v6110
  %6247 = vst.msk [vmem:[#allocation3 + $0x1c0] sm:$0xff] %vm1869, %v6112
  %6248 = vst.msk [vmem:[#allocation3 + $0x1c8] sm:$0xff] %vm1869, %v6114
  %6249 = vst.msk [vmem:[#allocation3 + $0x1d0] sm:$0xff] %vm1869, %v6116
  %6250 = vst.msk [vmem:[#allocation3 + $0x1d8] sm:$0xff] %vm1869, %v6118
  %6251 = vst.msk [vmem:[#allocation3 + $0x1e0] sm:$0xff] %vm1869, %v6120
  %6252 = vst.msk [vmem:[#allocation3 + $0x1e8] sm:$0xff] %vm1869, %v6122
  %6253 = vst.msk [vmem:[#allocation3 + $0x1f0] sm:$0xff] %vm1869, %v6124
  %6254 = vst.msk [vmem:[#allocation3 + $0x1f8] sm:$0xff] %vm1869, %v6126
  %v6255 = vld [vmem:[%s201 + $0x2] sm:$0xff]
  %v6256 = vld [vmem:[%s201 + $0xa] sm:$0xff]
  %v6257 = vld [vmem:[%s201 + $0x1a] sm:$0xff]
  %v6258 = vld [vmem:[%s201 + $0x22] sm:$0xff]
  %v6259 = vld [vmem:[%s201 + $0x32] sm:$0xff]
  %v6260 = vld [vmem:[%s201 + $0x3a] sm:$0xff]
  %v6261 = vld [vmem:[%s201 + $0x4a] sm:$0xff]
  %v6262 = vld [vmem:[%s201 + $0x52] sm:$0xff]
  %v6263 = vld [vmem:[%s201 + $0x62] sm:$0xff]
  %v6264 = vld [vmem:[%s201 + $0x6a] sm:$0xff]
  %v6265 = vld [vmem:[%s201 + $0x7a] sm:$0xff]
  %v6266 = vld [vmem:[%s201 + $0x82] sm:$0xff]
  %v6267 = vld [vmem:[%s201 + $0x92] sm:$0xff]
  %v6268 = vld [vmem:[%s201 + $0x9a] sm:$0xff]
  %v6269 = vld [vmem:[%s201 + $0xaa] sm:$0xff]
  %v6270 = vld [vmem:[%s201 + $0xb2] sm:$0xff]
  %v6271 = vld [vmem:[%s201 + $0xc2] sm:$0xff]
  %v6272 = vld [vmem:[%s201 + $0xca] sm:$0xff]
  %v6273 = vld [vmem:[%s201 + $0xda] sm:$0xff]
  %v6274 = vld [vmem:[%s201 + $0xe2] sm:$0xff]
  %v6275 = vld [vmem:[%s201 + $0xf2] sm:$0xff]
  %v6276 = vld [vmem:[%s201 + $0xfa] sm:$0xff]
  %v6277 = vld [vmem:[%s201 + $0x10a] sm:$0xff]
  %v6278 = vld [vmem:[%s201 + $0x112] sm:$0xff]
  %v6279 = vld [vmem:[%s201 + $0x122] sm:$0xff]
  %v6280 = vld [vmem:[%s201 + $0x12a] sm:$0xff]
  %v6281 = vld [vmem:[%s201 + $0x13a] sm:$0xff]
  %v6282 = vld [vmem:[%s201 + $0x142] sm:$0xff]
  %v6283 = vld [vmem:[%s201 + $0x152] sm:$0xff]
  %v6284 = vld [vmem:[%s201 + $0x15a] sm:$0xff]
  %v6285 = vld [vmem:[%s201 + $0x16a] sm:$0xff]
  %v6286 = vld [vmem:[%s201 + $0x172] sm:$0xff]
  %v6287 = vld [vmem:[%s201 + $0x1b2] sm:$0xff]
  %v6288 = vld [vmem:[%s201 + $0x1ba] sm:$0xff]
  %v6289 = vld [vmem:[%s201 + $0x1ca] sm:$0xff]
  %v6290 = vld [vmem:[%s201 + $0x1d2] sm:$0xff]
  %v6291 = vld [vmem:[%s201 + $0x1e2] sm:$0xff]
  %v6292 = vld [vmem:[%s201 + $0x1ea] sm:$0xff]
  %v6293 = vld [vmem:[%s201 + $0x1fa] sm:$0xff]
  %v6294 = vld [vmem:[%s201 + $0x202] sm:$0xff]
  %v6295 = vld [vmem:[%s201 + $0x212] sm:$0xff]
  %v6296 = vld [vmem:[%s201 + $0x21a] sm:$0xff]
  %v6297 = vld [vmem:[%s201 + $0x22a] sm:$0xff]
  %v6298 = vld [vmem:[%s201 + $0x232] sm:$0xff]
  %v6299 = vld [vmem:[%s201 + $0x242] sm:$0xff]
  %v6300 = vld [vmem:[%s201 + $0x24a] sm:$0xff]
  %v6301 = vld [vmem:[%s201 + $0x25a] sm:$0xff]
  %v6302 = vld [vmem:[%s201 + $0x262] sm:$0xff]
  %v6303 = vld [vmem:[%s201 + $0x272] sm:$0xff]
  %v6304 = vld [vmem:[%s201 + $0x27a] sm:$0xff]
  %v6305 = vld [vmem:[%s201 + $0x28a] sm:$0xff]
  %v6306 = vld [vmem:[%s201 + $0x292] sm:$0xff]
  %v6307 = vld [vmem:[%s201 + $0x2a2] sm:$0xff]
  %v6308 = vld [vmem:[%s201 + $0x2aa] sm:$0xff]
  %v6309 = vld [vmem:[%s201 + $0x2ba] sm:$0xff]
  %v6310 = vld [vmem:[%s201 + $0x2c2] sm:$0xff]
  %v6311 = vld [vmem:[%s201 + $0x2d2] sm:$0xff]
  %v6312 = vld [vmem:[%s201 + $0x2da] sm:$0xff]
  %v6313 = vld [vmem:[%s201 + $0x2ea] sm:$0xff]
  %v6314 = vld [vmem:[%s201 + $0x2f2] sm:$0xff]
  %v6315 = vld [vmem:[%s201 + $0x302] sm:$0xff]
  %v6316 = vld [vmem:[%s201 + $0x30a] sm:$0xff]
  %v6317 = vld [vmem:[%s201 + $0x31a] sm:$0xff]
  %v6318 = vld [vmem:[%s201 + $0x322] sm:$0xff]
  %6383 = vrot.lane.b32.xlu0 %v6255, 20
  %v6384 = vpop.permute.xlu0 %6383
  %6385 = vrot.lane.b32.xlu0 %v6256, 20
  %v6386 = vpop.permute.xlu0 %6385
  %6387 = vrot.lane.b32.xlu0 %v6257, 20
  %v6388 = vpop.permute.xlu0 %6387
  %6389 = vrot.lane.b32.xlu0 %v6258, 20
  %v6390 = vpop.permute.xlu0 %6389
  %6391 = vrot.lane.b32.xlu0 %v6259, 20
  %v6392 = vpop.permute.xlu0 %6391
  %6393 = vrot.lane.b32.xlu0 %v6260, 20
  %v6394 = vpop.permute.xlu0 %6393
  %6395 = vrot.lane.b32.xlu0 %v6261, 20
  %v6396 = vpop.permute.xlu0 %6395
  %6397 = vrot.lane.b32.xlu0 %v6262, 20
  %v6398 = vpop.permute.xlu0 %6397
  %6399 = vrot.lane.b32.xlu0 %v6263, 20
  %v6400 = vpop.permute.xlu0 %6399
  %6401 = vrot.lane.b32.xlu0 %v6264, 20
  %v6402 = vpop.permute.xlu0 %6401
  %6403 = vrot.lane.b32.xlu0 %v6265, 20
  %v6404 = vpop.permute.xlu0 %6403
  %6405 = vrot.lane.b32.xlu0 %v6266, 20
  %v6406 = vpop.permute.xlu0 %6405
  %6407 = vrot.lane.b32.xlu0 %v6267, 20
  %v6408 = vpop.permute.xlu0 %6407
  %6409 = vrot.lane.b32.xlu0 %v6268, 20
  %v6410 = vpop.permute.xlu0 %6409
  %6411 = vrot.lane.b32.xlu0 %v6269, 20
  %v6412 = vpop.permute.xlu0 %6411
  %6413 = vrot.lane.b32.xlu0 %v6270, 20
  %v6414 = vpop.permute.xlu0 %6413
  %6415 = vrot.lane.b32.xlu0 %v6271, 20
  %v6416 = vpop.permute.xlu0 %6415
  %6417 = vrot.lane.b32.xlu0 %v6272, 20
  %v6418 = vpop.permute.xlu0 %6417
  %6419 = vrot.lane.b32.xlu0 %v6273, 20
  %v6420 = vpop.permute.xlu0 %6419
  %6421 = vrot.lane.b32.xlu0 %v6274, 20
  %v6422 = vpop.permute.xlu0 %6421
  %6423 = vrot.lane.b32.xlu0 %v6275, 20
  %v6424 = vpop.permute.xlu0 %6423
  %6425 = vrot.lane.b32.xlu0 %v6276, 20
  %v6426 = vpop.permute.xlu0 %6425
  %6427 = vrot.lane.b32.xlu0 %v6277, 20
  %v6428 = vpop.permute.xlu0 %6427
  %6429 = vrot.lane.b32.xlu0 %v6278, 20
  %v6430 = vpop.permute.xlu0 %6429
  %6431 = vrot.lane.b32.xlu0 %v6279, 20
  %v6432 = vpop.permute.xlu0 %6431
  %6433 = vrot.lane.b32.xlu0 %v6280, 20
  %v6434 = vpop.permute.xlu0 %6433
  %6435 = vrot.lane.b32.xlu0 %v6281, 20
  %v6436 = vpop.permute.xlu0 %6435
  %6437 = vrot.lane.b32.xlu0 %v6282, 20
  %v6438 = vpop.permute.xlu0 %6437
  %6439 = vrot.lane.b32.xlu0 %v6283, 20
  %v6440 = vpop.permute.xlu0 %6439
  %6441 = vrot.lane.b32.xlu0 %v6284, 20
  %v6442 = vpop.permute.xlu0 %6441
  %6443 = vrot.lane.b32.xlu0 %v6285, 20
  %v6444 = vpop.permute.xlu0 %6443
  %6445 = vrot.lane.b32.xlu0 %v6286, 20
  %v6446 = vpop.permute.xlu0 %6445
  %6447 = vrot.lane.b32.xlu0 %v6287, 20
  %v6448 = vpop.permute.xlu0 %6447
  %6449 = vrot.lane.b32.xlu0 %v6288, 20
  %v6450 = vpop.permute.xlu0 %6449
  %6451 = vrot.lane.b32.xlu0 %v6289, 20
  %v6452 = vpop.permute.xlu0 %6451
  %6453 = vrot.lane.b32.xlu0 %v6290, 20
  %v6454 = vpop.permute.xlu0 %6453
  %6455 = vrot.lane.b32.xlu0 %v6291, 20
  %v6456 = vpop.permute.xlu0 %6455
  %6457 = vrot.lane.b32.xlu0 %v6292, 20
  %v6458 = vpop.permute.xlu0 %6457
  %6459 = vrot.lane.b32.xlu0 %v6293, 20
  %v6460 = vpop.permute.xlu0 %6459
  %6461 = vrot.lane.b32.xlu0 %v6294, 20
  %v6462 = vpop.permute.xlu0 %6461
  %6463 = vrot.lane.b32.xlu0 %v6295, 20
  %v6464 = vpop.permute.xlu0 %6463
  %6465 = vrot.lane.b32.xlu0 %v6296, 20
  %v6466 = vpop.permute.xlu0 %6465
  %6467 = vrot.lane.b32.xlu0 %v6297, 20
  %v6468 = vpop.permute.xlu0 %6467
  %6469 = vrot.lane.b32.xlu0 %v6298, 20
  %v6470 = vpop.permute.xlu0 %6469
  %6471 = vrot.lane.b32.xlu0 %v6299, 20
  %v6472 = vpop.permute.xlu0 %6471
  %6473 = vrot.lane.b32.xlu0 %v6300, 20
  %v6474 = vpop.permute.xlu0 %6473
  %6475 = vrot.lane.b32.xlu0 %v6301, 20
  %v6476 = vpop.permute.xlu0 %6475
  %6477 = vrot.lane.b32.xlu0 %v6302, 20
  %v6478 = vpop.permute.xlu0 %6477
  %6479 = vrot.lane.b32.xlu0 %v6303, 20
  %v6480 = vpop.permute.xlu0 %6479
  %6481 = vrot.lane.b32.xlu0 %v6304, 20
  %v6482 = vpop.permute.xlu0 %6481
  %6483 = vrot.lane.b32.xlu0 %v6305, 20
  %v6484 = vpop.permute.xlu0 %6483
  %6485 = vrot.lane.b32.xlu0 %v6306, 20
  %v6486 = vpop.permute.xlu0 %6485
  %6487 = vrot.lane.b32.xlu0 %v6307, 20
  %v6488 = vpop.permute.xlu0 %6487
  %6489 = vrot.lane.b32.xlu0 %v6308, 20
  %v6490 = vpop.permute.xlu0 %6489
  %6491 = vrot.lane.b32.xlu0 %v6309, 20
  %v6492 = vpop.permute.xlu0 %6491
  %6493 = vrot.lane.b32.xlu0 %v6310, 20
  %v6494 = vpop.permute.xlu0 %6493
  %6495 = vrot.lane.b32.xlu0 %v6311, 20
  %v6496 = vpop.permute.xlu0 %6495
  %6497 = vrot.lane.b32.xlu0 %v6312, 20
  %v6498 = vpop.permute.xlu0 %6497
  %6499 = vrot.lane.b32.xlu0 %v6313, 20
  %v6500 = vpop.permute.xlu0 %6499
  %6501 = vrot.lane.b32.xlu0 %v6314, 20
  %v6502 = vpop.permute.xlu0 %6501
  %6503 = vrot.lane.b32.xlu0 %v6315, 20
  %v6504 = vpop.permute.xlu0 %6503
  %6505 = vrot.lane.b32.xlu0 %v6316, 20
  %v6506 = vpop.permute.xlu0 %6505
  %6507 = vrot.lane.b32.xlu0 %v6317, 20
  %v6508 = vpop.permute.xlu0 %6507
  %6509 = vrot.lane.b32.xlu0 %v6318, 20
  %v6510 = vpop.permute.xlu0 %6509
  %6575 = vst.msk [vmem:[#allocation3] sm:$0xff] %vm2254, %v6384
  %6576 = vst.msk [vmem:[#allocation3 + $0x8] sm:$0xff] %vm2254, %v6386
  %6577 = vst.msk [vmem:[#allocation3 + $0x10] sm:$0xff] %vm2254, %v6388
  %6578 = vst.msk [vmem:[#allocation3 + $0x18] sm:$0xff] %vm2254, %v6390
  %6579 = vst.msk [vmem:[#allocation3 + $0x20] sm:$0xff] %vm2254, %v6392
  %6580 = vst.msk [vmem:[#allocation3 + $0x28] sm:$0xff] %vm2254, %v6394
  %6581 = vst.msk [vmem:[#allocation3 + $0x30] sm:$0xff] %vm2254, %v6396
  %6582 = vst.msk [vmem:[#allocation3 + $0x38] sm:$0xff] %vm2254, %v6398
  %6583 = vst.msk [vmem:[#allocation3 + $0x40] sm:$0xff] %vm2254, %v6400
  %6584 = vst.msk [vmem:[#allocation3 + $0x48] sm:$0xff] %vm2254, %v6402
  %6585 = vst.msk [vmem:[#allocation3 + $0x50] sm:$0xff] %vm2254, %v6404
  %6586 = vst.msk [vmem:[#allocation3 + $0x58] sm:$0xff] %vm2254, %v6406
  %6587 = vst.msk [vmem:[#allocation3 + $0x60] sm:$0xff] %vm2254, %v6408
  %6588 = vst.msk [vmem:[#allocation3 + $0x68] sm:$0xff] %vm2254, %v6410
  %6589 = vst.msk [vmem:[#allocation3 + $0x70] sm:$0xff] %vm2254, %v6412
  %6590 = vst.msk [vmem:[#allocation3 + $0x78] sm:$0xff] %vm2254, %v6414
  %6591 = vst.msk [vmem:[#allocation3 + $0x80] sm:$0xff] %vm2254, %v6416
  %6592 = vst.msk [vmem:[#allocation3 + $0x88] sm:$0xff] %vm2254, %v6418
  %6593 = vst.msk [vmem:[#allocation3 + $0x90] sm:$0xff] %vm2254, %v6420
  %6594 = vst.msk [vmem:[#allocation3 + $0x98] sm:$0xff] %vm2254, %v6422
  %6595 = vst.msk [vmem:[#allocation3 + $0xa0] sm:$0xff] %vm2254, %v6424
  %6596 = vst.msk [vmem:[#allocation3 + $0xa8] sm:$0xff] %vm2254, %v6426
  %6597 = vst.msk [vmem:[#allocation3 + $0xb0] sm:$0xff] %vm2254, %v6428
  %6598 = vst.msk [vmem:[#allocation3 + $0xb8] sm:$0xff] %vm2254, %v6430
  %6599 = vst.msk [vmem:[#allocation3 + $0xc0] sm:$0xff] %vm2254, %v6432
  %6600 = vst.msk [vmem:[#allocation3 + $0xc8] sm:$0xff] %vm2254, %v6434
  %6601 = vst.msk [vmem:[#allocation3 + $0xd0] sm:$0xff] %vm2254, %v6436
  %6602 = vst.msk [vmem:[#allocation3 + $0xd8] sm:$0xff] %vm2254, %v6438
  %6603 = vst.msk [vmem:[#allocation3 + $0xe0] sm:$0xff] %vm2254, %v6440
  %6604 = vst.msk [vmem:[#allocation3 + $0xe8] sm:$0xff] %vm2254, %v6442
  %6605 = vst.msk [vmem:[#allocation3 + $0xf0] sm:$0xff] %vm2254, %v6444
  %6606 = vst.msk [vmem:[#allocation3 + $0xf8] sm:$0xff] %vm2254, %v6446
  %6607 = vst.msk [vmem:[#allocation3 + $0x100] sm:$0xff] %vm2254, %v6448
  %6608 = vst.msk [vmem:[#allocation3 + $0x108] sm:$0xff] %vm2254, %v6450
  %6609 = vst.msk [vmem:[#allocation3 + $0x110] sm:$0xff] %vm2254, %v6452
  %6610 = vst.msk [vmem:[#allocation3 + $0x118] sm:$0xff] %vm2254, %v6454
  %6611 = vst.msk [vmem:[#allocation3 + $0x120] sm:$0xff] %vm2254, %v6456
  %6612 = vst.msk [vmem:[#allocation3 + $0x128] sm:$0xff] %vm2254, %v6458
  %6613 = vst.msk [vmem:[#allocation3 + $0x130] sm:$0xff] %vm2254, %v6460
  %6614 = vst.msk [vmem:[#allocation3 + $0x138] sm:$0xff] %vm2254, %v6462
  %6615 = vst.msk [vmem:[#allocation3 + $0x140] sm:$0xff] %vm2254, %v6464
  %6616 = vst.msk [vmem:[#allocation3 + $0x148] sm:$0xff] %vm2254, %v6466
  %6617 = vst.msk [vmem:[#allocation3 + $0x150] sm:$0xff] %vm2254, %v6468
  %6618 = vst.msk [vmem:[#allocation3 + $0x158] sm:$0xff] %vm2254, %v6470
  %6619 = vst.msk [vmem:[#allocation3 + $0x160] sm:$0xff] %vm2254, %v6472
  %6620 = vst.msk [vmem:[#allocation3 + $0x168] sm:$0xff] %vm2254, %v6474
  %6621 = vst.msk [vmem:[#allocation3 + $0x170] sm:$0xff] %vm2254, %v6476
  %6622 = vst.msk [vmem:[#allocation3 + $0x178] sm:$0xff] %vm2254, %v6478
  %6623 = vst.msk [vmem:[#allocation3 + $0x180] sm:$0xff] %vm2254, %v6480
  %6624 = vst.msk [vmem:[#allocation3 + $0x188] sm:$0xff] %vm2254, %v6482
  %6625 = vst.msk [vmem:[#allocation3 + $0x190] sm:$0xff] %vm2254, %v6484
  %6626 = vst.msk [vmem:[#allocation3 + $0x198] sm:$0xff] %vm2254, %v6486
  %6627 = vst.msk [vmem:[#allocation3 + $0x1a0] sm:$0xff] %vm2254, %v6488
  %6628 = vst.msk [vmem:[#allocation3 + $0x1a8] sm:$0xff] %vm2254, %v6490
  %6629 = vst.msk [vmem:[#allocation3 + $0x1b0] sm:$0xff] %vm2254, %v6492
  %6630 = vst.msk [vmem:[#allocation3 + $0x1b8] sm:$0xff] %vm2254, %v6494
  %6631 = vst.msk [vmem:[#allocation3 + $0x1c0] sm:$0xff] %vm2254, %v6496
  %6632 = vst.msk [vmem:[#allocation3 + $0x1c8] sm:$0xff] %vm2254, %v6498
  %6633 = vst.msk [vmem:[#allocation3 + $0x1d0] sm:$0xff] %vm2254, %v6500
  %6634 = vst.msk [vmem:[#allocation3 + $0x1d8] sm:$0xff] %vm2254, %v6502
  %6635 = vst.msk [vmem:[#allocation3 + $0x1e0] sm:$0xff] %vm2254, %v6504
  %6636 = vst.msk [vmem:[#allocation3 + $0x1e8] sm:$0xff] %vm2254, %v6506
  %6637 = vst.msk [vmem:[#allocation3 + $0x1f0] sm:$0xff] %vm2254, %v6508
  %6638 = vst.msk [vmem:[#allocation3 + $0x1f8] sm:$0xff] %vm2254, %v6510
  %v6639 = vld [vmem:[%s2319] sm:$0xff]
  %v6640 = vld [vmem:[%s2319 + $0x8] sm:$0xff]
  %v6641 = vld [vmem:[%s2319 + $0x18] sm:$0xff]
  %v6642 = vld [vmem:[%s2319 + $0x20] sm:$0xff]
  %v6643 = vld [vmem:[%s2319 + $0x30] sm:$0xff]
  %v6644 = vld [vmem:[%s2319 + $0x38] sm:$0xff]
  %v6645 = vld [vmem:[%s2319 + $0x48] sm:$0xff]
  %v6646 = vld [vmem:[%s2319 + $0x50] sm:$0xff]
  %v6647 = vld [vmem:[%s2319 + $0x60] sm:$0xff]
  %v6648 = vld [vmem:[%s2319 + $0x68] sm:$0xff]
  %v6649 = vld [vmem:[%s2319 + $0x78] sm:$0xff]
  %v6650 = vld [vmem:[%s2319 + $0x80] sm:$0xff]
  %v6651 = vld [vmem:[%s2319 + $0x90] sm:$0xff]
  %v6652 = vld [vmem:[%s2319 + $0x98] sm:$0xff]
  %v6653 = vld [vmem:[%s2319 + $0xa8] sm:$0xff]
  %v6654 = vld [vmem:[%s2319 + $0xb0] sm:$0xff]
  %v6655 = vld [vmem:[%s2319 + $0xc0] sm:$0xff]
  %v6656 = vld [vmem:[%s2319 + $0xc8] sm:$0xff]
  %v6657 = vld [vmem:[%s2319 + $0xd8] sm:$0xff]
  %v6658 = vld [vmem:[%s2319 + $0xe0] sm:$0xff]
  %v6659 = vld [vmem:[%s2319 + $0xf0] sm:$0xff]
  %v6660 = vld [vmem:[%s2319 + $0xf8] sm:$0xff]
  %v6661 = vld [vmem:[%s2319 + $0x108] sm:$0xff]
  %v6662 = vld [vmem:[%s2319 + $0x110] sm:$0xff]
  %v6663 = vld [vmem:[%s2319 + $0x120] sm:$0xff]
  %v6664 = vld [vmem:[%s2319 + $0x128] sm:$0xff]
  %v6665 = vld [vmem:[%s2319 + $0x138] sm:$0xff]
  %v6666 = vld [vmem:[%s2319 + $0x140] sm:$0xff]
  %v6667 = vld [vmem:[%s2319 + $0x150] sm:$0xff]
  %v6668 = vld [vmem:[%s2319 + $0x158] sm:$0xff]
  %v6669 = vld [vmem:[%s2319 + $0x168] sm:$0xff]
  %v6670 = vld [vmem:[%s2319 + $0x170] sm:$0xff]
  %v6671 = vld [vmem:[%s2319 + $0x1b0] sm:$0xff]
  %v6672 = vld [vmem:[%s2319 + $0x1b8] sm:$0xff]
  %v6673 = vld [vmem:[%s2319 + $0x1c8] sm:$0xff]
  %v6674 = vld [vmem:[%s2319 + $0x1d0] sm:$0xff]
  %v6675 = vld [vmem:[%s2319 + $0x1e0] sm:$0xff]
  %v6676 = vld [vmem:[%s2319 + $0x1e8] sm:$0xff]
  %v6677 = vld [vmem:[%s2319 + $0x1f8] sm:$0xff]
  %v6678 = vld [vmem:[%s2319 + $0x200] sm:$0xff]
  %v6679 = vld [vmem:[%s2319 + $0x210] sm:$0xff]
  %v6680 = vld [vmem:[%s2319 + $0x218] sm:$0xff]
  %v6681 = vld [vmem:[%s2319 + $0x228] sm:$0xff]
  %v6682 = vld [vmem:[%s2319 + $0x230] sm:$0xff]
  %v6683 = vld [vmem:[%s2319 + $0x240] sm:$0xff]
  %v6684 = vld [vmem:[%s2319 + $0x248] sm:$0xff]
  %v6685 = vld [vmem:[%s2319 + $0x258] sm:$0xff]
  %v6686 = vld [vmem:[%s2319 + $0x260] sm:$0xff]
  %v6687 = vld [vmem:[%s2319 + $0x270] sm:$0xff]
  %v6688 = vld [vmem:[%s2319 + $0x278] sm:$0xff]
  %v6689 = vld [vmem:[%s2319 + $0x288] sm:$0xff]
  %v6690 = vld [vmem:[%s2319 + $0x290] sm:$0xff]
  %v6691 = vld [vmem:[%s2319 + $0x2a0] sm:$0xff]
  %v6692 = vld [vmem:[%s2319 + $0x2a8] sm:$0xff]
  %v6693 = vld [vmem:[%s2319 + $0x2b8] sm:$0xff]
  %v6694 = vld [vmem:[%s2319 + $0x2c0] sm:$0xff]
  %v6695 = vld [vmem:[%s2319 + $0x2d0] sm:$0xff]
  %v6696 = vld [vmem:[%s2319 + $0x2d8] sm:$0xff]
  %v6697 = vld [vmem:[%s2319 + $0x2e8] sm:$0xff]
  %v6698 = vld [vmem:[%s2319 + $0x2f0] sm:$0xff]
  %v6699 = vld [vmem:[%s2319 + $0x300] sm:$0xff]
  %v6700 = vld [vmem:[%s2319 + $0x308] sm:$0xff]
  %v6701 = vld [vmem:[%s2319 + $0x318] sm:$0xff]
  %v6702 = vld [vmem:[%s2319 + $0x320] sm:$0xff]
  %6767 = vrot.lane.b32.xlu0 %v6639, 24
  %v6768 = vpop.permute.xlu0 %6767
  %6769 = vrot.lane.b32.xlu0 %v6640, 24
  %v6770 = vpop.permute.xlu0 %6769
  %6771 = vrot.lane.b32.xlu0 %v6641, 24
  %v6772 = vpop.permute.xlu0 %6771
  %6773 = vrot.lane.b32.xlu0 %v6642, 24
  %v6774 = vpop.permute.xlu0 %6773
  %6775 = vrot.lane.b32.xlu0 %v6643, 24
  %v6776 = vpop.permute.xlu0 %6775
  %6777 = vrot.lane.b32.xlu0 %v6644, 24
  %v6778 = vpop.permute.xlu0 %6777
  %6779 = vrot.lane.b32.xlu0 %v6645, 24
  %v6780 = vpop.permute.xlu0 %6779
  %6781 = vrot.lane.b32.xlu0 %v6646, 24
  %v6782 = vpop.permute.xlu0 %6781
  %6783 = vrot.lane.b32.xlu0 %v6647, 24
  %v6784 = vpop.permute.xlu0 %6783
  %6785 = vrot.lane.b32.xlu0 %v6648, 24
  %v6786 = vpop.permute.xlu0 %6785
  %6787 = vrot.lane.b32.xlu0 %v6649, 24
  %v6788 = vpop.permute.xlu0 %6787
  %6789 = vrot.lane.b32.xlu0 %v6650, 24
  %v6790 = vpop.permute.xlu0 %6789
  %6791 = vrot.lane.b32.xlu0 %v6651, 24
  %v6792 = vpop.permute.xlu0 %6791
  %6793 = vrot.lane.b32.xlu0 %v6652, 24
  %v6794 = vpop.permute.xlu0 %6793
  %6795 = vrot.lane.b32.xlu0 %v6653, 24
  %v6796 = vpop.permute.xlu0 %6795
  %6797 = vrot.lane.b32.xlu0 %v6654, 24
  %v6798 = vpop.permute.xlu0 %6797
  %6799 = vrot.lane.b32.xlu0 %v6655, 24
  %v6800 = vpop.permute.xlu0 %6799
  %6801 = vrot.lane.b32.xlu0 %v6656, 24
  %v6802 = vpop.permute.xlu0 %6801
  %6803 = vrot.lane.b32.xlu0 %v6657, 24
  %v6804 = vpop.permute.xlu0 %6803
  %6805 = vrot.lane.b32.xlu0 %v6658, 24
  %v6806 = vpop.permute.xlu0 %6805
  %6807 = vrot.lane.b32.xlu0 %v6659, 24
  %v6808 = vpop.permute.xlu0 %6807
  %6809 = vrot.lane.b32.xlu0 %v6660, 24
  %v6810 = vpop.permute.xlu0 %6809
  %6811 = vrot.lane.b32.xlu0 %v6661, 24
  %v6812 = vpop.permute.xlu0 %6811
  %6813 = vrot.lane.b32.xlu0 %v6662, 24
  %v6814 = vpop.permute.xlu0 %6813
  %6815 = vrot.lane.b32.xlu0 %v6663, 24
  %v6816 = vpop.permute.xlu0 %6815
  %6817 = vrot.lane.b32.xlu0 %v6664, 24
  %v6818 = vpop.permute.xlu0 %6817
  %6819 = vrot.lane.b32.xlu0 %v6665, 24
  %v6820 = vpop.permute.xlu0 %6819
  %6821 = vrot.lane.b32.xlu0 %v6666, 24
  %v6822 = vpop.permute.xlu0 %6821
  %6823 = vrot.lane.b32.xlu0 %v6667, 24
  %v6824 = vpop.permute.xlu0 %6823
  %6825 = vrot.lane.b32.xlu0 %v6668, 24
  %v6826 = vpop.permute.xlu0 %6825
  %6827 = vrot.lane.b32.xlu0 %v6669, 24
  %v6828 = vpop.permute.xlu0 %6827
  %6829 = vrot.lane.b32.xlu0 %v6670, 24
  %v6830 = vpop.permute.xlu0 %6829
  %6831 = vrot.lane.b32.xlu0 %v6671, 24
  %v6832 = vpop.permute.xlu0 %6831
  %6833 = vrot.lane.b32.xlu0 %v6672, 24
  %v6834 = vpop.permute.xlu0 %6833
  %6835 = vrot.lane.b32.xlu0 %v6673, 24
  %v6836 = vpop.permute.xlu0 %6835
  %6837 = vrot.lane.b32.xlu0 %v6674, 24
  %v6838 = vpop.permute.xlu0 %6837
  %6839 = vrot.lane.b32.xlu0 %v6675, 24
  %v6840 = vpop.permute.xlu0 %6839
  %6841 = vrot.lane.b32.xlu0 %v6676, 24
  %v6842 = vpop.permute.xlu0 %6841
  %6843 = vrot.lane.b32.xlu0 %v6677, 24
  %v6844 = vpop.permute.xlu0 %6843
  %6845 = vrot.lane.b32.xlu0 %v6678, 24
  %v6846 = vpop.permute.xlu0 %6845
  %6847 = vrot.lane.b32.xlu0 %v6679, 24
  %v6848 = vpop.permute.xlu0 %6847
  %6849 = vrot.lane.b32.xlu0 %v6680, 24
  %v6850 = vpop.permute.xlu0 %6849
  %6851 = vrot.lane.b32.xlu0 %v6681, 24
  %v6852 = vpop.permute.xlu0 %6851
  %6853 = vrot.lane.b32.xlu0 %v6682, 24
  %v6854 = vpop.permute.xlu0 %6853
  %6855 = vrot.lane.b32.xlu0 %v6683, 24
  %v6856 = vpop.permute.xlu0 %6855
  %6857 = vrot.lane.b32.xlu0 %v6684, 24
  %v6858 = vpop.permute.xlu0 %6857
  %6859 = vrot.lane.b32.xlu0 %v6685, 24
  %v6860 = vpop.permute.xlu0 %6859
  %6861 = vrot.lane.b32.xlu0 %v6686, 24
  %v6862 = vpop.permute.xlu0 %6861
  %6863 = vrot.lane.b32.xlu0 %v6687, 24
  %v6864 = vpop.permute.xlu0 %6863
  %6865 = vrot.lane.b32.xlu0 %v6688, 24
  %v6866 = vpop.permute.xlu0 %6865
  %6867 = vrot.lane.b32.xlu0 %v6689, 24
  %v6868 = vpop.permute.xlu0 %6867
  %6869 = vrot.lane.b32.xlu0 %v6690, 24
  %v6870 = vpop.permute.xlu0 %6869
  %6871 = vrot.lane.b32.xlu0 %v6691, 24
  %v6872 = vpop.permute.xlu0 %6871
  %6873 = vrot.lane.b32.xlu0 %v6692, 24
  %v6874 = vpop.permute.xlu0 %6873
  %6875 = vrot.lane.b32.xlu0 %v6693, 24
  %v6876 = vpop.permute.xlu0 %6875
  %6877 = vrot.lane.b32.xlu0 %v6694, 24
  %v6878 = vpop.permute.xlu0 %6877
  %6879 = vrot.lane.b32.xlu0 %v6695, 24
  %v6880 = vpop.permute.xlu0 %6879
  %6881 = vrot.lane.b32.xlu0 %v6696, 24
  %v6882 = vpop.permute.xlu0 %6881
  %6883 = vrot.lane.b32.xlu0 %v6697, 24
  %v6884 = vpop.permute.xlu0 %6883
  %6885 = vrot.lane.b32.xlu0 %v6698, 24
  %v6886 = vpop.permute.xlu0 %6885
  %6887 = vrot.lane.b32.xlu0 %v6699, 24
  %v6888 = vpop.permute.xlu0 %6887
  %6889 = vrot.lane.b32.xlu0 %v6700, 24
  %v6890 = vpop.permute.xlu0 %6889
  %6891 = vrot.lane.b32.xlu0 %v6701, 24
  %v6892 = vpop.permute.xlu0 %6891
  %6893 = vrot.lane.b32.xlu0 %v6702, 24
  %v6894 = vpop.permute.xlu0 %6893
  %6959 = vst.msk [vmem:[#allocation3] sm:$0xff] %vm2640, %v6768
  %6960 = vst.msk [vmem:[#allocation3 + $0x8] sm:$0xff] %vm2640, %v6770
  %6961 = vst.msk [vmem:[#allocation3 + $0x10] sm:$0xff] %vm2640, %v6772
  %6962 = vst.msk [vmem:[#allocation3 + $0x18] sm:$0xff] %vm2640, %v6774
  %6963 = vst.msk [vmem:[#allocation3 + $0x20] sm:$0xff] %vm2640, %v6776
  %6964 = vst.msk [vmem:[#allocation3 + $0x28] sm:$0xff] %vm2640, %v6778
  %6965 = vst.msk [vmem:[#allocation3 + $0x30] sm:$0xff] %vm2640, %v6780
  %6966 = vst.msk [vmem:[#allocation3 + $0x38] sm:$0xff] %vm2640, %v6782
  %6967 = vst.msk [vmem:[#allocation3 + $0x40] sm:$0xff] %vm2640, %v6784
  %6968 = vst.msk [vmem:[#allocation3 + $0x48] sm:$0xff] %vm2640, %v6786
  %6969 = vst.msk [vmem:[#allocation3 + $0x50] sm:$0xff] %vm2640, %v6788
  %6970 = vst.msk [vmem:[#allocation3 + $0x58] sm:$0xff] %vm2640, %v6790
  %6971 = vst.msk [vmem:[#allocation3 + $0x60] sm:$0xff] %vm2640, %v6792
  %6972 = vst.msk [vmem:[#allocation3 + $0x68] sm:$0xff] %vm2640, %v6794
  %6973 = vst.msk [vmem:[#allocation3 + $0x70] sm:$0xff] %vm2640, %v6796
  %6974 = vst.msk [vmem:[#allocation3 + $0x78] sm:$0xff] %vm2640, %v6798
  %6975 = vst.msk [vmem:[#allocation3 + $0x80] sm:$0xff] %vm2640, %v6800
  %6976 = vst.msk [vmem:[#allocation3 + $0x88] sm:$0xff] %vm2640, %v6802
  %6977 = vst.msk [vmem:[#allocation3 + $0x90] sm:$0xff] %vm2640, %v6804
  %6978 = vst.msk [vmem:[#allocation3 + $0x98] sm:$0xff] %vm2640, %v6806
  %6979 = vst.msk [vmem:[#allocation3 + $0xa0] sm:$0xff] %vm2640, %v6808
  %6980 = vst.msk [vmem:[#allocation3 + $0xa8] sm:$0xff] %vm2640, %v6810
  %6981 = vst.msk [vmem:[#allocation3 + $0xb0] sm:$0xff] %vm2640, %v6812
  %6982 = vst.msk [vmem:[#allocation3 + $0xb8] sm:$0xff] %vm2640, %v6814
  %6983 = vst.msk [vmem:[#allocation3 + $0xc0] sm:$0xff] %vm2640, %v6816
  %6984 = vst.msk [vmem:[#allocation3 + $0xc8] sm:$0xff] %vm2640, %v6818
  %6985 = vst.msk [vmem:[#allocation3 + $0xd0] sm:$0xff] %vm2640, %v6820
  %6986 = vst.msk [vmem:[#allocation3 + $0xd8] sm:$0xff] %vm2640, %v6822
  %6987 = vst.msk [vmem:[#allocation3 + $0xe0] sm:$0xff] %vm2640, %v6824
  %6988 = vst.msk [vmem:[#allocation3 + $0xe8] sm:$0xff] %vm2640, %v6826
  %6989 = vst.msk [vmem:[#allocation3 + $0xf0] sm:$0xff] %vm2640, %v6828
  %6990 = vst.msk [vmem:[#allocation3 + $0xf8] sm:$0xff] %vm2640, %v6830
  %6991 = vst.msk [vmem:[#allocation3 + $0x100] sm:$0xff] %vm2640, %v6832
  %6992 = vst.msk [vmem:[#allocation3 + $0x108] sm:$0xff] %vm2640, %v6834
  %6993 = vst.msk [vmem:[#allocation3 + $0x110] sm:$0xff] %vm2640, %v6836
  %6994 = vst.msk [vmem:[#allocation3 + $0x118] sm:$0xff] %vm2640, %v6838
  %6995 = vst.msk [vmem:[#allocation3 + $0x120] sm:$0xff] %vm2640, %v6840
  %6996 = vst.msk [vmem:[#allocation3 + $0x128] sm:$0xff] %vm2640, %v6842
  %6997 = vst.msk [vmem:[#allocation3 + $0x130] sm:$0xff] %vm2640, %v6844
  %6998 = vst.msk [vmem:[#allocation3 + $0x138] sm:$0xff] %vm2640, %v6846
  %6999 = vst.msk [vmem:[#allocation3 + $0x140] sm:$0xff] %vm2640, %v6848
  %7000 = vst.msk [vmem:[#allocation3 + $0x148] sm:$0xff] %vm2640, %v6850
  %7001 = vst.msk [vmem:[#allocation3 + $0x150] sm:$0xff] %vm2640, %v6852
  %7002 = vst.msk [vmem:[#allocation3 + $0x158] sm:$0xff] %vm2640, %v6854
  %7003 = vst.msk [vmem:[#allocation3 + $0x160] sm:$0xff] %vm2640, %v6856
  %7004 = vst.msk [vmem:[#allocation3 + $0x168] sm:$0xff] %vm2640, %v6858
  %7005 = vst.msk [vmem:[#allocation3 + $0x170] sm:$0xff] %vm2640, %v6860
  %7006 = vst.msk [vmem:[#allocation3 + $0x178] sm:$0xff] %vm2640, %v6862
  %7007 = vst.msk [vmem:[#allocation3 + $0x180] sm:$0xff] %vm2640, %v6864
  %7008 = vst.msk [vmem:[#allocation3 + $0x188] sm:$0xff] %vm2640, %v6866
  %7009 = vst.msk [vmem:[#allocation3 + $0x190] sm:$0xff] %vm2640, %v6868
  %7010 = vst.msk [vmem:[#allocation3 + $0x198] sm:$0xff] %vm2640, %v6870
  %7011 = vst.msk [vmem:[#allocation3 + $0x1a0] sm:$0xff] %vm2640, %v6872
  %7012 = vst.msk [vmem:[#allocation3 + $0x1a8] sm:$0xff] %vm2640, %v6874
  %7013 = vst.msk [vmem:[#allocation3 + $0x1b0] sm:$0xff] %vm2640, %v6876
  %7014 = vst.msk [vmem:[#allocation3 + $0x1b8] sm:$0xff] %vm2640, %v6878
  %7015 = vst.msk [vmem:[#allocation3 + $0x1c0] sm:$0xff] %vm2640, %v6880
  %7016 = vst.msk [vmem:[#allocation3 + $0x1c8] sm:$0xff] %vm2640, %v6882
  %7017 = vst.msk [vmem:[#allocation3 + $0x1d0] sm:$0xff] %vm2640, %v6884
  %7018 = vst.msk [vmem:[#allocation3 + $0x1d8] sm:$0xff] %vm2640, %v6886
  %7019 = vst.msk [vmem:[#allocation3 + $0x1e0] sm:$0xff] %vm2640, %v6888
  %7020 = vst.msk [vmem:[#allocation3 + $0x1e8] sm:$0xff] %vm2640, %v6890
  %7021 = vst.msk [vmem:[#allocation3 + $0x1f0] sm:$0xff] %vm2640, %v6892
  %7022 = vst.msk [vmem:[#allocation3 + $0x1f8] sm:$0xff] %vm2640, %v6894
  %v7023 = vld [vmem:[%s2319 + $0x1] sm:$0xff]
  %v7024 = vld [vmem:[%s2319 + $0x9] sm:$0xff]
  %v7025 = vld [vmem:[%s2319 + $0x19] sm:$0xff]
  %v7026 = vld [vmem:[%s2319 + $0x21] sm:$0xff]
  %v7027 = vld [vmem:[%s2319 + $0x31] sm:$0xff]
  %v7028 = vld [vmem:[%s2319 + $0x39] sm:$0xff]
  %v7029 = vld [vmem:[%s2319 + $0x49] sm:$0xff]
  %v7030 = vld [vmem:[%s2319 + $0x51] sm:$0xff]
  %v7031 = vld [vmem:[%s2319 + $0x61] sm:$0xff]
  %v7032 = vld [vmem:[%s2319 + $0x69] sm:$0xff]
  %v7033 = vld [vmem:[%s2319 + $0x79] sm:$0xff]
  %v7034 = vld [vmem:[%s2319 + $0x81] sm:$0xff]
  %v7035 = vld [vmem:[%s2319 + $0x91] sm:$0xff]
  %v7036 = vld [vmem:[%s2319 + $0x99] sm:$0xff]
  %v7037 = vld [vmem:[%s2319 + $0xa9] sm:$0xff]
  %v7038 = vld [vmem:[%s2319 + $0xb1] sm:$0xff]
  %v7039 = vld [vmem:[%s2319 + $0xc1] sm:$0xff]
  %v7040 = vld [vmem:[%s2319 + $0xc9] sm:$0xff]
  %v7041 = vld [vmem:[%s2319 + $0xd9] sm:$0xff]
  %v7042 = vld [vmem:[%s2319 + $0xe1] sm:$0xff]
  %v7043 = vld [vmem:[%s2319 + $0xf1] sm:$0xff]
  %v7044 = vld [vmem:[%s2319 + $0xf9] sm:$0xff]
  %v7045 = vld [vmem:[%s2319 + $0x109] sm:$0xff]
  %v7046 = vld [vmem:[%s2319 + $0x111] sm:$0xff]
  %v7047 = vld [vmem:[%s2319 + $0x121] sm:$0xff]
  %v7048 = vld [vmem:[%s2319 + $0x129] sm:$0xff]
  %v7049 = vld [vmem:[%s2319 + $0x139] sm:$0xff]
  %v7050 = vld [vmem:[%s2319 + $0x141] sm:$0xff]
  %v7051 = vld [vmem:[%s2319 + $0x151] sm:$0xff]
  %v7052 = vld [vmem:[%s2319 + $0x159] sm:$0xff]
  %v7053 = vld [vmem:[%s2319 + $0x169] sm:$0xff]
  %v7054 = vld [vmem:[%s2319 + $0x171] sm:$0xff]
  %v7055 = vld [vmem:[%s2319 + $0x1b1] sm:$0xff]
  %v7056 = vld [vmem:[%s2319 + $0x1b9] sm:$0xff]
  %v7057 = vld [vmem:[%s2319 + $0x1c9] sm:$0xff]
  %v7058 = vld [vmem:[%s2319 + $0x1d1] sm:$0xff]
  %v7059 = vld [vmem:[%s2319 + $0x1e1] sm:$0xff]
  %v7060 = vld [vmem:[%s2319 + $0x1e9] sm:$0xff]
  %v7061 = vld [vmem:[%s2319 + $0x1f9] sm:$0xff]
  %v7062 = vld [vmem:[%s2319 + $0x201] sm:$0xff]
  %v7063 = vld [vmem:[%s2319 + $0x211] sm:$0xff]
  %v7064 = vld [vmem:[%s2319 + $0x219] sm:$0xff]
  %v7065 = vld [vmem:[%s2319 + $0x229] sm:$0xff]
  %v7066 = vld [vmem:[%s2319 + $0x231] sm:$0xff]
  %v7067 = vld [vmem:[%s2319 + $0x241] sm:$0xff]
  %v7068 = vld [vmem:[%s2319 + $0x249] sm:$0xff]
  %v7069 = vld [vmem:[%s2319 + $0x259] sm:$0xff]
  %v7070 = vld [vmem:[%s2319 + $0x261] sm:$0xff]
  %v7071 = vld [vmem:[%s2319 + $0x271] sm:$0xff]
  %v7072 = vld [vmem:[%s2319 + $0x279] sm:$0xff]
  %v7073 = vld [vmem:[%s2319 + $0x289] sm:$0xff]
  %v7074 = vld [vmem:[%s2319 + $0x291] sm:$0xff]
  %v7075 = vld [vmem:[%s2319 + $0x2a1] sm:$0xff]
  %v7076 = vld [vmem:[%s2319 + $0x2a9] sm:$0xff]
  %v7077 = vld [vmem:[%s2319 + $0x2b9] sm:$0xff]
  %v7078 = vld [vmem:[%s2319 + $0x2c1] sm:$0xff]
  %v7079 = vld [vmem:[%s2319 + $0x2d1] sm:$0xff]
  %v7080 = vld [vmem:[%s2319 + $0x2d9] sm:$0xff]
  %v7081 = vld [vmem:[%s2319 + $0x2e9] sm:$0xff]
  %v7082 = vld [vmem:[%s2319 + $0x2f1] sm:$0xff]
  %v7083 = vld [vmem:[%s2319 + $0x301] sm:$0xff]
  %v7084 = vld [vmem:[%s2319 + $0x309] sm:$0xff]
  %v7085 = vld [vmem:[%s2319 + $0x319] sm:$0xff]
  %v7086 = vld [vmem:[%s2319 + $0x321] sm:$0xff]
  %7151 = vrot.lane.b32.xlu0 %v7023, 28
  %v7152 = vpop.permute.xlu0 %7151
  %7153 = vrot.lane.b32.xlu0 %v7024, 28
  %v7154 = vpop.permute.xlu0 %7153
  %7155 = vrot.lane.b32.xlu0 %v7025, 28
  %v7156 = vpop.permute.xlu0 %7155
  %7157 = vrot.lane.b32.xlu0 %v7026, 28
  %v7158 = vpop.permute.xlu0 %7157
  %7159 = vrot.lane.b32.xlu0 %v7027, 28
  %v7160 = vpop.permute.xlu0 %7159
  %7161 = vrot.lane.b32.xlu0 %v7028, 28
  %v7162 = vpop.permute.xlu0 %7161
  %7163 = vrot.lane.b32.xlu0 %v7029, 28
  %v7164 = vpop.permute.xlu0 %7163
  %7165 = vrot.lane.b32.xlu0 %v7030, 28
  %v7166 = vpop.permute.xlu0 %7165
  %7167 = vrot.lane.b32.xlu0 %v7031, 28
  %v7168 = vpop.permute.xlu0 %7167
  %7169 = vrot.lane.b32.xlu0 %v7032, 28
  %v7170 = vpop.permute.xlu0 %7169
  %7171 = vrot.lane.b32.xlu0 %v7033, 28
  %v7172 = vpop.permute.xlu0 %7171
  %7173 = vrot.lane.b32.xlu0 %v7034, 28
  %v7174 = vpop.permute.xlu0 %7173
  %7175 = vrot.lane.b32.xlu0 %v7035, 28
  %v7176 = vpop.permute.xlu0 %7175
  %7177 = vrot.lane.b32.xlu0 %v7036, 28
  %v7178 = vpop.permute.xlu0 %7177
  %7179 = vrot.lane.b32.xlu0 %v7037, 28
  %v7180 = vpop.permute.xlu0 %7179
  %7181 = vrot.lane.b32.xlu0 %v7038, 28
  %v7182 = vpop.permute.xlu0 %7181
  %7183 = vrot.lane.b32.xlu0 %v7039, 28
  %v7184 = vpop.permute.xlu0 %7183
  %7185 = vrot.lane.b32.xlu0 %v7040, 28
  %v7186 = vpop.permute.xlu0 %7185
  %7187 = vrot.lane.b32.xlu0 %v7041, 28
  %v7188 = vpop.permute.xlu0 %7187
  %7189 = vrot.lane.b32.xlu0 %v7042, 28
  %v7190 = vpop.permute.xlu0 %7189
  %7191 = vrot.lane.b32.xlu0 %v7043, 28
  %v7192 = vpop.permute.xlu0 %7191
  %7193 = vrot.lane.b32.xlu0 %v7044, 28
  %v7194 = vpop.permute.xlu0 %7193
  %7195 = vrot.lane.b32.xlu0 %v7045, 28
  %v7196 = vpop.permute.xlu0 %7195
  %7197 = vrot.lane.b32.xlu0 %v7046, 28
  %v7198 = vpop.permute.xlu0 %7197
  %7199 = vrot.lane.b32.xlu0 %v7047, 28
  %v7200 = vpop.permute.xlu0 %7199
  %7201 = vrot.lane.b32.xlu0 %v7048, 28
  %v7202 = vpop.permute.xlu0 %7201
  %7203 = vrot.lane.b32.xlu0 %v7049, 28
  %v7204 = vpop.permute.xlu0 %7203
  %7205 = vrot.lane.b32.xlu0 %v7050, 28
  %v7206 = vpop.permute.xlu0 %7205
  %7207 = vrot.lane.b32.xlu0 %v7051, 28
  %v7208 = vpop.permute.xlu0 %7207
  %7209 = vrot.lane.b32.xlu0 %v7052, 28
  %v7210 = vpop.permute.xlu0 %7209
  %7211 = vrot.lane.b32.xlu0 %v7053, 28
  %v7212 = vpop.permute.xlu0 %7211
  %7213 = vrot.lane.b32.xlu0 %v7054, 28
  %v7214 = vpop.permute.xlu0 %7213
  %7215 = vrot.lane.b32.xlu0 %v7055, 28
  %v7216 = vpop.permute.xlu0 %7215
  %7217 = vrot.lane.b32.xlu0 %v7056, 28
  %v7218 = vpop.permute.xlu0 %7217
  %7219 = vrot.lane.b32.xlu0 %v7057, 28
  %v7220 = vpop.permute.xlu0 %7219
  %7221 = vrot.lane.b32.xlu0 %v7058, 28
  %v7222 = vpop.permute.xlu0 %7221
  %7223 = vrot.lane.b32.xlu0 %v7059, 28
  %v7224 = vpop.permute.xlu0 %7223
  %7225 = vrot.lane.b32.xlu0 %v7060, 28
  %v7226 = vpop.permute.xlu0 %7225
  %7227 = vrot.lane.b32.xlu0 %v7061, 28
  %v7228 = vpop.permute.xlu0 %7227
  %7229 = vrot.lane.b32.xlu0 %v7062, 28
  %v7230 = vpop.permute.xlu0 %7229
  %7231 = vrot.lane.b32.xlu0 %v7063, 28
  %v7232 = vpop.permute.xlu0 %7231
  %7233 = vrot.lane.b32.xlu0 %v7064, 28
  %v7234 = vpop.permute.xlu0 %7233
  %7235 = vrot.lane.b32.xlu0 %v7065, 28
  %v7236 = vpop.permute.xlu0 %7235
  %7237 = vrot.lane.b32.xlu0 %v7066, 28
  %v7238 = vpop.permute.xlu0 %7237
  %7239 = vrot.lane.b32.xlu0 %v7067, 28
  %v7240 = vpop.permute.xlu0 %7239
  %7241 = vrot.lane.b32.xlu0 %v7068, 28
  %v7242 = vpop.permute.xlu0 %7241
  %7243 = vrot.lane.b32.xlu0 %v7069, 28
  %v7244 = vpop.permute.xlu0 %7243
  %7245 = vrot.lane.b32.xlu0 %v7070, 28
  %v7246 = vpop.permute.xlu0 %7245
  %7247 = vrot.lane.b32.xlu0 %v7071, 28
  %v7248 = vpop.permute.xlu0 %7247
  %7249 = vrot.lane.b32.xlu0 %v7072, 28
  %v7250 = vpop.permute.xlu0 %7249
  %7251 = vrot.lane.b32.xlu0 %v7073, 28
  %v7252 = vpop.permute.xlu0 %7251
  %7253 = vrot.lane.b32.xlu0 %v7074, 28
  %v7254 = vpop.permute.xlu0 %7253
  %7255 = vrot.lane.b32.xlu0 %v7075, 28
  %v7256 = vpop.permute.xlu0 %7255
  %7257 = vrot.lane.b32.xlu0 %v7076, 28
  %v7258 = vpop.permute.xlu0 %7257
  %7259 = vrot.lane.b32.xlu0 %v7077, 28
  %v7260 = vpop.permute.xlu0 %7259
  %7261 = vrot.lane.b32.xlu0 %v7078, 28
  %v7262 = vpop.permute.xlu0 %7261
  %7263 = vrot.lane.b32.xlu0 %v7079, 28
  %v7264 = vpop.permute.xlu0 %7263
  %7265 = vrot.lane.b32.xlu0 %v7080, 28
  %v7266 = vpop.permute.xlu0 %7265
  %7267 = vrot.lane.b32.xlu0 %v7081, 28
  %v7268 = vpop.permute.xlu0 %7267
  %7269 = vrot.lane.b32.xlu0 %v7082, 28
  %v7270 = vpop.permute.xlu0 %7269
  %7271 = vrot.lane.b32.xlu0 %v7083, 28
  %v7272 = vpop.permute.xlu0 %7271
  %7273 = vrot.lane.b32.xlu0 %v7084, 28
  %v7274 = vpop.permute.xlu0 %7273
  %7275 = vrot.lane.b32.xlu0 %v7085, 28
  %v7276 = vpop.permute.xlu0 %7275
  %7277 = vrot.lane.b32.xlu0 %v7086, 28
  %v7278 = vpop.permute.xlu0 %7277
  %7343 = vst.msk [vmem:[#allocation3] sm:$0xff] %vm3025, %v7152
  %7344 = vst.msk [vmem:[#allocation3 + $0x8] sm:$0xff] %vm3025, %v7154
  %7345 = vst.msk [vmem:[#allocation3 + $0x10] sm:$0xff] %vm3025, %v7156
  %7346 = vst.msk [vmem:[#allocation3 + $0x18] sm:$0xff] %vm3025, %v7158
  %7347 = vst.msk [vmem:[#allocation3 + $0x20] sm:$0xff] %vm3025, %v7160
  %7348 = vst.msk [vmem:[#allocation3 + $0x28] sm:$0xff] %vm3025, %v7162
  %7349 = vst.msk [vmem:[#allocation3 + $0x30] sm:$0xff] %vm3025, %v7164
  %7350 = vst.msk [vmem:[#allocation3 + $0x38] sm:$0xff] %vm3025, %v7166
  %7351 = vst.msk [vmem:[#allocation3 + $0x40] sm:$0xff] %vm3025, %v7168
  %7352 = vst.msk [vmem:[#allocation3 + $0x48] sm:$0xff] %vm3025, %v7170
  %7353 = vst.msk [vmem:[#allocation3 + $0x50] sm:$0xff] %vm3025, %v7172
  %7354 = vst.msk [vmem:[#allocation3 + $0x58] sm:$0xff] %vm3025, %v7174
  %7355 = vst.msk [vmem:[#allocation3 + $0x60] sm:$0xff] %vm3025, %v7176
  %7356 = vst.msk [vmem:[#allocation3 + $0x68] sm:$0xff] %vm3025, %v7178
  %7357 = vst.msk [vmem:[#allocation3 + $0x70] sm:$0xff] %vm3025, %v7180
  %7358 = vst.msk [vmem:[#allocation3 + $0x78] sm:$0xff] %vm3025, %v7182
  %7359 = vst.msk [vmem:[#allocation3 + $0x80] sm:$0xff] %vm3025, %v7184
  %7360 = vst.msk [vmem:[#allocation3 + $0x88] sm:$0xff] %vm3025, %v7186
  %7361 = vst.msk [vmem:[#allocation3 + $0x90] sm:$0xff] %vm3025, %v7188
  %7362 = vst.msk [vmem:[#allocation3 + $0x98] sm:$0xff] %vm3025, %v7190
  %7363 = vst.msk [vmem:[#allocation3 + $0xa0] sm:$0xff] %vm3025, %v7192
  %7364 = vst.msk [vmem:[#allocation3 + $0xa8] sm:$0xff] %vm3025, %v7194
  %7365 = vst.msk [vmem:[#allocation3 + $0xb0] sm:$0xff] %vm3025, %v7196
  %7366 = vst.msk [vmem:[#allocation3 + $0xb8] sm:$0xff] %vm3025, %v7198
  %7367 = vst.msk [vmem:[#allocation3 + $0xc0] sm:$0xff] %vm3025, %v7200
  %7368 = vst.msk [vmem:[#allocation3 + $0xc8] sm:$0xff] %vm3025, %v7202
  %7369 = vst.msk [vmem:[#allocation3 + $0xd0] sm:$0xff] %vm3025, %v7204
  %7370 = vst.msk [vmem:[#allocation3 + $0xd8] sm:$0xff] %vm3025, %v7206
  %7371 = vst.msk [vmem:[#allocation3 + $0xe0] sm:$0xff] %vm3025, %v7208
  %7372 = vst.msk [vmem:[#allocation3 + $0xe8] sm:$0xff] %vm3025, %v7210
  %7373 = vst.msk [vmem:[#allocation3 + $0xf0] sm:$0xff] %vm3025, %v7212
  %7374 = vst.msk [vmem:[#allocation3 + $0xf8] sm:$0xff] %vm3025, %v7214
  %7375 = vst.msk [vmem:[#allocation3 + $0x100] sm:$0xff] %vm3025, %v7216
  %7376 = vst.msk [vmem:[#allocation3 + $0x108] sm:$0xff] %vm3025, %v7218
  %7377 = vst.msk [vmem:[#allocation3 + $0x110] sm:$0xff] %vm3025, %v7220
  %7378 = vst.msk [vmem:[#allocation3 + $0x118] sm:$0xff] %vm3025, %v7222
  %7379 = vst.msk [vmem:[#allocation3 + $0x120] sm:$0xff] %vm3025, %v7224
  %7380 = vst.msk [vmem:[#allocation3 + $0x128] sm:$0xff] %vm3025, %v7226
  %7381 = vst.msk [vmem:[#allocation3 + $0x130] sm:$0xff] %vm3025, %v7228
  %7382 = vst.msk [vmem:[#allocation3 + $0x138] sm:$0xff] %vm3025, %v7230
  %7383 = vst.msk [vmem:[#allocation3 + $0x140] sm:$0xff] %vm3025, %v7232
  %7384 = vst.msk [vmem:[#allocation3 + $0x148] sm:$0xff] %vm3025, %v7234
  %7385 = vst.msk [vmem:[#allocation3 + $0x150] sm:$0xff] %vm3025, %v7236
  %7386 = vst.msk [vmem:[#allocation3 + $0x158] sm:$0xff] %vm3025, %v7238
  %7387 = vst.msk [vmem:[#allocation3 + $0x160] sm:$0xff] %vm3025, %v7240
  %7388 = vst.msk [vmem:[#allocation3 + $0x168] sm:$0xff] %vm3025, %v7242
  %7389 = vst.msk [vmem:[#allocation3 + $0x170] sm:$0xff] %vm3025, %v7244
  %7390 = vst.msk [vmem:[#allocation3 + $0x178] sm:$0xff] %vm3025, %v7246
  %7391 = vst.msk [vmem:[#allocation3 + $0x180] sm:$0xff] %vm3025, %v7248
  %7392 = vst.msk [vmem:[#allocation3 + $0x188] sm:$0xff] %vm3025, %v7250
  %7393 = vst.msk [vmem:[#allocation3 + $0x190] sm:$0xff] %vm3025, %v7252
  %7394 = vst.msk [vmem:[#allocation3 + $0x198] sm:$0xff] %vm3025, %v7254
  %7395 = vst.msk [vmem:[#allocation3 + $0x1a0] sm:$0xff] %vm3025, %v7256
  %7396 = vst.msk [vmem:[#allocation3 + $0x1a8] sm:$0xff] %vm3025, %v7258
  %7397 = vst.msk [vmem:[#allocation3 + $0x1b0] sm:$0xff] %vm3025, %v7260
  %7398 = vst.msk [vmem:[#allocation3 + $0x1b8] sm:$0xff] %vm3025, %v7262
  %7399 = vst.msk [vmem:[#allocation3 + $0x1c0] sm:$0xff] %vm3025, %v7264
  %7400 = vst.msk [vmem:[#allocation3 + $0x1c8] sm:$0xff] %vm3025, %v7266
  %7401 = vst.msk [vmem:[#allocation3 + $0x1d0] sm:$0xff] %vm3025, %v7268
  %7402 = vst.msk [vmem:[#allocation3 + $0x1d8] sm:$0xff] %vm3025, %v7270
  %7403 = vst.msk [vmem:[#allocation3 + $0x1e0] sm:$0xff] %vm3025, %v7272
  %7404 = vst.msk [vmem:[#allocation3 + $0x1e8] sm:$0xff] %vm3025, %v7274
  %7405 = vst.msk [vmem:[#allocation3 + $0x1f0] sm:$0xff] %vm3025, %v7276
  %7406 = vst.msk [vmem:[#allocation3 + $0x1f8] sm:$0xff] %vm3025, %v7278
  %v7407 = vld [vmem:[%s2319 + $0x2] sm:$0xff]
  %v7408 = vld [vmem:[%s2319 + $0xa] sm:$0xff]
  %v7409 = vld [vmem:[%s2319 + $0x1a] sm:$0xff]
  %v7410 = vld [vmem:[%s2319 + $0x22] sm:$0xff]
  %v7411 = vld [vmem:[%s2319 + $0x32] sm:$0xff]
  %v7412 = vld [vmem:[%s2319 + $0x3a] sm:$0xff]
  %v7413 = vld [vmem:[%s2319 + $0x4a] sm:$0xff]
  %v7414 = vld [vmem:[%s2319 + $0x52] sm:$0xff]
  %v7415 = vld [vmem:[%s2319 + $0x62] sm:$0xff]
  %v7416 = vld [vmem:[%s2319 + $0x6a] sm:$0xff]
  %v7417 = vld [vmem:[%s2319 + $0x7a] sm:$0xff]
  %v7418 = vld [vmem:[%s2319 + $0x82] sm:$0xff]
  %v7419 = vld [vmem:[%s2319 + $0x92] sm:$0xff]
  %v7420 = vld [vmem:[%s2319 + $0x9a] sm:$0xff]
  %v7421 = vld [vmem:[%s2319 + $0xaa] sm:$0xff]
  %v7422 = vld [vmem:[%s2319 + $0xb2] sm:$0xff]
  %v7423 = vld [vmem:[%s2319 + $0xc2] sm:$0xff]
  %v7424 = vld [vmem:[%s2319 + $0xca] sm:$0xff]
  %v7425 = vld [vmem:[%s2319 + $0xda] sm:$0xff]
  %v7426 = vld [vmem:[%s2319 + $0xe2] sm:$0xff]
  %v7427 = vld [vmem:[%s2319 + $0xf2] sm:$0xff]
  %v7428 = vld [vmem:[%s2319 + $0xfa] sm:$0xff]
  %v7429 = vld [vmem:[%s2319 + $0x10a] sm:$0xff]
  %v7430 = vld [vmem:[%s2319 + $0x112] sm:$0xff]
  %v7431 = vld [vmem:[%s2319 + $0x122] sm:$0xff]
  %v7432 = vld [vmem:[%s2319 + $0x12a] sm:$0xff]
  %v7433 = vld [vmem:[%s2319 + $0x13a] sm:$0xff]
  %v7434 = vld [vmem:[%s2319 + $0x142] sm:$0xff]
  %v7435 = vld [vmem:[%s2319 + $0x152] sm:$0xff]
  %v7436 = vld [vmem:[%s2319 + $0x15a] sm:$0xff]
  %v7437 = vld [vmem:[%s2319 + $0x16a] sm:$0xff]
  %v7438 = vld [vmem:[%s2319 + $0x172] sm:$0xff]
  %v7439 = vld [vmem:[%s2319 + $0x1b2] sm:$0xff]
  %v7440 = vld [vmem:[%s2319 + $0x1ba] sm:$0xff]
  %v7441 = vld [vmem:[%s2319 + $0x1ca] sm:$0xff]
  %v7442 = vld [vmem:[%s2319 + $0x1d2] sm:$0xff]
  %v7443 = vld [vmem:[%s2319 + $0x1e2] sm:$0xff]
  %v7444 = vld [vmem:[%s2319 + $0x1ea] sm:$0xff]
  %v7445 = vld [vmem:[%s2319 + $0x1fa] sm:$0xff]
  %v7446 = vld [vmem:[%s2319 + $0x202] sm:$0xff]
  %v7447 = vld [vmem:[%s2319 + $0x212] sm:$0xff]
  %v7448 = vld [vmem:[%s2319 + $0x21a] sm:$0xff]
  %v7449 = vld [vmem:[%s2319 + $0x22a] sm:$0xff]
  %v7450 = vld [vmem:[%s2319 + $0x232] sm:$0xff]
  %v7451 = vld [vmem:[%s2319 + $0x242] sm:$0xff]
  %v7452 = vld [vmem:[%s2319 + $0x24a] sm:$0xff]
  %v7453 = vld [vmem:[%s2319 + $0x25a] sm:$0xff]
  %v7454 = vld [vmem:[%s2319 + $0x262] sm:$0xff]
  %v7455 = vld [vmem:[%s2319 + $0x272] sm:$0xff]
  %v7456 = vld [vmem:[%s2319 + $0x27a] sm:$0xff]
  %v7457 = vld [vmem:[%s2319 + $0x28a] sm:$0xff]
  %v7458 = vld [vmem:[%s2319 + $0x292] sm:$0xff]
  %v7459 = vld [vmem:[%s2319 + $0x2a2] sm:$0xff]
  %v7460 = vld [vmem:[%s2319 + $0x2aa] sm:$0xff]
  %v7461 = vld [vmem:[%s2319 + $0x2ba] sm:$0xff]
  %v7462 = vld [vmem:[%s2319 + $0x2c2] sm:$0xff]
  %v7463 = vld [vmem:[%s2319 + $0x2d2] sm:$0xff]
  %v7464 = vld [vmem:[%s2319 + $0x2da] sm:$0xff]
  %v7465 = vld [vmem:[%s2319 + $0x2ea] sm:$0xff]
  %v7466 = vld [vmem:[%s2319 + $0x2f2] sm:$0xff]
  %v7467 = vld [vmem:[%s2319 + $0x302] sm:$0xff]
  %v7468 = vld [vmem:[%s2319 + $0x30a] sm:$0xff]
  %v7469 = vld [vmem:[%s2319 + $0x31a] sm:$0xff]
  %v7470 = vld [vmem:[%s2319 + $0x322] sm:$0xff]
  %7535 = vrot.lane.b32.xlu0 %v7407, 32
  %v7536 = vpop.permute.xlu0 %7535
  %7537 = vrot.lane.b32.xlu0 %v7408, 32
  %v7538 = vpop.permute.xlu0 %7537
  %7539 = vrot.lane.b32.xlu0 %v7409, 32
  %v7540 = vpop.permute.xlu0 %7539
  %7541 = vrot.lane.b32.xlu0 %v7410, 32
  %v7542 = vpop.permute.xlu0 %7541
  %7543 = vrot.lane.b32.xlu0 %v7411, 32
  %v7544 = vpop.permute.xlu0 %7543
  %7545 = vrot.lane.b32.xlu0 %v7412, 32
  %v7546 = vpop.permute.xlu0 %7545
  %7547 = vrot.lane.b32.xlu0 %v7413, 32
  %v7548 = vpop.permute.xlu0 %7547
  %7549 = vrot.lane.b32.xlu0 %v7414, 32
  %v7550 = vpop.permute.xlu0 %7549
  %7551 = vrot.lane.b32.xlu0 %v7415, 32
  %v7552 = vpop.permute.xlu0 %7551
  %7553 = vrot.lane.b32.xlu0 %v7416, 32
  %v7554 = vpop.permute.xlu0 %7553
  %7555 = vrot.lane.b32.xlu0 %v7417, 32
  %v7556 = vpop.permute.xlu0 %7555
  %7557 = vrot.lane.b32.xlu0 %v7418, 32
  %v7558 = vpop.permute.xlu0 %7557
  %7559 = vrot.lane.b32.xlu0 %v7419, 32
  %v7560 = vpop.permute.xlu0 %7559
  %7561 = vrot.lane.b32.xlu0 %v7420, 32
  %v7562 = vpop.permute.xlu0 %7561
  %7563 = vrot.lane.b32.xlu0 %v7421, 32
  %v7564 = vpop.permute.xlu0 %7563
  %7565 = vrot.lane.b32.xlu0 %v7422, 32
  %v7566 = vpop.permute.xlu0 %7565
  %7567 = vrot.lane.b32.xlu0 %v7423, 32
  %v7568 = vpop.permute.xlu0 %7567
  %7569 = vrot.lane.b32.xlu0 %v7424, 32
  %v7570 = vpop.permute.xlu0 %7569
  %7571 = vrot.lane.b32.xlu0 %v7425, 32
  %v7572 = vpop.permute.xlu0 %7571
  %7573 = vrot.lane.b32.xlu0 %v7426, 32
  %v7574 = vpop.permute.xlu0 %7573
  %7575 = vrot.lane.b32.xlu0 %v7427, 32
  %v7576 = vpop.permute.xlu0 %7575
  %7577 = vrot.lane.b32.xlu0 %v7428, 32
  %v7578 = vpop.permute.xlu0 %7577
  %7579 = vrot.lane.b32.xlu0 %v7429, 32
  %v7580 = vpop.permute.xlu0 %7579
  %7581 = vrot.lane.b32.xlu0 %v7430, 32
  %v7582 = vpop.permute.xlu0 %7581
  %7583 = vrot.lane.b32.xlu0 %v7431, 32
  %v7584 = vpop.permute.xlu0 %7583
  %7585 = vrot.lane.b32.xlu0 %v7432, 32
  %v7586 = vpop.permute.xlu0 %7585
  %7587 = vrot.lane.b32.xlu0 %v7433, 32
  %v7588 = vpop.permute.xlu0 %7587
  %7589 = vrot.lane.b32.xlu0 %v7434, 32
  %v7590 = vpop.permute.xlu0 %7589
  %7591 = vrot.lane.b32.xlu0 %v7435, 32
  %v7592 = vpop.permute.xlu0 %7591
  %7593 = vrot.lane.b32.xlu0 %v7436, 32
  %v7594 = vpop.permute.xlu0 %7593
  %7595 = vrot.lane.b32.xlu0 %v7437, 32
  %v7596 = vpop.permute.xlu0 %7595
  %7597 = vrot.lane.b32.xlu0 %v7438, 32
  %v7598 = vpop.permute.xlu0 %7597
  %7599 = vrot.lane.b32.xlu0 %v7439, 32
  %v7600 = vpop.permute.xlu0 %7599
  %7601 = vrot.lane.b32.xlu0 %v7440, 32
  %v7602 = vpop.permute.xlu0 %7601
  %7603 = vrot.lane.b32.xlu0 %v7441, 32
  %v7604 = vpop.permute.xlu0 %7603
  %7605 = vrot.lane.b32.xlu0 %v7442, 32
  %v7606 = vpop.permute.xlu0 %7605
  %7607 = vrot.lane.b32.xlu0 %v7443, 32
  %v7608 = vpop.permute.xlu0 %7607
  %7609 = vrot.lane.b32.xlu0 %v7444, 32
  %v7610 = vpop.permute.xlu0 %7609
  %7611 = vrot.lane.b32.xlu0 %v7445, 32
  %v7612 = vpop.permute.xlu0 %7611
  %7613 = vrot.lane.b32.xlu0 %v7446, 32
  %v7614 = vpop.permute.xlu0 %7613
  %7615 = vrot.lane.b32.xlu0 %v7447, 32
  %v7616 = vpop.permute.xlu0 %7615
  %7617 = vrot.lane.b32.xlu0 %v7448, 32
  %v7618 = vpop.permute.xlu0 %7617
  %7619 = vrot.lane.b32.xlu0 %v7449, 32
  %v7620 = vpop.permute.xlu0 %7619
  %7621 = vrot.lane.b32.xlu0 %v7450, 32
  %v7622 = vpop.permute.xlu0 %7621
  %7623 = vrot.lane.b32.xlu0 %v7451, 32
  %v7624 = vpop.permute.xlu0 %7623
  %7625 = vrot.lane.b32.xlu0 %v7452, 32
  %v7626 = vpop.permute.xlu0 %7625
  %7627 = vrot.lane.b32.xlu0 %v7453, 32
  %v7628 = vpop.permute.xlu0 %7627
  %7629 = vrot.lane.b32.xlu0 %v7454, 32
  %v7630 = vpop.permute.xlu0 %7629
  %7631 = vrot.lane.b32.xlu0 %v7455, 32
  %v7632 = vpop.permute.xlu0 %7631
  %7633 = vrot.lane.b32.xlu0 %v7456, 32
  %v7634 = vpop.permute.xlu0 %7633
  %7635 = vrot.lane.b32.xlu0 %v7457, 32
  %v7636 = vpop.permute.xlu0 %7635
  %7637 = vrot.lane.b32.xlu0 %v7458, 32
  %v7638 = vpop.permute.xlu0 %7637
  %7639 = vrot.lane.b32.xlu0 %v7459, 32
  %v7640 = vpop.permute.xlu0 %7639
  %7641 = vrot.lane.b32.xlu0 %v7460, 32
  %v7642 = vpop.permute.xlu0 %7641
  %7643 = vrot.lane.b32.xlu0 %v7461, 32
  %v7644 = vpop.permute.xlu0 %7643
  %7645 = vrot.lane.b32.xlu0 %v7462, 32
  %v7646 = vpop.permute.xlu0 %7645
  %7647 = vrot.lane.b32.xlu0 %v7463, 32
  %v7648 = vpop.permute.xlu0 %7647
  %7649 = vrot.lane.b32.xlu0 %v7464, 32
  %v7650 = vpop.permute.xlu0 %7649
  %7651 = vrot.lane.b32.xlu0 %v7465, 32
  %v7652 = vpop.permute.xlu0 %7651
  %7653 = vrot.lane.b32.xlu0 %v7466, 32
  %v7654 = vpop.permute.xlu0 %7653
  %7655 = vrot.lane.b32.xlu0 %v7467, 32
  %v7656 = vpop.permute.xlu0 %7655
  %7657 = vrot.lane.b32.xlu0 %v7468, 32
  %v7658 = vpop.permute.xlu0 %7657
  %7659 = vrot.lane.b32.xlu0 %v7469, 32
  %v7660 = vpop.permute.xlu0 %7659
  %7661 = vrot.lane.b32.xlu0 %v7470, 32
  %v7662 = vpop.permute.xlu0 %7661
  %7727 = vst.msk [vmem:[#allocation3] sm:$0xff] %vm3410, %v7536
  %7728 = vst.msk [vmem:[#allocation3 + $0x8] sm:$0xff] %vm3410, %v7538
  %7729 = vst.msk [vmem:[#allocation3 + $0x10] sm:$0xff] %vm3410, %v7540
  %7730 = vst.msk [vmem:[#allocation3 + $0x18] sm:$0xff] %vm3410, %v7542
  %7731 = vst.msk [vmem:[#allocation3 + $0x20] sm:$0xff] %vm3410, %v7544
  %7732 = vst.msk [vmem:[#allocation3 + $0x28] sm:$0xff] %vm3410, %v7546
  %7733 = vst.msk [vmem:[#allocation3 + $0x30] sm:$0xff] %vm3410, %v7548
  %7734 = vst.msk [vmem:[#allocation3 + $0x38] sm:$0xff] %vm3410, %v7550
  %7735 = vst.msk [vmem:[#allocation3 + $0x40] sm:$0xff] %vm3410, %v7552
  %7736 = vst.msk [vmem:[#allocation3 + $0x48] sm:$0xff] %vm3410, %v7554
  %7737 = vst.msk [vmem:[#allocation3 + $0x50] sm:$0xff] %vm3410, %v7556
  %7738 = vst.msk [vmem:[#allocation3 + $0x58] sm:$0xff] %vm3410, %v7558
  %7739 = vst.msk [vmem:[#allocation3 + $0x60] sm:$0xff] %vm3410, %v7560
  %7740 = vst.msk [vmem:[#allocation3 + $0x68] sm:$0xff] %vm3410, %v7562
  %7741 = vst.msk [vmem:[#allocation3 + $0x70] sm:$0xff] %vm3410, %v7564
  %7742 = vst.msk [vmem:[#allocation3 + $0x78] sm:$0xff] %vm3410, %v7566
  %7743 = vst.msk [vmem:[#allocation3 + $0x80] sm:$0xff] %vm3410, %v7568
  %7744 = vst.msk [vmem:[#allocation3 + $0x88] sm:$0xff] %vm3410, %v7570
  %7745 = vst.msk [vmem:[#allocation3 + $0x90] sm:$0xff] %vm3410, %v7572
  %7746 = vst.msk [vmem:[#allocation3 + $0x98] sm:$0xff] %vm3410, %v7574
  %7747 = vst.msk [vmem:[#allocation3 + $0xa0] sm:$0xff] %vm3410, %v7576
  %7748 = vst.msk [vmem:[#allocation3 + $0xa8] sm:$0xff] %vm3410, %v7578
  %7749 = vst.msk [vmem:[#allocation3 + $0xb0] sm:$0xff] %vm3410, %v7580
  %7750 = vst.msk [vmem:[#allocation3 + $0xb8] sm:$0xff] %vm3410, %v7582
  %7751 = vst.msk [vmem:[#allocation3 + $0xc0] sm:$0xff] %vm3410, %v7584
  %7752 = vst.msk [vmem:[#allocation3 + $0xc8] sm:$0xff] %vm3410, %v7586
  %7753 = vst.msk [vmem:[#allocation3 + $0xd0] sm:$0xff] %vm3410, %v7588
  %7754 = vst.msk [vmem:[#allocation3 + $0xd8] sm:$0xff] %vm3410, %v7590
  %7755 = vst.msk [vmem:[#allocation3 + $0xe0] sm:$0xff] %vm3410, %v7592
  %7756 = vst.msk [vmem:[#allocation3 + $0xe8] sm:$0xff] %vm3410, %v7594
  %7757 = vst.msk [vmem:[#allocation3 + $0xf0] sm:$0xff] %vm3410, %v7596
  %7758 = vst.msk [vmem:[#allocation3 + $0xf8] sm:$0xff] %vm3410, %v7598
  %7759 = vst.msk [vmem:[#allocation3 + $0x100] sm:$0xff] %vm3410, %v7600
  %7760 = vst.msk [vmem:[#allocation3 + $0x108] sm:$0xff] %vm3410, %v7602
  %7761 = vst.msk [vmem:[#allocation3 + $0x110] sm:$0xff] %vm3410, %v7604
  %7762 = vst.msk [vmem:[#allocation3 + $0x118] sm:$0xff] %vm3410, %v7606
  %7763 = vst.msk [vmem:[#allocation3 + $0x120] sm:$0xff] %vm3410, %v7608
  %7764 = vst.msk [vmem:[#allocation3 + $0x128] sm:$0xff] %vm3410, %v7610
  %7765 = vst.msk [vmem:[#allocation3 + $0x130] sm:$0xff] %vm3410, %v7612
  %7766 = vst.msk [vmem:[#allocation3 + $0x138] sm:$0xff] %vm3410, %v7614
  %7767 = vst.msk [vmem:[#allocation3 + $0x140] sm:$0xff] %vm3410, %v7616
  %7768 = vst.msk [vmem:[#allocation3 + $0x148] sm:$0xff] %vm3410, %v7618
  %7769 = vst.msk [vmem:[#allocation3 + $0x150] sm:$0xff] %vm3410, %v7620
  %7770 = vst.msk [vmem:[#allocation3 + $0x158] sm:$0xff] %vm3410, %v7622
  %7771 = vst.msk [vmem:[#allocation3 + $0x160] sm:$0xff] %vm3410, %v7624
  %7772 = vst.msk [vmem:[#allocation3 + $0x168] sm:$0xff] %vm3410, %v7626
  %7773 = vst.msk [vmem:[#allocation3 + $0x170] sm:$0xff] %vm3410, %v7628
  %7774 = vst.msk [vmem:[#allocation3 + $0x178] sm:$0xff] %vm3410, %v7630
  %7775 = vst.msk [vmem:[#allocation3 + $0x180] sm:$0xff] %vm3410, %v7632
  %7776 = vst.msk [vmem:[#allocation3 + $0x188] sm:$0xff] %vm3410, %v7634
  %7777 = vst.msk [vmem:[#allocation3 + $0x190] sm:$0xff] %vm3410, %v7636
  %7778 = vst.msk [vmem:[#allocation3 + $0x198] sm:$0xff] %vm3410, %v7638
  %7779 = vst.msk [vmem:[#allocation3 + $0x1a0] sm:$0xff] %vm3410, %v7640
  %7780 = vst.msk [vmem:[#allocation3 + $0x1a8] sm:$0xff] %vm3410, %v7642
  %7781 = vst.msk [vmem:[#allocation3 + $0x1b0] sm:$0xff] %vm3410, %v7644
  %7782 = vst.msk [vmem:[#allocation3 + $0x1b8] sm:$0xff] %vm3410, %v7646
  %7783 = vst.msk [vmem:[#allocation3 + $0x1c0] sm:$0xff] %vm3410, %v7648
  %7784 = vst.msk [vmem:[#allocation3 + $0x1c8] sm:$0xff] %vm3410, %v7650
  %7785 = vst.msk [vmem:[#allocation3 + $0x1d0] sm:$0xff] %vm3410, %v7652
  %7786 = vst.msk [vmem:[#allocation3 + $0x1d8] sm:$0xff] %vm3410, %v7654
  %7787 = vst.msk [vmem:[#allocation3 + $0x1e0] sm:$0xff] %vm3410, %v7656
  %7788 = vst.msk [vmem:[#allocation3 + $0x1e8] sm:$0xff] %vm3410, %v7658
  %7789 = vst.msk [vmem:[#allocation3 + $0x1f0] sm:$0xff] %vm3410, %v7660
  %7790 = vst.msk [vmem:[#allocation3 + $0x1f8] sm:$0xff] %vm3410, %v7662
  %v7791 = vld [vmem:[#allocation3] sm:$0xff]
  %v7792 = vld [vmem:[#allocation3 + $0x8] sm:$0xff]
  %v7793 = vld [vmem:[#allocation3 + $0x10] sm:$0xff]
  %v7794 = vld [vmem:[#allocation3 + $0x18] sm:$0xff]
  %v7795 = vld [vmem:[#allocation3 + $0x20] sm:$0xff]
  %v7796 = vld [vmem:[#allocation3 + $0x28] sm:$0xff]
  %v7797 = vld [vmem:[#allocation3 + $0x30] sm:$0xff]
  %v7798 = vld [vmem:[#allocation3 + $0x38] sm:$0xff]
  %v7799 = vld [vmem:[#allocation3 + $0x40] sm:$0xff]
  %v7800 = vld [vmem:[#allocation3 + $0x48] sm:$0xff]
  %v7801 = vld [vmem:[#allocation3 + $0x50] sm:$0xff]
  %v7802 = vld [vmem:[#allocation3 + $0x58] sm:$0xff]
  %v7803 = vld [vmem:[#allocation3 + $0x60] sm:$0xff]
  %v7804 = vld [vmem:[#allocation3 + $0x68] sm:$0xff]
  %v7805 = vld [vmem:[#allocation3 + $0x70] sm:$0xff]
  %v7806 = vld [vmem:[#allocation3 + $0x78] sm:$0xff]
  %v7807 = vld [vmem:[#allocation3 + $0x80] sm:$0xff]
  %v7808 = vld [vmem:[#allocation3 + $0x88] sm:$0xff]
  %v7809 = vld [vmem:[#allocation3 + $0x90] sm:$0xff]
  %v7810 = vld [vmem:[#allocation3 + $0x98] sm:$0xff]
  %v7811 = vld [vmem:[#allocation3 + $0xa0] sm:$0xff]
  %v7812 = vld [vmem:[#allocation3 + $0xa8] sm:$0xff]
  %v7813 = vld [vmem:[#allocation3 + $0xb0] sm:$0xff]
  %v7814 = vld [vmem:[#allocation3 + $0xb8] sm:$0xff]
  %v7815 = vld [vmem:[#allocation3 + $0xc0] sm:$0xff]
  %v7816 = vld [vmem:[#allocation3 + $0xc8] sm:$0xff]
  %v7817 = vld [vmem:[#allocation3 + $0xd0] sm:$0xff]
  %v7818 = vld [vmem:[#allocation3 + $0xd8] sm:$0xff]
  %v7819 = vld [vmem:[#allocation3 + $0xe0] sm:$0xff]
  %v7820 = vld [vmem:[#allocation3 + $0xe8] sm:$0xff]
  %v7821 = vld [vmem:[#allocation3 + $0xf0] sm:$0xff]
  %v7822 = vld [vmem:[#allocation3 + $0xf8] sm:$0xff]
  %v7823 = vld [vmem:[#allocation3 + $0x100] sm:$0xff]
  %v7824 = vld [vmem:[#allocation3 + $0x108] sm:$0xff]
  %v7825 = vld [vmem:[#allocation3 + $0x110] sm:$0xff]
  %v7826 = vld [vmem:[#allocation3 + $0x118] sm:$0xff]
  %v7827 = vld [vmem:[#allocation3 + $0x120] sm:$0xff]
  %v7828 = vld [vmem:[#allocation3 + $0x128] sm:$0xff]
  %v7829 = vld [vmem:[#allocation3 + $0x130] sm:$0xff]
  %v7830 = vld [vmem:[#allocation3 + $0x138] sm:$0xff]
  %v7831 = vld [vmem:[#allocation3 + $0x140] sm:$0xff]
  %v7832 = vld [vmem:[#allocation3 + $0x148] sm:$0xff]
  %v7833 = vld [vmem:[#allocation3 + $0x150] sm:$0xff]
  %v7834 = vld [vmem:[#allocation3 + $0x158] sm:$0xff]
  %v7835 = vld [vmem:[#allocation3 + $0x160] sm:$0xff]
  %v7836 = vld [vmem:[#allocation3 + $0x168] sm:$0xff]
  %v7837 = vld [vmem:[#allocation3 + $0x170] sm:$0xff]
  %v7838 = vld [vmem:[#allocation3 + $0x178] sm:$0xff]
  %v7839 = vld [vmem:[#allocation3 + $0x180] sm:$0xff]
  %v7840 = vld [vmem:[#allocation3 + $0x188] sm:$0xff]
  %v7841 = vld [vmem:[#allocation3 + $0x190] sm:$0xff]
  %v7842 = vld [vmem:[#allocation3 + $0x198] sm:$0xff]
  %v7843 = vld [vmem:[#allocation3 + $0x1a0] sm:$0xff]
  %v7844 = vld [vmem:[#allocation3 + $0x1a8] sm:$0xff]
  %v7845 = vld [vmem:[#allocation3 + $0x1b0] sm:$0xff]
  %v7846 = vld [vmem:[#allocation3 + $0x1b8] sm:$0xff]
  %v7847 = vld [vmem:[#allocation3 + $0x1c0] sm:$0xff]
  %v7848 = vld [vmem:[#allocation3 + $0x1c8] sm:$0xff]
  %v7849 = vld [vmem:[#allocation3 + $0x1d0] sm:$0xff]
  %v7850 = vld [vmem:[#allocation3 + $0x1d8] sm:$0xff]
  %v7851 = vld [vmem:[#allocation3 + $0x1e0] sm:$0xff]
  %v7852 = vld [vmem:[#allocation3 + $0x1e8] sm:$0xff]
  %v7853 = vld [vmem:[#allocation3 + $0x1f0] sm:$0xff]
  %v7854 = vld [vmem:[#allocation3 + $0x1f8] sm:$0xff]
  %v7855 = vpack.c.bf16 %v7792, %v7791
  %v7856 = vpack.c.bf16 %v7794, %v7793
  %v7857 = vpack.c.bf16 %v7796, %v7795
  %v7858 = vpack.c.bf16 %v7798, %v7797
  %v7859 = vpack.c.bf16 %v7800, %v7799
  %v7860 = vpack.c.bf16 %v7802, %v7801
  %v7861 = vpack.c.bf16 %v7804, %v7803
  %v7862 = vpack.c.bf16 %v7806, %v7805
  %v7863 = vpack.c.bf16 %v7808, %v7807
  %v7864 = vpack.c.bf16 %v7810, %v7809
  %v7865 = vpack.c.bf16 %v7812, %v7811
  %v7866 = vpack.c.bf16 %v7814, %v7813
  %v7867 = vpack.c.bf16 %v7816, %v7815
  %v7868 = vpack.c.bf16 %v7818, %v7817
  %v7869 = vpack.c.bf16 %v7820, %v7819
  %v7870 = vpack.c.bf16 %v7822, %v7821
  %v7871 = vpack.c.bf16 %v7824, %v7823
  %v7872 = vpack.c.bf16 %v7826, %v7825
  %v7873 = vpack.c.bf16 %v7828, %v7827
  %v7874 = vpack.c.bf16 %v7830, %v7829
  %v7875 = vpack.c.bf16 %v7832, %v7831
  %v7876 = vpack.c.bf16 %v7834, %v7833
  %v7877 = vpack.c.bf16 %v7836, %v7835
  %v7878 = vpack.c.bf16 %v7838, %v7837
  %v7879 = vpack.c.bf16 %v7840, %v7839
  %v7880 = vpack.c.bf16 %v7842, %v7841
  %v7881 = vpack.c.bf16 %v7844, %v7843
  %v7882 = vpack.c.bf16 %v7846, %v7845
  %v7883 = vpack.c.bf16 %v7848, %v7847
  %v7884 = vpack.c.bf16 %v7850, %v7849
  %v7885 = vpack.c.bf16 %v7852, %v7851
  %v7886 = vpack.c.bf16 %v7854, %v7853
  %v7887 = vld [vmem:[%s2] sm:$0xf]
  %v7888 = vld [vmem:[%s2 + $0x4] sm:$0xf]
  %v7889 = vld [vmem:[%s2 + $0x8] sm:$0xf]
  %v7890 = vld [vmem:[%s2 + $0xc] sm:$0xf]
  %v7891 = vld [vmem:[%s2 + $0x10] sm:$0x3]
  %v7897 = vunpack.c.l.b16 %v7887
  %v7898 = vunpack.c.l.b16 %v7888
  %v7899 = vunpack.c.l.b16 %v7889
  %v7900 = vunpack.c.l.b16 %v7890
  %v7901 = vunpack.c.l.b16 %v7891
  %v7902 = vpack.c.b16 %v7898, %v7897
  %v7903 = vpack.c.b16 %v7900, %v7899
  %v7904 = vpack.c.b16 %v7901, %v7901
  %v7908 = vsel %vm3591, %v7855, 0
  %v7911 = vsel %vm3591, %v7856, 0
  %v7914 = vsel %vm3591, %v7857, 0
  %v7917 = vsel %vm3591, %v7858, 0
  %v7920 = vsel %vm3591, %v7859, 0
  %v7923 = vsel %vm3591, %v7860, 0
  %v7926 = vsel %vm3591, %v7861, 0
  %v7929 = vsel %vm3591, %v7862, 0
  %v7932 = vsel %vm3591, %v7863, 0
  %v7935 = vsel %vm3591, %v7864, 0
  %v7938 = vsel %vm3591, %v7865, 0
  %v7941 = vsel %vm3591, %v7866, 0
  %v7944 = vsel %vm3591, %v7867, 0
  %v7947 = vsel %vm3591, %v7868, 0
  %v7950 = vsel %vm3591, %v7869, 0
  %v7953 = vsel %vm3591, %v7870, 0
  %v7956 = vsel %vm3591, %v7871, 0
  %v7959 = vsel %vm3591, %v7872, 0
  %v7962 = vsel %vm3591, %v7873, 0
  %v7965 = vsel %vm3591, %v7874, 0
  %v7968 = vsel %vm3591, %v7875, 0
  %v7971 = vsel %vm3591, %v7876, 0
  %v7974 = vsel %vm3591, %v7877, 0
  %v7977 = vsel %vm3591, %v7878, 0
  %v7980 = vsel %vm3591, %v7879, 0
  %v7983 = vsel %vm3591, %v7880, 0
  %v7986 = vsel %vm3591, %v7881, 0
  %v7989 = vsel %vm3591, %v7882, 0
  %v7992 = vsel %vm3591, %v7883, 0
  %v7995 = vsel %vm3591, %v7884, 0
  %v7998 = vsel %vm3591, %v7885, 0
  %v8001 = vsel %vm3591, %v7886, 0
  %v8004 = vsel %vm3688, %v7904, 0
  %8006 = vmatprep.subr.bf16.mxu0 0
  %8007 = vmatpush1.bf16.msra.mxu0 0
  %8008 = vmatprep.subr.bf16.mxu0 0
  %8009 = vmatpush1.bf16.msra.mxu0 0
  %8010 = vmatprep.subr.bf16.mxu0 0
  %8011 = vmatpush1.bf16.msra.mxu0 0
  %8012 = vmatprep.subr.bf16.mxu0 0
  %8013 = vmatpush1.bf16.msra.mxu0 0
  %8014 = vmatprep.subr.bf16.mxu0 0
  %8015 = vmatpush1.bf16.msra.mxu0 0
  %8016 = vmatprep.subr.bf16.mxu0 0
  %8017 = vmatpush1.bf16.msra.mxu0 %v8004
  %8018 = vmatprep.subr.bf16.mxu0 0
  %8019 = vmatpush1.bf16.msra.mxu0 %v7903
  %8020 = vmatprep.subr.bf16.mxu0 0
  %8021 = vmatpush1.bf16.msra.mxu0 %v7902
  %8022 = vmatprep.subr.bf16.mxu0 0
  %8023 = vmatpush2.bf16.msra.mxu0 0
  %8024 = vmatprep.subr.bf16.mxu0 0
  %8025 = vmatpush2.bf16.msra.mxu0 0
  %8026 = vmatprep.subr.bf16.mxu0 0
  %8027 = vmatpush2.bf16.msra.mxu0 0
  %8028 = vmatprep.subr.bf16.mxu0 0
  %8029 = vmatpush2.bf16.msra.mxu0 0
  %8030 = vmatprep.subr.bf16.mxu0 0
  %8031 = vmatpush2.bf16.msra.mxu0 0
  %8032 = vmatprep.subr.bf16.mxu0 0
  %8033 = vmatpush2.bf16.msra.mxu0 0
  %8034 = vmatprep.subr.bf16.mxu0 0
  %8035 = vmatpush2.bf16.msra.mxu0 0
  %8036 = vmatprep.subr.bf16.mxu0 0
  %8037 = vmatpush2.bf16.msra.mxu0 0
  %8038 = vmatprep.mubr.bf16.mxu0 0
  %8039 = vmatmul.mubr.bf16.gmra.mxu0 %v7908
  %v8040 = vpop.f32.mrf.mxu0
  %v8041 = vadd.f32 0.0, %v8040
  %v8042 = vpop.f32.mrf.mxu0
  %v8043 = vpop.f32.mrf.mxu0
  %v8044 = vadd.f32 0.0, %v8043
  %v8045 = vpop.f32.mrf.mxu0
  %8046 = vmatprep.mubr.bf16.mxu0 0
  %8047 = vmatmul.mubr.bf16.gmra.mxu0 %v7911
  %v8048 = vpop.f32.mrf.mxu0
  %v8049 = vadd.f32 0.0, %v8048
  %v8050 = vpop.f32.mrf.mxu0
  %v8051 = vpop.f32.mrf.mxu0
  %v8052 = vadd.f32 0.0, %v8051
  %v8053 = vpop.f32.mrf.mxu0
  %8054 = vmatprep.mubr.bf16.mxu0 0
  %8055 = vmatmul.mubr.bf16.gmra.mxu0 %v7914
  %v8056 = vpop.f32.mrf.mxu0
  %v8057 = vadd.f32 0.0, %v8056
  %v8058 = vpop.f32.mrf.mxu0
  %v8059 = vpop.f32.mrf.mxu0
  %v8060 = vadd.f32 0.0, %v8059
  %v8061 = vpop.f32.mrf.mxu0
  %8062 = vmatprep.mubr.bf16.mxu0 0
  %8063 = vmatmul.mubr.bf16.gmra.mxu0 %v7917
  %v8064 = vpop.f32.mrf.mxu0
  %v8065 = vadd.f32 0.0, %v8064
  %v8066 = vpop.f32.mrf.mxu0
  %v8067 = vpop.f32.mrf.mxu0
  %v8068 = vadd.f32 0.0, %v8067
  %v8069 = vpop.f32.mrf.mxu0
  %8070 = vmatprep.mubr.bf16.mxu0 0
  %8071 = vmatmul.mubr.bf16.gmra.mxu0 %v7920
  %v8072 = vpop.f32.mrf.mxu0
  %v8073 = vadd.f32 0.0, %v8072
  %v8074 = vpop.f32.mrf.mxu0
  %v8075 = vpop.f32.mrf.mxu0
  %v8076 = vadd.f32 0.0, %v8075
  %v8077 = vpop.f32.mrf.mxu0
  %8078 = vmatprep.mubr.bf16.mxu0 0
  %8079 = vmatmul.mubr.bf16.gmra.mxu0 %v7923
  %v8080 = vpop.f32.mrf.mxu0
  %v8081 = vadd.f32 0.0, %v8080
  %v8082 = vpop.f32.mrf.mxu0
  %v8083 = vpop.f32.mrf.mxu0
  %v8084 = vadd.f32 0.0, %v8083
  %v8085 = vpop.f32.mrf.mxu0
  %8086 = vmatprep.mubr.bf16.mxu0 0
  %8087 = vmatmul.mubr.bf16.gmra.mxu0 %v7926
  %v8088 = vpop.f32.mrf.mxu0
  %v8089 = vadd.f32 0.0, %v8088
  %v8090 = vpop.f32.mrf.mxu0
  %v8091 = vpop.f32.mrf.mxu0
  %v8092 = vadd.f32 0.0, %v8091
  %v8093 = vpop.f32.mrf.mxu0
  %8094 = vmatprep.mubr.bf16.mxu0 0
  %8095 = vmatmul.mubr.bf16.gmra.mxu0 %v7929
  %v8096 = vpop.f32.mrf.mxu0
  %v8097 = vadd.f32 0.0, %v8096
  %v8098 = vpop.f32.mrf.mxu0
  %v8099 = vpop.f32.mrf.mxu0
  %v8100 = vadd.f32 0.0, %v8099
  %v8101 = vpop.f32.mrf.mxu0
  %8102 = vmatprep.mubr.bf16.mxu0 0
  %8103 = vmatmul.mubr.bf16.gmra.mxu0 %v7932
  %v8104 = vpop.f32.mrf.mxu0
  %v8105 = vadd.f32 0.0, %v8104
  %v8106 = vpop.f32.mrf.mxu0
  %v8107 = vpop.f32.mrf.mxu0
  %v8108 = vadd.f32 0.0, %v8107
  %v8109 = vpop.f32.mrf.mxu0
  %8110 = vmatprep.mubr.bf16.mxu0 0
  %8111 = vmatmul.mubr.bf16.gmra.mxu0 %v7935
  %v8112 = vpop.f32.mrf.mxu0
  %v8113 = vadd.f32 0.0, %v8112
  %v8114 = vpop.f32.mrf.mxu0
  %v8115 = vpop.f32.mrf.mxu0
  %v8116 = vadd.f32 0.0, %v8115
  %v8117 = vpop.f32.mrf.mxu0
  %8118 = vmatprep.mubr.bf16.mxu0 0
  %8119 = vmatmul.mubr.bf16.gmra.mxu0 %v7938
  %v8120 = vpop.f32.mrf.mxu0
  %v8121 = vadd.f32 0.0, %v8120
  %v8122 = vpop.f32.mrf.mxu0
  %v8123 = vpop.f32.mrf.mxu0
  %v8124 = vadd.f32 0.0, %v8123
  %v8125 = vpop.f32.mrf.mxu0
  %8126 = vmatprep.mubr.bf16.mxu0 0
  %8127 = vmatmul.mubr.bf16.gmra.mxu0 %v7941
  %v8128 = vpop.f32.mrf.mxu0
  %v8129 = vadd.f32 0.0, %v8128
  %v8130 = vpop.f32.mrf.mxu0
  %v8131 = vpop.f32.mrf.mxu0
  %v8132 = vadd.f32 0.0, %v8131
  %v8133 = vpop.f32.mrf.mxu0
  %8134 = vmatprep.mubr.bf16.mxu0 0
  %8135 = vmatmul.mubr.bf16.gmra.mxu0 %v7944
  %v8136 = vpop.f32.mrf.mxu0
  %v8137 = vadd.f32 0.0, %v8136
  %v8138 = vpop.f32.mrf.mxu0
  %v8139 = vpop.f32.mrf.mxu0
  %v8140 = vadd.f32 0.0, %v8139
  %v8141 = vpop.f32.mrf.mxu0
  %8142 = vmatprep.mubr.bf16.mxu0 0
  %8143 = vmatmul.mubr.bf16.gmra.mxu0 %v7947
  %v8144 = vpop.f32.mrf.mxu0
  %v8145 = vadd.f32 0.0, %v8144
  %v8146 = vpop.f32.mrf.mxu0
  %v8147 = vpop.f32.mrf.mxu0
  %v8148 = vadd.f32 0.0, %v8147
  %v8149 = vpop.f32.mrf.mxu0
  %8150 = vmatprep.mubr.bf16.mxu0 0
  %8151 = vmatmul.mubr.bf16.gmra.mxu0 %v7950
  %v8152 = vpop.f32.mrf.mxu0
  %v8153 = vadd.f32 0.0, %v8152
  %v8154 = vpop.f32.mrf.mxu0
  %v8155 = vpop.f32.mrf.mxu0
  %v8156 = vadd.f32 0.0, %v8155
  %v8157 = vpop.f32.mrf.mxu0
  %8158 = vmatprep.mubr.bf16.mxu0 0
  %8159 = vmatmul.mubr.bf16.gmra.mxu0 %v7953
  %v8160 = vpop.f32.mrf.mxu0
  %v8161 = vadd.f32 0.0, %v8160
  %v8162 = vpop.f32.mrf.mxu0
  %v8163 = vpop.f32.mrf.mxu0
  %v8164 = vadd.f32 0.0, %v8163
  %v8165 = vpop.f32.mrf.mxu0
  %8166 = vmatprep.mubr.bf16.mxu0 0
  %8167 = vmatmul.mubr.bf16.gmra.mxu0 %v7956
  %v8168 = vpop.f32.mrf.mxu0
  %v8169 = vadd.f32 0.0, %v8168
  %v8170 = vpop.f32.mrf.mxu0
  %v8171 = vpop.f32.mrf.mxu0
  %v8172 = vadd.f32 0.0, %v8171
  %v8173 = vpop.f32.mrf.mxu0
  %8174 = vmatprep.mubr.bf16.mxu0 0
  %8175 = vmatmul.mubr.bf16.gmra.mxu0 %v7959
  %v8176 = vpop.f32.mrf.mxu0
  %v8177 = vadd.f32 0.0, %v8176
  %v8178 = vpop.f32.mrf.mxu0
  %v8179 = vpop.f32.mrf.mxu0
  %v8180 = vadd.f32 0.0, %v8179
  %v8181 = vpop.f32.mrf.mxu0
  %8182 = vmatprep.mubr.bf16.mxu0 0
  %8183 = vmatmul.mubr.bf16.gmra.mxu0 %v7962
  %v8184 = vpop.f32.mrf.mxu0
  %v8185 = vadd.f32 0.0, %v8184
  %v8186 = vpop.f32.mrf.mxu0
  %v8187 = vpop.f32.mrf.mxu0
  %v8188 = vadd.f32 0.0, %v8187
  %v8189 = vpop.f32.mrf.mxu0
  %8190 = vmatprep.mubr.bf16.mxu0 0
  %8191 = vmatmul.mubr.bf16.gmra.mxu0 %v7965
  %v8192 = vpop.f32.mrf.mxu0
  %v8193 = vadd.f32 0.0, %v8192
  %v8194 = vpop.f32.mrf.mxu0
  %v8195 = vpop.f32.mrf.mxu0
  %v8196 = vadd.f32 0.0, %v8195
  %v8197 = vpop.f32.mrf.mxu0
  %8198 = vmatprep.mubr.bf16.mxu0 0
  %8199 = vmatmul.mubr.bf16.gmra.mxu0 %v7968
  %v8200 = vpop.f32.mrf.mxu0
  %v8201 = vadd.f32 0.0, %v8200
  %v8202 = vpop.f32.mrf.mxu0
  %v8203 = vpop.f32.mrf.mxu0
  %v8204 = vadd.f32 0.0, %v8203
  %v8205 = vpop.f32.mrf.mxu0
  %8206 = vmatprep.mubr.bf16.mxu0 0
  %8207 = vmatmul.mubr.bf16.gmra.mxu0 %v7971
  %v8208 = vpop.f32.mrf.mxu0
  %v8209 = vadd.f32 0.0, %v8208
  %v8210 = vpop.f32.mrf.mxu0
  %v8211 = vpop.f32.mrf.mxu0
  %v8212 = vadd.f32 0.0, %v8211
  %v8213 = vpop.f32.mrf.mxu0
  %8214 = vmatprep.mubr.bf16.mxu0 0
  %8215 = vmatmul.mubr.bf16.gmra.mxu0 %v7974
  %v8216 = vpop.f32.mrf.mxu0
  %v8217 = vadd.f32 0.0, %v8216
  %v8218 = vpop.f32.mrf.mxu0
  %v8219 = vpop.f32.mrf.mxu0
  %v8220 = vadd.f32 0.0, %v8219
  %v8221 = vpop.f32.mrf.mxu0
  %8222 = vmatprep.mubr.bf16.mxu0 0
  %8223 = vmatmul.mubr.bf16.gmra.mxu0 %v7977
  %v8224 = vpop.f32.mrf.mxu0
  %v8225 = vadd.f32 0.0, %v8224
  %v8226 = vpop.f32.mrf.mxu0
  %v8227 = vpop.f32.mrf.mxu0
  %v8228 = vadd.f32 0.0, %v8227
  %v8229 = vpop.f32.mrf.mxu0
  %8230 = vmatprep.mubr.bf16.mxu0 0
  %8231 = vmatmul.mubr.bf16.gmra.mxu0 %v7980
  %v8232 = vpop.f32.mrf.mxu0
  %v8233 = vadd.f32 0.0, %v8232
  %v8234 = vpop.f32.mrf.mxu0
  %v8235 = vpop.f32.mrf.mxu0
  %v8236 = vadd.f32 0.0, %v8235
  %v8237 = vpop.f32.mrf.mxu0
  %8238 = vmatprep.mubr.bf16.mxu0 0
  %8239 = vmatmul.mubr.bf16.gmra.mxu0 %v7983
  %v8240 = vpop.f32.mrf.mxu0
  %v8241 = vadd.f32 0.0, %v8240
  %v8242 = vpop.f32.mrf.mxu0
  %v8243 = vpop.f32.mrf.mxu0
  %v8244 = vadd.f32 0.0, %v8243
  %v8245 = vpop.f32.mrf.mxu0
  %8246 = vmatprep.mubr.bf16.mxu0 0
  %8247 = vmatmul.mubr.bf16.gmra.mxu0 %v7986
  %v8248 = vpop.f32.mrf.mxu0
  %v8249 = vadd.f32 0.0, %v8248
  %v8250 = vpop.f32.mrf.mxu0
  %v8251 = vpop.f32.mrf.mxu0
  %v8252 = vadd.f32 0.0, %v8251
  %v8253 = vpop.f32.mrf.mxu0
  %8254 = vmatprep.mubr.bf16.mxu0 0
  %8255 = vmatmul.mubr.bf16.gmra.mxu0 %v7989
  %v8256 = vpop.f32.mrf.mxu0
  %v8257 = vadd.f32 0.0, %v8256
  %v8258 = vpop.f32.mrf.mxu0
  %v8259 = vpop.f32.mrf.mxu0
  %v8260 = vadd.f32 0.0, %v8259
  %v8261 = vpop.f32.mrf.mxu0
  %8262 = vmatprep.mubr.bf16.mxu0 0
  %8263 = vmatmul.mubr.bf16.gmra.mxu0 %v7992
  %v8264 = vpop.f32.mrf.mxu0
  %v8265 = vadd.f32 0.0, %v8264
  %v8266 = vpop.f32.mrf.mxu0
  %v8267 = vpop.f32.mrf.mxu0
  %v8268 = vadd.f32 0.0, %v8267
  %v8269 = vpop.f32.mrf.mxu0
  %8270 = vmatprep.mubr.bf16.mxu0 0
  %8271 = vmatmul.mubr.bf16.gmra.mxu0 %v7995
  %v8272 = vpop.f32.mrf.mxu0
  %v8273 = vadd.f32 0.0, %v8272
  %v8274 = vpop.f32.mrf.mxu0
  %v8275 = vpop.f32.mrf.mxu0
  %v8276 = vadd.f32 0.0, %v8275
  %v8277 = vpop.f32.mrf.mxu0
  %8278 = vmatprep.mubr.bf16.mxu0 0
  %8279 = vmatmul.mubr.bf16.gmra.mxu0 %v7998
  %v8280 = vpop.f32.mrf.mxu0
  %v8281 = vadd.f32 0.0, %v8280
  %v8282 = vpop.f32.mrf.mxu0
  %v8283 = vpop.f32.mrf.mxu0
  %v8284 = vadd.f32 0.0, %v8283
  %v8285 = vpop.f32.mrf.mxu0
  %8286 = vmatprep.mubr.bf16.mxu0 0
  %8287 = vmatmul.mubr.bf16.gmra.mxu0 %v8001
  %v8288 = vpop.f32.mrf.mxu0
  %v8289 = vadd.f32 0.0, %v8288
  %v8290 = vpop.f32.mrf.mxu0
  %v8291 = vpop.f32.mrf.mxu0
  %v8292 = vadd.f32 0.0, %v8291
  %v8293 = vpop.f32.mrf.mxu0
  %8294 = vdwg.mxu0
  %v8295 = vsel %vm27, %v8041, 0.0
  %v8296 = vsel %vm27, %v8044, 0.0
  %v8297 = vadd.f32 %v8295, %v8296
  %v8298 = vsel %vm27, %v8049, 0.0
  %v8299 = vadd.f32 %v8297, %v8298
  %v8300 = vsel %vm27, %v8052, 0.0
  %v8301 = vadd.f32 %v8299, %v8300
  %v8302 = vsel %vm27, %v8057, 0.0
  %v8303 = vadd.f32 %v8301, %v8302
  %v8304 = vsel %vm27, %v8060, 0.0
  %v8305 = vadd.f32 %v8303, %v8304
  %v8306 = vsel %vm27, %v8065, 0.0
  %v8307 = vadd.f32 %v8305, %v8306
  %v8308 = vsel %vm27, %v8068, 0.0
  %v8309 = vadd.f32 %v8307, %v8308
  %v8310 = vsel %vm27, %v8073, 0.0
  %v8311 = vadd.f32 %v8309, %v8310
  %v8312 = vsel %vm27, %v8076, 0.0
  %v8313 = vadd.f32 %v8311, %v8312
  %v8314 = vsel %vm27, %v8081, 0.0
  %v8315 = vadd.f32 %v8313, %v8314
  %v8316 = vsel %vm27, %v8084, 0.0
  %v8317 = vadd.f32 %v8315, %v8316
  %v8318 = vsel %vm27, %v8089, 0.0
  %v8319 = vadd.f32 %v8317, %v8318
  %v8320 = vsel %vm27, %v8092, 0.0
  %v8321 = vadd.f32 %v8319, %v8320
  %v8322 = vsel %vm27, %v8097, 0.0
  %v8323 = vadd.f32 %v8321, %v8322
  %v8324 = vsel %vm27, %v8100, 0.0
  %v8325 = vadd.f32 %v8323, %v8324
  %v8326 = vsel %vm27, %v8105, 0.0
  %v8327 = vadd.f32 %v8325, %v8326
  %v8328 = vsel %vm27, %v8108, 0.0
  %v8329 = vadd.f32 %v8327, %v8328
  %v8330 = vsel %vm27, %v8113, 0.0
  %v8331 = vadd.f32 %v8329, %v8330
  %v8332 = vsel %vm27, %v8116, 0.0
  %v8333 = vadd.f32 %v8331, %v8332
  %v8334 = vsel %vm27, %v8121, 0.0
  %v8335 = vadd.f32 %v8333, %v8334
  %v8336 = vsel %vm27, %v8124, 0.0
  %v8337 = vadd.f32 %v8335, %v8336
  %v8338 = vsel %vm27, %v8129, 0.0
  %v8339 = vadd.f32 %v8337, %v8338
  %v8340 = vsel %vm27, %v8132, 0.0
  %v8341 = vadd.f32 %v8339, %v8340
  %v8342 = vsel %vm27, %v8137, 0.0
  %v8343 = vadd.f32 %v8341, %v8342
  %v8344 = vsel %vm27, %v8140, 0.0
  %v8345 = vadd.f32 %v8343, %v8344
  %v8346 = vsel %vm27, %v8145, 0.0
  %v8347 = vadd.f32 %v8345, %v8346
  %v8348 = vsel %vm27, %v8148, 0.0
  %v8349 = vadd.f32 %v8347, %v8348
  %v8350 = vsel %vm27, %v8153, 0.0
  %v8351 = vadd.f32 %v8349, %v8350
  %v8352 = vsel %vm27, %v8156, 0.0
  %v8353 = vadd.f32 %v8351, %v8352
  %v8354 = vsel %vm27, %v8161, 0.0
  %v8355 = vadd.f32 %v8353, %v8354
  %v8356 = vsel %vm27, %v8164, 0.0
  %v8357 = vadd.f32 %v8355, %v8356
  %v8358 = vsel %vm27, %v8169, 0.0
  %v8359 = vadd.f32 %v8357, %v8358
  %v8360 = vsel %vm27, %v8172, 0.0
  %v8361 = vadd.f32 %v8359, %v8360
  %v8362 = vsel %vm27, %v8177, 0.0
  %v8363 = vadd.f32 %v8361, %v8362
  %v8364 = vsel %vm27, %v8180, 0.0
  %v8365 = vadd.f32 %v8363, %v8364
  %v8366 = vsel %vm27, %v8185, 0.0
  %v8367 = vadd.f32 %v8365, %v8366
  %v8368 = vsel %vm27, %v8188, 0.0
  %v8369 = vadd.f32 %v8367, %v8368
  %v8370 = vsel %vm27, %v8193, 0.0
  %v8371 = vadd.f32 %v8369, %v8370
  %v8372 = vsel %vm27, %v8196, 0.0
  %v8373 = vadd.f32 %v8371, %v8372
  %v8374 = vsel %vm27, %v8201, 0.0
  %v8375 = vadd.f32 %v8373, %v8374
  %v8376 = vsel %vm27, %v8204, 0.0
  %v8377 = vadd.f32 %v8375, %v8376
  %v8378 = vsel %vm27, %v8209, 0.0
  %v8379 = vadd.f32 %v8377, %v8378
  %v8380 = vsel %vm27, %v8212, 0.0
  %v8381 = vadd.f32 %v8379, %v8380
  %v8382 = vsel %vm27, %v8217, 0.0
  %v8383 = vadd.f32 %v8381, %v8382
  %v8384 = vsel %vm27, %v8220, 0.0
  %v8385 = vadd.f32 %v8383, %v8384
  %v8386 = vsel %vm27, %v8225, 0.0
  %v8387 = vadd.f32 %v8385, %v8386
  %v8388 = vsel %vm27, %v8228, 0.0
  %v8389 = vadd.f32 %v8387, %v8388
  %v8390 = vsel %vm27, %v8233, 0.0
  %v8391 = vadd.f32 %v8389, %v8390
  %v8392 = vsel %vm27, %v8236, 0.0
  %v8393 = vadd.f32 %v8391, %v8392
  %v8394 = vsel %vm27, %v8241, 0.0
  %v8395 = vadd.f32 %v8393, %v8394
  %v8396 = vsel %vm27, %v8244, 0.0
  %v8397 = vadd.f32 %v8395, %v8396
  %v8398 = vsel %vm27, %v8249, 0.0
  %v8399 = vadd.f32 %v8397, %v8398
  %v8400 = vsel %vm27, %v8252, 0.0
  %v8401 = vadd.f32 %v8399, %v8400
  %v8402 = vsel %vm27, %v8257, 0.0
  %v8403 = vadd.f32 %v8401, %v8402
  %v8404 = vsel %vm27, %v8260, 0.0
  %v8405 = vadd.f32 %v8403, %v8404
  %v8406 = vsel %vm27, %v8265, 0.0
  %v8407 = vadd.f32 %v8405, %v8406
  %v8408 = vsel %vm27, %v8268, 0.0
  %v8409 = vadd.f32 %v8407, %v8408
  %v8410 = vsel %vm27, %v8273, 0.0
  %v8411 = vadd.f32 %v8409, %v8410
  %v8412 = vsel %vm27, %v8276, 0.0
  %v8413 = vadd.f32 %v8411, %v8412
  %v8414 = vsel %vm27, %v8281, 0.0
  %v8415 = vadd.f32 %v8413, %v8414
  %v8416 = vsel %vm27, %v8284, 0.0
  %v8417 = vadd.f32 %v8415, %v8416
  %v8418 = vsel %vm27, %v8289, 0.0
  %v8419 = vadd.f32 %v8417, %v8418
  %v8420 = vsel %vm27, %v8292, 0.0
  %v8421 = vadd.f32 %v8419, %v8420
  %v8422 = vrot.slane %v8421, 4
  %v8423 = vadd.f32 %v8421, %v8422
  %v8424 = vrot.slane %v8423, 2
  %v8425 = vadd.f32 %v8423, %v8424
  %v8426 = vrot.slane %v8425, 1
  %v8427 = vadd.f32 %v8425, %v8426
  %v8428 = vmul.f32 %v8427, 0.001953125
  %v8429 = vmul.f32 %v8041, %v8041
  %v8430 = vmul.f32 %v8044, %v8044
  %v8431 = vmul.f32 %v8049, %v8049
  %v8432 = vmul.f32 %v8052, %v8052
  %v8433 = vmul.f32 %v8057, %v8057
  %v8434 = vmul.f32 %v8060, %v8060
  %v8435 = vmul.f32 %v8065, %v8065
  %v8436 = vmul.f32 %v8068, %v8068
  %v8437 = vmul.f32 %v8073, %v8073
  %v8438 = vmul.f32 %v8076, %v8076
  %v8439 = vmul.f32 %v8081, %v8081
  %v8440 = vmul.f32 %v8084, %v8084
  %v8441 = vmul.f32 %v8089, %v8089
  %v8442 = vmul.f32 %v8092, %v8092
  %v8443 = vmul.f32 %v8097, %v8097
  %v8444 = vmul.f32 %v8100, %v8100
  %v8445 = vmul.f32 %v8105, %v8105
  %v8446 = vmul.f32 %v8108, %v8108
  %v8447 = vmul.f32 %v8113, %v8113
  %v8448 = vmul.f32 %v8116, %v8116
  %v8449 = vmul.f32 %v8121, %v8121
  %v8450 = vmul.f32 %v8124, %v8124
  %v8451 = vmul.f32 %v8129, %v8129
  %v8452 = vmul.f32 %v8132, %v8132
  %v8453 = vmul.f32 %v8137, %v8137
  %v8454 = vmul.f32 %v8140, %v8140
  %v8455 = vmul.f32 %v8145, %v8145
  %v8456 = vmul.f32 %v8148, %v8148
  %v8457 = vmul.f32 %v8153, %v8153
  %v8458 = vmul.f32 %v8156, %v8156
  %v8459 = vmul.f32 %v8161, %v8161
  %v8460 = vmul.f32 %v8164, %v8164
  %v8461 = vmul.f32 %v8169, %v8169
  %v8462 = vmul.f32 %v8172, %v8172
  %v8463 = vmul.f32 %v8177, %v8177
  %v8464 = vmul.f32 %v8180, %v8180
  %v8465 = vmul.f32 %v8185, %v8185
  %v8466 = vmul.f32 %v8188, %v8188
  %v8467 = vmul.f32 %v8193, %v8193
  %v8468 = vmul.f32 %v8196, %v8196
  %v8469 = vmul.f32 %v8201, %v8201
  %v8470 = vmul.f32 %v8204, %v8204
  %v8471 = vmul.f32 %v8209, %v8209
  %v8472 = vmul.f32 %v8212, %v8212
  %v8473 = vmul.f32 %v8217, %v8217
  %v8474 = vmul.f32 %v8220, %v8220
  %v8475 = vmul.f32 %v8225, %v8225
  %v8476 = vmul.f32 %v8228, %v8228
  %v8477 = vmul.f32 %v8233, %v8233
  %v8478 = vmul.f32 %v8236, %v8236
  %v8479 = vmul.f32 %v8241, %v8241
  %v8480 = vmul.f32 %v8244, %v8244
  %v8481 = vmul.f32 %v8249, %v8249
  %v8482 = vmul.f32 %v8252, %v8252
  %v8483 = vmul.f32 %v8257, %v8257
  %v8484 = vmul.f32 %v8260, %v8260
  %v8485 = vmul.f32 %v8265, %v8265
  %v8486 = vmul.f32 %v8268, %v8268
  %v8487 = vmul.f32 %v8273, %v8273
  %v8488 = vmul.f32 %v8276, %v8276
  %v8489 = vmul.f32 %v8281, %v8281
  %v8490 = vmul.f32 %v8284, %v8284
  %v8491 = vmul.f32 %v8289, %v8289
  %v8492 = vmul.f32 %v8292, %v8292
  %v8493 = vsel %vm27, %v8429, 0.0
  %v8494 = vsel %vm27, %v8430, 0.0
  %v8495 = vadd.f32 %v8493, %v8494
  %v8496 = vsel %vm27, %v8431, 0.0
  %v8497 = vadd.f32 %v8495, %v8496
  %v8498 = vsel %vm27, %v8432, 0.0
  %v8499 = vadd.f32 %v8497, %v8498
  %v8500 = vsel %vm27, %v8433, 0.0
  %v8501 = vadd.f32 %v8499, %v8500
  %v8502 = vsel %vm27, %v8434, 0.0
  %v8503 = vadd.f32 %v8501, %v8502
  %v8504 = vsel %vm27, %v8435, 0.0
  %v8505 = vadd.f32 %v8503, %v8504
  %v8506 = vsel %vm27, %v8436, 0.0
  %v8507 = vadd.f32 %v8505, %v8506
  %v8508 = vsel %vm27, %v8437, 0.0
  %v8509 = vadd.f32 %v8507, %v8508
  %v8510 = vsel %vm27, %v8438, 0.0
  %v8511 = vadd.f32 %v8509, %v8510
  %v8512 = vsel %vm27, %v8439, 0.0
  %v8513 = vadd.f32 %v8511, %v8512
  %v8514 = vsel %vm27, %v8440, 0.0
  %v8515 = vadd.f32 %v8513, %v8514
  %v8516 = vsel %vm27, %v8441, 0.0
  %v8517 = vadd.f32 %v8515, %v8516
  %v8518 = vsel %vm27, %v8442, 0.0
  %v8519 = vadd.f32 %v8517, %v8518
  %v8520 = vsel %vm27, %v8443, 0.0
  %v8521 = vadd.f32 %v8519, %v8520
  %v8522 = vsel %vm27, %v8444, 0.0
  %v8523 = vadd.f32 %v8521, %v8522
  %v8524 = vsel %vm27, %v8445, 0.0
  %v8525 = vadd.f32 %v8523, %v8524
  %v8526 = vsel %vm27, %v8446, 0.0
  %v8527 = vadd.f32 %v8525, %v8526
  %v8528 = vsel %vm27, %v8447, 0.0
  %v8529 = vadd.f32 %v8527, %v8528
  %v8530 = vsel %vm27, %v8448, 0.0
  %v8531 = vadd.f32 %v8529, %v8530
  %v8532 = vsel %vm27, %v8449, 0.0
  %v8533 = vadd.f32 %v8531, %v8532
  %v8534 = vsel %vm27, %v8450, 0.0
  %v8535 = vadd.f32 %v8533, %v8534
  %v8536 = vsel %vm27, %v8451, 0.0
  %v8537 = vadd.f32 %v8535, %v8536
  %v8538 = vsel %vm27, %v8452, 0.0
  %v8539 = vadd.f32 %v8537, %v8538
  %v8540 = vsel %vm27, %v8453, 0.0
  %v8541 = vadd.f32 %v8539, %v8540
  %v8542 = vsel %vm27, %v8454, 0.0
  %v8543 = vadd.f32 %v8541, %v8542
  %v8544 = vsel %vm27, %v8455, 0.0
  %v8545 = vadd.f32 %v8543, %v8544
  %v8546 = vsel %vm27, %v8456, 0.0
  %v8547 = vadd.f32 %v8545, %v8546
  %v8548 = vsel %vm27, %v8457, 0.0
  %v8549 = vadd.f32 %v8547, %v8548
  %v8550 = vsel %vm27, %v8458, 0.0
  %v8551 = vadd.f32 %v8549, %v8550
  %v8552 = vsel %vm27, %v8459, 0.0
  %v8553 = vadd.f32 %v8551, %v8552
  %v8554 = vsel %vm27, %v8460, 0.0
  %v8555 = vadd.f32 %v8553, %v8554
  %v8556 = vsel %vm27, %v8461, 0.0
  %v8557 = vadd.f32 %v8555, %v8556
  %v8558 = vsel %vm27, %v8462, 0.0
  %v8559 = vadd.f32 %v8557, %v8558
  %v8560 = vsel %vm27, %v8463, 0.0
  %v8561 = vadd.f32 %v8559, %v8560
  %v8562 = vsel %vm27, %v8464, 0.0
  %v8563 = vadd.f32 %v8561, %v8562
  %v8564 = vsel %vm27, %v8465, 0.0
  %v8565 = vadd.f32 %v8563, %v8564
  %v8566 = vsel %vm27, %v8466, 0.0
  %v8567 = vadd.f32 %v8565, %v8566
  %v8568 = vsel %vm27, %v8467, 0.0
  %v8569 = vadd.f32 %v8567, %v8568
  %v8570 = vsel %vm27, %v8468, 0.0
  %v8571 = vadd.f32 %v8569, %v8570
  %v8572 = vsel %vm27, %v8469, 0.0
  %v8573 = vadd.f32 %v8571, %v8572
  %v8574 = vsel %vm27, %v8470, 0.0
  %v8575 = vadd.f32 %v8573, %v8574
  %v8576 = vsel %vm27, %v8471, 0.0
  %v8577 = vadd.f32 %v8575, %v8576
  %v8578 = vsel %vm27, %v8472, 0.0
  %v8579 = vadd.f32 %v8577, %v8578
  %v8580 = vsel %vm27, %v8473, 0.0
  %v8581 = vadd.f32 %v8579, %v8580
  %v8582 = vsel %vm27, %v8474, 0.0
  %v8583 = vadd.f32 %v8581, %v8582
  %v8584 = vsel %vm27, %v8475, 0.0
  %v8585 = vadd.f32 %v8583, %v8584
  %v8586 = vsel %vm27, %v8476, 0.0
  %v8587 = vadd.f32 %v8585, %v8586
  %v8588 = vsel %vm27, %v8477, 0.0
  %v8589 = vadd.f32 %v8587, %v8588
  %v8590 = vsel %vm27, %v8478, 0.0
  %v8591 = vadd.f32 %v8589, %v8590
  %v8592 = vsel %vm27, %v8479, 0.0
  %v8593 = vadd.f32 %v8591, %v8592
  %v8594 = vsel %vm27, %v8480, 0.0
  %v8595 = vadd.f32 %v8593, %v8594
  %v8596 = vsel %vm27, %v8481, 0.0
  %v8597 = vadd.f32 %v8595, %v8596
  %v8598 = vsel %vm27, %v8482, 0.0
  %v8599 = vadd.f32 %v8597, %v8598
  %v8600 = vsel %vm27, %v8483, 0.0
  %v8601 = vadd.f32 %v8599, %v8600
  %v8602 = vsel %vm27, %v8484, 0.0
  %v8603 = vadd.f32 %v8601, %v8602
  %v8604 = vsel %vm27, %v8485, 0.0
  %v8605 = vadd.f32 %v8603, %v8604
  %v8606 = vsel %vm27, %v8486, 0.0
  %v8607 = vadd.f32 %v8605, %v8606
  %v8608 = vsel %vm27, %v8487, 0.0
  %v8609 = vadd.f32 %v8607, %v8608
  %v8610 = vsel %vm27, %v8488, 0.0
  %v8611 = vadd.f32 %v8609, %v8610
  %v8612 = vsel %vm27, %v8489, 0.0
  %v8613 = vadd.f32 %v8611, %v8612
  %v8614 = vsel %vm27, %v8490, 0.0
  %v8615 = vadd.f32 %v8613, %v8614
  %v8616 = vsel %vm27, %v8491, 0.0
  %v8617 = vadd.f32 %v8615, %v8616
  %v8618 = vsel %vm27, %v8492, 0.0
  %v8619 = vadd.f32 %v8617, %v8618
  %v8620 = vrot.slane %v8619, 4
  %v8621 = vadd.f32 %v8619, %v8620
  %v8622 = vrot.slane %v8621, 2
  %v8623 = vadd.f32 %v8621, %v8622
  %v8624 = vrot.slane %v8623, 1
  %v8625 = vadd.f32 %v8623, %v8624
  %v8626 = vmul.f32 %v8625, 0.001953125
  %v8627 = vmul.f32 %v8428, %v8428
  %v8628 = vsub.f32 %v8626, %v8627
  %v8629 = vmax.f32 %v8628, 0.0
  %v8630 = vld [vmem:[%s5] sm:$0x1]
  %v8631 = vadd.f32 %v8629, 1e-05
  %v8632 = vrsqrt.pop %v8631
  %v8633 = vmul.f32 %v8630, %v8632
  %v8634 = vld [vmem:[%s6] sm:$0x1]
  %v8635 = vmul.f32 %v8428, %v8633
  %v8636 = vsub.f32 %v8634, %v8635
  %v8638 = vlaneseq
  %v8639 = vshrl.u32 %v8638, 7
  %v8640 = vsub.s32 0, %v8639
  %v8641 = vrot.slane %v8633, %v8640
  %v8643 = vmul.f32 %v8041, %v8641
  %v8644 = vmul.f32 %v8044, %v8641
  %v8645 = vmul.f32 %v8049, %v8641
  %v8646 = vmul.f32 %v8052, %v8641
  %v8647 = vmul.f32 %v8057, %v8641
  %v8648 = vmul.f32 %v8060, %v8641
  %v8649 = vmul.f32 %v8065, %v8641
  %v8650 = vmul.f32 %v8068, %v8641
  %v8651 = vmul.f32 %v8073, %v8641
  %v8652 = vmul.f32 %v8076, %v8641
  %v8653 = vmul.f32 %v8081, %v8641
  %v8654 = vmul.f32 %v8084, %v8641
  %v8655 = vmul.f32 %v8089, %v8641
  %v8656 = vmul.f32 %v8092, %v8641
  %v8657 = vmul.f32 %v8097, %v8641
  %v8658 = vmul.f32 %v8100, %v8641
  %v8659 = vmul.f32 %v8105, %v8641
  %v8660 = vmul.f32 %v8108, %v8641
  %v8661 = vmul.f32 %v8113, %v8641
  %v8662 = vmul.f32 %v8116, %v8641
  %v8663 = vmul.f32 %v8121, %v8641
  %v8664 = vmul.f32 %v8124, %v8641
  %v8665 = vmul.f32 %v8129, %v8641
  %v8666 = vmul.f32 %v8132, %v8641
  %v8667 = vmul.f32 %v8137, %v8641
  %v8668 = vmul.f32 %v8140, %v8641
  %v8669 = vmul.f32 %v8145, %v8641
  %v8670 = vmul.f32 %v8148, %v8641
  %v8671 = vmul.f32 %v8153, %v8641
  %v8672 = vmul.f32 %v8156, %v8641
  %v8673 = vmul.f32 %v8161, %v8641
  %v8674 = vmul.f32 %v8164, %v8641
  %v8675 = vmul.f32 %v8169, %v8641
  %v8676 = vmul.f32 %v8172, %v8641
  %v8677 = vmul.f32 %v8177, %v8641
  %v8678 = vmul.f32 %v8180, %v8641
  %v8679 = vmul.f32 %v8185, %v8641
  %v8680 = vmul.f32 %v8188, %v8641
  %v8681 = vmul.f32 %v8193, %v8641
  %v8682 = vmul.f32 %v8196, %v8641
  %v8683 = vmul.f32 %v8201, %v8641
  %v8684 = vmul.f32 %v8204, %v8641
  %v8685 = vmul.f32 %v8209, %v8641
  %v8686 = vmul.f32 %v8212, %v8641
  %v8687 = vmul.f32 %v8217, %v8641
  %v8688 = vmul.f32 %v8220, %v8641
  %v8689 = vmul.f32 %v8225, %v8641
  %v8690 = vmul.f32 %v8228, %v8641
  %v8691 = vmul.f32 %v8233, %v8641
  %v8692 = vmul.f32 %v8236, %v8641
  %v8693 = vmul.f32 %v8241, %v8641
  %v8694 = vmul.f32 %v8244, %v8641
  %v8695 = vmul.f32 %v8249, %v8641
  %v8696 = vmul.f32 %v8252, %v8641
  %v8697 = vmul.f32 %v8257, %v8641
  %v8698 = vmul.f32 %v8260, %v8641
  %v8699 = vmul.f32 %v8265, %v8641
  %v8700 = vmul.f32 %v8268, %v8641
  %v8701 = vmul.f32 %v8273, %v8641
  %v8702 = vmul.f32 %v8276, %v8641
  %v8703 = vmul.f32 %v8281, %v8641
  %v8704 = vmul.f32 %v8284, %v8641
  %v8705 = vmul.f32 %v8289, %v8641
  %v8706 = vmul.f32 %v8292, %v8641
  %v8708 = vlaneseq
  %v8709 = vshrl.u32 %v8708, 7
  %v8710 = vsub.s32 0, %v8709
  %v8711 = vrot.slane %v8636, %v8710
  %v8713 = vadd.f32 %v8643, %v8711
  %v8714 = vadd.f32 %v8644, %v8711
  %v8715 = vadd.f32 %v8645, %v8711
  %v8716 = vadd.f32 %v8646, %v8711
  %v8717 = vadd.f32 %v8647, %v8711
  %v8718 = vadd.f32 %v8648, %v8711
  %v8719 = vadd.f32 %v8649, %v8711
  %v8720 = vadd.f32 %v8650, %v8711
  %v8721 = vadd.f32 %v8651, %v8711
  %v8722 = vadd.f32 %v8652, %v8711
  %v8723 = vadd.f32 %v8653, %v8711
  %v8724 = vadd.f32 %v8654, %v8711
  %v8725 = vadd.f32 %v8655, %v8711
  %v8726 = vadd.f32 %v8656, %v8711
  %v8727 = vadd.f32 %v8657, %v8711
  %v8728 = vadd.f32 %v8658, %v8711
  %v8729 = vadd.f32 %v8659, %v8711
  %v8730 = vadd.f32 %v8660, %v8711
  %v8731 = vadd.f32 %v8661, %v8711
  %v8732 = vadd.f32 %v8662, %v8711
  %v8733 = vadd.f32 %v8663, %v8711
  %v8734 = vadd.f32 %v8664, %v8711
  %v8735 = vadd.f32 %v8665, %v8711
  %v8736 = vadd.f32 %v8666, %v8711
  %v8737 = vadd.f32 %v8667, %v8711
  %v8738 = vadd.f32 %v8668, %v8711
  %v8739 = vadd.f32 %v8669, %v8711
  %v8740 = vadd.f32 %v8670, %v8711
  %v8741 = vadd.f32 %v8671, %v8711
  %v8742 = vadd.f32 %v8672, %v8711
  %v8743 = vadd.f32 %v8673, %v8711
  %v8744 = vadd.f32 %v8674, %v8711
  %v8745 = vadd.f32 %v8675, %v8711
  %v8746 = vadd.f32 %v8676, %v8711
  %v8747 = vadd.f32 %v8677, %v8711
  %v8748 = vadd.f32 %v8678, %v8711
  %v8749 = vadd.f32 %v8679, %v8711
  %v8750 = vadd.f32 %v8680, %v8711
  %v8751 = vadd.f32 %v8681, %v8711
  %v8752 = vadd.f32 %v8682, %v8711
  %v8753 = vadd.f32 %v8683, %v8711
  %v8754 = vadd.f32 %v8684, %v8711
  %v8755 = vadd.f32 %v8685, %v8711
  %v8756 = vadd.f32 %v8686, %v8711
  %v8757 = vadd.f32 %v8687, %v8711
  %v8758 = vadd.f32 %v8688, %v8711
  %v8759 = vadd.f32 %v8689, %v8711
  %v8760 = vadd.f32 %v8690, %v8711
  %v8761 = vadd.f32 %v8691, %v8711
  %v8762 = vadd.f32 %v8692, %v8711
  %v8763 = vadd.f32 %v8693, %v8711
  %v8764 = vadd.f32 %v8694, %v8711
  %v8765 = vadd.f32 %v8695, %v8711
  %v8766 = vadd.f32 %v8696, %v8711
  %v8767 = vadd.f32 %v8697, %v8711
  %v8768 = vadd.f32 %v8698, %v8711
  %v8769 = vadd.f32 %v8699, %v8711
  %v8770 = vadd.f32 %v8700, %v8711
  %v8771 = vadd.f32 %v8701, %v8711
  %v8772 = vadd.f32 %v8702, %v8711
  %v8773 = vadd.f32 %v8703, %v8711
  %v8774 = vadd.f32 %v8704, %v8711
  %v8775 = vadd.f32 %v8705, %v8711
  %v8776 = vadd.f32 %v8706, %v8711
  %v8777 = vld [vmem:[%s0] sm:$0xff]
  %v8778 = vld [vmem:[%s0 + $0x8] sm:$0xff]
  %v8779 = vld [vmem:[%s0 + $0x10] sm:$0xff]
  %v8780 = vld [vmem:[%s0 + $0x18] sm:$0xff]
  %v8781 = vld [vmem:[%s0 + $0x20] sm:$0xff]
  %v8782 = vld [vmem:[%s0 + $0x28] sm:$0xff]
  %v8783 = vld [vmem:[%s0 + $0x30] sm:$0xff]
  %v8784 = vld [vmem:[%s0 + $0x38] sm:$0xff]
  %v8785 = vld [vmem:[%s0 + $0x40] sm:$0xff]
  %v8786 = vld [vmem:[%s0 + $0x48] sm:$0xff]
  %v8787 = vld [vmem:[%s0 + $0x50] sm:$0xff]
  %v8788 = vld [vmem:[%s0 + $0x58] sm:$0xff]
  %v8789 = vld [vmem:[%s0 + $0x60] sm:$0xff]
  %v8790 = vld [vmem:[%s0 + $0x68] sm:$0xff]
  %v8791 = vld [vmem:[%s0 + $0x70] sm:$0xff]
  %v8792 = vld [vmem:[%s0 + $0x78] sm:$0xff]
  %v8793 = vld [vmem:[%s0 + $0x80] sm:$0xff]
  %v8794 = vld [vmem:[%s0 + $0x88] sm:$0xff]
  %v8795 = vld [vmem:[%s0 + $0x90] sm:$0xff]
  %v8796 = vld [vmem:[%s0 + $0x98] sm:$0xff]
  %v8797 = vld [vmem:[%s0 + $0xa0] sm:$0xff]
  %v8798 = vld [vmem:[%s0 + $0xa8] sm:$0xff]
  %v8799 = vld [vmem:[%s0 + $0xb0] sm:$0xff]
  %v8800 = vld [vmem:[%s0 + $0xb8] sm:$0xff]
  %v8801 = vld [vmem:[%s0 + $0xc0] sm:$0xff]
  %v8802 = vld [vmem:[%s0 + $0xc8] sm:$0xff]
  %v8803 = vld [vmem:[%s0 + $0xd0] sm:$0xff]
  %v8804 = vld [vmem:[%s0 + $0xd8] sm:$0xff]
  %v8805 = vld [vmem:[%s0 + $0xe0] sm:$0xff]
  %v8806 = vld [vmem:[%s0 + $0xe8] sm:$0xff]
  %v8807 = vld [vmem:[%s0 + $0xf0] sm:$0xff]
  %v8808 = vld [vmem:[%s0 + $0xf8] sm:$0xff]
  %v8809 = vld [vmem:[%s0 + $0x100] sm:$0xff]
  %v8810 = vld [vmem:[%s0 + $0x108] sm:$0xff]
  %v8811 = vld [vmem:[%s0 + $0x110] sm:$0xff]
  %v8812 = vld [vmem:[%s0 + $0x118] sm:$0xff]
  %v8813 = vld [vmem:[%s0 + $0x120] sm:$0xff]
  %v8814 = vld [vmem:[%s0 + $0x128] sm:$0xff]
  %v8815 = vld [vmem:[%s0 + $0x130] sm:$0xff]
  %v8816 = vld [vmem:[%s0 + $0x138] sm:$0xff]
  %v8817 = vld [vmem:[%s0 + $0x140] sm:$0xff]
  %v8818 = vld [vmem:[%s0 + $0x148] sm:$0xff]
  %v8819 = vld [vmem:[%s0 + $0x150] sm:$0xff]
  %v8820 = vld [vmem:[%s0 + $0x158] sm:$0xff]
  %v8821 = vld [vmem:[%s0 + $0x160] sm:$0xff]
  %v8822 = vld [vmem:[%s0 + $0x168] sm:$0xff]
  %v8823 = vld [vmem:[%s0 + $0x170] sm:$0xff]
  %v8824 = vld [vmem:[%s0 + $0x178] sm:$0xff]
  %v8825 = vld [vmem:[%s0 + $0x180] sm:$0xff]
  %v8826 = vld [vmem:[%s0 + $0x188] sm:$0xff]
  %v8827 = vld [vmem:[%s0 + $0x190] sm:$0xff]
  %v8828 = vld [vmem:[%s0 + $0x198] sm:$0xff]
  %v8829 = vld [vmem:[%s0 + $0x1a0] sm:$0xff]
  %v8830 = vld [vmem:[%s0 + $0x1a8] sm:$0xff]
  %v8831 = vld [vmem:[%s0 + $0x1b0] sm:$0xff]
  %v8832 = vld [vmem:[%s0 + $0x1b8] sm:$0xff]
  %v8833 = vld [vmem:[%s0 + $0x1c0] sm:$0xff]
  %v8834 = vld [vmem:[%s0 + $0x1c8] sm:$0xff]
  %v8835 = vld [vmem:[%s0 + $0x1d0] sm:$0xff]
  %v8836 = vld [vmem:[%s0 + $0x1d8] sm:$0xff]
  %v8837 = vld [vmem:[%s0 + $0x1e0] sm:$0xff]
  %v8838 = vld [vmem:[%s0 + $0x1e8] sm:$0xff]
  %v8839 = vld [vmem:[%s0 + $0x1f0] sm:$0xff]
  %v8840 = vld [vmem:[%s0 + $0x1f8] sm:$0xff]
  %v8841 = vadd.f32 %v8713, %v8777
  %v8842 = vadd.f32 %v8714, %v8778
  %v8843 = vadd.f32 %v8715, %v8779
  %v8844 = vadd.f32 %v8716, %v8780
  %v8845 = vadd.f32 %v8717, %v8781
  %v8846 = vadd.f32 %v8718, %v8782
  %v8847 = vadd.f32 %v8719, %v8783
  %v8848 = vadd.f32 %v8720, %v8784
  %v8849 = vadd.f32 %v8721, %v8785
  %v8850 = vadd.f32 %v8722, %v8786
  %v8851 = vadd.f32 %v8723, %v8787
  %v8852 = vadd.f32 %v8724, %v8788
  %v8853 = vadd.f32 %v8725, %v8789
  %v8854 = vadd.f32 %v8726, %v8790
  %v8855 = vadd.f32 %v8727, %v8791
  %v8856 = vadd.f32 %v8728, %v8792
  %v8857 = vadd.f32 %v8729, %v8793
  %v8858 = vadd.f32 %v8730, %v8794
  %v8859 = vadd.f32 %v8731, %v8795
  %v8860 = vadd.f32 %v8732, %v8796
  %v8861 = vadd.f32 %v8733, %v8797
  %v8862 = vadd.f32 %v8734, %v8798
  %v8863 = vadd.f32 %v8735, %v8799
  %v8864 = vadd.f32 %v8736, %v8800
  %v8865 = vadd.f32 %v8737, %v8801
  %v8866 = vadd.f32 %v8738, %v8802
  %v8867 = vadd.f32 %v8739, %v8803
  %v8868 = vadd.f32 %v8740, %v8804
  %v8869 = vadd.f32 %v8741, %v8805
  %v8870 = vadd.f32 %v8742, %v8806
  %v8871 = vadd.f32 %v8743, %v8807
  %v8872 = vadd.f32 %v8744, %v8808
  %v8873 = vadd.f32 %v8745, %v8809
  %v8874 = vadd.f32 %v8746, %v8810
  %v8875 = vadd.f32 %v8747, %v8811
  %v8876 = vadd.f32 %v8748, %v8812
  %v8877 = vadd.f32 %v8749, %v8813
  %v8878 = vadd.f32 %v8750, %v8814
  %v8879 = vadd.f32 %v8751, %v8815
  %v8880 = vadd.f32 %v8752, %v8816
  %v8881 = vadd.f32 %v8753, %v8817
  %v8882 = vadd.f32 %v8754, %v8818
  %v8883 = vadd.f32 %v8755, %v8819
  %v8884 = vadd.f32 %v8756, %v8820
  %v8885 = vadd.f32 %v8757, %v8821
  %v8886 = vadd.f32 %v8758, %v8822
  %v8887 = vadd.f32 %v8759, %v8823
  %v8888 = vadd.f32 %v8760, %v8824
  %v8889 = vadd.f32 %v8761, %v8825
  %v8890 = vadd.f32 %v8762, %v8826
  %v8891 = vadd.f32 %v8763, %v8827
  %v8892 = vadd.f32 %v8764, %v8828
  %v8893 = vadd.f32 %v8765, %v8829
  %v8894 = vadd.f32 %v8766, %v8830
  %v8895 = vadd.f32 %v8767, %v8831
  %v8896 = vadd.f32 %v8768, %v8832
  %v8897 = vadd.f32 %v8769, %v8833
  %v8898 = vadd.f32 %v8770, %v8834
  %v8899 = vadd.f32 %v8771, %v8835
  %v8900 = vadd.f32 %v8772, %v8836
  %v8901 = vadd.f32 %v8773, %v8837
  %v8902 = vadd.f32 %v8774, %v8838
  %v8903 = vadd.f32 %v8775, %v8839
  %v8904 = vadd.f32 %v8776, %v8840
  %v8905 = vmax.f32 %v8841, 0.0
  %v8906 = vmax.f32 %v8842, 0.0
  %v8907 = vmax.f32 %v8843, 0.0
  %v8908 = vmax.f32 %v8844, 0.0
  %v8909 = vmax.f32 %v8845, 0.0
  %v8910 = vmax.f32 %v8846, 0.0
  %v8911 = vmax.f32 %v8847, 0.0
  %v8912 = vmax.f32 %v8848, 0.0
  %v8913 = vmax.f32 %v8849, 0.0
  %v8914 = vmax.f32 %v8850, 0.0
  %v8915 = vmax.f32 %v8851, 0.0
  %v8916 = vmax.f32 %v8852, 0.0
  %v8917 = vmax.f32 %v8853, 0.0
  %v8918 = vmax.f32 %v8854, 0.0
  %v8919 = vmax.f32 %v8855, 0.0
  %v8920 = vmax.f32 %v8856, 0.0
  %v8921 = vmax.f32 %v8857, 0.0
  %v8922 = vmax.f32 %v8858, 0.0
  %v8923 = vmax.f32 %v8859, 0.0
  %v8924 = vmax.f32 %v8860, 0.0
  %v8925 = vmax.f32 %v8861, 0.0
  %v8926 = vmax.f32 %v8862, 0.0
  %v8927 = vmax.f32 %v8863, 0.0
  %v8928 = vmax.f32 %v8864, 0.0
  %v8929 = vmax.f32 %v8865, 0.0
  %v8930 = vmax.f32 %v8866, 0.0
  %v8931 = vmax.f32 %v8867, 0.0
  %v8932 = vmax.f32 %v8868, 0.0
  %v8933 = vmax.f32 %v8869, 0.0
  %v8934 = vmax.f32 %v8870, 0.0
  %v8935 = vmax.f32 %v8871, 0.0
  %v8936 = vmax.f32 %v8872, 0.0
  %v8937 = vmax.f32 %v8873, 0.0
  %v8938 = vmax.f32 %v8874, 0.0
  %v8939 = vmax.f32 %v8875, 0.0
  %v8940 = vmax.f32 %v8876, 0.0
  %v8941 = vmax.f32 %v8877, 0.0
  %v8942 = vmax.f32 %v8878, 0.0
  %v8943 = vmax.f32 %v8879, 0.0
  %v8944 = vmax.f32 %v8880, 0.0
  %v8945 = vmax.f32 %v8881, 0.0
  %v8946 = vmax.f32 %v8882, 0.0
  %v8947 = vmax.f32 %v8883, 0.0
  %v8948 = vmax.f32 %v8884, 0.0
  %v8949 = vmax.f32 %v8885, 0.0
  %v8950 = vmax.f32 %v8886, 0.0
  %v8951 = vmax.f32 %v8887, 0.0
  %v8952 = vmax.f32 %v8888, 0.0
  %v8953 = vmax.f32 %v8889, 0.0
  %v8954 = vmax.f32 %v8890, 0.0
  %v8955 = vmax.f32 %v8891, 0.0
  %v8956 = vmax.f32 %v8892, 0.0
  %v8957 = vmax.f32 %v8893, 0.0
  %v8958 = vmax.f32 %v8894, 0.0
  %v8959 = vmax.f32 %v8895, 0.0
  %v8960 = vmax.f32 %v8896, 0.0
  %v8961 = vmax.f32 %v8897, 0.0
  %v8962 = vmax.f32 %v8898, 0.0
  %v8963 = vmax.f32 %v8899, 0.0
  %v8964 = vmax.f32 %v8900, 0.0
  %v8965 = vmax.f32 %v8901, 0.0
  %v8966 = vmax.f32 %v8902, 0.0
  %v8967 = vmax.f32 %v8903, 0.0
  %v8968 = vmax.f32 %v8904, 0.0
  %8969 = vst.msk [vmem:[%s7] sm:$0xff] %vm27, %v8905
  %8970 = vst.msk [vmem:[%s7 + $0x8] sm:$0xff] %vm27, %v8906
  %8971 = vst.msk [vmem:[%s7 + $0x10] sm:$0xff] %vm27, %v8907
  %8972 = vst.msk [vmem:[%s7 + $0x18] sm:$0xff] %vm27, %v8908
  %8973 = vst.msk [vmem:[%s7 + $0x20] sm:$0xff] %vm27, %v8909
  %8974 = vst.msk [vmem:[%s7 + $0x28] sm:$0xff] %vm27, %v8910
  %8975 = vst.msk [vmem:[%s7 + $0x30] sm:$0xff] %vm27, %v8911
  %8976 = vst.msk [vmem:[%s7 + $0x38] sm:$0xff] %vm27, %v8912
  %8977 = vst.msk [vmem:[%s7 + $0x40] sm:$0xff] %vm27, %v8913
  %8978 = vst.msk [vmem:[%s7 + $0x48] sm:$0xff] %vm27, %v8914
  %8979 = vst.msk [vmem:[%s7 + $0x50] sm:$0xff] %vm27, %v8915
  %8980 = vst.msk [vmem:[%s7 + $0x58] sm:$0xff] %vm27, %v8916
  %8981 = vst.msk [vmem:[%s7 + $0x60] sm:$0xff] %vm27, %v8917
  %8982 = vst.msk [vmem:[%s7 + $0x68] sm:$0xff] %vm27, %v8918
  %8983 = vst.msk [vmem:[%s7 + $0x70] sm:$0xff] %vm27, %v8919
  %8984 = vst.msk [vmem:[%s7 + $0x78] sm:$0xff] %vm27, %v8920
  %8985 = vst.msk [vmem:[%s7 + $0x80] sm:$0xff] %vm27, %v8921
  %8986 = vst.msk [vmem:[%s7 + $0x88] sm:$0xff] %vm27, %v8922
  %8987 = vst.msk [vmem:[%s7 + $0x90] sm:$0xff] %vm27, %v8923
  %8988 = vst.msk [vmem:[%s7 + $0x98] sm:$0xff] %vm27, %v8924
  %8989 = vst.msk [vmem:[%s7 + $0xa0] sm:$0xff] %vm27, %v8925
  %8990 = vst.msk [vmem:[%s7 + $0xa8] sm:$0xff] %vm27, %v8926
  %8991 = vst.msk [vmem:[%s7 + $0xb0] sm:$0xff] %vm27, %v8927
  %8992 = vst.msk [vmem:[%s7 + $0xb8] sm:$0xff] %vm27, %v8928
  %8993 = vst.msk [vmem:[%s7 + $0xc0] sm:$0xff] %vm27, %v8929
  %8994 = vst.msk [vmem:[%s7 + $0xc8] sm:$0xff] %vm27, %v8930
  %8995 = vst.msk [vmem:[%s7 + $0xd0] sm:$0xff] %vm27, %v8931
  %8996 = vst.msk [vmem:[%s7 + $0xd8] sm:$0xff] %vm27, %v8932
  %8997 = vst.msk [vmem:[%s7 + $0xe0] sm:$0xff] %vm27, %v8933
  %8998 = vst.msk [vmem:[%s7 + $0xe8] sm:$0xff] %vm27, %v8934
  %8999 = vst.msk [vmem:[%s7 + $0xf0] sm:$0xff] %vm27, %v8935
  %9000 = vst.msk [vmem:[%s7 + $0xf8] sm:$0xff] %vm27, %v8936
  %9001 = vst.msk [vmem:[%s7 + $0x100] sm:$0xff] %vm27, %v8937
  %9002 = vst.msk [vmem:[%s7 + $0x108] sm:$0xff] %vm27, %v8938
  %9003 = vst.msk [vmem:[%s7 + $0x110] sm:$0xff] %vm27, %v8939
  %9004 = vst.msk [vmem:[%s7 + $0x118] sm:$0xff] %vm27, %v8940
  %9005 = vst.msk [vmem:[%s7 + $0x120] sm:$0xff] %vm27, %v8941
  %9006 = vst.msk [vmem:[%s7 + $0x128] sm:$0xff] %vm27, %v8942
  %9007 = vst.msk [vmem:[%s7 + $0x130] sm:$0xff] %vm27, %v8943
  %9008 = vst.msk [vmem:[%s7 + $0x138] sm:$0xff] %vm27, %v8944
  %9009 = vst.msk [vmem:[%s7 + $0x140] sm:$0xff] %vm27, %v8945
  %9010 = vst.msk [vmem:[%s7 + $0x148] sm:$0xff] %vm27, %v8946
  %9011 = vst.msk [vmem:[%s7 + $0x150] sm:$0xff] %vm27, %v8947
  %9012 = vst.msk [vmem:[%s7 + $0x158] sm:$0xff] %vm27, %v8948
  %9013 = vst.msk [vmem:[%s7 + $0x160] sm:$0xff] %vm27, %v8949
  %9014 = vst.msk [vmem:[%s7 + $0x168] sm:$0xff] %vm27, %v8950
  %9015 = vst.msk [vmem:[%s7 + $0x170] sm:$0xff] %vm27, %v8951
  %9016 = vst.msk [vmem:[%s7 + $0x178] sm:$0xff] %vm27, %v8952
  %9017 = vst.msk [vmem:[%s7 + $0x180] sm:$0xff] %vm27, %v8953
  %9018 = vst.msk [vmem:[%s7 + $0x188] sm:$0xff] %vm27, %v8954
  %9019 = vst.msk [vmem:[%s7 + $0x190] sm:$0xff] %vm27, %v8955
  %9020 = vst.msk [vmem:[%s7 + $0x198] sm:$0xff] %vm27, %v8956
  %9021 = vst.msk [vmem:[%s7 + $0x1a0] sm:$0xff] %vm27, %v8957
  %9022 = vst.msk [vmem:[%s7 + $0x1a8] sm:$0xff] %vm27, %v8958
  %9023 = vst.msk [vmem:[%s7 + $0x1b0] sm:$0xff] %vm27, %v8959
  %9024 = vst.msk [vmem:[%s7 + $0x1b8] sm:$0xff] %vm27, %v8960
  %9025 = vst.msk [vmem:[%s7 + $0x1c0] sm:$0xff] %vm27, %v8961
  %9026 = vst.msk [vmem:[%s7 + $0x1c8] sm:$0xff] %vm27, %v8962
  %9027 = vst.msk [vmem:[%s7 + $0x1d0] sm:$0xff] %vm27, %v8963
  %9028 = vst.msk [vmem:[%s7 + $0x1d8] sm:$0xff] %vm27, %v8964
  %9029 = vst.msk [vmem:[%s7 + $0x1e0] sm:$0xff] %vm27, %v8965
  %9030 = vst.msk [vmem:[%s7 + $0x1e8] sm:$0xff] %vm27, %v8966
  %9031 = vst.msk [vmem:[%s7 + $0x1f0] sm:$0xff] %vm27, %v8967
  %9032 = vst.msk [vmem:[%s7 + $0x1f8] sm:$0xff] %vm27, %v8968
  // Predicated region
  $region30: #{basic_block.1} parent=0 // pred_check
    _
  $region31: #{basic_block.1} parent=0 // pred_check_branch
    %9034 = sbr.rel (0) target = $region33
  $region32: #{basic_block.1} parent=0 // pred_region
    _
  $region33: #{basic_block.1} parent=0 // pred_fallthru
    _
  // Predicated region
  $region34: #{basic_block.1} parent=0 // pred_check
    _
  $region35: #{basic_block.1} parent=0 // pred_check_branch
    %9036 = sbr.rel (0) target = $region37
  $region36: #{basic_block.1} parent=0 // pred_region
    _
  $region37: #{basic_block.1} parent=0 // pred_fallthru
    _

</llo_original>
